<compile_context>
chip_gen: v5e
topology: v5e:2x2
jax: 0.10.0
libtpu: 0.0.40
codegen_flags: <defaults>
</compile_context>

<pallas_src>
import jax
import jax.numpy as jnp
from jax.experimental import pallas as pl
from jax.experimental.pallas import tpu as pltpu


# ---------------------------------------------------------------------------
# Fused residual-block kernel: one batch tile per grid step; each conv is a
# single K = 9*C MXU dot against an im2col matrix staged in VMEM.
# ---------------------------------------------------------------------------
def _resblock_kernel(x_ref, w1_ref, b1_ref, w2_ref, b2_ref, o_ref,
                     xpad_ref, hpad_ref, col_ref):
    tb, hh, ww, c = x_ref.shape            # static tile shape (NHWC, bf16)
    m = tb * hh * ww

    x = x_ref[...]                         # (tb, H, W, C) bf16

    # Zero ONLY the 1-pixel halo of the padded scratches; the interiors are
    # fully overwritten below every step.
    zrow = jnp.zeros((tb, 1, ww + 2, c), xpad_ref.dtype)
    zcol = jnp.zeros((tb, hh + 2, 1, c), xpad_ref.dtype)
    for pad in (xpad_ref, hpad_ref):
        pad[:, 0:1, :, :] = zrow
        pad[:, hh + 1:hh + 2, :, :] = zrow
        pad[:, :, 0:1, :] = zcol
        pad[:, :, ww + 1:ww + 2, :] = zcol

    xpad_ref[:, 1:hh + 1, 1:ww + 1, :] = x

    # ---- conv1 (BN scale pre-folded into w1): im2col + ONE MXU dot ----------
    for dy in range(3):
        for dx in range(3):
            t = dy * 3 + dx
            col_ref[:, t * c:(t + 1) * c] = (
                xpad_ref[:, dy:dy + hh, dx:dx + ww, :].reshape(m, c))
    h = jnp.dot(col_ref[...], w1_ref[...], preferred_element_type=jnp.float32)
    h = jnp.maximum(h + b1_ref[...], 0.0)                      # (m, C) f32

    # Intermediate activation never leaves VMEM (bf16 for the second MXU pass).
    hpad_ref[:, 1:hh + 1, 1:ww + 1, :] = (
        h.astype(hpad_ref.dtype).reshape(tb, hh, ww, c))

    # ---- conv2 (folded BN): im2col (scratch reused) + ONE dot + skip + ReLU -
    for dy in range(3):
        for dx in range(3):
            t = dy * 3 + dx
            col_ref[:, t * c:(t + 1) * c] = (
                hpad_ref[:, dy:dy + hh, dx:dx + ww, :].reshape(m, c))
    acc = jnp.dot(col_ref[...], w2_ref[...], preferred_element_type=jnp.float32)
    out = acc + b2_ref[...] + x.astype(jnp.float32).reshape(m, c)   # f32 math
    o_ref[...] = jnp.maximum(out, 0.0).reshape(tb, hh, ww, c).astype(o_ref.dtype)


# ---------------------------------------------------------------------------
# Batch-tile selection: divisor of N (avoids a padded copy of x), big blocks,
# but keep >= min_steps grid steps so pipelining / megacore sharding engage.
# ---------------------------------------------------------------------------
def _pick_batch_tile(n, per_sample_bytes, *, target_bytes=512 << 10, min_steps=4):
    divisors = [d for d in range(1, n + 1) if n % d == 0]
    cands = [d for d in divisors if n // d >= min_steps] or divisors
    fitting = [d for d in cands if d * per_sample_bytes <= target_bytes]
    return max(fitting) if fitting else min(cands)


# ---------------------------------------------------------------------------
# NHWC / bf16 entry point (the fast path: no layout or dtype round trips)
# ---------------------------------------------------------------------------
def residual_block_nhwc(x, w1, b1, w2, b2, *, batch_tile=None):
    """relu( BN2(conv2( relu(BN1(conv1(x))) )) + x ), BN folded (eval mode).

    x      : (N, H, W, C) bf16 activations (C ideally a multiple of 128).
    w1/w2  : (9*C, C) bf16 conv weights with the BN scale folded in
             (row order = (ky, kx, cin), i.e. HWIO flattened).
    b1/b2  : (1, C) f32 folded BN biases.
    """
    if x.dtype != jnp.bfloat16:
        x = x.astype(jnp.bfloat16)
    n, hh, ww, c = x.shape
    assert w1.shape == (9 * c, c) and w2.shape == (9 * c, c)
    b1 = jnp.asarray(b1, jnp.float32).reshape(1, c)
    b2 = jnp.asarray(b2, jnp.float32).reshape(1, c)

    per_sample = hh * ww * c * 2                       # bf16 activation bytes
    tb = batch_tile or _pick_batch_tile(n, per_sample)
    assert n % tb == 0, "batch_tile must divide N (avoids a padded copy of x)"
    m = tb * hh * ww

    act_spec = pl.BlockSpec((tb, hh, ww, c), lambda i: (i, 0, 0, 0))
    w_spec = pl.BlockSpec((9 * c, c), lambda i: (0, 0))
    b_spec = pl.BlockSpec((1, c), lambda i: (0, 0))

    # Explicit VMEM budget: double-buffered in/out blocks + weights, plus the
    # two padded scratches and the shared im2col scratch, with headroom.
    est = (4 * tb * hh * ww * c * 2                    # in + out blocks x2 bufs
           + 2 * 2 * (9 * c * c * 2)                   # both weights x2 bufs
           + 2 * tb * (hh + 2) * (ww + 2) * c * 2      # xpad + hpad
           + m * 9 * c * 2                             # im2col scratch
           + (1 << 20))                                # biases + headroom
    vmem_limit = int(min(max(2 * est, 16 << 20), 32 << 20))   # safe on v5e-v7x

    return pl.pallas_call(
        _resblock_kernel,
        out_shape=jax.ShapeDtypeStruct((n, hh, ww, c), jnp.bfloat16),
        grid=(n // tb,),
        in_specs=[act_spec, w_spec, b_spec, w_spec, b_spec],
        out_specs=act_spec,
        scratch_shapes=[
            pltpu.VMEM((tb, hh + 2, ww + 2, c), jnp.bfloat16),   # padded x
            pltpu.VMEM((tb, hh + 2, ww + 2, c), jnp.bfloat16),   # padded h1
            pltpu.VMEM((m, 9 * c), jnp.bfloat16),                # shared im2col
        ],
        compiler_params=pltpu.CompilerParams(
            dimension_semantics=("parallel",),    # batch tiles are independent
            vmem_limit_bytes=vmem_limit,
        ),
    )(x, w1, b1, w2, b2)


# ---------------------------------------------------------------------------
# PyTorch-layout (NCHW, f32) convenience wrapper: one fused transpose+cast
# each way.  A bf16/NHWC pipeline should call residual_block_nhwc directly.
# ---------------------------------------------------------------------------
def residual_block_nchw(x_nchw, w1, b1, w2, b2, *, batch_tile=None):
    x = jnp.transpose(x_nchw, (0, 2, 3, 1)).astype(jnp.bfloat16)
    y = residual_block_nhwc(x, w1, b1, w2, b2, batch_tile=batch_tile)
    return jnp.transpose(y, (0, 3, 1, 2)).astype(jnp.float32)


# ---------------------------------------------------------------------------
# BN folding (CenteredBatchNorm2d: gamma fixed at 1, beta trainable, eval mode)
# ---------------------------------------------------------------------------
def fold_bn_into_conv(w_hwio, beta, running_mean, running_var, eps=1e-5):
    scale = jax.lax.rsqrt(running_var + eps)                     # gamma == 1
    w = (w_hwio * scale[None, None, None, :]).astype(jnp.bfloat16)
    b = (beta - running_mean * scale).astype(jnp.float32)
    kh, kw, ci, co = w_hwio.shape
    return w.reshape(kh * kw * ci, co), b.reshape(1, co)         # (9C, C), (1, C)


# ---------------------------------------------------------------------------
# Pure-JAX reference (same folded bf16 weights / f32 accumulation semantics)
# ---------------------------------------------------------------------------
def _reference_nchw(x_nchw, w1k, b1, w2k, b2):
    c = x_nchw.shape[1]
    w1 = w1k.reshape(3, 3, c, c)
    w2 = w2k.reshape(3, 3, c, c)
    dn = ("NHWC", "HWIO", "NHWC")
    x = jnp.transpose(x_nchw, (0, 2, 3, 1)).astype(jnp.bfloat16)
    h = jax.lax.conv_general_dilated(x, w1, (1, 1), "SAME", dimension_numbers=dn,
                                     preferred_element_type=jnp.float32)
    h = jnp.maximum(h + b1.reshape(1, 1, 1, -1), 0.0).astype(jnp.bfloat16)
    o = jax.lax.conv_general_dilated(h, w2, (1, 1), "SAME", dimension_numbers=dn,
                                     preferred_element_type=jnp.float32)
    o = jnp.maximum(o + b2.reshape(1, 1, 1, -1) + x.astype(jnp.float32), 0.0)
    return jnp.transpose(o, (0, 3, 1, 2))


if __name__ == "__main__":
    # Channel-minor NHWC with C = 128 keeps every block a full 128-lane tile.
    BATCH, CHANNELS, H, W = 16, 128, 8, 8

    key = jax.random.PRNGKey(0)
    ks = jax.random.split(key, 9)
    x = jax.random.normal(ks[0], (BATCH, CHANNELS, H, W), jnp.float32)

    fan_in = 3 * 3 * CHANNELS

    def conv_w(k):                                    # HWIO layout
        return (fan_in ** -0.5) * jax.random.normal(
            k, (3, 3, CHANNELS, CHANNELS), jnp.float32)

    w1, w2 = conv_w(ks[1]), conv_w(ks[2])
    beta1 = 0.1 * jax.random.normal(ks[3], (CHANNELS,), jnp.float32)
    beta2 = 0.1 * jax.random.normal(ks[4], (CHANNELS,), jnp.float32)
    mean1 = 0.05 * jax.random.normal(ks[5], (CHANNELS,), jnp.float32)
    mean2 = 0.05 * jax.random.normal(ks[6], (CHANNELS,), jnp.float32)
    var1 = 1.0 + 0.1 * jnp.abs(jax.random.normal(ks[7], (CHANNELS,), jnp.float32))
    var2 = 1.0 + 0.1 * jnp.abs(jax.random.normal(ks[8], (CHANNELS,), jnp.float32))

    fw1, fb1 = fold_bn_into_conv(w1, beta1, mean1, var1)
    fw2, fb2 = fold_bn_into_conv(w2, beta2, mean2, var2)

    fwd = jax.jit(residual_block_nchw)
    out = fwd(x, fw1, fb1, fw2, fb2)
    jax.block_until_ready(out)

    assert out.shape == (BATCH, CHANNELS, H, W)
    assert bool(jnp.all(out >= 0.0))                  # ReLU output

    ref = _reference_nchw(x, fw1, fb1, fw2, fb2)
    max_err = float(jnp.max(jnp.abs(out - ref)))
    mean_err = float(jnp.mean(jnp.abs(out - ref)))
    assert max_err < 3e-2 and mean_err < 3e-3, (
        f"error vs reference: max={max_err}, mean={mean_err}")

    print("KERNEL_OK")
</pallas_src>

<mosaic_0001>
module attributes {stable_mosaic.version = 11 : i64} {
  func.func @_resblock_kernel(%arg0: i32, %arg1: memref<4x8x8x128xbf16, #tpu.memory_space<vmem>>, %arg2: memref<1152x128xbf16, #tpu.memory_space<vmem>>, %arg3: memref<1x128xf32, #tpu.memory_space<vmem>>, %arg4: memref<1152x128xbf16, #tpu.memory_space<vmem>>, %arg5: memref<1x128xf32, #tpu.memory_space<vmem>>, %arg6: memref<4x8x8x128xbf16, #tpu.memory_space<vmem>>, %arg7: memref<4x10x10x128xbf16, #tpu.memory_space<vmem>>, %arg8: memref<4x10x10x128xbf16, #tpu.memory_space<vmem>>, %arg9: memref<256x1152xbf16, #tpu.memory_space<vmem>>) attributes {dimension_semantics = [#tpu.dimension_semantics<parallel>], iteration_bounds = array<i64: 4>, scalar_prefetch = 0 : i64, scratch_operands = 3 : i64, tpu.core_type = #tpu.core_type<tc>, window_params = [{transform_indices = @transform_0, window_bounds = array<i64: 4, 8, 8, 128>}, {pipeline_mode = #tpu.pipeline_mode<synchronous>, transform_indices = @transform_1, window_bounds = array<i64: 1152, 128>}, {pipeline_mode = #tpu.pipeline_mode<synchronous>, transform_indices = @transform_2, window_bounds = array<i64: 1, 128>}, {pipeline_mode = #tpu.pipeline_mode<synchronous>, transform_indices = @transform_3, window_bounds = array<i64: 1152, 128>}, {pipeline_mode = #tpu.pipeline_mode<synchronous>, transform_indices = @transform_4, window_bounds = array<i64: 1, 128>}, {transform_indices = @transform_5, window_bounds = array<i64: 4, 8, 8, 128>}]} {
    %c0 = arith.constant 0 : index
    %c0_0 = arith.constant 0 : index
    %c0_1 = arith.constant 0 : index
    %c0_2 = arith.constant 0 : index
    %0 = vector.load %arg1[%c0, %c0_0, %c0_1, %c0_2] : memref<4x8x8x128xbf16, #tpu.memory_space<vmem>>, vector<4x8x8x128xbf16>
    %cst = arith.constant 0.000000e+00 : bf16
    %1 = vector.broadcast %cst : bf16 to vector<4x1x10x128xbf16>
    %cst_3 = arith.constant 0.000000e+00 : bf16
    %2 = vector.broadcast %cst_3 : bf16 to vector<4x10x1x128xbf16>
    %c0_4 = arith.constant 0 : index
    %c0_5 = arith.constant 0 : index
    %c0_6 = arith.constant 0 : index
    %c0_7 = arith.constant 0 : index
    %3 = vector.load %arg7[%c0_4, %c0_5, %c0_6, %c0_7] : memref<4x10x10x128xbf16, #tpu.memory_space<vmem>>, vector<4x1x10x128xbf16>
    tpu.vector_store %arg7[%c0_4, %c0_5, %c0_6, %c0_7], %1 {strides = array<i32>} : memref<4x10x10x128xbf16, #tpu.memory_space<vmem>>, vector<4x1x10x128xbf16>,
    %c0_8 = arith.constant 0 : index
    %c9 = arith.constant 9 : index
    %c0_9 = arith.constant 0 : index
    %c0_10 = arith.constant 0 : index
    %4 = vector.load %arg7[%c0_8, %c9, %c0_9, %c0_10] : memref<4x10x10x128xbf16, #tpu.memory_space<vmem>>, vector<4x1x10x128xbf16>
    tpu.vector_store %arg7[%c0_8, %c9, %c0_9, %c0_10], %1 {strides = array<i32>} : memref<4x10x10x128xbf16, #tpu.memory_space<vmem>>, vector<4x1x10x128xbf16>,
    %c0_11 = arith.constant 0 : index
    %c0_12 = arith.constant 0 : index
    %c0_13 = arith.constant 0 : index
    %c0_14 = arith.constant 0 : index
    %5 = vector.load %arg7[%c0_11, %c0_12, %c0_13, %c0_14] : memref<4x10x10x128xbf16, #tpu.memory_space<vmem>>, vector<4x10x1x128xbf16>
    tpu.vector_store %arg7[%c0_11, %c0_12, %c0_13, %c0_14], %2 {strides = array<i32>} : memref<4x10x10x128xbf16, #tpu.memory_space<vmem>>, vector<4x10x1x128xbf16>,
    %c0_15 = arith.constant 0 : index
    %c0_16 = arith.constant 0 : index
    %c9_17 = arith.constant 9 : index
    %c0_18 = arith.constant 0 : index
    %6 = vector.load %arg7[%c0_15, %c0_16, %c9_17, %c0_18] : memref<4x10x10x128xbf16, #tpu.memory_space<vmem>>, vector<4x10x1x128xbf16>
    tpu.vector_store %arg7[%c0_15, %c0_16, %c9_17, %c0_18], %2 {strides = array<i32>} : memref<4x10x10x128xbf16, #tpu.memory_space<vmem>>, vector<4x10x1x128xbf16>,
    %c0_19 = arith.constant 0 : index
    %c0_20 = arith.constant 0 : index
    %c0_21 = arith.constant 0 : index
    %c0_22 = arith.constant 0 : index
    %7 = vector.load %arg8[%c0_19, %c0_20, %c0_21, %c0_22] : memref<4x10x10x128xbf16, #tpu.memory_space<vmem>>, vector<4x1x10x128xbf16>
    tpu.vector_store %arg8[%c0_19, %c0_20, %c0_21, %c0_22], %1 {strides = array<i32>} : memref<4x10x10x128xbf16, #tpu.memory_space<vmem>>, vector<4x1x10x128xbf16>,
    %c0_23 = arith.constant 0 : index
    %c9_24 = arith.constant 9 : index
    %c0_25 = arith.constant 0 : index
    %c0_26 = arith.constant 0 : index
    %8 = vector.load %arg8[%c0_23, %c9_24, %c0_25, %c0_26] : memref<4x10x10x128xbf16, #tpu.memory_space<vmem>>, vector<4x1x10x128xbf16>
    tpu.vector_store %arg8[%c0_23, %c9_24, %c0_25, %c0_26], %1 {strides = array<i32>} : memref<4x10x10x128xbf16, #tpu.memory_space<vmem>>, vector<4x1x10x128xbf16>,
    %c0_27 = arith.constant 0 : index
    %c0_28 = arith.constant 0 : index
    %c0_29 = arith.constant 0 : index
    %c0_30 = arith.constant 0 : index
    %9 = vector.load %arg8[%c0_27, %c0_28, %c0_29, %c0_30] : memref<4x10x10x128xbf16, #tpu.memory_space<vmem>>, vector<4x10x1x128xbf16>
    tpu.vector_store %arg8[%c0_27, %c0_28, %c0_29, %c0_30], %2 {strides = array<i32>} : memref<4x10x10x128xbf16, #tpu.memory_space<vmem>>, vector<4x10x1x128xbf16>,
    %c0_31 = arith.constant 0 : index
    %c0_32 = arith.constant 0 : index
    %c9_33 = arith.constant 9 : index
    %c0_34 = arith.constant 0 : index
    %10 = vector.load %arg8[%c0_31, %c0_32, %c9_33, %c0_34] : memref<4x10x10x128xbf16, #tpu.memory_space<vmem>>, vector<4x10x1x128xbf16>
    tpu.vector_store %arg8[%c0_31, %c0_32, %c9_33, %c0_34], %2 {strides = array<i32>} : memref<4x10x10x128xbf16, #tpu.memory_space<vmem>>, vector<4x10x1x128xbf16>,
    %c0_35 = arith.constant 0 : index
    %c1 = arith.constant 1 : index
    %c1_36 = arith.constant 1 : index
    %c0_37 = arith.constant 0 : index
    %11 = vector.load %arg7[%c0_35, %c1, %c1_36, %c0_37] : memref<4x10x10x128xbf16, #tpu.memory_space<vmem>>, vector<4x8x8x128xbf16>
    tpu.vector_store %arg7[%c0_35, %c1, %c1_36, %c0_37], %0 {strides = array<i32>} : memref<4x10x10x128xbf16, #tpu.memory_space<vmem>>, vector<4x8x8x128xbf16>,
    %c0_38 = arith.constant 0 : index
    %c0_39 = arith.constant 0 : index
    %c0_40 = arith.constant 0 : index
    %c0_41 = arith.constant 0 : index
    %12 = vector.load %arg7[%c0_38, %c0_39, %c0_40, %c0_41] : memref<4x10x10x128xbf16, #tpu.memory_space<vmem>>, vector<4x8x8x128xbf16>
    %13 = vector.shape_cast %12 : vector<4x8x8x128xbf16> to vector<256x128xbf16>
    %c0_42 = arith.constant 0 : index
    %c0_43 = arith.constant 0 : index
    %14 = vector.load %arg9[%c0_42, %c0_43] : memref<256x1152xbf16, #tpu.memory_space<vmem>>, vector<256x128xbf16>
    tpu.vector_store %arg9[%c0_42, %c0_43], %13 {strides = array<i32>} : memref<256x1152xbf16, #tpu.memory_space<vmem>>, vector<256x128xbf16>,
    %c0_44 = arith.constant 0 : index
    %c0_45 = arith.constant 0 : index
    %c1_46 = arith.constant 1 : index
    %c0_47 = arith.constant 0 : index
    %15 = vector.load %arg7[%c0_44, %c0_45, %c1_46, %c0_47] : memref<4x10x10x128xbf16, #tpu.memory_space<vmem>>, vector<4x8x8x128xbf16>
    %16 = vector.shape_cast %15 : vector<4x8x8x128xbf16> to vector<256x128xbf16>
    %c0_48 = arith.constant 0 : index
    %c128 = arith.constant 128 : index
    %17 = vector.load %arg9[%c0_48, %c128] : memref<256x1152xbf16, #tpu.memory_space<vmem>>, vector<256x128xbf16>
    tpu.vector_store %arg9[%c0_48, %c128], %16 {strides = array<i32>} : memref<256x1152xbf16, #tpu.memory_space<vmem>>, vector<256x128xbf16>,
    %c0_49 = arith.constant 0 : index
    %c0_50 = arith.constant 0 : index
    %c2 = arith.constant 2 : index
    %c0_51 = arith.constant 0 : index
    %18 = vector.load %arg7[%c0_49, %c0_50, %c2, %c0_51] : memref<4x10x10x128xbf16, #tpu.memory_space<vmem>>, vector<4x8x8x128xbf16>
    %19 = vector.shape_cast %18 : vector<4x8x8x128xbf16> to vector<256x128xbf16>
    %c0_52 = arith.constant 0 : index
    %c256 = arith.constant 256 : index
    %20 = vector.load %arg9[%c0_52, %c256] : memref<256x1152xbf16, #tpu.memory_space<vmem>>, vector<256x128xbf16>
    tpu.vector_store %arg9[%c0_52, %c256], %19 {strides = array<i32>} : memref<256x1152xbf16, #tpu.memory_space<vmem>>, vector<256x128xbf16>,
    %c0_53 = arith.constant 0 : index
    %c1_54 = arith.constant 1 : index
    %c0_55 = arith.constant 0 : index
    %c0_56 = arith.constant 0 : index
    %21 = vector.load %arg7[%c0_53, %c1_54, %c0_55, %c0_56] : memref<4x10x10x128xbf16, #tpu.memory_space<vmem>>, vector<4x8x8x128xbf16>
    %22 = vector.shape_cast %21 : vector<4x8x8x128xbf16> to vector<256x128xbf16>
    %c0_57 = arith.constant 0 : index
    %c384 = arith.constant 384 : index
    %23 = vector.load %arg9[%c0_57, %c384] : memref<256x1152xbf16, #tpu.memory_space<vmem>>, vector<256x128xbf16>
    tpu.vector_store %arg9[%c0_57, %c384], %22 {strides = array<i32>} : memref<256x1152xbf16, #tpu.memory_space<vmem>>, vector<256x128xbf16>,
    %c0_58 = arith.constant 0 : index
    %c1_59 = arith.constant 1 : index
    %c1_60 = arith.constant 1 : index
    %c0_61 = arith.constant 0 : index
    %24 = vector.load %arg7[%c0_58, %c1_59, %c1_60, %c0_61] : memref<4x10x10x128xbf16, #tpu.memory_space<vmem>>, vector<4x8x8x128xbf16>
    %25 = vector.shape_cast %24 : vector<4x8x8x128xbf16> to vector<256x128xbf16>
    %c0_62 = arith.constant 0 : index
    %c512 = arith.constant 512 : index
    %26 = vector.load %arg9[%c0_62, %c512] : memref<256x1152xbf16, #tpu.memory_space<vmem>>, vector<256x128xbf16>
    tpu.vector_store %arg9[%c0_62, %c512], %25 {strides = array<i32>} : memref<256x1152xbf16, #tpu.memory_space<vmem>>, vector<256x128xbf16>,
    %c0_63 = arith.constant 0 : index
    %c1_64 = arith.constant 1 : index
    %c2_65 = arith.constant 2 : index
    %c0_66 = arith.constant 0 : index
    %27 = vector.load %arg7[%c0_63, %c1_64, %c2_65, %c0_66] : memref<4x10x10x128xbf16, #tpu.memory_space<vmem>>, vector<4x8x8x128xbf16>
    %28 = vector.shape_cast %27 : vector<4x8x8x128xbf16> to vector<256x128xbf16>
    %c0_67 = arith.constant 0 : index
    %c640 = arith.constant 640 : index
    %29 = vector.load %arg9[%c0_67, %c640] : memref<256x1152xbf16, #tpu.memory_space<vmem>>, vector<256x128xbf16>
    tpu.vector_store %arg9[%c0_67, %c640], %28 {strides = array<i32>} : memref<256x1152xbf16, #tpu.memory_space<vmem>>, vector<256x128xbf16>,
    %c0_68 = arith.constant 0 : index
    %c2_69 = arith.constant 2 : index
    %c0_70 = arith.constant 0 : index
    %c0_71 = arith.constant 0 : index
    %30 = vector.load %arg7[%c0_68, %c2_69, %c0_70, %c0_71] : memref<4x10x10x128xbf16, #tpu.memory_space<vmem>>, vector<4x8x8x128xbf16>
    %31 = vector.shape_cast %30 : vector<4x8x8x128xbf16> to vector<256x128xbf16>
    %c0_72 = arith.constant 0 : index
    %c768 = arith.constant 768 : index
    %32 = vector.load %arg9[%c0_72, %c768] : memref<256x1152xbf16, #tpu.memory_space<vmem>>, vector<256x128xbf16>
    tpu.vector_store %arg9[%c0_72, %c768], %31 {strides = array<i32>} : memref<256x1152xbf16, #tpu.memory_space<vmem>>, vector<256x128xbf16>,
    %c0_73 = arith.constant 0 : index
    %c2_74 = arith.constant 2 : index
    %c1_75 = arith.constant 1 : index
    %c0_76 = arith.constant 0 : index
    %33 = vector.load %arg7[%c0_73, %c2_74, %c1_75, %c0_76] : memref<4x10x10x128xbf16, #tpu.memory_space<vmem>>, vector<4x8x8x128xbf16>
    %34 = vector.shape_cast %33 : vector<4x8x8x128xbf16> to vector<256x128xbf16>
    %c0_77 = arith.constant 0 : index
    %c896 = arith.constant 896 : index
    %35 = vector.load %arg9[%c0_77, %c896] : memref<256x1152xbf16, #tpu.memory_space<vmem>>, vector<256x128xbf16>
    tpu.vector_store %arg9[%c0_77, %c896], %34 {strides = array<i32>} : memref<256x1152xbf16, #tpu.memory_space<vmem>>, vector<256x128xbf16>,
    %c0_78 = arith.constant 0 : index
    %c2_79 = arith.constant 2 : index
    %c2_80 = arith.constant 2 : index
    %c0_81 = arith.constant 0 : index
    %36 = vector.load %arg7[%c0_78, %c2_79, %c2_80, %c0_81] : memref<4x10x10x128xbf16, #tpu.memory_space<vmem>>, vector<4x8x8x128xbf16>
    %37 = vector.shape_cast %36 : vector<4x8x8x128xbf16> to vector<256x128xbf16>
    %c0_82 = arith.constant 0 : index
    %c1024 = arith.constant 1024 : index
    %38 = vector.load %arg9[%c0_82, %c1024] : memref<256x1152xbf16, #tpu.memory_space<vmem>>, vector<256x128xbf16>
    tpu.vector_store %arg9[%c0_82, %c1024], %37 {strides = array<i32>} : memref<256x1152xbf16, #tpu.memory_space<vmem>>, vector<256x128xbf16>,
    %c0_83 = arith.constant 0 : index
    %c0_84 = arith.constant 0 : index
    %39 = vector.load %arg9[%c0_83, %c0_84] : memref<256x1152xbf16, #tpu.memory_space<vmem>>, vector<256x1152xbf16>
    %c0_85 = arith.constant 0 : index
    %c0_86 = arith.constant 0 : index
    %40 = vector.load %arg2[%c0_85, %c0_86] : memref<1152x128xbf16, #tpu.memory_space<vmem>>, vector<1152x128xbf16>
    %cst_87 = arith.constant dense<0.000000e+00> : vector<256x128xf32>
    %41 = tpu.matmul %39, %40, %cst_87 {dimension_numbers = #tpu.dot_dimension_numbers<[1], [0], [0], [1], [0, 0, 1, 1], [], []>} : vector<256x1152xbf16>, vector<1152x128xbf16>, vector<256x128xf32> -> vector<256x128xf32>
    %c0_88 = arith.constant 0 : index
    %c0_89 = arith.constant 0 : index
    %42 = vector.load %arg3[%c0_88, %c0_89] : memref<1x128xf32, #tpu.memory_space<vmem>>, vector<1x128xf32>
    %43 = vector.broadcast %42 : vector<1x128xf32> to vector<256x128xf32>
    %44 = arith.addf %41, %43 : vector<256x128xf32>
    %cst_90 = arith.constant 0.000000e+00 : f32
    %45 = vector.broadcast %cst_90 : f32 to vector<256x128xf32>
    %46 = arith.maximumf %44, %45 : vector<256x128xf32>
    %47 = arith.truncf %46 : vector<256x128xf32> to vector<256x128xbf16>
    %48 = vector.shape_cast %47 : vector<256x128xbf16> to vector<4x8x8x128xbf16>
    %c0_91 = arith.constant 0 : index
    %c1_92 = arith.constant 1 : index
    %c1_93 = arith.constant 1 : index
    %c0_94 = arith.constant 0 : index
    %49 = vector.load %arg8[%c0_91, %c1_92, %c1_93, %c0_94] : memref<4x10x10x128xbf16, #tpu.memory_space<vmem>>, vector<4x8x8x128xbf16>
    tpu.vector_store %arg8[%c0_91, %c1_92, %c1_93, %c0_94], %48 {strides = array<i32>} : memref<4x10x10x128xbf16, #tpu.memory_space<vmem>>, vector<4x8x8x128xbf16>,
    %c0_95 = arith.constant 0 : index
    %c0_96 = arith.constant 0 : index
    %c0_97 = arith.constant 0 : index
    %c0_98 = arith.constant 0 : index
    %50 = vector.load %arg8[%c0_95, %c0_96, %c0_97, %c0_98] : memref<4x10x10x128xbf16, #tpu.memory_space<vmem>>, vector<4x8x8x128xbf16>
    %51 = vector.shape_cast %50 : vector<4x8x8x128xbf16> to vector<256x128xbf16>
    %c0_99 = arith.constant 0 : index
    %c0_100 = arith.constant 0 : index
    %52 = vector.load %arg9[%c0_99, %c0_100] : memref<256x1152xbf16, #tpu.memory_space<vmem>>, vector<256x128xbf16>
    tpu.vector_store %arg9[%c0_99, %c0_100], %51 {strides = array<i32>} : memref<256x1152xbf16, #tpu.memory_space<vmem>>, vector<256x128xbf16>,
    %c0_101 = arith.constant 0 : index
    %c0_102 = arith.constant 0 : index
    %c1_103 = arith.constant 1 : index
    %c0_104 = arith.constant 0 : index
    %53 = vector.load %arg8[%c0_101, %c0_102, %c1_103, %c0_104] : memref<4x10x10x128xbf16, #tpu.memory_space<vmem>>, vector<4x8x8x128xbf16>
    %54 = vector.shape_cast %53 : vector<4x8x8x128xbf16> to vector<256x128xbf16>
    %c0_105 = arith.constant 0 : index
    %c128_106 = arith.constant 128 : index
    %55 = vector.load %arg9[%c0_105, %c128_106] : memref<256x1152xbf16, #tpu.memory_space<vmem>>, vector<256x128xbf16>
    tpu.vector_store %arg9[%c0_105, %c128_106], %54 {strides = array<i32>} : memref<256x1152xbf16, #tpu.memory_space<vmem>>, vector<256x128xbf16>,
    %c0_107 = arith.constant 0 : index
    %c0_108 = arith.constant 0 : index
    %c2_109 = arith.constant 2 : index
    %c0_110 = arith.constant 0 : index
    %56 = vector.load %arg8[%c0_107, %c0_108, %c2_109, %c0_110] : memref<4x10x10x128xbf16, #tpu.memory_space<vmem>>, vector<4x8x8x128xbf16>
    %57 = vector.shape_cast %56 : vector<4x8x8x128xbf16> to vector<256x128xbf16>
    %c0_111 = arith.constant 0 : index
    %c256_112 = arith.constant 256 : index
    %58 = vector.load %arg9[%c0_111, %c256_112] : memref<256x1152xbf16, #tpu.memory_space<vmem>>, vector<256x128xbf16>
    tpu.vector_store %arg9[%c0_111, %c256_112], %57 {strides = array<i32>} : memref<256x1152xbf16, #tpu.memory_space<vmem>>, vector<256x128xbf16>,
    %c0_113 = arith.constant 0 : index
    %c1_114 = arith.constant 1 : index
    %c0_115 = arith.constant 0 : index
    %c0_116 = arith.constant 0 : index
    %59 = vector.load %arg8[%c0_113, %c1_114, %c0_115, %c0_116] : memref<4x10x10x128xbf16, #tpu.memory_space<vmem>>, vector<4x8x8x128xbf16>
    %60 = vector.shape_cast %59 : vector<4x8x8x128xbf16> to vector<256x128xbf16>
    %c0_117 = arith.constant 0 : index
    %c384_118 = arith.constant 384 : index
    %61 = vector.load %arg9[%c0_117, %c384_118] : memref<256x1152xbf16, #tpu.memory_space<vmem>>, vector<256x128xbf16>
    tpu.vector_store %arg9[%c0_117, %c384_118], %60 {strides = array<i32>} : memref<256x1152xbf16, #tpu.memory_space<vmem>>, vector<256x128xbf16>,
    %c0_119 = arith.constant 0 : index
    %c1_120 = arith.constant 1 : index
    %c1_121 = arith.constant 1 : index
    %c0_122 = arith.constant 0 : index
    %62 = vector.load %arg8[%c0_119, %c1_120, %c1_121, %c0_122] : memref<4x10x10x128xbf16, #tpu.memory_space<vmem>>, vector<4x8x8x128xbf16>
    %63 = vector.shape_cast %62 : vector<4x8x8x128xbf16> to vector<256x128xbf16>
    %c0_123 = arith.constant 0 : index
    %c512_124 = arith.constant 512 : index
    %64 = vector.load %arg9[%c0_123, %c512_124] : memref<256x1152xbf16, #tpu.memory_space<vmem>>, vector<256x128xbf16>
    tpu.vector_store %arg9[%c0_123, %c512_124], %63 {strides = array<i32>} : memref<256x1152xbf16, #tpu.memory_space<vmem>>, vector<256x128xbf16>,
    %c0_125 = arith.constant 0 : index
    %c1_126 = arith.constant 1 : index
    %c2_127 = arith.constant 2 : index
    %c0_128 = arith.constant 0 : index
    %65 = vector.load %arg8[%c0_125, %c1_126, %c2_127, %c0_128] : memref<4x10x10x128xbf16, #tpu.memory_space<vmem>>, vector<4x8x8x128xbf16>
    %66 = vector.shape_cast %65 : vector<4x8x8x128xbf16> to vector<256x128xbf16>
    %c0_129 = arith.constant 0 : index
    %c640_130 = arith.constant 640 : index
    %67 = vector.load %arg9[%c0_129, %c640_130] : memref<256x1152xbf16, #tpu.memory_space<vmem>>, vector<256x128xbf16>
    tpu.vector_store %arg9[%c0_129, %c640_130], %66 {strides = array<i32>} : memref<256x1152xbf16, #tpu.memory_space<vmem>>, vector<256x128xbf16>,
    %c0_131 = arith.constant 0 : index
    %c2_132 = arith.constant 2 : index
    %c0_133 = arith.constant 0 : index
    %c0_134 = arith.constant 0 : index
    %68 = vector.load %arg8[%c0_131, %c2_132, %c0_133, %c0_134] : memref<4x10x10x128xbf16, #tpu.memory_space<vmem>>, vector<4x8x8x128xbf16>
    %69 = vector.shape_cast %68 : vector<4x8x8x128xbf16> to vector<256x128xbf16>
    %c0_135 = arith.constant 0 : index
    %c768_136 = arith.constant 768 : index
    %70 = vector.load %arg9[%c0_135, %c768_136] : memref<256x1152xbf16, #tpu.memory_space<vmem>>, vector<256x128xbf16>
    tpu.vector_store %arg9[%c0_135, %c768_136], %69 {strides = array<i32>} : memref<256x1152xbf16, #tpu.memory_space<vmem>>, vector<256x128xbf16>,
    %c0_137 = arith.constant 0 : index
    %c2_138 = arith.constant 2 : index
    %c1_139 = arith.constant 1 : index
    %c0_140 = arith.constant 0 : index
    %71 = vector.load %arg8[%c0_137, %c2_138, %c1_139, %c0_140] : memref<4x10x10x128xbf16, #tpu.memory_space<vmem>>, vector<4x8x8x128xbf16>
    %72 = vector.shape_cast %71 : vector<4x8x8x128xbf16> to vector<256x128xbf16>
    %c0_141 = arith.constant 0 : index
    %c896_142 = arith.constant 896 : index
    %73 = vector.load %arg9[%c0_141, %c896_142] : memref<256x1152xbf16, #tpu.memory_space<vmem>>, vector<256x128xbf16>
    tpu.vector_store %arg9[%c0_141, %c896_142], %72 {strides = array<i32>} : memref<256x1152xbf16, #tpu.memory_space<vmem>>, vector<256x128xbf16>,
    %c0_143 = arith.constant 0 : index
    %c2_144 = arith.constant 2 : index
    %c2_145 = arith.constant 2 : index
    %c0_146 = arith.constant 0 : index
    %74 = vector.load %arg8[%c0_143, %c2_144, %c2_145, %c0_146] : memref<4x10x10x128xbf16, #tpu.memory_space<vmem>>, vector<4x8x8x128xbf16>
    %75 = vector.shape_cast %74 : vector<4x8x8x128xbf16> to vector<256x128xbf16>
    %c0_147 = arith.constant 0 : index
    %c1024_148 = arith.constant 1024 : index
    %76 = vector.load %arg9[%c0_147, %c1024_148] : memref<256x1152xbf16, #tpu.memory_space<vmem>>, vector<256x128xbf16>
    tpu.vector_store %arg9[%c0_147, %c1024_148], %75 {strides = array<i32>} : memref<256x1152xbf16, #tpu.memory_space<vmem>>, vector<256x128xbf16>,
    %c0_149 = arith.constant 0 : index
    %c0_150 = arith.constant 0 : index
    %77 = vector.load %arg9[%c0_149, %c0_150] : memref<256x1152xbf16, #tpu.memory_space<vmem>>, vector<256x1152xbf16>
    %c0_151 = arith.constant 0 : index
    %c0_152 = arith.constant 0 : index
    %78 = vector.load %arg4[%c0_151, %c0_152] : memref<1152x128xbf16, #tpu.memory_space<vmem>>, vector<1152x128xbf16>
    %cst_153 = arith.constant dense<0.000000e+00> : vector<256x128xf32>
    %79 = tpu.matmul %77, %78, %cst_153 {dimension_numbers = #tpu.dot_dimension_numbers<[1], [0], [0], [1], [0, 0, 1, 1], [], []>} : vector<256x1152xbf16>, vector<1152x128xbf16>, vector<256x128xf32> -> vector<256x128xf32>
    %c0_154 = arith.constant 0 : index
    %c0_155 = arith.constant 0 : index
    %80 = vector.load %arg5[%c0_154, %c0_155] : memref<1x128xf32, #tpu.memory_space<vmem>>, vector<1x128xf32>
    %81 = vector.broadcast %80 : vector<1x128xf32> to vector<256x128xf32>
    %82 = arith.addf %79, %81 : vector<256x128xf32>
    %83 = arith.extf %0 : vector<4x8x8x128xbf16> to vector<4x8x8x128xf32>
    %84 = vector.shape_cast %83 : vector<4x8x8x128xf32> to vector<256x128xf32>
    %85 = arith.addf %82, %84 : vector<256x128xf32>
    %cst_156 = arith.constant 0.000000e+00 : f32
    %86 = vector.broadcast %cst_156 : f32 to vector<256x128xf32>
    %87 = arith.maximumf %85, %86 : vector<256x128xf32>
    %88 = vector.shape_cast %87 : vector<256x128xf32> to vector<4x8x8x128xf32>
    %89 = arith.truncf %88 : vector<4x8x8x128xf32> to vector<4x8x8x128xbf16>
    %c0_157 = arith.constant 0 : index
    %c0_158 = arith.constant 0 : index
    %c0_159 = arith.constant 0 : index
    %c0_160 = arith.constant 0 : index
    %90 = vector.load %arg6[%c0_157, %c0_158, %c0_159, %c0_160] : memref<4x8x8x128xbf16, #tpu.memory_space<vmem>>, vector<4x8x8x128xbf16>
    tpu.vector_store %arg6[%c0_157, %c0_158, %c0_159, %c0_160], %89 {strides = array<i32>} : memref<4x8x8x128xbf16, #tpu.memory_space<vmem>>, vector<4x8x8x128xbf16>,
    return
  }
  func.func @transform_0(%arg0: i32) -> (i32, i32, i32, i32) {
    %c0_i32 = arith.constant 0 : i32
    %c0_i32_0 = arith.constant 0 : i32
    %c0_i32_1 = arith.constant 0 : i32
    %c0_i32_2 = arith.constant 0 : i32
    return %arg0, %c0_i32, %c0_i32_0, %c0_i32_1 : i32, i32, i32, i32
  }
  func.func @transform_1(%arg0: i32) -> (i32, i32) {
    %c0_i32 = arith.constant 0 : i32
    %c0_i32_0 = arith.constant 0 : i32
    %c0_i32_1 = arith.constant 0 : i32
    return %c0_i32, %c0_i32_0 : i32, i32
  }
  func.func @transform_2(%arg0: i32) -> (i32, i32) {
    %c0_i32 = arith.constant 0 : i32
    %c0_i32_0 = arith.constant 0 : i32
    %c0_i32_1 = arith.constant 0 : i32
    return %c0_i32, %c0_i32_0 : i32, i32
  }
  func.func @transform_3(%arg0: i32) -> (i32, i32) {
    %c0_i32 = arith.constant 0 : i32
    %c0_i32_0 = arith.constant 0 : i32
    %c0_i32_1 = arith.constant 0 : i32
    return %c0_i32, %c0_i32_0 : i32, i32
  }
  func.func @transform_4(%arg0: i32) -> (i32, i32) {
    %c0_i32 = arith.constant 0 : i32
    %c0_i32_0 = arith.constant 0 : i32
    %c0_i32_1 = arith.constant 0 : i32
    return %c0_i32, %c0_i32_0 : i32, i32
  }
  func.func @transform_5(%arg0: i32) -> (i32, i32, i32, i32) {
    %c0_i32 = arith.constant 0 : i32
    %c0_i32_0 = arith.constant 0 : i32
    %c0_i32_1 = arith.constant 0 : i32
    %c0_i32_2 = arith.constant 0 : i32
    return %arg0, %c0_i32, %c0_i32_0, %c0_i32_1 : i32, i32, i32, i32
  }
}

</mosaic_0001>

<llo_original>
// kernel: residual_block_nchw.1
$region0: #{residual_block_nchw.1}
  #allocation0 [shape = 'u32[]', space=smem, size = 0x4, offset = 0x4, fixed_abs, tag = 'smem constant byte address 0x4 - core index']
  #allocation1 [shape = 'u32[72,128]{1,0:T(1,128)}', space=vmem, size = 0x9000, scoped, tag = 'internal scratch']
  #allocation2 [shape = 'bf16[4,10,10,128]{3,2,1,0:T(8,128)(2,1)}', space=vmem, size = 0x28000, scoped, tag = 'scratch operand']
  #allocation3 [shape = 'bf16[4,10,10,128]{3,2,1,0:T(8,128)(2,1)}', space=vmem, size = 0x28000, scoped, tag = 'scratch operand']
  #allocation4 [shape = 'bf16[256,1152]{1,0:T(8,128)(2,1)}', space=vmem, size = 0x90000, scoped, tag = 'scratch operand']
  %s0 = inlined_call_operand.vmem [shape: bf16[16,8,8,128], index: 0, kind: input, shape index: {}]
  %s1 = inlined_call_operand.vmem [shape: bf16[1152,128], index: 1, kind: input, shape index: {}]
  %s2 = inlined_call_operand.vmem [shape: f32[1,128], index: 2, kind: input, shape index: {}]
  %s3 = inlined_call_operand.vmem [shape: bf16[1152,128], index: 3, kind: input, shape index: {}]
  %s4 = inlined_call_operand.vmem [shape: f32[1,128], index: 4, kind: input, shape index: {}]
  %s5 = inlined_call_operand.vmem [shape: bf16[16,8,8,128], index: 5, kind: output, shape index: {}]
  %s6 = sld [smem:[#allocation0]]
  $region53: #{residual_block_nchw.1} parent=0
    _
  %s8 = ssub.s32 1, %s6
  %s9 = scalar_select 0, %s8, %s6
  loop: start=0, step=1, limit=6
  $region2: #{residual_block_nchw.1} parent=0 // loop_pre_header
    _
  $region3: #{residual_block_nchw.1} parent=0 // loop_header
    %s11 = sphi 0, %s15
    %p12 = scmp.ge.s32.totalorder %s11, 6
    %s21 = sphi 0, %s23
    %s24 = sphi 0, %s21
    %s25 = sphi 0, %s24
    %s41 = sphi 0, %s25
    %s45 = sphi 0, %s45
    %s47 = sphi 0, %s45
    %s48 = sphi 0, %s47
    %s62 = sphi 0, %s48
    %s66 = sphi 0, %s66
    %s68 = sphi 0, %s66
    %s69 = sphi 0, %s68
    %s83 = sphi 0, %s69
    %s87 = sphi 0, %s87
    %s89 = sphi 0, %s87
    %s90 = sphi 0, %s89
    %s104 = sphi 0, %s90
    %s108 = sphi 0, %s108
    %s110 = sphi 0, %s108
    %s111 = sphi 0, %s110
    %s125 = sphi 0, %s111
    %s131 = sphi 0, %s133
    %s134 = sphi 0, %s131
    %s135 = sphi 0, %s134
    %s151 = sphi 0, %s135
  $region4: #{residual_block_nchw.1} parent=0 // loop_header_branch
    %14 = sbr.rel (%p12) target = $region8
  $region5: #{residual_block_nchw.1} parent=0 // loop_body
    %s16 = ssub.s32 %s11, 1
    %s17 = ssub.s32 %s11, 2
    %s18 = sadd.s32 %s11, 1
    %s19 = ssub.s32 %s11, %s18
    %p20 = scmp.eq.s32.totalorder %s19, 0
    %s22 = sadd.s32 %s21, 1
    %s23 = scalar_select %p20, %s21, %s22
    %p26 = pneg %p20
    %p27 = scmp.eq.s32.totalorder %s11, 3
    %p28 = por %p26, %p27
    %p29 = scmp.ne.s32.totalorder %s21, %s24
    %p30 = scmp.eq.s32.totalorder %s11, 0
    %p31 = por %p29, %p30
    %p32 = scmp.ne.s32.totalorder %s21, %s24
    %p33 = scmp.eq.s32.totalorder %s16, 3
    %p34 = por %p32, %p33
    %p35 = scmp.ne.s32.totalorder %s24, %s25
    %p36 = scmp.eq.s32.totalorder %s16, 0
    %p37 = por %p35, %p36
    %p38 = scmp.ne.s32.totalorder %s24, %s25
    %p39 = scmp.eq.s32.totalorder %s17, 3
    %p40 = por %p38, %p39
    %p42 = scmp.ne.s32.totalorder %s25, %s41
    %p43 = scmp.eq.s32.totalorder %s17, 0
    %p44 = por %p42, %p43
    %s46 = sadd.s32 %s45, 1
    %p49 = scmp.eq.s32.totalorder %s11, 3
    %p50 = scmp.ne.s32.totalorder %s45, %s47
    %p51 = scmp.eq.s32.totalorder %s11, 0
    %p52 = por %p50, %p51
    %p53 = scmp.ne.s32.totalorder %s45, %s47
    %p54 = scmp.eq.s32.totalorder %s16, 3
    %p55 = por %p53, %p54
    %p56 = scmp.ne.s32.totalorder %s47, %s48
    %p57 = scmp.eq.s32.totalorder %s16, 0
    %p58 = por %p56, %p57
    %p59 = scmp.ne.s32.totalorder %s47, %s48
    %p60 = scmp.eq.s32.totalorder %s17, 3
    %p61 = por %p59, %p60
    %p63 = scmp.ne.s32.totalorder %s48, %s62
    %p64 = scmp.eq.s32.totalorder %s17, 0
    %p65 = por %p63, %p64
    %s67 = sadd.s32 %s66, 1
    %p70 = scmp.eq.s32.totalorder %s11, 3
    %p71 = scmp.ne.s32.totalorder %s66, %s68
    %p72 = scmp.eq.s32.totalorder %s11, 0
    %p73 = por %p71, %p72
    %p74 = scmp.ne.s32.totalorder %s66, %s68
    %p75 = scmp.eq.s32.totalorder %s16, 3
    %p76 = por %p74, %p75
    %p77 = scmp.ne.s32.totalorder %s68, %s69
    %p78 = scmp.eq.s32.totalorder %s16, 0
    %p79 = por %p77, %p78
    %p80 = scmp.ne.s32.totalorder %s68, %s69
    %p81 = scmp.eq.s32.totalorder %s17, 3
    %p82 = por %p80, %p81
    %p84 = scmp.ne.s32.totalorder %s69, %s83
    %p85 = scmp.eq.s32.totalorder %s17, 0
    %p86 = por %p84, %p85
    %s88 = sadd.s32 %s87, 1
    %p91 = scmp.eq.s32.totalorder %s11, 3
    %p92 = scmp.ne.s32.totalorder %s87, %s89
    %p93 = scmp.eq.s32.totalorder %s11, 0
    %p94 = por %p92, %p93
    %p95 = scmp.ne.s32.totalorder %s87, %s89
    %p96 = scmp.eq.s32.totalorder %s16, 3
    %p97 = por %p95, %p96
    %p98 = scmp.ne.s32.totalorder %s89, %s90
    %p99 = scmp.eq.s32.totalorder %s16, 0
    %p100 = por %p98, %p99
    %p101 = scmp.ne.s32.totalorder %s89, %s90
    %p102 = scmp.eq.s32.totalorder %s17, 3
    %p103 = por %p101, %p102
    %p105 = scmp.ne.s32.totalorder %s90, %s104
    %p106 = scmp.eq.s32.totalorder %s17, 0
    %p107 = por %p105, %p106
    %s109 = sadd.s32 %s108, 1
    %p112 = scmp.eq.s32.totalorder %s11, 3
    %p113 = scmp.ne.s32.totalorder %s108, %s110
    %p114 = scmp.eq.s32.totalorder %s11, 0
    %p115 = por %p113, %p114
    %p116 = scmp.ne.s32.totalorder %s108, %s110
    %p117 = scmp.eq.s32.totalorder %s16, 3
    %p118 = por %p116, %p117
    %p119 = scmp.ne.s32.totalorder %s110, %s111
    %p120 = scmp.eq.s32.totalorder %s16, 0
    %p121 = por %p119, %p120
    %p122 = scmp.ne.s32.totalorder %s110, %s111
    %p123 = scmp.eq.s32.totalorder %s17, 3
    %p124 = por %p122, %p123
    %p126 = scmp.ne.s32.totalorder %s111, %s125
    %p127 = scmp.eq.s32.totalorder %s17, 0
    %p128 = por %p126, %p127
    %s129 = ssub.s32 %s11, %s18
    %p130 = scmp.eq.s32.totalorder %s129, 0
    %s132 = sadd.s32 %s131, 1
    %s133 = scalar_select %p130, %s131, %s132
    %p136 = pneg %p130
    %p137 = scmp.eq.s32.totalorder %s11, 3
    %p138 = por %p136, %p137
    %p139 = scmp.ne.s32.totalorder %s131, %s134
    %p140 = scmp.eq.s32.totalorder %s11, 0
    %p141 = por %p139, %p140
    %p142 = scmp.ne.s32.totalorder %s131, %s134
    %p143 = scmp.eq.s32.totalorder %s16, 3
    %p144 = por %p142, %p143
    %p145 = scmp.ne.s32.totalorder %s134, %s135
    %p146 = scmp.eq.s32.totalorder %s16, 0
    %p147 = por %p145, %p146
    %p148 = scmp.ne.s32.totalorder %s134, %s135
    %p149 = scmp.eq.s32.totalorder %s17, 3
    %p150 = por %p148, %p149
    %p152 = scmp.ne.s32.totalorder %s135, %s151
    %p153 = scmp.eq.s32.totalorder %s17, 0
    %p154 = por %p152, %p153
    %p155 = scmp.le.s32.totalorder 1, %s11
    %p156 = scmp.lt.s32.totalorder %s11, 5
    %p157 = pnand %p155, %p156
    %p158 = pneg %p157
    // Predicated region
    $region9: #{residual_block_nchw.1} parent=5 // pred_check
      _
    $region10: #{residual_block_nchw.1} parent=5 // pred_check_branch
      %160 = sbr.rel (%p157) target = $region12
    $region11: #{residual_block_nchw.1} parent=5 // pred_region
      %s161 = ssub.s32 %s11, 1
      // Predicated region
      $region13: #{residual_block_nchw.1} parent=11 // pred_check
        %p162 = pneg %p58
      $region14: #{residual_block_nchw.1} parent=11 // pred_check_branch
        %164 = sbr.rel (%p162) target = $region16
      $region15: #{residual_block_nchw.1} parent=11 // pred_region
        _
      $region16: #{residual_block_nchw.1} parent=11 // pred_fallthru
        _
      // Predicated region
      $region17: #{residual_block_nchw.1} parent=11 // pred_check
        %p165 = pneg %p79
      $region18: #{residual_block_nchw.1} parent=11 // pred_check_branch
        %167 = sbr.rel (%p165) target = $region20
      $region19: #{residual_block_nchw.1} parent=11 // pred_region
        _
      $region20: #{residual_block_nchw.1} parent=11 // pred_fallthru
        _
      // Predicated region
      $region21: #{residual_block_nchw.1} parent=11 // pred_check
        %p168 = pneg %p100
      $region22: #{residual_block_nchw.1} parent=11 // pred_check_branch
        %170 = sbr.rel (%p168) target = $region24
      $region23: #{residual_block_nchw.1} parent=11 // pred_region
        _
      $region24: #{residual_block_nchw.1} parent=11 // pred_fallthru
        _
      // Predicated region
      $region25: #{residual_block_nchw.1} parent=11 // pred_check
        %p171 = pneg %p121
      $region26: #{residual_block_nchw.1} parent=11 // pred_check_branch
        %173 = sbr.rel (%p171) target = $region28
      $region27: #{residual_block_nchw.1} parent=11 // pred_region
        _
      $region28: #{residual_block_nchw.1} parent=11 // pred_fallthru
        _
    $region12: #{residual_block_nchw.1} parent=5 // pred_fallthru
      _
    %p174 = scmp.lt.s32.totalorder %s11, 4
    // Predicated region
    $region29: #{residual_block_nchw.1} parent=5 // pred_check
      %p175 = pneg %p174
    $region30: #{residual_block_nchw.1} parent=5 // pred_check_branch
      %177 = sbr.rel (%p175) target = $region32
    $region31: #{residual_block_nchw.1} parent=5 // pred_region
      // Predicated region
      $region33: #{residual_block_nchw.1} parent=31 // pred_check
        %p178 = pneg %p31
      $region34: #{residual_block_nchw.1} parent=31 // pred_check_branch
        %180 = sbr.rel (%p178) target = $region36
      $region35: #{residual_block_nchw.1} parent=31 // pred_region
        %s181 = smul.u32 4, %s11
        %p182 = scmp.lt.s32.totalorder %s181, 15
        %s183 = scalar_select %p182, %s181, 15
        %s184 = smul.addr %s183, 8
        %s185 = smul.addr %s184, 4
        %s186 = scalar_lea.vmem %s0, %s185
        %s187 = smul.u32 4, %s11
      $region36: #{residual_block_nchw.1} parent=31 // pred_fallthru
        _
    $region32: #{residual_block_nchw.1} parent=5 // pred_fallthru
      _
    %p188 = scmp.le.s32.totalorder 1, %s11
    %p189 = scmp.lt.s32.totalorder %s11, 5
    %p190 = pnand %p188, %p189
    %p191 = pneg %p190
    // Predicated region
    $region37: #{residual_block_nchw.1} parent=5 // pred_check
      _
    $region38: #{residual_block_nchw.1} parent=5 // pred_check_branch
      %193 = sbr.rel (%p190) target = $region40
    $region39: #{residual_block_nchw.1} parent=5 // pred_region
      %s194 = ssub.s32 %s11, 1
      %s195 = smul.u32 4, %s16
      %p196 = scmp.lt.s32.totalorder %s195, 15
      %s197 = scalar_select %p196, %s195, 15
      %s198 = smul.addr %s197, 8
      %s199 = smul.addr %s198, 4
      %s200 = scalar_lea.vmem %s0, %s199
      %p201 = pneg %p37
      %p202 = pneg %p34
      %p203 = pneg %p58
      %p204 = pneg %p55
      %p205 = pneg %p79
      %p206 = pneg %p76
      %p207 = pneg %p100
      %p208 = pneg %p97
      %p209 = pneg %p121
      %p210 = pneg %p118
      %p211 = pneg %p147
      %p212 = pneg %p144
      %s213 = smul.u32 4, %s16
      %p214 = scmp.lt.s32.totalorder %s213, 15
      %s215 = scalar_select %p214, %s213, 15
      %s216 = smul.addr %s215, 8
      %s217 = smul.addr %s216, 4
      %s218 = scalar_lea.vmem %s5, %s217
      %s219 = smul.u32 4, %s16
      %p220 = scmp.lt.s32.totalorder %s219, 15
      %s221 = scalar_select %p220, %s219, 15
      %s222 = smul.addr %s221, 8
      %s223 = smul.addr %s222, 4
      %s224 = scalar_lea.vmem %s0, %s223
      %s225 = smul.u32 4, %s16
      %s226 = smul.u32 4, %s16
      %p227 = scmp.lt.s32.totalorder %s226, 15
      %s228 = scalar_select %p227, %s226, 15
      %s229 = smul.addr %s228, 8
      %s230 = smul.addr %s229, 4
      %s231 = scalar_lea.vmem %s5, %s230
      %s232 = smul.u32 4, %s16
      %v234 = vld [vmem:[%s224] sm:$0xf]
      %v235 = vld [vmem:[%s224 + $0x4] sm:$0xf]
      %v236 = vld [vmem:[%s224 + $0x8] sm:$0xf]
      %v237 = vld [vmem:[%s224 + $0xc] sm:$0xf]
      %v238 = vld [vmem:[%s224 + $0x10] sm:$0xf]
      %v239 = vld [vmem:[%s224 + $0x14] sm:$0xf]
      %v240 = vld [vmem:[%s224 + $0x18] sm:$0xf]
      %v241 = vld [vmem:[%s224 + $0x1c] sm:$0xf]
      %v242 = vld [vmem:[%s224 + $0x20] sm:$0xf]
      %v243 = vld [vmem:[%s224 + $0x24] sm:$0xf]
      %v244 = vld [vmem:[%s224 + $0x28] sm:$0xf]
      %v245 = vld [vmem:[%s224 + $0x2c] sm:$0xf]
      %v246 = vld [vmem:[%s224 + $0x30] sm:$0xf]
      %v247 = vld [vmem:[%s224 + $0x34] sm:$0xf]
      %v248 = vld [vmem:[%s224 + $0x38] sm:$0xf]
      %v249 = vld [vmem:[%s224 + $0x3c] sm:$0xf]
      %v250 = vld [vmem:[%s224 + $0x40] sm:$0xf]
      %v251 = vld [vmem:[%s224 + $0x44] sm:$0xf]
      %v252 = vld [vmem:[%s224 + $0x48] sm:$0xf]
      %v253 = vld [vmem:[%s224 + $0x4c] sm:$0xf]
      %v254 = vld [vmem:[%s224 + $0x50] sm:$0xf]
      %v255 = vld [vmem:[%s224 + $0x54] sm:$0xf]
      %v256 = vld [vmem:[%s224 + $0x58] sm:$0xf]
      %v257 = vld [vmem:[%s224 + $0x5c] sm:$0xf]
      %v258 = vld [vmem:[%s224 + $0x60] sm:$0xf]
      %v259 = vld [vmem:[%s224 + $0x64] sm:$0xf]
      %v260 = vld [vmem:[%s224 + $0x68] sm:$0xf]
      %v261 = vld [vmem:[%s224 + $0x6c] sm:$0xf]
      %v262 = vld [vmem:[%s224 + $0x70] sm:$0xf]
      %v263 = vld [vmem:[%s224 + $0x74] sm:$0xf]
      %v264 = vld [vmem:[%s224 + $0x78] sm:$0xf]
      %v265 = vld [vmem:[%s224 + $0x7c] sm:$0xf]
      %266 = vst [vmem:[#allocation2] sm:$0xf] 0
      %267 = vst [vmem:[#allocation2 + $0x4] sm:$0x1] 0
      %268 = vst [vmem:[#allocation2 + $0x50] sm:$0xf] 0
      %269 = vst [vmem:[#allocation2 + $0x54] sm:$0x1] 0
      %270 = vst [vmem:[#allocation2 + $0xa0] sm:$0xf] 0
      %271 = vst [vmem:[#allocation2 + $0xa4] sm:$0x1] 0
      %272 = vst [vmem:[#allocation2 + $0xf0] sm:$0xf] 0
      %273 = vst [vmem:[#allocation2 + $0xf4] sm:$0x1] 0
      %s274 = scalar_lea.vmem [#allocation2], 72
      %275 = vst [vmem:[%s274] sm:$0xf] 0
      %276 = vst [vmem:[%s274 + $0x4] sm:$0x1] 0
      %277 = vst [vmem:[%s274 + $0x50] sm:$0xf] 0
      %278 = vst [vmem:[%s274 + $0x54] sm:$0x1] 0
      %279 = vst [vmem:[%s274 + $0xa0] sm:$0xf] 0
      %280 = vst [vmem:[%s274 + $0xa4] sm:$0x1] 0
      %281 = vst [vmem:[%s274 + $0xf0] sm:$0xf] 0
      %282 = vst [vmem:[%s274 + $0xf4] sm:$0x1] 0
      %vm283 = vcmask 1040384
      %vm284 = vsmask.f32 256
      %vm285 = vmand %vm283, %vm284
      %v286 = vld [vmem:[#allocation2] sm:$0x1]
      %v287 = vsel %vm285, 0, %v286
      %288 = vst [vmem:[#allocation2] sm:$0x1] %v287
      %v289 = vld [vmem:[#allocation2 + $0x8] sm:$0x1]
      %v290 = vsel %vm285, 0, %v289
      %291 = vst [vmem:[#allocation2 + $0x8] sm:$0x1] %v290
      %v292 = vld [vmem:[#allocation2 + $0x10] sm:$0x1]
      %v293 = vsel %vm285, 0, %v292
      %294 = vst [vmem:[#allocation2 + $0x10] sm:$0x1] %v293
      %v295 = vld [vmem:[#allocation2 + $0x18] sm:$0x1]
      %v296 = vsel %vm285, 0, %v295
      %297 = vst [vmem:[#allocation2 + $0x18] sm:$0x1] %v296
      %v298 = vld [vmem:[#allocation2 + $0x20] sm:$0x1]
      %v299 = vsel %vm285, 0, %v298
      %300 = vst [vmem:[#allocation2 + $0x20] sm:$0x1] %v299
      %v301 = vld [vmem:[#allocation2 + $0x28] sm:$0x1]
      %v302 = vsel %vm285, 0, %v301
      %303 = vst [vmem:[#allocation2 + $0x28] sm:$0x1] %v302
      %v304 = vld [vmem:[#allocation2 + $0x30] sm:$0x1]
      %v305 = vsel %vm285, 0, %v304
      %306 = vst [vmem:[#allocation2 + $0x30] sm:$0x1] %v305
      %v307 = vld [vmem:[#allocation2 + $0x38] sm:$0x1]
      %v308 = vsel %vm285, 0, %v307
      %309 = vst [vmem:[#allocation2 + $0x38] sm:$0x1] %v308
      %v310 = vld [vmem:[#allocation2 + $0x40] sm:$0x1]
      %v311 = vsel %vm285, 0, %v310
      %312 = vst [vmem:[#allocation2 + $0x40] sm:$0x1] %v311
      %v313 = vld [vmem:[#allocation2 + $0x48] sm:$0x1]
      %v314 = vsel %vm285, 0, %v313
      %315 = vst [vmem:[#allocation2 + $0x48] sm:$0x1] %v314
      %v316 = vld [vmem:[#allocation2 + $0x50] sm:$0x1]
      %v317 = vsel %vm285, 0, %v316
      %318 = vst [vmem:[#allocation2 + $0x50] sm:$0x1] %v317
      %v319 = vld [vmem:[#allocation2 + $0x58] sm:$0x1]
      %v320 = vsel %vm285, 0, %v319
      %321 = vst [vmem:[#allocation2 + $0x58] sm:$0x1] %v320
      %v322 = vld [vmem:[#allocation2 + $0x60] sm:$0x1]
      %v323 = vsel %vm285, 0, %v322
      %324 = vst [vmem:[#allocation2 + $0x60] sm:$0x1] %v323
      %v325 = vld [vmem:[#allocation2 + $0x68] sm:$0x1]
      %v326 = vsel %vm285, 0, %v325
      %327 = vst [vmem:[#allocation2 + $0x68] sm:$0x1] %v326
      %v328 = vld [vmem:[#allocation2 + $0x70] sm:$0x1]
      %v329 = vsel %vm285, 0, %v328
      %330 = vst [vmem:[#allocation2 + $0x70] sm:$0x1] %v329
      %v331 = vld [vmem:[#allocation2 + $0x78] sm:$0x1]
      %v332 = vsel %vm285, 0, %v331
      %333 = vst [vmem:[#allocation2 + $0x78] sm:$0x1] %v332
      %v334 = vld [vmem:[#allocation2 + $0x80] sm:$0x1]
      %v335 = vsel %vm285, 0, %v334
      %336 = vst [vmem:[#allocation2 + $0x80] sm:$0x1] %v335
      %v337 = vld [vmem:[#allocation2 + $0x88] sm:$0x1]
      %v338 = vsel %vm285, 0, %v337
      %339 = vst [vmem:[#allocation2 + $0x88] sm:$0x1] %v338
      %v340 = vld [vmem:[#allocation2 + $0x90] sm:$0x1]
      %v341 = vsel %vm285, 0, %v340
      %342 = vst [vmem:[#allocation2 + $0x90] sm:$0x1] %v341
      %v343 = vld [vmem:[#allocation2 + $0x98] sm:$0x1]
      %v344 = vsel %vm285, 0, %v343
      %345 = vst [vmem:[#allocation2 + $0x98] sm:$0x1] %v344
      %v346 = vld [vmem:[#allocation2 + $0xa0] sm:$0x1]
      %v347 = vsel %vm285, 0, %v346
      %348 = vst [vmem:[#allocation2 + $0xa0] sm:$0x1] %v347
      %v349 = vld [vmem:[#allocation2 + $0xa8] sm:$0x1]
      %v350 = vsel %vm285, 0, %v349
      %351 = vst [vmem:[#allocation2 + $0xa8] sm:$0x1] %v350
      %v352 = vld [vmem:[#allocation2 + $0xb0] sm:$0x1]
      %v353 = vsel %vm285, 0, %v352
      %354 = vst [vmem:[#allocation2 + $0xb0] sm:$0x1] %v353
      %v355 = vld [vmem:[#allocation2 + $0xb8] sm:$0x1]
      %v356 = vsel %vm285, 0, %v355
      %357 = vst [vmem:[#allocation2 + $0xb8] sm:$0x1] %v356
      %v358 = vld [vmem:[#allocation2 + $0xc0] sm:$0x1]
      %v359 = vsel %vm285, 0, %v358
      %360 = vst [vmem:[#allocation2 + $0xc0] sm:$0x1] %v359
      %v361 = vld [vmem:[#allocation2 + $0xc8] sm:$0x1]
      %v362 = vsel %vm285, 0, %v361
      %363 = vst [vmem:[#allocation2 + $0xc8] sm:$0x1] %v362
      %v364 = vld [vmem:[#allocation2 + $0xd0] sm:$0x1]
      %v365 = vsel %vm285, 0, %v364
      %366 = vst [vmem:[#allocation2 + $0xd0] sm:$0x1] %v365
      %v367 = vld [vmem:[#allocation2 + $0xd8] sm:$0x1]
      %v368 = vsel %vm285, 0, %v367
      %369 = vst [vmem:[#allocation2 + $0xd8] sm:$0x1] %v368
      %v370 = vld [vmem:[#allocation2 + $0xe0] sm:$0x1]
      %v371 = vsel %vm285, 0, %v370
      %372 = vst [vmem:[#allocation2 + $0xe0] sm:$0x1] %v371
      %v373 = vld [vmem:[#allocation2 + $0xe8] sm:$0x1]
      %v374 = vsel %vm285, 0, %v373
      %375 = vst [vmem:[#allocation2 + $0xe8] sm:$0x1] %v374
      %v376 = vld [vmem:[#allocation2 + $0xf0] sm:$0x1]
      %v377 = vsel %vm285, 0, %v376
      %378 = vst [vmem:[#allocation2 + $0xf0] sm:$0x1] %v377
      %v379 = vld [vmem:[#allocation2 + $0xf8] sm:$0x1]
      %v380 = vsel %vm285, 0, %v379
      %381 = vst [vmem:[#allocation2 + $0xf8] sm:$0x1] %v380
      %v382 = vld [vmem:[#allocation2 + $0x100] sm:$0x1]
      %v383 = vsel %vm285, 0, %v382
      %384 = vst [vmem:[#allocation2 + $0x100] sm:$0x1] %v383
      %v385 = vld [vmem:[#allocation2 + $0x108] sm:$0x1]
      %v386 = vsel %vm285, 0, %v385
      %387 = vst [vmem:[#allocation2 + $0x108] sm:$0x1] %v386
      %v388 = vld [vmem:[#allocation2 + $0x110] sm:$0x1]
      %v389 = vsel %vm285, 0, %v388
      %390 = vst [vmem:[#allocation2 + $0x110] sm:$0x1] %v389
      %v391 = vld [vmem:[#allocation2 + $0x118] sm:$0x1]
      %v392 = vsel %vm285, 0, %v391
      %393 = vst [vmem:[#allocation2 + $0x118] sm:$0x1] %v392
      %v394 = vld [vmem:[#allocation2 + $0x120] sm:$0x1]
      %v395 = vsel %vm285, 0, %v394
      %396 = vst [vmem:[#allocation2 + $0x120] sm:$0x1] %v395
      %v397 = vld [vmem:[#allocation2 + $0x128] sm:$0x1]
      %v398 = vsel %vm285, 0, %v397
      %399 = vst [vmem:[#allocation2 + $0x128] sm:$0x1] %v398
      %v400 = vld [vmem:[#allocation2 + $0x130] sm:$0x1]
      %v401 = vsel %vm285, 0, %v400
      %402 = vst [vmem:[#allocation2 + $0x130] sm:$0x1] %v401
      %v403 = vld [vmem:[#allocation2 + $0x138] sm:$0x1]
      %v404 = vsel %vm285, 0, %v403
      %405 = vst [vmem:[#allocation2 + $0x138] sm:$0x1] %v404
      %vm406 = vsmask.f32 7938
      %vm407 = vmand %vm283, %vm406
      %v408 = vld [vmem:[#allocation2 + $0x4] sm:$0x1]
      %v409 = vsel %vm407, 0, %v408
      %410 = vst [vmem:[#allocation2 + $0x4] sm:$0x1] %v409
      %v411 = vld [vmem:[#allocation2 + $0xc] sm:$0x1]
      %v412 = vsel %vm407, 0, %v411
      %413 = vst [vmem:[#allocation2 + $0xc] sm:$0x1] %v412
      %v414 = vld [vmem:[#allocation2 + $0x14] sm:$0x1]
      %v415 = vsel %vm407, 0, %v414
      %416 = vst [vmem:[#allocation2 + $0x14] sm:$0x1] %v415
      %v417 = vld [vmem:[#allocation2 + $0x1c] sm:$0x1]
      %v418 = vsel %vm407, 0, %v417
      %419 = vst [vmem:[#allocation2 + $0x1c] sm:$0x1] %v418
      %v420 = vld [vmem:[#allocation2 + $0x24] sm:$0x1]
      %v421 = vsel %vm407, 0, %v420
      %422 = vst [vmem:[#allocation2 + $0x24] sm:$0x1] %v421
      %v423 = vld [vmem:[#allocation2 + $0x2c] sm:$0x1]
      %v424 = vsel %vm407, 0, %v423
      %425 = vst [vmem:[#allocation2 + $0x2c] sm:$0x1] %v424
      %v426 = vld [vmem:[#allocation2 + $0x34] sm:$0x1]
      %v427 = vsel %vm407, 0, %v426
      %428 = vst [vmem:[#allocation2 + $0x34] sm:$0x1] %v427
      %v429 = vld [vmem:[#allocation2 + $0x3c] sm:$0x1]
      %v430 = vsel %vm407, 0, %v429
      %431 = vst [vmem:[#allocation2 + $0x3c] sm:$0x1] %v430
      %v432 = vld [vmem:[#allocation2 + $0x44] sm:$0x1]
      %v433 = vsel %vm407, 0, %v432
      %434 = vst [vmem:[#allocation2 + $0x44] sm:$0x1] %v433
      %v435 = vld [vmem:[#allocation2 + $0x4c] sm:$0x1]
      %v436 = vsel %vm407, 0, %v435
      %437 = vst [vmem:[#allocation2 + $0x4c] sm:$0x1] %v436
      %v438 = vld [vmem:[#allocation2 + $0x54] sm:$0x1]
      %v439 = vsel %vm407, 0, %v438
      %440 = vst [vmem:[#allocation2 + $0x54] sm:$0x1] %v439
      %v441 = vld [vmem:[#allocation2 + $0x5c] sm:$0x1]
      %v442 = vsel %vm407, 0, %v441
      %443 = vst [vmem:[#allocation2 + $0x5c] sm:$0x1] %v442
      %v444 = vld [vmem:[#allocation2 + $0x64] sm:$0x1]
      %v445 = vsel %vm407, 0, %v444
      %446 = vst [vmem:[#allocation2 + $0x64] sm:$0x1] %v445
      %v447 = vld [vmem:[#allocation2 + $0x6c] sm:$0x1]
      %v448 = vsel %vm407, 0, %v447
      %449 = vst [vmem:[#allocation2 + $0x6c] sm:$0x1] %v448
      %v450 = vld [vmem:[#allocation2 + $0x74] sm:$0x1]
      %v451 = vsel %vm407, 0, %v450
      %452 = vst [vmem:[#allocation2 + $0x74] sm:$0x1] %v451
      %v453 = vld [vmem:[#allocation2 + $0x7c] sm:$0x1]
      %v454 = vsel %vm407, 0, %v453
      %455 = vst [vmem:[#allocation2 + $0x7c] sm:$0x1] %v454
      %v456 = vld [vmem:[#allocation2 + $0x84] sm:$0x1]
      %v457 = vsel %vm407, 0, %v456
      %458 = vst [vmem:[#allocation2 + $0x84] sm:$0x1] %v457
      %v459 = vld [vmem:[#allocation2 + $0x8c] sm:$0x1]
      %v460 = vsel %vm407, 0, %v459
      %461 = vst [vmem:[#allocation2 + $0x8c] sm:$0x1] %v460
      %v462 = vld [vmem:[#allocation2 + $0x94] sm:$0x1]
      %v463 = vsel %vm407, 0, %v462
      %464 = vst [vmem:[#allocation2 + $0x94] sm:$0x1] %v463
      %v465 = vld [vmem:[#allocation2 + $0x9c] sm:$0x1]
      %v466 = vsel %vm407, 0, %v465
      %467 = vst [vmem:[#allocation2 + $0x9c] sm:$0x1] %v466
      %v468 = vld [vmem:[#allocation2 + $0xa4] sm:$0x1]
      %v469 = vsel %vm407, 0, %v468
      %470 = vst [vmem:[#allocation2 + $0xa4] sm:$0x1] %v469
      %v471 = vld [vmem:[#allocation2 + $0xac] sm:$0x1]
      %v472 = vsel %vm407, 0, %v471
      %473 = vst [vmem:[#allocation2 + $0xac] sm:$0x1] %v472
      %v474 = vld [vmem:[#allocation2 + $0xb4] sm:$0x1]
      %v475 = vsel %vm407, 0, %v474
      %476 = vst [vmem:[#allocation2 + $0xb4] sm:$0x1] %v475
      %v477 = vld [vmem:[#allocation2 + $0xbc] sm:$0x1]
      %v478 = vsel %vm407, 0, %v477
      %479 = vst [vmem:[#allocation2 + $0xbc] sm:$0x1] %v478
      %v480 = vld [vmem:[#allocation2 + $0xc4] sm:$0x1]
      %v481 = vsel %vm407, 0, %v480
      %482 = vst [vmem:[#allocation2 + $0xc4] sm:$0x1] %v481
      %v483 = vld [vmem:[#allocation2 + $0xcc] sm:$0x1]
      %v484 = vsel %vm407, 0, %v483
      %485 = vst [vmem:[#allocation2 + $0xcc] sm:$0x1] %v484
      %v486 = vld [vmem:[#allocation2 + $0xd4] sm:$0x1]
      %v487 = vsel %vm407, 0, %v486
      %488 = vst [vmem:[#allocation2 + $0xd4] sm:$0x1] %v487
      %v489 = vld [vmem:[#allocation2 + $0xdc] sm:$0x1]
      %v490 = vsel %vm407, 0, %v489
      %491 = vst [vmem:[#allocation2 + $0xdc] sm:$0x1] %v490
      %v492 = vld [vmem:[#allocation2 + $0xe4] sm:$0x1]
      %v493 = vsel %vm407, 0, %v492
      %494 = vst [vmem:[#allocation2 + $0xe4] sm:$0x1] %v493
      %v495 = vld [vmem:[#allocation2 + $0xec] sm:$0x1]
      %v496 = vsel %vm407, 0, %v495
      %497 = vst [vmem:[#allocation2 + $0xec] sm:$0x1] %v496
      %v498 = vld [vmem:[#allocation2 + $0xf4] sm:$0x1]
      %v499 = vsel %vm407, 0, %v498
      %500 = vst [vmem:[#allocation2 + $0xf4] sm:$0x1] %v499
      %v501 = vld [vmem:[#allocation2 + $0xfc] sm:$0x1]
      %v502 = vsel %vm407, 0, %v501
      %503 = vst [vmem:[#allocation2 + $0xfc] sm:$0x1] %v502
      %v504 = vld [vmem:[#allocation2 + $0x104] sm:$0x1]
      %v505 = vsel %vm407, 0, %v504
      %506 = vst [vmem:[#allocation2 + $0x104] sm:$0x1] %v505
      %v507 = vld [vmem:[#allocation2 + $0x10c] sm:$0x1]
      %v508 = vsel %vm407, 0, %v507
      %509 = vst [vmem:[#allocation2 + $0x10c] sm:$0x1] %v508
      %v510 = vld [vmem:[#allocation2 + $0x114] sm:$0x1]
      %v511 = vsel %vm407, 0, %v510
      %512 = vst [vmem:[#allocation2 + $0x114] sm:$0x1] %v511
      %v513 = vld [vmem:[#allocation2 + $0x11c] sm:$0x1]
      %v514 = vsel %vm407, 0, %v513
      %515 = vst [vmem:[#allocation2 + $0x11c] sm:$0x1] %v514
      %v516 = vld [vmem:[#allocation2 + $0x124] sm:$0x1]
      %v517 = vsel %vm407, 0, %v516
      %518 = vst [vmem:[#allocation2 + $0x124] sm:$0x1] %v517
      %v519 = vld [vmem:[#allocation2 + $0x12c] sm:$0x1]
      %v520 = vsel %vm407, 0, %v519
      %521 = vst [vmem:[#allocation2 + $0x12c] sm:$0x1] %v520
      %v522 = vld [vmem:[#allocation2 + $0x134] sm:$0x1]
      %v523 = vsel %vm407, 0, %v522
      %524 = vst [vmem:[#allocation2 + $0x134] sm:$0x1] %v523
      %v525 = vld [vmem:[#allocation2 + $0x13c] sm:$0x1]
      %v526 = vsel %vm407, 0, %v525
      %527 = vst [vmem:[#allocation2 + $0x13c] sm:$0x1] %v526
      %528 = vst [vmem:[#allocation3] sm:$0xf] 0
      %529 = vst [vmem:[#allocation3 + $0x4] sm:$0x1] 0
      %530 = vst [vmem:[#allocation3 + $0x50] sm:$0xf] 0
      %531 = vst [vmem:[#allocation3 + $0x54] sm:$0x1] 0
      %532 = vst [vmem:[#allocation3 + $0xa0] sm:$0xf] 0
      %533 = vst [vmem:[#allocation3 + $0xa4] sm:$0x1] 0
      %534 = vst [vmem:[#allocation3 + $0xf0] sm:$0xf] 0
      %535 = vst [vmem:[#allocation3 + $0xf4] sm:$0x1] 0
      %s536 = scalar_lea.vmem [#allocation3], 72
      %537 = vst [vmem:[%s536] sm:$0xf] 0
      %538 = vst [vmem:[%s536 + $0x4] sm:$0x1] 0
      %539 = vst [vmem:[%s536 + $0x50] sm:$0xf] 0
      %540 = vst [vmem:[%s536 + $0x54] sm:$0x1] 0
      %541 = vst [vmem:[%s536 + $0xa0] sm:$0xf] 0
      %542 = vst [vmem:[%s536 + $0xa4] sm:$0x1] 0
      %543 = vst [vmem:[%s536 + $0xf0] sm:$0xf] 0
      %544 = vst [vmem:[%s536 + $0xf4] sm:$0x1] 0
      %v545 = vld [vmem:[#allocation3] sm:$0x1]
      %v546 = vsel %vm285, 0, %v545
      %547 = vst [vmem:[#allocation3] sm:$0x1] %v546
      %v548 = vld [vmem:[#allocation3 + $0x8] sm:$0x1]
      %v549 = vsel %vm285, 0, %v548
      %550 = vst [vmem:[#allocation3 + $0x8] sm:$0x1] %v549
      %v551 = vld [vmem:[#allocation3 + $0x10] sm:$0x1]
      %v552 = vsel %vm285, 0, %v551
      %553 = vst [vmem:[#allocation3 + $0x10] sm:$0x1] %v552
      %v554 = vld [vmem:[#allocation3 + $0x18] sm:$0x1]
      %v555 = vsel %vm285, 0, %v554
      %556 = vst [vmem:[#allocation3 + $0x18] sm:$0x1] %v555
      %v557 = vld [vmem:[#allocation3 + $0x20] sm:$0x1]
      %v558 = vsel %vm285, 0, %v557
      %559 = vst [vmem:[#allocation3 + $0x20] sm:$0x1] %v558
      %v560 = vld [vmem:[#allocation3 + $0x28] sm:$0x1]
      %v561 = vsel %vm285, 0, %v560
      %562 = vst [vmem:[#allocation3 + $0x28] sm:$0x1] %v561
      %v563 = vld [vmem:[#allocation3 + $0x30] sm:$0x1]
      %v564 = vsel %vm285, 0, %v563
      %565 = vst [vmem:[#allocation3 + $0x30] sm:$0x1] %v564
      %v566 = vld [vmem:[#allocation3 + $0x38] sm:$0x1]
      %v567 = vsel %vm285, 0, %v566
      %568 = vst [vmem:[#allocation3 + $0x38] sm:$0x1] %v567
      %v569 = vld [vmem:[#allocation3 + $0x40] sm:$0x1]
      %v570 = vsel %vm285, 0, %v569
      %571 = vst [vmem:[#allocation3 + $0x40] sm:$0x1] %v570
      %v572 = vld [vmem:[#allocation3 + $0x48] sm:$0x1]
      %v573 = vsel %vm285, 0, %v572
      %574 = vst [vmem:[#allocation3 + $0x48] sm:$0x1] %v573
      %v575 = vld [vmem:[#allocation3 + $0x50] sm:$0x1]
      %v576 = vsel %vm285, 0, %v575
      %577 = vst [vmem:[#allocation3 + $0x50] sm:$0x1] %v576
      %v578 = vld [vmem:[#allocation3 + $0x58] sm:$0x1]
      %v579 = vsel %vm285, 0, %v578
      %580 = vst [vmem:[#allocation3 + $0x58] sm:$0x1] %v579
      %v581 = vld [vmem:[#allocation3 + $0x60] sm:$0x1]
      %v582 = vsel %vm285, 0, %v581
      %583 = vst [vmem:[#allocation3 + $0x60] sm:$0x1] %v582
      %v584 = vld [vmem:[#allocation3 + $0x68] sm:$0x1]
      %v585 = vsel %vm285, 0, %v584
      %586 = vst [vmem:[#allocation3 + $0x68] sm:$0x1] %v585
      %v587 = vld [vmem:[#allocation3 + $0x70] sm:$0x1]
      %v588 = vsel %vm285, 0, %v587
      %589 = vst [vmem:[#allocation3 + $0x70] sm:$0x1] %v588
      %v590 = vld [vmem:[#allocation3 + $0x78] sm:$0x1]
      %v591 = vsel %vm285, 0, %v590
      %592 = vst [vmem:[#allocation3 + $0x78] sm:$0x1] %v591
      %v593 = vld [vmem:[#allocation3 + $0x80] sm:$0x1]
      %v594 = vsel %vm285, 0, %v593
      %595 = vst [vmem:[#allocation3 + $0x80] sm:$0x1] %v594
      %v596 = vld [vmem:[#allocation3 + $0x88] sm:$0x1]
      %v597 = vsel %vm285, 0, %v596
      %598 = vst [vmem:[#allocation3 + $0x88] sm:$0x1] %v597
      %v599 = vld [vmem:[#allocation3 + $0x90] sm:$0x1]
      %v600 = vsel %vm285, 0, %v599
      %601 = vst [vmem:[#allocation3 + $0x90] sm:$0x1] %v600
      %v602 = vld [vmem:[#allocation3 + $0x98] sm:$0x1]
      %v603 = vsel %vm285, 0, %v602
      %604 = vst [vmem:[#allocation3 + $0x98] sm:$0x1] %v603
      %v605 = vld [vmem:[#allocation3 + $0xa0] sm:$0x1]
      %v606 = vsel %vm285, 0, %v605
      %607 = vst [vmem:[#allocation3 + $0xa0] sm:$0x1] %v606
      %v608 = vld [vmem:[#allocation3 + $0xa8] sm:$0x1]
      %v609 = vsel %vm285, 0, %v608
      %610 = vst [vmem:[#allocation3 + $0xa8] sm:$0x1] %v609
      %v611 = vld [vmem:[#allocation3 + $0xb0] sm:$0x1]
      %v612 = vsel %vm285, 0, %v611
      %613 = vst [vmem:[#allocation3 + $0xb0] sm:$0x1] %v612
      %v614 = vld [vmem:[#allocation3 + $0xb8] sm:$0x1]
      %v615 = vsel %vm285, 0, %v614
      %616 = vst [vmem:[#allocation3 + $0xb8] sm:$0x1] %v615
      %v617 = vld [vmem:[#allocation3 + $0xc0] sm:$0x1]
      %v618 = vsel %vm285, 0, %v617
      %619 = vst [vmem:[#allocation3 + $0xc0] sm:$0x1] %v618
      %v620 = vld [vmem:[#allocation3 + $0xc8] sm:$0x1]
      %v621 = vsel %vm285, 0, %v620
      %622 = vst [vmem:[#allocation3 + $0xc8] sm:$0x1] %v621
      %v623 = vld [vmem:[#allocation3 + $0xd0] sm:$0x1]
      %v624 = vsel %vm285, 0, %v623
      %625 = vst [vmem:[#allocation3 + $0xd0] sm:$0x1] %v624
      %v626 = vld [vmem:[#allocation3 + $0xd8] sm:$0x1]
      %v627 = vsel %vm285, 0, %v626
      %628 = vst [vmem:[#allocation3 + $0xd8] sm:$0x1] %v627
      %v629 = vld [vmem:[#allocation3 + $0xe0] sm:$0x1]
      %v630 = vsel %vm285, 0, %v629
      %631 = vst [vmem:[#allocation3 + $0xe0] sm:$0x1] %v630
      %v632 = vld [vmem:[#allocation3 + $0xe8] sm:$0x1]
      %v633 = vsel %vm285, 0, %v632
      %634 = vst [vmem:[#allocation3 + $0xe8] sm:$0x1] %v633
      %v635 = vld [vmem:[#allocation3 + $0xf0] sm:$0x1]
      %v636 = vsel %vm285, 0, %v635
      %637 = vst [vmem:[#allocation3 + $0xf0] sm:$0x1] %v636
      %v638 = vld [vmem:[#allocation3 + $0xf8] sm:$0x1]
      %v639 = vsel %vm285, 0, %v638
      %640 = vst [vmem:[#allocation3 + $0xf8] sm:$0x1] %v639
      %v641 = vld [vmem:[#allocation3 + $0x100] sm:$0x1]
      %v642 = vsel %vm285, 0, %v641
      %643 = vst [vmem:[#allocation3 + $0x100] sm:$0x1] %v642
      %v644 = vld [vmem:[#allocation3 + $0x108] sm:$0x1]
      %v645 = vsel %vm285, 0, %v644
      %646 = vst [vmem:[#allocation3 + $0x108] sm:$0x1] %v645
      %v647 = vld [vmem:[#allocation3 + $0x110] sm:$0x1]
      %v648 = vsel %vm285, 0, %v647
      %649 = vst [vmem:[#allocation3 + $0x110] sm:$0x1] %v648
      %v650 = vld [vmem:[#allocation3 + $0x118] sm:$0x1]
      %v651 = vsel %vm285, 0, %v650
      %652 = vst [vmem:[#allocation3 + $0x118] sm:$0x1] %v651
      %v653 = vld [vmem:[#allocation3 + $0x120] sm:$0x1]
      %v654 = vsel %vm285, 0, %v653
      %655 = vst [vmem:[#allocation3 + $0x120] sm:$0x1] %v654
      %v656 = vld [vmem:[#allocation3 + $0x128] sm:$0x1]
      %v657 = vsel %vm285, 0, %v656
      %658 = vst [vmem:[#allocation3 + $0x128] sm:$0x1] %v657
      %v659 = vld [vmem:[#allocation3 + $0x130] sm:$0x1]
      %v660 = vsel %vm285, 0, %v659
      %661 = vst [vmem:[#allocation3 + $0x130] sm:$0x1] %v660
      %v662 = vld [vmem:[#allocation3 + $0x138] sm:$0x1]
      %v663 = vsel %vm285, 0, %v662
      %664 = vst [vmem:[#allocation3 + $0x138] sm:$0x1] %v663
      %v665 = vld [vmem:[#allocation3 + $0x4] sm:$0x1]
      %v666 = vsel %vm407, 0, %v665
      %667 = vst [vmem:[#allocation3 + $0x4] sm:$0x1] %v666
      %v668 = vld [vmem:[#allocation3 + $0xc] sm:$0x1]
      %v669 = vsel %vm407, 0, %v668
      %670 = vst [vmem:[#allocation3 + $0xc] sm:$0x1] %v669
      %v671 = vld [vmem:[#allocation3 + $0x14] sm:$0x1]
      %v672 = vsel %vm407, 0, %v671
      %673 = vst [vmem:[#allocation3 + $0x14] sm:$0x1] %v672
      %v674 = vld [vmem:[#allocation3 + $0x1c] sm:$0x1]
      %v675 = vsel %vm407, 0, %v674
      %676 = vst [vmem:[#allocation3 + $0x1c] sm:$0x1] %v675
      %v677 = vld [vmem:[#allocation3 + $0x24] sm:$0x1]
      %v678 = vsel %vm407, 0, %v677
      %679 = vst [vmem:[#allocation3 + $0x24] sm:$0x1] %v678
      %v680 = vld [vmem:[#allocation3 + $0x2c] sm:$0x1]
      %v681 = vsel %vm407, 0, %v680
      %682 = vst [vmem:[#allocation3 + $0x2c] sm:$0x1] %v681
      %v683 = vld [vmem:[#allocation3 + $0x34] sm:$0x1]
      %v684 = vsel %vm407, 0, %v683
      %685 = vst [vmem:[#allocation3 + $0x34] sm:$0x1] %v684
      %v686 = vld [vmem:[#allocation3 + $0x3c] sm:$0x1]
      %v687 = vsel %vm407, 0, %v686
      %688 = vst [vmem:[#allocation3 + $0x3c] sm:$0x1] %v687
      %v689 = vld [vmem:[#allocation3 + $0x44] sm:$0x1]
      %v690 = vsel %vm407, 0, %v689
      %691 = vst [vmem:[#allocation3 + $0x44] sm:$0x1] %v690
      %v692 = vld [vmem:[#allocation3 + $0x4c] sm:$0x1]
      %v693 = vsel %vm407, 0, %v692
      %694 = vst [vmem:[#allocation3 + $0x4c] sm:$0x1] %v693
      %v695 = vld [vmem:[#allocation3 + $0x54] sm:$0x1]
      %v696 = vsel %vm407, 0, %v695
      %697 = vst [vmem:[#allocation3 + $0x54] sm:$0x1] %v696
      %v698 = vld [vmem:[#allocation3 + $0x5c] sm:$0x1]
      %v699 = vsel %vm407, 0, %v698
      %700 = vst [vmem:[#allocation3 + $0x5c] sm:$0x1] %v699
      %v701 = vld [vmem:[#allocation3 + $0x64] sm:$0x1]
      %v702 = vsel %vm407, 0, %v701
      %703 = vst [vmem:[#allocation3 + $0x64] sm:$0x1] %v702
      %v704 = vld [vmem:[#allocation3 + $0x6c] sm:$0x1]
      %v705 = vsel %vm407, 0, %v704
      %706 = vst [vmem:[#allocation3 + $0x6c] sm:$0x1] %v705
      %v707 = vld [vmem:[#allocation3 + $0x74] sm:$0x1]
      %v708 = vsel %vm407, 0, %v707
      %709 = vst [vmem:[#allocation3 + $0x74] sm:$0x1] %v708
      %v710 = vld [vmem:[#allocation3 + $0x7c] sm:$0x1]
      %v711 = vsel %vm407, 0, %v710
      %712 = vst [vmem:[#allocation3 + $0x7c] sm:$0x1] %v711
      %v713 = vld [vmem:[#allocation3 + $0x84] sm:$0x1]
      %v714 = vsel %vm407, 0, %v713
      %715 = vst [vmem:[#allocation3 + $0x84] sm:$0x1] %v714
      %v716 = vld [vmem:[#allocation3 + $0x8c] sm:$0x1]
      %v717 = vsel %vm407, 0, %v716
      %718 = vst [vmem:[#allocation3 + $0x8c] sm:$0x1] %v717
      %v719 = vld [vmem:[#allocation3 + $0x94] sm:$0x1]
      %v720 = vsel %vm407, 0, %v719
      %721 = vst [vmem:[#allocation3 + $0x94] sm:$0x1] %v720
      %v722 = vld [vmem:[#allocation3 + $0x9c] sm:$0x1]
      %v723 = vsel %vm407, 0, %v722
      %724 = vst [vmem:[#allocation3 + $0x9c] sm:$0x1] %v723
      %v725 = vld [vmem:[#allocation3 + $0xa4] sm:$0x1]
      %v726 = vsel %vm407, 0, %v725
      %727 = vst [vmem:[#allocation3 + $0xa4] sm:$0x1] %v726
      %v728 = vld [vmem:[#allocation3 + $0xac] sm:$0x1]
      %v729 = vsel %vm407, 0, %v728
      %730 = vst [vmem:[#allocation3 + $0xac] sm:$0x1] %v729
      %v731 = vld [vmem:[#allocation3 + $0xb4] sm:$0x1]
      %v732 = vsel %vm407, 0, %v731
      %733 = vst [vmem:[#allocation3 + $0xb4] sm:$0x1] %v732
      %v734 = vld [vmem:[#allocation3 + $0xbc] sm:$0x1]
      %v735 = vsel %vm407, 0, %v734
      %736 = vst [vmem:[#allocation3 + $0xbc] sm:$0x1] %v735
      %v737 = vld [vmem:[#allocation3 + $0xc4] sm:$0x1]
      %v738 = vsel %vm407, 0, %v737
      %739 = vst [vmem:[#allocation3 + $0xc4] sm:$0x1] %v738
      %v740 = vld [vmem:[#allocation3 + $0xcc] sm:$0x1]
      %v741 = vsel %vm407, 0, %v740
      %742 = vst [vmem:[#allocation3 + $0xcc] sm:$0x1] %v741
      %v743 = vld [vmem:[#allocation3 + $0xd4] sm:$0x1]
      %v744 = vsel %vm407, 0, %v743
      %745 = vst [vmem:[#allocation3 + $0xd4] sm:$0x1] %v744
      %v746 = vld [vmem:[#allocation3 + $0xdc] sm:$0x1]
      %v747 = vsel %vm407, 0, %v746
      %748 = vst [vmem:[#allocation3 + $0xdc] sm:$0x1] %v747
      %v749 = vld [vmem:[#allocation3 + $0xe4] sm:$0x1]
      %v750 = vsel %vm407, 0, %v749
      %751 = vst [vmem:[#allocation3 + $0xe4] sm:$0x1] %v750
      %v752 = vld [vmem:[#allocation3 + $0xec] sm:$0x1]
      %v753 = vsel %vm407, 0, %v752
      %754 = vst [vmem:[#allocation3 + $0xec] sm:$0x1] %v753
      %v755 = vld [vmem:[#allocation3 + $0xf4] sm:$0x1]
      %v756 = vsel %vm407, 0, %v755
      %757 = vst [vmem:[#allocation3 + $0xf4] sm:$0x1] %v756
      %v758 = vld [vmem:[#allocation3 + $0xfc] sm:$0x1]
      %v759 = vsel %vm407, 0, %v758
      %760 = vst [vmem:[#allocation3 + $0xfc] sm:$0x1] %v759
      %v761 = vld [vmem:[#allocation3 + $0x104] sm:$0x1]
      %v762 = vsel %vm407, 0, %v761
      %763 = vst [vmem:[#allocation3 + $0x104] sm:$0x1] %v762
      %v764 = vld [vmem:[#allocation3 + $0x10c] sm:$0x1]
      %v765 = vsel %vm407, 0, %v764
      %766 = vst [vmem:[#allocation3 + $0x10c] sm:$0x1] %v765
      %v767 = vld [vmem:[#allocation3 + $0x114] sm:$0x1]
      %v768 = vsel %vm407, 0, %v767
      %769 = vst [vmem:[#allocation3 + $0x114] sm:$0x1] %v768
      %v770 = vld [vmem:[#allocation3 + $0x11c] sm:$0x1]
      %v771 = vsel %vm407, 0, %v770
      %772 = vst [vmem:[#allocation3 + $0x11c] sm:$0x1] %v771
      %v773 = vld [vmem:[#allocation3 + $0x124] sm:$0x1]
      %v774 = vsel %vm407, 0, %v773
      %775 = vst [vmem:[#allocation3 + $0x124] sm:$0x1] %v774
      %v776 = vld [vmem:[#allocation3 + $0x12c] sm:$0x1]
      %v777 = vsel %vm407, 0, %v776
      %778 = vst [vmem:[#allocation3 + $0x12c] sm:$0x1] %v777
      %v779 = vld [vmem:[#allocation3 + $0x134] sm:$0x1]
      %v780 = vsel %vm407, 0, %v779
      %781 = vst [vmem:[#allocation3 + $0x134] sm:$0x1] %v780
      %v782 = vld [vmem:[#allocation3 + $0x13c] sm:$0x1]
      %v783 = vsel %vm407, 0, %v782
      %784 = vst [vmem:[#allocation3 + $0x13c] sm:$0x1] %v783
      %v786 = vshrl.u32 %v234, 16
      %v788 = vrot.slane %v786, 7
      %v789 = vshll.u32 %v234, 16
      %v791 = vor.u32 %v788, %v789
      %v792 = vrot.slane %v788, 4
      %v794 = vshrl.u32 %v235, 16
      %v796 = vrot.slane %v794, 7
      %v797 = vshll.u32 %v235, 16
      %v799 = vor.u32 %v796, %v797
      %v800 = vrot.slane %v796, 4
      %v802 = vshrl.u32 %v236, 16
      %v804 = vrot.slane %v802, 7
      %v805 = vshll.u32 %v236, 16
      %v807 = vor.u32 %v804, %v805
      %v808 = vrot.slane %v804, 4
      %v810 = vshrl.u32 %v237, 16
      %v812 = vrot.slane %v810, 7
      %v813 = vshll.u32 %v237, 16
      %v815 = vor.u32 %v812, %v813
      %v816 = vrot.slane %v812, 4
      %v818 = vshrl.u32 %v238, 16
      %v820 = vrot.slane %v818, 7
      %v821 = vshll.u32 %v238, 16
      %v823 = vor.u32 %v820, %v821
      %v824 = vrot.slane %v820, 4
      %v826 = vshrl.u32 %v239, 16
      %v828 = vrot.slane %v826, 7
      %v829 = vshll.u32 %v239, 16
      %v831 = vor.u32 %v828, %v829
      %v832 = vrot.slane %v828, 4
      %v834 = vshrl.u32 %v240, 16
      %v836 = vrot.slane %v834, 7
      %v837 = vshll.u32 %v240, 16
      %v839 = vor.u32 %v836, %v837
      %v840 = vrot.slane %v836, 4
      %v842 = vshrl.u32 %v241, 16
      %v844 = vrot.slane %v842, 7
      %v845 = vshll.u32 %v241, 16
      %v847 = vor.u32 %v844, %v845
      %v848 = vrot.slane %v844, 4
      %v850 = vshrl.u32 %v242, 16
      %v852 = vrot.slane %v850, 7
      %v853 = vshll.u32 %v242, 16
      %v855 = vor.u32 %v852, %v853
      %v856 = vrot.slane %v852, 4
      %v858 = vshrl.u32 %v243, 16
      %v860 = vrot.slane %v858, 7
      %v861 = vshll.u32 %v243, 16
      %v863 = vor.u32 %v860, %v861
      %v864 = vrot.slane %v860, 4
      %v866 = vshrl.u32 %v244, 16
      %v868 = vrot.slane %v866, 7
      %v869 = vshll.u32 %v244, 16
      %v871 = vor.u32 %v868, %v869
      %v872 = vrot.slane %v868, 4
      %v874 = vshrl.u32 %v245, 16
      %v876 = vrot.slane %v874, 7
      %v877 = vshll.u32 %v245, 16
      %v879 = vor.u32 %v876, %v877
      %v880 = vrot.slane %v876, 4
      %v882 = vshrl.u32 %v246, 16
      %v884 = vrot.slane %v882, 7
      %v885 = vshll.u32 %v246, 16
      %v887 = vor.u32 %v884, %v885
      %v888 = vrot.slane %v884, 4
      %v890 = vshrl.u32 %v247, 16
      %v892 = vrot.slane %v890, 7
      %v893 = vshll.u32 %v247, 16
      %v895 = vor.u32 %v892, %v893
      %v896 = vrot.slane %v892, 4
      %v898 = vshrl.u32 %v248, 16
      %v900 = vrot.slane %v898, 7
      %v901 = vshll.u32 %v248, 16
      %v903 = vor.u32 %v900, %v901
      %v904 = vrot.slane %v900, 4
      %v906 = vshrl.u32 %v249, 16
      %v908 = vrot.slane %v906, 7
      %v909 = vshll.u32 %v249, 16
      %v911 = vor.u32 %v908, %v909
      %v912 = vrot.slane %v908, 4
      %v914 = vshrl.u32 %v250, 16
      %v916 = vrot.slane %v914, 7
      %v917 = vshll.u32 %v250, 16
      %v919 = vor.u32 %v916, %v917
      %v920 = vrot.slane %v916, 4
      %v922 = vshrl.u32 %v251, 16
      %v924 = vrot.slane %v922, 7
      %v925 = vshll.u32 %v251, 16
      %v927 = vor.u32 %v924, %v925
      %v928 = vrot.slane %v924, 4
      %v930 = vshrl.u32 %v252, 16
      %v932 = vrot.slane %v930, 7
      %v933 = vshll.u32 %v252, 16
      %v935 = vor.u32 %v932, %v933
      %v936 = vrot.slane %v932, 4
      %v938 = vshrl.u32 %v253, 16
      %v940 = vrot.slane %v938, 7
      %v941 = vshll.u32 %v253, 16
      %v943 = vor.u32 %v940, %v941
      %v944 = vrot.slane %v940, 4
      %v946 = vshrl.u32 %v254, 16
      %v948 = vrot.slane %v946, 7
      %v949 = vshll.u32 %v254, 16
      %v951 = vor.u32 %v948, %v949
      %v952 = vrot.slane %v948, 4
      %v954 = vshrl.u32 %v255, 16
      %v956 = vrot.slane %v954, 7
      %v957 = vshll.u32 %v255, 16
      %v959 = vor.u32 %v956, %v957
      %v960 = vrot.slane %v956, 4
      %v962 = vshrl.u32 %v256, 16
      %v964 = vrot.slane %v962, 7
      %v965 = vshll.u32 %v256, 16
      %v967 = vor.u32 %v964, %v965
      %v968 = vrot.slane %v964, 4
      %v970 = vshrl.u32 %v257, 16
      %v972 = vrot.slane %v970, 7
      %v973 = vshll.u32 %v257, 16
      %v975 = vor.u32 %v972, %v973
      %v976 = vrot.slane %v972, 4
      %v978 = vshrl.u32 %v258, 16
      %v980 = vrot.slane %v978, 7
      %v981 = vshll.u32 %v258, 16
      %v983 = vor.u32 %v980, %v981
      %v984 = vrot.slane %v980, 4
      %v986 = vshrl.u32 %v259, 16
      %v988 = vrot.slane %v986, 7
      %v989 = vshll.u32 %v259, 16
      %v991 = vor.u32 %v988, %v989
      %v992 = vrot.slane %v988, 4
      %v994 = vshrl.u32 %v260, 16
      %v996 = vrot.slane %v994, 7
      %v997 = vshll.u32 %v260, 16
      %v999 = vor.u32 %v996, %v997
      %v1000 = vrot.slane %v996, 4
      %v1002 = vshrl.u32 %v261, 16
      %v1004 = vrot.slane %v1002, 7
      %v1005 = vshll.u32 %v261, 16
      %v1007 = vor.u32 %v1004, %v1005
      %v1008 = vrot.slane %v1004, 4
      %v1010 = vshrl.u32 %v262, 16
      %v1012 = vrot.slane %v1010, 7
      %v1013 = vshll.u32 %v262, 16
      %v1015 = vor.u32 %v1012, %v1013
      %v1016 = vrot.slane %v1012, 4
      %v1018 = vshrl.u32 %v263, 16
      %v1020 = vrot.slane %v1018, 7
      %v1021 = vshll.u32 %v263, 16
      %v1023 = vor.u32 %v1020, %v1021
      %v1024 = vrot.slane %v1020, 4
      %v1026 = vshrl.u32 %v264, 16
      %v1028 = vrot.slane %v1026, 7
      %v1029 = vshll.u32 %v264, 16
      %v1031 = vor.u32 %v1028, %v1029
      %v1032 = vrot.slane %v1028, 4
      %v1034 = vshrl.u32 %v265, 16
      %v1036 = vrot.slane %v1034, 7
      %v1037 = vshll.u32 %v265, 16
      %v1039 = vor.u32 %v1036, %v1037
      %v1040 = vrot.slane %v1036, 4
      %s1105 = scalar_lea.vmem [#allocation2], 8
      %vm1106 = vcmask 1043456
      %vm1107 = vmand %vm1106, %vm406
      %v1108 = vld [vmem:[%s1105] sm:$0xf]
      %v1109 = vsel %vm1107, %v791, %v1108
      %1110 = vst [vmem:[%s1105] sm:$0xf] %v1109
      %v1111 = vld [vmem:[%s1105 + $0x4] sm:$0x1]
      %v1112 = vsel %vm285, %v792, %v1111
      %1113 = vst [vmem:[%s1105 + $0x4] sm:$0x1] %v1112
      %v1114 = vld [vmem:[%s1105 + $0x8] sm:$0xf]
      %v1115 = vsel %vm1107, %v799, %v1114
      %1116 = vst [vmem:[%s1105 + $0x8] sm:$0xf] %v1115
      %v1117 = vld [vmem:[%s1105 + $0xc] sm:$0x1]
      %v1118 = vsel %vm285, %v800, %v1117
      %1119 = vst [vmem:[%s1105 + $0xc] sm:$0x1] %v1118
      %v1120 = vld [vmem:[%s1105 + $0x10] sm:$0xf]
      %v1121 = vsel %vm1107, %v807, %v1120
      %1122 = vst [vmem:[%s1105 + $0x10] sm:$0xf] %v1121
      %v1123 = vld [vmem:[%s1105 + $0x14] sm:$0x1]
      %v1124 = vsel %vm285, %v808, %v1123
      %1125 = vst [vmem:[%s1105 + $0x14] sm:$0x1] %v1124
      %v1126 = vld [vmem:[%s1105 + $0x18] sm:$0xf]
      %v1127 = vsel %vm1107, %v815, %v1126
      %1128 = vst [vmem:[%s1105 + $0x18] sm:$0xf] %v1127
      %v1129 = vld [vmem:[%s1105 + $0x1c] sm:$0x1]
      %v1130 = vsel %vm285, %v816, %v1129
      %1131 = vst [vmem:[%s1105 + $0x1c] sm:$0x1] %v1130
      %v1132 = vld [vmem:[%s1105 + $0x20] sm:$0xf]
      %v1133 = vsel %vm1107, %v823, %v1132
      %1134 = vst [vmem:[%s1105 + $0x20] sm:$0xf] %v1133
      %v1135 = vld [vmem:[%s1105 + $0x24] sm:$0x1]
      %v1136 = vsel %vm285, %v824, %v1135
      %1137 = vst [vmem:[%s1105 + $0x24] sm:$0x1] %v1136
      %v1138 = vld [vmem:[%s1105 + $0x28] sm:$0xf]
      %v1139 = vsel %vm1107, %v831, %v1138
      %1140 = vst [vmem:[%s1105 + $0x28] sm:$0xf] %v1139
      %v1141 = vld [vmem:[%s1105 + $0x2c] sm:$0x1]
      %v1142 = vsel %vm285, %v832, %v1141
      %1143 = vst [vmem:[%s1105 + $0x2c] sm:$0x1] %v1142
      %v1144 = vld [vmem:[%s1105 + $0x30] sm:$0xf]
      %v1145 = vsel %vm1107, %v839, %v1144
      %1146 = vst [vmem:[%s1105 + $0x30] sm:$0xf] %v1145
      %v1147 = vld [vmem:[%s1105 + $0x34] sm:$0x1]
      %v1148 = vsel %vm285, %v840, %v1147
      %1149 = vst [vmem:[%s1105 + $0x34] sm:$0x1] %v1148
      %v1150 = vld [vmem:[%s1105 + $0x38] sm:$0xf]
      %v1151 = vsel %vm1107, %v847, %v1150
      %1152 = vst [vmem:[%s1105 + $0x38] sm:$0xf] %v1151
      %v1153 = vld [vmem:[%s1105 + $0x3c] sm:$0x1]
      %v1154 = vsel %vm285, %v848, %v1153
      %1155 = vst [vmem:[%s1105 + $0x3c] sm:$0x1] %v1154
      %v1156 = vld [vmem:[%s1105 + $0x50] sm:$0xf]
      %v1157 = vsel %vm1107, %v855, %v1156
      %1158 = vst [vmem:[%s1105 + $0x50] sm:$0xf] %v1157
      %v1159 = vld [vmem:[%s1105 + $0x54] sm:$0x1]
      %v1160 = vsel %vm285, %v856, %v1159
      %1161 = vst [vmem:[%s1105 + $0x54] sm:$0x1] %v1160
      %v1162 = vld [vmem:[%s1105 + $0x58] sm:$0xf]
      %v1163 = vsel %vm1107, %v863, %v1162
      %1164 = vst [vmem:[%s1105 + $0x58] sm:$0xf] %v1163
      %v1165 = vld [vmem:[%s1105 + $0x5c] sm:$0x1]
      %v1166 = vsel %vm285, %v864, %v1165
      %1167 = vst [vmem:[%s1105 + $0x5c] sm:$0x1] %v1166
      %v1168 = vld [vmem:[%s1105 + $0x60] sm:$0xf]
      %v1169 = vsel %vm1107, %v871, %v1168
      %1170 = vst [vmem:[%s1105 + $0x60] sm:$0xf] %v1169
      %v1171 = vld [vmem:[%s1105 + $0x64] sm:$0x1]
      %v1172 = vsel %vm285, %v872, %v1171
      %1173 = vst [vmem:[%s1105 + $0x64] sm:$0x1] %v1172
      %v1174 = vld [vmem:[%s1105 + $0x68] sm:$0xf]
      %v1175 = vsel %vm1107, %v879, %v1174
      %1176 = vst [vmem:[%s1105 + $0x68] sm:$0xf] %v1175
      %v1177 = vld [vmem:[%s1105 + $0x6c] sm:$0x1]
      %v1178 = vsel %vm285, %v880, %v1177
      %1179 = vst [vmem:[%s1105 + $0x6c] sm:$0x1] %v1178
      %v1180 = vld [vmem:[%s1105 + $0x70] sm:$0xf]
      %v1181 = vsel %vm1107, %v887, %v1180
      %1182 = vst [vmem:[%s1105 + $0x70] sm:$0xf] %v1181
      %v1183 = vld [vmem:[%s1105 + $0x74] sm:$0x1]
      %v1184 = vsel %vm285, %v888, %v1183
      %1185 = vst [vmem:[%s1105 + $0x74] sm:$0x1] %v1184
      %v1186 = vld [vmem:[%s1105 + $0x78] sm:$0xf]
      %v1187 = vsel %vm1107, %v895, %v1186
      %1188 = vst [vmem:[%s1105 + $0x78] sm:$0xf] %v1187
      %v1189 = vld [vmem:[%s1105 + $0x7c] sm:$0x1]
      %v1190 = vsel %vm285, %v896, %v1189
      %1191 = vst [vmem:[%s1105 + $0x7c] sm:$0x1] %v1190
      %v1192 = vld [vmem:[%s1105 + $0x80] sm:$0xf]
      %v1193 = vsel %vm1107, %v903, %v1192
      %1194 = vst [vmem:[%s1105 + $0x80] sm:$0xf] %v1193
      %v1195 = vld [vmem:[%s1105 + $0x84] sm:$0x1]
      %v1196 = vsel %vm285, %v904, %v1195
      %1197 = vst [vmem:[%s1105 + $0x84] sm:$0x1] %v1196
      %v1198 = vld [vmem:[%s1105 + $0x88] sm:$0xf]
      %v1199 = vsel %vm1107, %v911, %v1198
      %1200 = vst [vmem:[%s1105 + $0x88] sm:$0xf] %v1199
      %v1201 = vld [vmem:[%s1105 + $0x8c] sm:$0x1]
      %v1202 = vsel %vm285, %v912, %v1201
      %1203 = vst [vmem:[%s1105 + $0x8c] sm:$0x1] %v1202
      %v1204 = vld [vmem:[%s1105 + $0xa0] sm:$0xf]
      %v1205 = vsel %vm1107, %v919, %v1204
      %1206 = vst [vmem:[%s1105 + $0xa0] sm:$0xf] %v1205
      %v1207 = vld [vmem:[%s1105 + $0xa4] sm:$0x1]
      %v1208 = vsel %vm285, %v920, %v1207
      %1209 = vst [vmem:[%s1105 + $0xa4] sm:$0x1] %v1208
      %v1210 = vld [vmem:[%s1105 + $0xa8] sm:$0xf]
      %v1211 = vsel %vm1107, %v927, %v1210
      %1212 = vst [vmem:[%s1105 + $0xa8] sm:$0xf] %v1211
      %v1213 = vld [vmem:[%s1105 + $0xac] sm:$0x1]
      %v1214 = vsel %vm285, %v928, %v1213
      %1215 = vst [vmem:[%s1105 + $0xac] sm:$0x1] %v1214
      %v1216 = vld [vmem:[%s1105 + $0xb0] sm:$0xf]
      %v1217 = vsel %vm1107, %v935, %v1216
      %1218 = vst [vmem:[%s1105 + $0xb0] sm:$0xf] %v1217
      %v1219 = vld [vmem:[%s1105 + $0xb4] sm:$0x1]
      %v1220 = vsel %vm285, %v936, %v1219
      %1221 = vst [vmem:[%s1105 + $0xb4] sm:$0x1] %v1220
      %v1222 = vld [vmem:[%s1105 + $0xb8] sm:$0xf]
      %v1223 = vsel %vm1107, %v943, %v1222
      %1224 = vst [vmem:[%s1105 + $0xb8] sm:$0xf] %v1223
      %v1225 = vld [vmem:[%s1105 + $0xbc] sm:$0x1]
      %v1226 = vsel %vm285, %v944, %v1225
      %1227 = vst [vmem:[%s1105 + $0xbc] sm:$0x1] %v1226
      %v1228 = vld [vmem:[%s1105 + $0xc0] sm:$0xf]
      %v1229 = vsel %vm1107, %v951, %v1228
      %1230 = vst [vmem:[%s1105 + $0xc0] sm:$0xf] %v1229
      %v1231 = vld [vmem:[%s1105 + $0xc4] sm:$0x1]
      %v1232 = vsel %vm285, %v952, %v1231
      %1233 = vst [vmem:[%s1105 + $0xc4] sm:$0x1] %v1232
      %v1234 = vld [vmem:[%s1105 + $0xc8] sm:$0xf]
      %v1235 = vsel %vm1107, %v959, %v1234
      %1236 = vst [vmem:[%s1105 + $0xc8] sm:$0xf] %v1235
      %v1237 = vld [vmem:[%s1105 + $0xcc] sm:$0x1]
      %v1238 = vsel %vm285, %v960, %v1237
      %1239 = vst [vmem:[%s1105 + $0xcc] sm:$0x1] %v1238
      %v1240 = vld [vmem:[%s1105 + $0xd0] sm:$0xf]
      %v1241 = vsel %vm1107, %v967, %v1240
      %1242 = vst [vmem:[%s1105 + $0xd0] sm:$0xf] %v1241
      %v1243 = vld [vmem:[%s1105 + $0xd4] sm:$0x1]
      %v1244 = vsel %vm285, %v968, %v1243
      %1245 = vst [vmem:[%s1105 + $0xd4] sm:$0x1] %v1244
      %v1246 = vld [vmem:[%s1105 + $0xd8] sm:$0xf]
      %v1247 = vsel %vm1107, %v975, %v1246
      %1248 = vst [vmem:[%s1105 + $0xd8] sm:$0xf] %v1247
      %v1249 = vld [vmem:[%s1105 + $0xdc] sm:$0x1]
      %v1250 = vsel %vm285, %v976, %v1249
      %1251 = vst [vmem:[%s1105 + $0xdc] sm:$0x1] %v1250
      %v1252 = vld [vmem:[%s1105 + $0xf0] sm:$0xf]
      %v1253 = vsel %vm1107, %v983, %v1252
      %1254 = vst [vmem:[%s1105 + $0xf0] sm:$0xf] %v1253
      %v1255 = vld [vmem:[%s1105 + $0xf4] sm:$0x1]
      %v1256 = vsel %vm285, %v984, %v1255
      %1257 = vst [vmem:[%s1105 + $0xf4] sm:$0x1] %v1256
      %v1258 = vld [vmem:[%s1105 + $0xf8] sm:$0xf]
      %v1259 = vsel %vm1107, %v991, %v1258
      %1260 = vst [vmem:[%s1105 + $0xf8] sm:$0xf] %v1259
      %v1261 = vld [vmem:[%s1105 + $0xfc] sm:$0x1]
      %v1262 = vsel %vm285, %v992, %v1261
      %1263 = vst [vmem:[%s1105 + $0xfc] sm:$0x1] %v1262
      %v1264 = vld [vmem:[%s1105 + $0x100] sm:$0xf]
      %v1265 = vsel %vm1107, %v999, %v1264
      %1266 = vst [vmem:[%s1105 + $0x100] sm:$0xf] %v1265
      %v1267 = vld [vmem:[%s1105 + $0x104] sm:$0x1]
      %v1268 = vsel %vm285, %v1000, %v1267
      %1269 = vst [vmem:[%s1105 + $0x104] sm:$0x1] %v1268
      %v1270 = vld [vmem:[%s1105 + $0x108] sm:$0xf]
      %v1271 = vsel %vm1107, %v1007, %v1270
      %1272 = vst [vmem:[%s1105 + $0x108] sm:$0xf] %v1271
      %v1273 = vld [vmem:[%s1105 + $0x10c] sm:$0x1]
      %v1274 = vsel %vm285, %v1008, %v1273
      %1275 = vst [vmem:[%s1105 + $0x10c] sm:$0x1] %v1274
      %v1276 = vld [vmem:[%s1105 + $0x110] sm:$0xf]
      %v1277 = vsel %vm1107, %v1015, %v1276
      %1278 = vst [vmem:[%s1105 + $0x110] sm:$0xf] %v1277
      %v1279 = vld [vmem:[%s1105 + $0x114] sm:$0x1]
      %v1280 = vsel %vm285, %v1016, %v1279
      %1281 = vst [vmem:[%s1105 + $0x114] sm:$0x1] %v1280
      %v1282 = vld [vmem:[%s1105 + $0x118] sm:$0xf]
      %v1283 = vsel %vm1107, %v1023, %v1282
      %1284 = vst [vmem:[%s1105 + $0x118] sm:$0xf] %v1283
      %v1285 = vld [vmem:[%s1105 + $0x11c] sm:$0x1]
      %v1286 = vsel %vm285, %v1024, %v1285
      %1287 = vst [vmem:[%s1105 + $0x11c] sm:$0x1] %v1286
      %v1288 = vld [vmem:[%s1105 + $0x120] sm:$0xf]
      %v1289 = vsel %vm1107, %v1031, %v1288
      %1290 = vst [vmem:[%s1105 + $0x120] sm:$0xf] %v1289
      %v1291 = vld [vmem:[%s1105 + $0x124] sm:$0x1]
      %v1292 = vsel %vm285, %v1032, %v1291
      %1293 = vst [vmem:[%s1105 + $0x124] sm:$0x1] %v1292
      %v1294 = vld [vmem:[%s1105 + $0x128] sm:$0xf]
      %v1295 = vsel %vm1107, %v1039, %v1294
      %1296 = vst [vmem:[%s1105 + $0x128] sm:$0xf] %v1295
      %v1297 = vld [vmem:[%s1105 + $0x12c] sm:$0x1]
      %v1298 = vsel %vm285, %v1040, %v1297
      %1299 = vst [vmem:[%s1105 + $0x12c] sm:$0x1] %v1298
      %v1300 = vld [vmem:[#allocation2] sm:$0xf]
      %v1301 = vld [vmem:[#allocation2 + $0x8] sm:$0xf]
      %v1302 = vld [vmem:[#allocation2 + $0x10] sm:$0xf]
      %v1303 = vld [vmem:[#allocation2 + $0x18] sm:$0xf]
      %v1304 = vld [vmem:[#allocation2 + $0x20] sm:$0xf]
      %v1305 = vld [vmem:[#allocation2 + $0x28] sm:$0xf]
      %v1306 = vld [vmem:[#allocation2 + $0x30] sm:$0xf]
      %v1307 = vld [vmem:[#allocation2 + $0x38] sm:$0xf]
      %v1308 = vld [vmem:[#allocation2 + $0x50] sm:$0xf]
      %v1309 = vld [vmem:[#allocation2 + $0x58] sm:$0xf]
      %v1310 = vld [vmem:[#allocation2 + $0x60] sm:$0xf]
      %v1311 = vld [vmem:[#allocation2 + $0x68] sm:$0xf]
      %v1312 = vld [vmem:[#allocation2 + $0x70] sm:$0xf]
      %v1313 = vld [vmem:[#allocation2 + $0x78] sm:$0xf]
      %v1314 = vld [vmem:[#allocation2 + $0x80] sm:$0xf]
      %v1315 = vld [vmem:[#allocation2 + $0x88] sm:$0xf]
      %v1316 = vld [vmem:[#allocation2 + $0xa0] sm:$0xf]
      %v1317 = vld [vmem:[#allocation2 + $0xa8] sm:$0xf]
      %v1318 = vld [vmem:[#allocation2 + $0xb0] sm:$0xf]
      %v1319 = vld [vmem:[#allocation2 + $0xb8] sm:$0xf]
      %v1320 = vld [vmem:[#allocation2 + $0xc0] sm:$0xf]
      %v1321 = vld [vmem:[#allocation2 + $0xc8] sm:$0xf]
      %v1322 = vld [vmem:[#allocation2 + $0xd0] sm:$0xf]
      %v1323 = vld [vmem:[#allocation2 + $0xd8] sm:$0xf]
      %v1324 = vld [vmem:[#allocation2 + $0xf0] sm:$0xf]
      %v1325 = vld [vmem:[#allocation2 + $0xf8] sm:$0xf]
      %v1326 = vld [vmem:[#allocation2 + $0x100] sm:$0xf]
      %v1327 = vld [vmem:[#allocation2 + $0x108] sm:$0xf]
      %v1328 = vld [vmem:[#allocation2 + $0x110] sm:$0xf]
      %v1329 = vld [vmem:[#allocation2 + $0x118] sm:$0xf]
      %v1330 = vld [vmem:[#allocation2 + $0x120] sm:$0xf]
      %v1331 = vld [vmem:[#allocation2 + $0x128] sm:$0xf]
      %1332 = vst [vmem:[#allocation4] sm:$0xf] %v1300
      %1333 = vst [vmem:[#allocation4 + $0x24] sm:$0xf] %v1301
      %1334 = vst [vmem:[#allocation4 + $0x48] sm:$0xf] %v1302
      %1335 = vst [vmem:[#allocation4 + $0x6c] sm:$0xf] %v1303
      %1336 = vst [vmem:[#allocation4 + $0x90] sm:$0xf] %v1304
      %1337 = vst [vmem:[#allocation4 + $0xb4] sm:$0xf] %v1305
      %1338 = vst [vmem:[#allocation4 + $0xd8] sm:$0xf] %v1306
      %1339 = vst [vmem:[#allocation4 + $0xfc] sm:$0xf] %v1307
      %1340 = vst [vmem:[#allocation4 + $0x120] sm:$0xf] %v1308
      %1341 = vst [vmem:[#allocation4 + $0x144] sm:$0xf] %v1309
      %1342 = vst [vmem:[#allocation4 + $0x168] sm:$0xf] %v1310
      %1343 = vst [vmem:[#allocation4 + $0x18c] sm:$0xf] %v1311
      %1344 = vst [vmem:[#allocation4 + $0x1b0] sm:$0xf] %v1312
      %1345 = vst [vmem:[#allocation4 + $0x1d4] sm:$0xf] %v1313
      %1346 = vst [vmem:[#allocation4 + $0x1f8] sm:$0xf] %v1314
      %1347 = vst [vmem:[#allocation4 + $0x21c] sm:$0xf] %v1315
      %1348 = vst [vmem:[#allocation4 + $0x240] sm:$0xf] %v1316
      %1349 = vst [vmem:[#allocation4 + $0x264] sm:$0xf] %v1317
      %1350 = vst [vmem:[#allocation4 + $0x288] sm:$0xf] %v1318
      %1351 = vst [vmem:[#allocation4 + $0x2ac] sm:$0xf] %v1319
      %1352 = vst [vmem:[#allocation4 + $0x2d0] sm:$0xf] %v1320
      %1353 = vst [vmem:[#allocation4 + $0x2f4] sm:$0xf] %v1321
      %1354 = vst [vmem:[#allocation4 + $0x318] sm:$0xf] %v1322
      %1355 = vst [vmem:[#allocation4 + $0x33c] sm:$0xf] %v1323
      %1356 = vst [vmem:[#allocation4 + $0x360] sm:$0xf] %v1324
      %1357 = vst [vmem:[#allocation4 + $0x384] sm:$0xf] %v1325
      %1358 = vst [vmem:[#allocation4 + $0x3a8] sm:$0xf] %v1326
      %1359 = vst [vmem:[#allocation4 + $0x3cc] sm:$0xf] %v1327
      %1360 = vst [vmem:[#allocation4 + $0x3f0] sm:$0xf] %v1328
      %1361 = vst [vmem:[#allocation4 + $0x414] sm:$0xf] %v1329
      %1362 = vst [vmem:[#allocation4 + $0x438] sm:$0xf] %v1330
      %1363 = vst [vmem:[#allocation4 + $0x45c] sm:$0xf] %v1331
      %v1364 = vld [vmem:[#allocation2] sm:$0xf]
      %v1365 = vld [vmem:[#allocation2 + $0x4] sm:$0x1]
      %v1366 = vld [vmem:[#allocation2 + $0x8] sm:$0xf]
      %v1367 = vld [vmem:[#allocation2 + $0xc] sm:$0x1]
      %v1368 = vld [vmem:[#allocation2 + $0x10] sm:$0xf]
      %v1369 = vld [vmem:[#allocation2 + $0x14] sm:$0x1]
      %v1370 = vld [vmem:[#allocation2 + $0x18] sm:$0xf]
      %v1371 = vld [vmem:[#allocation2 + $0x1c] sm:$0x1]
      %v1372 = vld [vmem:[#allocation2 + $0x20] sm:$0xf]
      %v1373 = vld [vmem:[#allocation2 + $0x24] sm:$0x1]
      %v1374 = vld [vmem:[#allocation2 + $0x28] sm:$0xf]
      %v1375 = vld [vmem:[#allocation2 + $0x2c] sm:$0x1]
      %v1376 = vld [vmem:[#allocation2 + $0x30] sm:$0xf]
      %v1377 = vld [vmem:[#allocation2 + $0x34] sm:$0x1]
      %v1378 = vld [vmem:[#allocation2 + $0x38] sm:$0xf]
      %v1379 = vld [vmem:[#allocation2 + $0x3c] sm:$0x1]
      %v1380 = vld [vmem:[#allocation2 + $0x50] sm:$0xf]
      %v1381 = vld [vmem:[#allocation2 + $0x54] sm:$0x1]
      %v1382 = vld [vmem:[#allocation2 + $0x58] sm:$0xf]
      %v1383 = vld [vmem:[#allocation2 + $0x5c] sm:$0x1]
      %v1384 = vld [vmem:[#allocation2 + $0x60] sm:$0xf]
      %v1385 = vld [vmem:[#allocation2 + $0x64] sm:$0x1]
      %v1386 = vld [vmem:[#allocation2 + $0x68] sm:$0xf]
      %v1387 = vld [vmem:[#allocation2 + $0x6c] sm:$0x1]
      %v1388 = vld [vmem:[#allocation2 + $0x70] sm:$0xf]
      %v1389 = vld [vmem:[#allocation2 + $0x74] sm:$0x1]
      %v1390 = vld [vmem:[#allocation2 + $0x78] sm:$0xf]
      %v1391 = vld [vmem:[#allocation2 + $0x7c] sm:$0x1]
      %v1392 = vld [vmem:[#allocation2 + $0x80] sm:$0xf]
      %v1393 = vld [vmem:[#allocation2 + $0x84] sm:$0x1]
      %v1394 = vld [vmem:[#allocation2 + $0x88] sm:$0xf]
      %v1395 = vld [vmem:[#allocation2 + $0x8c] sm:$0x1]
      %v1396 = vld [vmem:[#allocation2 + $0xa0] sm:$0xf]
      %v1397 = vld [vmem:[#allocation2 + $0xa4] sm:$0x1]
      %v1398 = vld [vmem:[#allocation2 + $0xa8] sm:$0xf]
      %v1399 = vld [vmem:[#allocation2 + $0xac] sm:$0x1]
      %v1400 = vld [vmem:[#allocation2 + $0xb0] sm:$0xf]
      %v1401 = vld [vmem:[#allocation2 + $0xb4] sm:$0x1]
      %v1402 = vld [vmem:[#allocation2 + $0xb8] sm:$0xf]
      %v1403 = vld [vmem:[#allocation2 + $0xbc] sm:$0x1]
      %v1404 = vld [vmem:[#allocation2 + $0xc0] sm:$0xf]
      %v1405 = vld [vmem:[#allocation2 + $0xc4] sm:$0x1]
      %v1406 = vld [vmem:[#allocation2 + $0xc8] sm:$0xf]
      %v1407 = vld [vmem:[#allocation2 + $0xcc] sm:$0x1]
      %v1408 = vld [vmem:[#allocation2 + $0xd0] sm:$0xf]
      %v1409 = vld [vmem:[#allocation2 + $0xd4] sm:$0x1]
      %v1410 = vld [vmem:[#allocation2 + $0xd8] sm:$0xf]
      %v1411 = vld [vmem:[#allocation2 + $0xdc] sm:$0x1]
      %v1412 = vld [vmem:[#allocation2 + $0xf0] sm:$0xf]
      %v1413 = vld [vmem:[#allocation2 + $0xf4] sm:$0x1]
      %v1414 = vld [vmem:[#allocation2 + $0xf8] sm:$0xf]
      %v1415 = vld [vmem:[#allocation2 + $0xfc] sm:$0x1]
      %v1416 = vld [vmem:[#allocation2 + $0x100] sm:$0xf]
      %v1417 = vld [vmem:[#allocation2 + $0x104] sm:$0x1]
      %v1418 = vld [vmem:[#allocation2 + $0x108] sm:$0xf]
      %v1419 = vld [vmem:[#allocation2 + $0x10c] sm:$0x1]
      %v1420 = vld [vmem:[#allocation2 + $0x110] sm:$0xf]
      %v1421 = vld [vmem:[#allocation2 + $0x114] sm:$0x1]
      %v1422 = vld [vmem:[#allocation2 + $0x118] sm:$0xf]
      %v1423 = vld [vmem:[#allocation2 + $0x11c] sm:$0x1]
      %v1424 = vld [vmem:[#allocation2 + $0x120] sm:$0xf]
      %v1425 = vld [vmem:[#allocation2 + $0x124] sm:$0x1]
      %v1426 = vld [vmem:[#allocation2 + $0x128] sm:$0xf]
      %v1427 = vld [vmem:[#allocation2 + $0x12c] sm:$0x1]
      %vm1428 = vsmask.f32 3328
      %vm1429 = vsmask.f32 7440
      %vm1430 = vmor %vm1428, %vm1429
      %v1432 = vshrl.u32 %v1364, 16
      %v1434 = vrot.slane %v1432, 4
      %v1435 = vshll.u32 %v1364, 16
      %v1437 = vrot.slane %v1435, 5
      %v1438 = vor.u32 %v1434, %v1437
      %v1439 = vrot.slane %v1438, 4
      %v1441 = vshll.u32 %v1365, 16
      %v1443 = vrot.slane %v1441, 5
      %v1444 = vsel %vm1430, %v1439, %v1443
      %v1446 = vshrl.u32 %v1366, 16
      %v1448 = vrot.slane %v1446, 4
      %v1449 = vshll.u32 %v1366, 16
      %v1451 = vrot.slane %v1449, 5
      %v1452 = vor.u32 %v1448, %v1451
      %v1453 = vrot.slane %v1452, 4
      %v1455 = vshll.u32 %v1367, 16
      %v1457 = vrot.slane %v1455, 5
      %v1458 = vsel %vm1430, %v1453, %v1457
      %v1460 = vshrl.u32 %v1368, 16
      %v1462 = vrot.slane %v1460, 4
      %v1463 = vshll.u32 %v1368, 16
      %v1465 = vrot.slane %v1463, 5
      %v1466 = vor.u32 %v1462, %v1465
      %v1467 = vrot.slane %v1466, 4
      %v1469 = vshll.u32 %v1369, 16
      %v1471 = vrot.slane %v1469, 5
      %v1472 = vsel %vm1430, %v1467, %v1471
      %v1474 = vshrl.u32 %v1370, 16
      %v1476 = vrot.slane %v1474, 4
      %v1477 = vshll.u32 %v1370, 16
      %v1479 = vrot.slane %v1477, 5
      %v1480 = vor.u32 %v1476, %v1479
      %v1481 = vrot.slane %v1480, 4
      %v1483 = vshll.u32 %v1371, 16
      %v1485 = vrot.slane %v1483, 5
      %v1486 = vsel %vm1430, %v1481, %v1485
      %v1488 = vshrl.u32 %v1372, 16
      %v1490 = vrot.slane %v1488, 4
      %v1491 = vshll.u32 %v1372, 16
      %v1493 = vrot.slane %v1491, 5
      %v1494 = vor.u32 %v1490, %v1493
      %v1495 = vrot.slane %v1494, 4
      %v1497 = vshll.u32 %v1373, 16
      %v1499 = vrot.slane %v1497, 5
      %v1500 = vsel %vm1430, %v1495, %v1499
      %v1502 = vshrl.u32 %v1374, 16
      %v1504 = vrot.slane %v1502, 4
      %v1505 = vshll.u32 %v1374, 16
      %v1507 = vrot.slane %v1505, 5
      %v1508 = vor.u32 %v1504, %v1507
      %v1509 = vrot.slane %v1508, 4
      %v1511 = vshll.u32 %v1375, 16
      %v1513 = vrot.slane %v1511, 5
      %v1514 = vsel %vm1430, %v1509, %v1513
      %v1516 = vshrl.u32 %v1376, 16
      %v1518 = vrot.slane %v1516, 4
      %v1519 = vshll.u32 %v1376, 16
      %v1521 = vrot.slane %v1519, 5
      %v1522 = vor.u32 %v1518, %v1521
      %v1523 = vrot.slane %v1522, 4
      %v1525 = vshll.u32 %v1377, 16
      %v1527 = vrot.slane %v1525, 5
      %v1528 = vsel %vm1430, %v1523, %v1527
      %v1530 = vshrl.u32 %v1378, 16
      %v1532 = vrot.slane %v1530, 4
      %v1533 = vshll.u32 %v1378, 16
      %v1535 = vrot.slane %v1533, 5
      %v1536 = vor.u32 %v1532, %v1535
      %v1537 = vrot.slane %v1536, 4
      %v1539 = vshll.u32 %v1379, 16
      %v1541 = vrot.slane %v1539, 5
      %v1542 = vsel %vm1430, %v1537, %v1541
      %v1544 = vshrl.u32 %v1380, 16
      %v1546 = vrot.slane %v1544, 4
      %v1547 = vshll.u32 %v1380, 16
      %v1549 = vrot.slane %v1547, 5
      %v1550 = vor.u32 %v1546, %v1549
      %v1551 = vrot.slane %v1550, 4
      %v1553 = vshll.u32 %v1381, 16
      %v1555 = vrot.slane %v1553, 5
      %v1556 = vsel %vm1430, %v1551, %v1555
      %v1558 = vshrl.u32 %v1382, 16
      %v1560 = vrot.slane %v1558, 4
      %v1561 = vshll.u32 %v1382, 16
      %v1563 = vrot.slane %v1561, 5
      %v1564 = vor.u32 %v1560, %v1563
      %v1565 = vrot.slane %v1564, 4
      %v1567 = vshll.u32 %v1383, 16
      %v1569 = vrot.slane %v1567, 5
      %v1570 = vsel %vm1430, %v1565, %v1569
      %v1572 = vshrl.u32 %v1384, 16
      %v1574 = vrot.slane %v1572, 4
      %v1575 = vshll.u32 %v1384, 16
      %v1577 = vrot.slane %v1575, 5
      %v1578 = vor.u32 %v1574, %v1577
      %v1579 = vrot.slane %v1578, 4
      %v1581 = vshll.u32 %v1385, 16
      %v1583 = vrot.slane %v1581, 5
      %v1584 = vsel %vm1430, %v1579, %v1583
      %v1586 = vshrl.u32 %v1386, 16
      %v1588 = vrot.slane %v1586, 4
      %v1589 = vshll.u32 %v1386, 16
      %v1591 = vrot.slane %v1589, 5
      %v1592 = vor.u32 %v1588, %v1591
      %v1593 = vrot.slane %v1592, 4
      %v1595 = vshll.u32 %v1387, 16
      %v1597 = vrot.slane %v1595, 5
      %v1598 = vsel %vm1430, %v1593, %v1597
      %v1600 = vshrl.u32 %v1388, 16
      %v1602 = vrot.slane %v1600, 4
      %v1603 = vshll.u32 %v1388, 16
      %v1605 = vrot.slane %v1603, 5
      %v1606 = vor.u32 %v1602, %v1605
      %v1607 = vrot.slane %v1606, 4
      %v1609 = vshll.u32 %v1389, 16
      %v1611 = vrot.slane %v1609, 5
      %v1612 = vsel %vm1430, %v1607, %v1611
      %v1614 = vshrl.u32 %v1390, 16
      %v1616 = vrot.slane %v1614, 4
      %v1617 = vshll.u32 %v1390, 16
      %v1619 = vrot.slane %v1617, 5
      %v1620 = vor.u32 %v1616, %v1619
      %v1621 = vrot.slane %v1620, 4
      %v1623 = vshll.u32 %v1391, 16
      %v1625 = vrot.slane %v1623, 5
      %v1626 = vsel %vm1430, %v1621, %v1625
      %v1628 = vshrl.u32 %v1392, 16
      %v1630 = vrot.slane %v1628, 4
      %v1631 = vshll.u32 %v1392, 16
      %v1633 = vrot.slane %v1631, 5
      %v1634 = vor.u32 %v1630, %v1633
      %v1635 = vrot.slane %v1634, 4
      %v1637 = vshll.u32 %v1393, 16
      %v1639 = vrot.slane %v1637, 5
      %v1640 = vsel %vm1430, %v1635, %v1639
      %v1642 = vshrl.u32 %v1394, 16
      %v1644 = vrot.slane %v1642, 4
      %v1645 = vshll.u32 %v1394, 16
      %v1647 = vrot.slane %v1645, 5
      %v1648 = vor.u32 %v1644, %v1647
      %v1649 = vrot.slane %v1648, 4
      %v1651 = vshll.u32 %v1395, 16
      %v1653 = vrot.slane %v1651, 5
      %v1654 = vsel %vm1430, %v1649, %v1653
      %v1656 = vshrl.u32 %v1396, 16
      %v1658 = vrot.slane %v1656, 4
      %v1659 = vshll.u32 %v1396, 16
      %v1661 = vrot.slane %v1659, 5
      %v1662 = vor.u32 %v1658, %v1661
      %v1663 = vrot.slane %v1662, 4
      %v1665 = vshll.u32 %v1397, 16
      %v1667 = vrot.slane %v1665, 5
      %v1668 = vsel %vm1430, %v1663, %v1667
      %v1670 = vshrl.u32 %v1398, 16
      %v1672 = vrot.slane %v1670, 4
      %v1673 = vshll.u32 %v1398, 16
      %v1675 = vrot.slane %v1673, 5
      %v1676 = vor.u32 %v1672, %v1675
      %v1677 = vrot.slane %v1676, 4
      %v1679 = vshll.u32 %v1399, 16
      %v1681 = vrot.slane %v1679, 5
      %v1682 = vsel %vm1430, %v1677, %v1681
      %v1684 = vshrl.u32 %v1400, 16
      %v1686 = vrot.slane %v1684, 4
      %v1687 = vshll.u32 %v1400, 16
      %v1689 = vrot.slane %v1687, 5
      %v1690 = vor.u32 %v1686, %v1689
      %v1691 = vrot.slane %v1690, 4
      %v1693 = vshll.u32 %v1401, 16
      %v1695 = vrot.slane %v1693, 5
      %v1696 = vsel %vm1430, %v1691, %v1695
      %v1698 = vshrl.u32 %v1402, 16
      %v1700 = vrot.slane %v1698, 4
      %v1701 = vshll.u32 %v1402, 16
      %v1703 = vrot.slane %v1701, 5
      %v1704 = vor.u32 %v1700, %v1703
      %v1705 = vrot.slane %v1704, 4
      %v1707 = vshll.u32 %v1403, 16
      %v1709 = vrot.slane %v1707, 5
      %v1710 = vsel %vm1430, %v1705, %v1709
      %v1712 = vshrl.u32 %v1404, 16
      %v1714 = vrot.slane %v1712, 4
      %v1715 = vshll.u32 %v1404, 16
      %v1717 = vrot.slane %v1715, 5
      %v1718 = vor.u32 %v1714, %v1717
      %v1719 = vrot.slane %v1718, 4
      %v1721 = vshll.u32 %v1405, 16
      %v1723 = vrot.slane %v1721, 5
      %v1724 = vsel %vm1430, %v1719, %v1723
      %v1726 = vshrl.u32 %v1406, 16
      %v1728 = vrot.slane %v1726, 4
      %v1729 = vshll.u32 %v1406, 16
      %v1731 = vrot.slane %v1729, 5
      %v1732 = vor.u32 %v1728, %v1731
      %v1733 = vrot.slane %v1732, 4
      %v1735 = vshll.u32 %v1407, 16
      %v1737 = vrot.slane %v1735, 5
      %v1738 = vsel %vm1430, %v1733, %v1737
      %v1740 = vshrl.u32 %v1408, 16
      %v1742 = vrot.slane %v1740, 4
      %v1743 = vshll.u32 %v1408, 16
      %v1745 = vrot.slane %v1743, 5
      %v1746 = vor.u32 %v1742, %v1745
      %v1747 = vrot.slane %v1746, 4
      %v1749 = vshll.u32 %v1409, 16
      %v1751 = vrot.slane %v1749, 5
      %v1752 = vsel %vm1430, %v1747, %v1751
      %v1754 = vshrl.u32 %v1410, 16
      %v1756 = vrot.slane %v1754, 4
      %v1757 = vshll.u32 %v1410, 16
      %v1759 = vrot.slane %v1757, 5
      %v1760 = vor.u32 %v1756, %v1759
      %v1761 = vrot.slane %v1760, 4
      %v1763 = vshll.u32 %v1411, 16
      %v1765 = vrot.slane %v1763, 5
      %v1766 = vsel %vm1430, %v1761, %v1765
      %v1768 = vshrl.u32 %v1412, 16
      %v1770 = vrot.slane %v1768, 4
      %v1771 = vshll.u32 %v1412, 16
      %v1773 = vrot.slane %v1771, 5
      %v1774 = vor.u32 %v1770, %v1773
      %v1775 = vrot.slane %v1774, 4
      %v1777 = vshll.u32 %v1413, 16
      %v1779 = vrot.slane %v1777, 5
      %v1780 = vsel %vm1430, %v1775, %v1779
      %v1782 = vshrl.u32 %v1414, 16
      %v1784 = vrot.slane %v1782, 4
      %v1785 = vshll.u32 %v1414, 16
      %v1787 = vrot.slane %v1785, 5
      %v1788 = vor.u32 %v1784, %v1787
      %v1789 = vrot.slane %v1788, 4
      %v1791 = vshll.u32 %v1415, 16
      %v1793 = vrot.slane %v1791, 5
      %v1794 = vsel %vm1430, %v1789, %v1793
      %v1796 = vshrl.u32 %v1416, 16
      %v1798 = vrot.slane %v1796, 4
      %v1799 = vshll.u32 %v1416, 16
      %v1801 = vrot.slane %v1799, 5
      %v1802 = vor.u32 %v1798, %v1801
      %v1803 = vrot.slane %v1802, 4
      %v1805 = vshll.u32 %v1417, 16
      %v1807 = vrot.slane %v1805, 5
      %v1808 = vsel %vm1430, %v1803, %v1807
      %v1810 = vshrl.u32 %v1418, 16
      %v1812 = vrot.slane %v1810, 4
      %v1813 = vshll.u32 %v1418, 16
      %v1815 = vrot.slane %v1813, 5
      %v1816 = vor.u32 %v1812, %v1815
      %v1817 = vrot.slane %v1816, 4
      %v1819 = vshll.u32 %v1419, 16
      %v1821 = vrot.slane %v1819, 5
      %v1822 = vsel %vm1430, %v1817, %v1821
      %v1824 = vshrl.u32 %v1420, 16
      %v1826 = vrot.slane %v1824, 4
      %v1827 = vshll.u32 %v1420, 16
      %v1829 = vrot.slane %v1827, 5
      %v1830 = vor.u32 %v1826, %v1829
      %v1831 = vrot.slane %v1830, 4
      %v1833 = vshll.u32 %v1421, 16
      %v1835 = vrot.slane %v1833, 5
      %v1836 = vsel %vm1430, %v1831, %v1835
      %v1838 = vshrl.u32 %v1422, 16
      %v1840 = vrot.slane %v1838, 4
      %v1841 = vshll.u32 %v1422, 16
      %v1843 = vrot.slane %v1841, 5
      %v1844 = vor.u32 %v1840, %v1843
      %v1845 = vrot.slane %v1844, 4
      %v1847 = vshll.u32 %v1423, 16
      %v1849 = vrot.slane %v1847, 5
      %v1850 = vsel %vm1430, %v1845, %v1849
      %v1852 = vshrl.u32 %v1424, 16
      %v1854 = vrot.slane %v1852, 4
      %v1855 = vshll.u32 %v1424, 16
      %v1857 = vrot.slane %v1855, 5
      %v1858 = vor.u32 %v1854, %v1857
      %v1859 = vrot.slane %v1858, 4
      %v1861 = vshll.u32 %v1425, 16
      %v1863 = vrot.slane %v1861, 5
      %v1864 = vsel %vm1430, %v1859, %v1863
      %v1866 = vshrl.u32 %v1426, 16
      %v1868 = vrot.slane %v1866, 4
      %v1869 = vshll.u32 %v1426, 16
      %v1871 = vrot.slane %v1869, 5
      %v1872 = vor.u32 %v1868, %v1871
      %v1873 = vrot.slane %v1872, 4
      %v1875 = vshll.u32 %v1427, 16
      %v1877 = vrot.slane %v1875, 5
      %v1878 = vsel %vm1430, %v1873, %v1877
      %1911 = vst [vmem:[#allocation4 + $0x4] sm:$0xf] %v1444
      %1912 = vst [vmem:[#allocation4 + $0x28] sm:$0xf] %v1458
      %1913 = vst [vmem:[#allocation4 + $0x4c] sm:$0xf] %v1472
      %1914 = vst [vmem:[#allocation4 + $0x70] sm:$0xf] %v1486
      %1915 = vst [vmem:[#allocation4 + $0x94] sm:$0xf] %v1500
      %1916 = vst [vmem:[#allocation4 + $0xb8] sm:$0xf] %v1514
      %1917 = vst [vmem:[#allocation4 + $0xdc] sm:$0xf] %v1528
      %1918 = vst [vmem:[#allocation4 + $0x100] sm:$0xf] %v1542
      %1919 = vst [vmem:[#allocation4 + $0x124] sm:$0xf] %v1556
      %1920 = vst [vmem:[#allocation4 + $0x148] sm:$0xf] %v1570
      %1921 = vst [vmem:[#allocation4 + $0x16c] sm:$0xf] %v1584
      %1922 = vst [vmem:[#allocation4 + $0x190] sm:$0xf] %v1598
      %1923 = vst [vmem:[#allocation4 + $0x1b4] sm:$0xf] %v1612
      %1924 = vst [vmem:[#allocation4 + $0x1d8] sm:$0xf] %v1626
      %1925 = vst [vmem:[#allocation4 + $0x1fc] sm:$0xf] %v1640
      %1926 = vst [vmem:[#allocation4 + $0x220] sm:$0xf] %v1654
      %1927 = vst [vmem:[#allocation4 + $0x244] sm:$0xf] %v1668
      %1928 = vst [vmem:[#allocation4 + $0x268] sm:$0xf] %v1682
      %1929 = vst [vmem:[#allocation4 + $0x28c] sm:$0xf] %v1696
      %1930 = vst [vmem:[#allocation4 + $0x2b0] sm:$0xf] %v1710
      %1931 = vst [vmem:[#allocation4 + $0x2d4] sm:$0xf] %v1724
      %1932 = vst [vmem:[#allocation4 + $0x2f8] sm:$0xf] %v1738
      %1933 = vst [vmem:[#allocation4 + $0x31c] sm:$0xf] %v1752
      %1934 = vst [vmem:[#allocation4 + $0x340] sm:$0xf] %v1766
      %1935 = vst [vmem:[#allocation4 + $0x364] sm:$0xf] %v1780
      %1936 = vst [vmem:[#allocation4 + $0x388] sm:$0xf] %v1794
      %1937 = vst [vmem:[#allocation4 + $0x3ac] sm:$0xf] %v1808
      %1938 = vst [vmem:[#allocation4 + $0x3d0] sm:$0xf] %v1822
      %1939 = vst [vmem:[#allocation4 + $0x3f4] sm:$0xf] %v1836
      %1940 = vst [vmem:[#allocation4 + $0x418] sm:$0xf] %v1850
      %1941 = vst [vmem:[#allocation4 + $0x43c] sm:$0xf] %v1864
      %1942 = vst [vmem:[#allocation4 + $0x460] sm:$0xf] %v1878
      %v1943 = vld [vmem:[#allocation2] sm:$0xe]
      %v1944 = vld [vmem:[#allocation2 + $0x4] sm:$0x1]
      %v1945 = vld [vmem:[#allocation2 + $0x8] sm:$0xe]
      %v1946 = vld [vmem:[#allocation2 + $0xc] sm:$0x1]
      %v1947 = vld [vmem:[#allocation2 + $0x10] sm:$0xe]
      %v1948 = vld [vmem:[#allocation2 + $0x14] sm:$0x1]
      %v1949 = vld [vmem:[#allocation2 + $0x18] sm:$0xe]
      %v1950 = vld [vmem:[#allocation2 + $0x1c] sm:$0x1]
      %v1951 = vld [vmem:[#allocation2 + $0x20] sm:$0xe]
      %v1952 = vld [vmem:[#allocation2 + $0x24] sm:$0x1]
      %v1953 = vld [vmem:[#allocation2 + $0x28] sm:$0xe]
      %v1954 = vld [vmem:[#allocation2 + $0x2c] sm:$0x1]
      %v1955 = vld [vmem:[#allocation2 + $0x30] sm:$0xe]
      %v1956 = vld [vmem:[#allocation2 + $0x34] sm:$0x1]
      %v1957 = vld [vmem:[#allocation2 + $0x38] sm:$0xe]
      %v1958 = vld [vmem:[#allocation2 + $0x3c] sm:$0x1]
      %v1959 = vld [vmem:[#allocation2 + $0x50] sm:$0xe]
      %v1960 = vld [vmem:[#allocation2 + $0x54] sm:$0x1]
      %v1961 = vld [vmem:[#allocation2 + $0x58] sm:$0xe]
      %v1962 = vld [vmem:[#allocation2 + $0x5c] sm:$0x1]
      %v1963 = vld [vmem:[#allocation2 + $0x60] sm:$0xe]
      %v1964 = vld [vmem:[#allocation2 + $0x64] sm:$0x1]
      %v1965 = vld [vmem:[#allocation2 + $0x68] sm:$0xe]
      %v1966 = vld [vmem:[#allocation2 + $0x6c] sm:$0x1]
      %v1967 = vld [vmem:[#allocation2 + $0x70] sm:$0xe]
      %v1968 = vld [vmem:[#allocation2 + $0x74] sm:$0x1]
      %v1969 = vld [vmem:[#allocation2 + $0x78] sm:$0xe]
      %v1970 = vld [vmem:[#allocation2 + $0x7c] sm:$0x1]
      %v1971 = vld [vmem:[#allocation2 + $0x80] sm:$0xe]
      %v1972 = vld [vmem:[#allocation2 + $0x84] sm:$0x1]
      %v1973 = vld [vmem:[#allocation2 + $0x88] sm:$0xe]
      %v1974 = vld [vmem:[#allocation2 + $0x8c] sm:$0x1]
      %v1975 = vld [vmem:[#allocation2 + $0xa0] sm:$0xe]
      %v1976 = vld [vmem:[#allocation2 + $0xa4] sm:$0x1]
      %v1977 = vld [vmem:[#allocation2 + $0xa8] sm:$0xe]
      %v1978 = vld [vmem:[#allocation2 + $0xac] sm:$0x1]
      %v1979 = vld [vmem:[#allocation2 + $0xb0] sm:$0xe]
      %v1980 = vld [vmem:[#allocation2 + $0xb4] sm:$0x1]
      %v1981 = vld [vmem:[#allocation2 + $0xb8] sm:$0xe]
      %v1982 = vld [vmem:[#allocation2 + $0xbc] sm:$0x1]
      %v1983 = vld [vmem:[#allocation2 + $0xc0] sm:$0xe]
      %v1984 = vld [vmem:[#allocation2 + $0xc4] sm:$0x1]
      %v1985 = vld [vmem:[#allocation2 + $0xc8] sm:$0xe]
      %v1986 = vld [vmem:[#allocation2 + $0xcc] sm:$0x1]
      %v1987 = vld [vmem:[#allocation2 + $0xd0] sm:$0xe]
      %v1988 = vld [vmem:[#allocation2 + $0xd4] sm:$0x1]
      %v1989 = vld [vmem:[#allocation2 + $0xd8] sm:$0xe]
      %v1990 = vld [vmem:[#allocation2 + $0xdc] sm:$0x1]
      %v1991 = vld [vmem:[#allocation2 + $0xf0] sm:$0xe]
      %v1992 = vld [vmem:[#allocation2 + $0xf4] sm:$0x1]
      %v1993 = vld [vmem:[#allocation2 + $0xf8] sm:$0xe]
      %v1994 = vld [vmem:[#allocation2 + $0xfc] sm:$0x1]
      %v1995 = vld [vmem:[#allocation2 + $0x100] sm:$0xe]
      %v1996 = vld [vmem:[#allocation2 + $0x104] sm:$0x1]
      %v1997 = vld [vmem:[#allocation2 + $0x108] sm:$0xe]
      %v1998 = vld [vmem:[#allocation2 + $0x10c] sm:$0x1]
      %v1999 = vld [vmem:[#allocation2 + $0x110] sm:$0xe]
      %v2000 = vld [vmem:[#allocation2 + $0x114] sm:$0x1]
      %v2001 = vld [vmem:[#allocation2 + $0x118] sm:$0xe]
      %v2002 = vld [vmem:[#allocation2 + $0x11c] sm:$0x1]
      %v2003 = vld [vmem:[#allocation2 + $0x120] sm:$0xe]
      %v2004 = vld [vmem:[#allocation2 + $0x124] sm:$0x1]
      %v2005 = vld [vmem:[#allocation2 + $0x128] sm:$0xe]
      %v2006 = vld [vmem:[#allocation2 + $0x12c] sm:$0x1]
      %vm2071 = vcmask 1042432
      %vm2072 = vcmask 1046532
      %vm2073 = vmor %vm2071, %vm2072
      %v2074 = vrot.slane %v1943, 5
      %v2075 = vrot.slane %v2074, 4
      %v2076 = vrot.slane %v1944, 5
      %v2077 = vsel %vm2073, %v2075, %v2076
      %v2078 = vrot.slane %v1945, 5
      %v2079 = vrot.slane %v2078, 4
      %v2080 = vrot.slane %v1946, 5
      %v2081 = vsel %vm2073, %v2079, %v2080
      %v2082 = vrot.slane %v1947, 5
      %v2083 = vrot.slane %v2082, 4
      %v2084 = vrot.slane %v1948, 5
      %v2085 = vsel %vm2073, %v2083, %v2084
      %v2086 = vrot.slane %v1949, 5
      %v2087 = vrot.slane %v2086, 4
      %v2088 = vrot.slane %v1950, 5
      %v2089 = vsel %vm2073, %v2087, %v2088
      %v2090 = vrot.slane %v1951, 5
      %v2091 = vrot.slane %v2090, 4
      %v2092 = vrot.slane %v1952, 5
      %v2093 = vsel %vm2073, %v2091, %v2092
      %v2094 = vrot.slane %v1953, 5
      %v2095 = vrot.slane %v2094, 4
      %v2096 = vrot.slane %v1954, 5
      %v2097 = vsel %vm2073, %v2095, %v2096
      %v2098 = vrot.slane %v1955, 5
      %v2099 = vrot.slane %v2098, 4
      %v2100 = vrot.slane %v1956, 5
      %v2101 = vsel %vm2073, %v2099, %v2100
      %v2102 = vrot.slane %v1957, 5
      %v2103 = vrot.slane %v2102, 4
      %v2104 = vrot.slane %v1958, 5
      %v2105 = vsel %vm2073, %v2103, %v2104
      %v2106 = vrot.slane %v1959, 5
      %v2107 = vrot.slane %v2106, 4
      %v2108 = vrot.slane %v1960, 5
      %v2109 = vsel %vm2073, %v2107, %v2108
      %v2110 = vrot.slane %v1961, 5
      %v2111 = vrot.slane %v2110, 4
      %v2112 = vrot.slane %v1962, 5
      %v2113 = vsel %vm2073, %v2111, %v2112
      %v2114 = vrot.slane %v1963, 5
      %v2115 = vrot.slane %v2114, 4
      %v2116 = vrot.slane %v1964, 5
      %v2117 = vsel %vm2073, %v2115, %v2116
      %v2118 = vrot.slane %v1965, 5
      %v2119 = vrot.slane %v2118, 4
      %v2120 = vrot.slane %v1966, 5
      %v2121 = vsel %vm2073, %v2119, %v2120
      %v2122 = vrot.slane %v1967, 5
      %v2123 = vrot.slane %v2122, 4
      %v2124 = vrot.slane %v1968, 5
      %v2125 = vsel %vm2073, %v2123, %v2124
      %v2126 = vrot.slane %v1969, 5
      %v2127 = vrot.slane %v2126, 4
      %v2128 = vrot.slane %v1970, 5
      %v2129 = vsel %vm2073, %v2127, %v2128
      %v2130 = vrot.slane %v1971, 5
      %v2131 = vrot.slane %v2130, 4
      %v2132 = vrot.slane %v1972, 5
      %v2133 = vsel %vm2073, %v2131, %v2132
      %v2134 = vrot.slane %v1973, 5
      %v2135 = vrot.slane %v2134, 4
      %v2136 = vrot.slane %v1974, 5
      %v2137 = vsel %vm2073, %v2135, %v2136
      %v2138 = vrot.slane %v1975, 5
      %v2139 = vrot.slane %v2138, 4
      %v2140 = vrot.slane %v1976, 5
      %v2141 = vsel %vm2073, %v2139, %v2140
      %v2142 = vrot.slane %v1977, 5
      %v2143 = vrot.slane %v2142, 4
      %v2144 = vrot.slane %v1978, 5
      %v2145 = vsel %vm2073, %v2143, %v2144
      %v2146 = vrot.slane %v1979, 5
      %v2147 = vrot.slane %v2146, 4
      %v2148 = vrot.slane %v1980, 5
      %v2149 = vsel %vm2073, %v2147, %v2148
      %v2150 = vrot.slane %v1981, 5
      %v2151 = vrot.slane %v2150, 4
      %v2152 = vrot.slane %v1982, 5
      %v2153 = vsel %vm2073, %v2151, %v2152
      %v2154 = vrot.slane %v1983, 5
      %v2155 = vrot.slane %v2154, 4
      %v2156 = vrot.slane %v1984, 5
      %v2157 = vsel %vm2073, %v2155, %v2156
      %v2158 = vrot.slane %v1985, 5
      %v2159 = vrot.slane %v2158, 4
      %v2160 = vrot.slane %v1986, 5
      %v2161 = vsel %vm2073, %v2159, %v2160
      %v2162 = vrot.slane %v1987, 5
      %v2163 = vrot.slane %v2162, 4
      %v2164 = vrot.slane %v1988, 5
      %v2165 = vsel %vm2073, %v2163, %v2164
      %v2166 = vrot.slane %v1989, 5
      %v2167 = vrot.slane %v2166, 4
      %v2168 = vrot.slane %v1990, 5
      %v2169 = vsel %vm2073, %v2167, %v2168
      %v2170 = vrot.slane %v1991, 5
      %v2171 = vrot.slane %v2170, 4
      %v2172 = vrot.slane %v1992, 5
      %v2173 = vsel %vm2073, %v2171, %v2172
      %v2174 = vrot.slane %v1993, 5
      %v2175 = vrot.slane %v2174, 4
      %v2176 = vrot.slane %v1994, 5
      %v2177 = vsel %vm2073, %v2175, %v2176
      %v2178 = vrot.slane %v1995, 5
      %v2179 = vrot.slane %v2178, 4
      %v2180 = vrot.slane %v1996, 5
      %v2181 = vsel %vm2073, %v2179, %v2180
      %v2182 = vrot.slane %v1997, 5
      %v2183 = vrot.slane %v2182, 4
      %v2184 = vrot.slane %v1998, 5
      %v2185 = vsel %vm2073, %v2183, %v2184
      %v2186 = vrot.slane %v1999, 5
      %v2187 = vrot.slane %v2186, 4
      %v2188 = vrot.slane %v2000, 5
      %v2189 = vsel %vm2073, %v2187, %v2188
      %v2190 = vrot.slane %v2001, 5
      %v2191 = vrot.slane %v2190, 4
      %v2192 = vrot.slane %v2002, 5
      %v2193 = vsel %vm2073, %v2191, %v2192
      %v2194 = vrot.slane %v2003, 5
      %v2195 = vrot.slane %v2194, 4
      %v2196 = vrot.slane %v2004, 5
      %v2197 = vsel %vm2073, %v2195, %v2196
      %v2198 = vrot.slane %v2005, 5
      %v2199 = vrot.slane %v2198, 4
      %v2200 = vrot.slane %v2006, 5
      %v2201 = vsel %vm2073, %v2199, %v2200
      %2234 = vst [vmem:[#allocation4 + $0x8] sm:$0xf] %v2077
      %2235 = vst [vmem:[#allocation4 + $0x2c] sm:$0xf] %v2081
      %2236 = vst [vmem:[#allocation4 + $0x50] sm:$0xf] %v2085
      %2237 = vst [vmem:[#allocation4 + $0x74] sm:$0xf] %v2089
      %2238 = vst [vmem:[#allocation4 + $0x98] sm:$0xf] %v2093
      %2239 = vst [vmem:[#allocation4 + $0xbc] sm:$0xf] %v2097
      %2240 = vst [vmem:[#allocation4 + $0xe0] sm:$0xf] %v2101
      %2241 = vst [vmem:[#allocation4 + $0x104] sm:$0xf] %v2105
      %2242 = vst [vmem:[#allocation4 + $0x128] sm:$0xf] %v2109
      %2243 = vst [vmem:[#allocation4 + $0x14c] sm:$0xf] %v2113
      %2244 = vst [vmem:[#allocation4 + $0x170] sm:$0xf] %v2117
      %2245 = vst [vmem:[#allocation4 + $0x194] sm:$0xf] %v2121
      %2246 = vst [vmem:[#allocation4 + $0x1b8] sm:$0xf] %v2125
      %2247 = vst [vmem:[#allocation4 + $0x1dc] sm:$0xf] %v2129
      %2248 = vst [vmem:[#allocation4 + $0x200] sm:$0xf] %v2133
      %2249 = vst [vmem:[#allocation4 + $0x224] sm:$0xf] %v2137
      %2250 = vst [vmem:[#allocation4 + $0x248] sm:$0xf] %v2141
      %2251 = vst [vmem:[#allocation4 + $0x26c] sm:$0xf] %v2145
      %2252 = vst [vmem:[#allocation4 + $0x290] sm:$0xf] %v2149
      %2253 = vst [vmem:[#allocation4 + $0x2b4] sm:$0xf] %v2153
      %2254 = vst [vmem:[#allocation4 + $0x2d8] sm:$0xf] %v2157
      %2255 = vst [vmem:[#allocation4 + $0x2fc] sm:$0xf] %v2161
      %2256 = vst [vmem:[#allocation4 + $0x320] sm:$0xf] %v2165
      %2257 = vst [vmem:[#allocation4 + $0x344] sm:$0xf] %v2169
      %2258 = vst [vmem:[#allocation4 + $0x368] sm:$0xf] %v2173
      %2259 = vst [vmem:[#allocation4 + $0x38c] sm:$0xf] %v2177
      %2260 = vst [vmem:[#allocation4 + $0x3b0] sm:$0xf] %v2181
      %2261 = vst [vmem:[#allocation4 + $0x3d4] sm:$0xf] %v2185
      %2262 = vst [vmem:[#allocation4 + $0x3f8] sm:$0xf] %v2189
      %2263 = vst [vmem:[#allocation4 + $0x41c] sm:$0xf] %v2193
      %2264 = vst [vmem:[#allocation4 + $0x440] sm:$0xf] %v2197
      %2265 = vst [vmem:[#allocation4 + $0x464] sm:$0xf] %v2201
      %v2266 = vld [vmem:[%s1105] sm:$0xf]
      %v2267 = vld [vmem:[%s1105 + $0x8] sm:$0xf]
      %v2268 = vld [vmem:[%s1105 + $0x10] sm:$0xf]
      %v2269 = vld [vmem:[%s1105 + $0x18] sm:$0xf]
      %v2270 = vld [vmem:[%s1105 + $0x20] sm:$0xf]
      %v2271 = vld [vmem:[%s1105 + $0x28] sm:$0xf]
      %v2272 = vld [vmem:[%s1105 + $0x30] sm:$0xf]
      %v2273 = vld [vmem:[%s1105 + $0x38] sm:$0xf]
      %v2274 = vld [vmem:[%s1105 + $0x50] sm:$0xf]
      %v2275 = vld [vmem:[%s1105 + $0x58] sm:$0xf]
      %v2276 = vld [vmem:[%s1105 + $0x60] sm:$0xf]
      %v2277 = vld [vmem:[%s1105 + $0x68] sm:$0xf]
      %v2278 = vld [vmem:[%s1105 + $0x70] sm:$0xf]
      %v2279 = vld [vmem:[%s1105 + $0x78] sm:$0xf]
      %v2280 = vld [vmem:[%s1105 + $0x80] sm:$0xf]
      %v2281 = vld [vmem:[%s1105 + $0x88] sm:$0xf]
      %v2282 = vld [vmem:[%s1105 + $0xa0] sm:$0xf]
      %v2283 = vld [vmem:[%s1105 + $0xa8] sm:$0xf]
      %v2284 = vld [vmem:[%s1105 + $0xb0] sm:$0xf]
      %v2285 = vld [vmem:[%s1105 + $0xb8] sm:$0xf]
      %v2286 = vld [vmem:[%s1105 + $0xc0] sm:$0xf]
      %v2287 = vld [vmem:[%s1105 + $0xc8] sm:$0xf]
      %v2288 = vld [vmem:[%s1105 + $0xd0] sm:$0xf]
      %v2289 = vld [vmem:[%s1105 + $0xd8] sm:$0xf]
      %v2290 = vld [vmem:[%s1105 + $0xf0] sm:$0xf]
      %v2291 = vld [vmem:[%s1105 + $0xf8] sm:$0xf]
      %v2292 = vld [vmem:[%s1105 + $0x100] sm:$0xf]
      %v2293 = vld [vmem:[%s1105 + $0x108] sm:$0xf]
      %v2294 = vld [vmem:[%s1105 + $0x110] sm:$0xf]
      %v2295 = vld [vmem:[%s1105 + $0x118] sm:$0xf]
      %v2296 = vld [vmem:[%s1105 + $0x120] sm:$0xf]
      %v2297 = vld [vmem:[%s1105 + $0x128] sm:$0xf]
      %2298 = vst [vmem:[#allocation4 + $0xc] sm:$0xf] %v2266
      %2299 = vst [vmem:[#allocation4 + $0x30] sm:$0xf] %v2267
      %2300 = vst [vmem:[#allocation4 + $0x54] sm:$0xf] %v2268
      %2301 = vst [vmem:[#allocation4 + $0x78] sm:$0xf] %v2269
      %2302 = vst [vmem:[#allocation4 + $0x9c] sm:$0xf] %v2270
      %2303 = vst [vmem:[#allocation4 + $0xc0] sm:$0xf] %v2271
      %2304 = vst [vmem:[#allocation4 + $0xe4] sm:$0xf] %v2272
      %2305 = vst [vmem:[#allocation4 + $0x108] sm:$0xf] %v2273
      %2306 = vst [vmem:[#allocation4 + $0x12c] sm:$0xf] %v2274
      %2307 = vst [vmem:[#allocation4 + $0x150] sm:$0xf] %v2275
      %2308 = vst [vmem:[#allocation4 + $0x174] sm:$0xf] %v2276
      %2309 = vst [vmem:[#allocation4 + $0x198] sm:$0xf] %v2277
      %2310 = vst [vmem:[#allocation4 + $0x1bc] sm:$0xf] %v2278
      %2311 = vst [vmem:[#allocation4 + $0x1e0] sm:$0xf] %v2279
      %2312 = vst [vmem:[#allocation4 + $0x204] sm:$0xf] %v2280
      %2313 = vst [vmem:[#allocation4 + $0x228] sm:$0xf] %v2281
      %2314 = vst [vmem:[#allocation4 + $0x24c] sm:$0xf] %v2282
      %2315 = vst [vmem:[#allocation4 + $0x270] sm:$0xf] %v2283
      %2316 = vst [vmem:[#allocation4 + $0x294] sm:$0xf] %v2284
      %2317 = vst [vmem:[#allocation4 + $0x2b8] sm:$0xf] %v2285
      %2318 = vst [vmem:[#allocation4 + $0x2dc] sm:$0xf] %v2286
      %2319 = vst [vmem:[#allocation4 + $0x300] sm:$0xf] %v2287
      %2320 = vst [vmem:[#allocation4 + $0x324] sm:$0xf] %v2288
      %2321 = vst [vmem:[#allocation4 + $0x348] sm:$0xf] %v2289
      %2322 = vst [vmem:[#allocation4 + $0x36c] sm:$0xf] %v2290
      %2323 = vst [vmem:[#allocation4 + $0x390] sm:$0xf] %v2291
      %2324 = vst [vmem:[#allocation4 + $0x3b4] sm:$0xf] %v2292
      %2325 = vst [vmem:[#allocation4 + $0x3d8] sm:$0xf] %v2293
      %2326 = vst [vmem:[#allocation4 + $0x3fc] sm:$0xf] %v2294
      %2327 = vst [vmem:[#allocation4 + $0x420] sm:$0xf] %v2295
      %2328 = vst [vmem:[#allocation4 + $0x444] sm:$0xf] %v2296
      %2329 = vst [vmem:[#allocation4 + $0x468] sm:$0xf] %v2297
      %v2330 = vld [vmem:[%s1105] sm:$0xf]
      %v2331 = vld [vmem:[%s1105 + $0x4] sm:$0x1]
      %v2332 = vld [vmem:[%s1105 + $0x8] sm:$0xf]
      %v2333 = vld [vmem:[%s1105 + $0xc] sm:$0x1]
      %v2334 = vld [vmem:[%s1105 + $0x10] sm:$0xf]
      %v2335 = vld [vmem:[%s1105 + $0x14] sm:$0x1]
      %v2336 = vld [vmem:[%s1105 + $0x18] sm:$0xf]
      %v2337 = vld [vmem:[%s1105 + $0x1c] sm:$0x1]
      %v2338 = vld [vmem:[%s1105 + $0x20] sm:$0xf]
      %v2339 = vld [vmem:[%s1105 + $0x24] sm:$0x1]
      %v2340 = vld [vmem:[%s1105 + $0x28] sm:$0xf]
      %v2341 = vld [vmem:[%s1105 + $0x2c] sm:$0x1]
      %v2342 = vld [vmem:[%s1105 + $0x30] sm:$0xf]
      %v2343 = vld [vmem:[%s1105 + $0x34] sm:$0x1]
      %v2344 = vld [vmem:[%s1105 + $0x38] sm:$0xf]
      %v2345 = vld [vmem:[%s1105 + $0x3c] sm:$0x1]
      %v2346 = vld [vmem:[%s1105 + $0x50] sm:$0xf]
      %v2347 = vld [vmem:[%s1105 + $0x54] sm:$0x1]
      %v2348 = vld [vmem:[%s1105 + $0x58] sm:$0xf]
      %v2349 = vld [vmem:[%s1105 + $0x5c] sm:$0x1]
      %v2350 = vld [vmem:[%s1105 + $0x60] sm:$0xf]
      %v2351 = vld [vmem:[%s1105 + $0x64] sm:$0x1]
      %v2352 = vld [vmem:[%s1105 + $0x68] sm:$0xf]
      %v2353 = vld [vmem:[%s1105 + $0x6c] sm:$0x1]
      %v2354 = vld [vmem:[%s1105 + $0x70] sm:$0xf]
      %v2355 = vld [vmem:[%s1105 + $0x74] sm:$0x1]
      %v2356 = vld [vmem:[%s1105 + $0x78] sm:$0xf]
      %v2357 = vld [vmem:[%s1105 + $0x7c] sm:$0x1]
      %v2358 = vld [vmem:[%s1105 + $0x80] sm:$0xf]
      %v2359 = vld [vmem:[%s1105 + $0x84] sm:$0x1]
      %v2360 = vld [vmem:[%s1105 + $0x88] sm:$0xf]
      %v2361 = vld [vmem:[%s1105 + $0x8c] sm:$0x1]
      %v2362 = vld [vmem:[%s1105 + $0xa0] sm:$0xf]
      %v2363 = vld [vmem:[%s1105 + $0xa4] sm:$0x1]
      %v2364 = vld [vmem:[%s1105 + $0xa8] sm:$0xf]
      %v2365 = vld [vmem:[%s1105 + $0xac] sm:$0x1]
      %v2366 = vld [vmem:[%s1105 + $0xb0] sm:$0xf]
      %v2367 = vld [vmem:[%s1105 + $0xb4] sm:$0x1]
      %v2368 = vld [vmem:[%s1105 + $0xb8] sm:$0xf]
      %v2369 = vld [vmem:[%s1105 + $0xbc] sm:$0x1]
      %v2370 = vld [vmem:[%s1105 + $0xc0] sm:$0xf]
      %v2371 = vld [vmem:[%s1105 + $0xc4] sm:$0x1]
      %v2372 = vld [vmem:[%s1105 + $0xc8] sm:$0xf]
      %v2373 = vld [vmem:[%s1105 + $0xcc] sm:$0x1]
      %v2374 = vld [vmem:[%s1105 + $0xd0] sm:$0xf]
      %v2375 = vld [vmem:[%s1105 + $0xd4] sm:$0x1]
      %v2376 = vld [vmem:[%s1105 + $0xd8] sm:$0xf]
      %v2377 = vld [vmem:[%s1105 + $0xdc] sm:$0x1]
      %v2378 = vld [vmem:[%s1105 + $0xf0] sm:$0xf]
      %v2379 = vld [vmem:[%s1105 + $0xf4] sm:$0x1]
      %v2380 = vld [vmem:[%s1105 + $0xf8] sm:$0xf]
      %v2381 = vld [vmem:[%s1105 + $0xfc] sm:$0x1]
      %v2382 = vld [vmem:[%s1105 + $0x100] sm:$0xf]
      %v2383 = vld [vmem:[%s1105 + $0x104] sm:$0x1]
      %v2384 = vld [vmem:[%s1105 + $0x108] sm:$0xf]
      %v2385 = vld [vmem:[%s1105 + $0x10c] sm:$0x1]
      %v2386 = vld [vmem:[%s1105 + $0x110] sm:$0xf]
      %v2387 = vld [vmem:[%s1105 + $0x114] sm:$0x1]
      %v2388 = vld [vmem:[%s1105 + $0x118] sm:$0xf]
      %v2389 = vld [vmem:[%s1105 + $0x11c] sm:$0x1]
      %v2390 = vld [vmem:[%s1105 + $0x120] sm:$0xf]
      %v2391 = vld [vmem:[%s1105 + $0x124] sm:$0x1]
      %v2392 = vld [vmem:[%s1105 + $0x128] sm:$0xf]
      %v2393 = vld [vmem:[%s1105 + $0x12c] sm:$0x1]
      %v2395 = vshrl.u32 %v2330, 16
      %v2397 = vrot.slane %v2395, 4
      %v2398 = vshll.u32 %v2330, 16
      %v2400 = vrot.slane %v2398, 5
      %v2401 = vor.u32 %v2397, %v2400
      %v2402 = vrot.slane %v2401, 4
      %v2404 = vshll.u32 %v2331, 16
      %v2406 = vrot.slane %v2404, 5
      %v2407 = vsel %vm1430, %v2402, %v2406
      %v2409 = vshrl.u32 %v2332, 16
      %v2411 = vrot.slane %v2409, 4
      %v2412 = vshll.u32 %v2332, 16
      %v2414 = vrot.slane %v2412, 5
      %v2415 = vor.u32 %v2411, %v2414
      %v2416 = vrot.slane %v2415, 4
      %v2418 = vshll.u32 %v2333, 16
      %v2420 = vrot.slane %v2418, 5
      %v2421 = vsel %vm1430, %v2416, %v2420
      %v2423 = vshrl.u32 %v2334, 16
      %v2425 = vrot.slane %v2423, 4
      %v2426 = vshll.u32 %v2334, 16
      %v2428 = vrot.slane %v2426, 5
      %v2429 = vor.u32 %v2425, %v2428
      %v2430 = vrot.slane %v2429, 4
      %v2432 = vshll.u32 %v2335, 16
      %v2434 = vrot.slane %v2432, 5
      %v2435 = vsel %vm1430, %v2430, %v2434
      %v2437 = vshrl.u32 %v2336, 16
      %v2439 = vrot.slane %v2437, 4
      %v2440 = vshll.u32 %v2336, 16
      %v2442 = vrot.slane %v2440, 5
      %v2443 = vor.u32 %v2439, %v2442
      %v2444 = vrot.slane %v2443, 4
      %v2446 = vshll.u32 %v2337, 16
      %v2448 = vrot.slane %v2446, 5
      %v2449 = vsel %vm1430, %v2444, %v2448
      %v2451 = vshrl.u32 %v2338, 16
      %v2453 = vrot.slane %v2451, 4
      %v2454 = vshll.u32 %v2338, 16
      %v2456 = vrot.slane %v2454, 5
      %v2457 = vor.u32 %v2453, %v2456
      %v2458 = vrot.slane %v2457, 4
      %v2460 = vshll.u32 %v2339, 16
      %v2462 = vrot.slane %v2460, 5
      %v2463 = vsel %vm1430, %v2458, %v2462
      %v2465 = vshrl.u32 %v2340, 16
      %v2467 = vrot.slane %v2465, 4
      %v2468 = vshll.u32 %v2340, 16
      %v2470 = vrot.slane %v2468, 5
      %v2471 = vor.u32 %v2467, %v2470
      %v2472 = vrot.slane %v2471, 4
      %v2474 = vshll.u32 %v2341, 16
      %v2476 = vrot.slane %v2474, 5
      %v2477 = vsel %vm1430, %v2472, %v2476
      %v2479 = vshrl.u32 %v2342, 16
      %v2481 = vrot.slane %v2479, 4
      %v2482 = vshll.u32 %v2342, 16
      %v2484 = vrot.slane %v2482, 5
      %v2485 = vor.u32 %v2481, %v2484
      %v2486 = vrot.slane %v2485, 4
      %v2488 = vshll.u32 %v2343, 16
      %v2490 = vrot.slane %v2488, 5
      %v2491 = vsel %vm1430, %v2486, %v2490
      %v2493 = vshrl.u32 %v2344, 16
      %v2495 = vrot.slane %v2493, 4
      %v2496 = vshll.u32 %v2344, 16
      %v2498 = vrot.slane %v2496, 5
      %v2499 = vor.u32 %v2495, %v2498
      %v2500 = vrot.slane %v2499, 4
      %v2502 = vshll.u32 %v2345, 16
      %v2504 = vrot.slane %v2502, 5
      %v2505 = vsel %vm1430, %v2500, %v2504
      %v2507 = vshrl.u32 %v2346, 16
      %v2509 = vrot.slane %v2507, 4
      %v2510 = vshll.u32 %v2346, 16
      %v2512 = vrot.slane %v2510, 5
      %v2513 = vor.u32 %v2509, %v2512
      %v2514 = vrot.slane %v2513, 4
      %v2516 = vshll.u32 %v2347, 16
      %v2518 = vrot.slane %v2516, 5
      %v2519 = vsel %vm1430, %v2514, %v2518
      %v2521 = vshrl.u32 %v2348, 16
      %v2523 = vrot.slane %v2521, 4
      %v2524 = vshll.u32 %v2348, 16
      %v2526 = vrot.slane %v2524, 5
      %v2527 = vor.u32 %v2523, %v2526
      %v2528 = vrot.slane %v2527, 4
      %v2530 = vshll.u32 %v2349, 16
      %v2532 = vrot.slane %v2530, 5
      %v2533 = vsel %vm1430, %v2528, %v2532
      %v2535 = vshrl.u32 %v2350, 16
      %v2537 = vrot.slane %v2535, 4
      %v2538 = vshll.u32 %v2350, 16
      %v2540 = vrot.slane %v2538, 5
      %v2541 = vor.u32 %v2537, %v2540
      %v2542 = vrot.slane %v2541, 4
      %v2544 = vshll.u32 %v2351, 16
      %v2546 = vrot.slane %v2544, 5
      %v2547 = vsel %vm1430, %v2542, %v2546
      %v2549 = vshrl.u32 %v2352, 16
      %v2551 = vrot.slane %v2549, 4
      %v2552 = vshll.u32 %v2352, 16
      %v2554 = vrot.slane %v2552, 5
      %v2555 = vor.u32 %v2551, %v2554
      %v2556 = vrot.slane %v2555, 4
      %v2558 = vshll.u32 %v2353, 16
      %v2560 = vrot.slane %v2558, 5
      %v2561 = vsel %vm1430, %v2556, %v2560
      %v2563 = vshrl.u32 %v2354, 16
      %v2565 = vrot.slane %v2563, 4
      %v2566 = vshll.u32 %v2354, 16
      %v2568 = vrot.slane %v2566, 5
      %v2569 = vor.u32 %v2565, %v2568
      %v2570 = vrot.slane %v2569, 4
      %v2572 = vshll.u32 %v2355, 16
      %v2574 = vrot.slane %v2572, 5
      %v2575 = vsel %vm1430, %v2570, %v2574
      %v2577 = vshrl.u32 %v2356, 16
      %v2579 = vrot.slane %v2577, 4
      %v2580 = vshll.u32 %v2356, 16
      %v2582 = vrot.slane %v2580, 5
      %v2583 = vor.u32 %v2579, %v2582
      %v2584 = vrot.slane %v2583, 4
      %v2586 = vshll.u32 %v2357, 16
      %v2588 = vrot.slane %v2586, 5
      %v2589 = vsel %vm1430, %v2584, %v2588
      %v2591 = vshrl.u32 %v2358, 16
      %v2593 = vrot.slane %v2591, 4
      %v2594 = vshll.u32 %v2358, 16
      %v2596 = vrot.slane %v2594, 5
      %v2597 = vor.u32 %v2593, %v2596
      %v2598 = vrot.slane %v2597, 4
      %v2600 = vshll.u32 %v2359, 16
      %v2602 = vrot.slane %v2600, 5
      %v2603 = vsel %vm1430, %v2598, %v2602
      %v2605 = vshrl.u32 %v2360, 16
      %v2607 = vrot.slane %v2605, 4
      %v2608 = vshll.u32 %v2360, 16
      %v2610 = vrot.slane %v2608, 5
      %v2611 = vor.u32 %v2607, %v2610
      %v2612 = vrot.slane %v2611, 4
      %v2614 = vshll.u32 %v2361, 16
      %v2616 = vrot.slane %v2614, 5
      %v2617 = vsel %vm1430, %v2612, %v2616
      %v2619 = vshrl.u32 %v2362, 16
      %v2621 = vrot.slane %v2619, 4
      %v2622 = vshll.u32 %v2362, 16
      %v2624 = vrot.slane %v2622, 5
      %v2625 = vor.u32 %v2621, %v2624
      %v2626 = vrot.slane %v2625, 4
      %v2628 = vshll.u32 %v2363, 16
      %v2630 = vrot.slane %v2628, 5
      %v2631 = vsel %vm1430, %v2626, %v2630
      %v2633 = vshrl.u32 %v2364, 16
      %v2635 = vrot.slane %v2633, 4
      %v2636 = vshll.u32 %v2364, 16
      %v2638 = vrot.slane %v2636, 5
      %v2639 = vor.u32 %v2635, %v2638
      %v2640 = vrot.slane %v2639, 4
      %v2642 = vshll.u32 %v2365, 16
      %v2644 = vrot.slane %v2642, 5
      %v2645 = vsel %vm1430, %v2640, %v2644
      %v2647 = vshrl.u32 %v2366, 16
      %v2649 = vrot.slane %v2647, 4
      %v2650 = vshll.u32 %v2366, 16
      %v2652 = vrot.slane %v2650, 5
      %v2653 = vor.u32 %v2649, %v2652
      %v2654 = vrot.slane %v2653, 4
      %v2656 = vshll.u32 %v2367, 16
      %v2658 = vrot.slane %v2656, 5
      %v2659 = vsel %vm1430, %v2654, %v2658
      %v2661 = vshrl.u32 %v2368, 16
      %v2663 = vrot.slane %v2661, 4
      %v2664 = vshll.u32 %v2368, 16
      %v2666 = vrot.slane %v2664, 5
      %v2667 = vor.u32 %v2663, %v2666
      %v2668 = vrot.slane %v2667, 4
      %v2670 = vshll.u32 %v2369, 16
      %v2672 = vrot.slane %v2670, 5
      %v2673 = vsel %vm1430, %v2668, %v2672
      %v2675 = vshrl.u32 %v2370, 16
      %v2677 = vrot.slane %v2675, 4
      %v2678 = vshll.u32 %v2370, 16
      %v2680 = vrot.slane %v2678, 5
      %v2681 = vor.u32 %v2677, %v2680
      %v2682 = vrot.slane %v2681, 4
      %v2684 = vshll.u32 %v2371, 16
      %v2686 = vrot.slane %v2684, 5
      %v2687 = vsel %vm1430, %v2682, %v2686
      %v2689 = vshrl.u32 %v2372, 16
      %v2691 = vrot.slane %v2689, 4
      %v2692 = vshll.u32 %v2372, 16
      %v2694 = vrot.slane %v2692, 5
      %v2695 = vor.u32 %v2691, %v2694
      %v2696 = vrot.slane %v2695, 4
      %v2698 = vshll.u32 %v2373, 16
      %v2700 = vrot.slane %v2698, 5
      %v2701 = vsel %vm1430, %v2696, %v2700
      %v2703 = vshrl.u32 %v2374, 16
      %v2705 = vrot.slane %v2703, 4
      %v2706 = vshll.u32 %v2374, 16
      %v2708 = vrot.slane %v2706, 5
      %v2709 = vor.u32 %v2705, %v2708
      %v2710 = vrot.slane %v2709, 4
      %v2712 = vshll.u32 %v2375, 16
      %v2714 = vrot.slane %v2712, 5
      %v2715 = vsel %vm1430, %v2710, %v2714
      %v2717 = vshrl.u32 %v2376, 16
      %v2719 = vrot.slane %v2717, 4
      %v2720 = vshll.u32 %v2376, 16
      %v2722 = vrot.slane %v2720, 5
      %v2723 = vor.u32 %v2719, %v2722
      %v2724 = vrot.slane %v2723, 4
      %v2726 = vshll.u32 %v2377, 16
      %v2728 = vrot.slane %v2726, 5
      %v2729 = vsel %vm1430, %v2724, %v2728
      %v2731 = vshrl.u32 %v2378, 16
      %v2733 = vrot.slane %v2731, 4
      %v2734 = vshll.u32 %v2378, 16
      %v2736 = vrot.slane %v2734, 5
      %v2737 = vor.u32 %v2733, %v2736
      %v2738 = vrot.slane %v2737, 4
      %v2740 = vshll.u32 %v2379, 16
      %v2742 = vrot.slane %v2740, 5
      %v2743 = vsel %vm1430, %v2738, %v2742
      %v2745 = vshrl.u32 %v2380, 16
      %v2747 = vrot.slane %v2745, 4
      %v2748 = vshll.u32 %v2380, 16
      %v2750 = vrot.slane %v2748, 5
      %v2751 = vor.u32 %v2747, %v2750
      %v2752 = vrot.slane %v2751, 4
      %v2754 = vshll.u32 %v2381, 16
      %v2756 = vrot.slane %v2754, 5
      %v2757 = vsel %vm1430, %v2752, %v2756
      %v2759 = vshrl.u32 %v2382, 16
      %v2761 = vrot.slane %v2759, 4
      %v2762 = vshll.u32 %v2382, 16
      %v2764 = vrot.slane %v2762, 5
      %v2765 = vor.u32 %v2761, %v2764
      %v2766 = vrot.slane %v2765, 4
      %v2768 = vshll.u32 %v2383, 16
      %v2770 = vrot.slane %v2768, 5
      %v2771 = vsel %vm1430, %v2766, %v2770
      %v2773 = vshrl.u32 %v2384, 16
      %v2775 = vrot.slane %v2773, 4
      %v2776 = vshll.u32 %v2384, 16
      %v2778 = vrot.slane %v2776, 5
      %v2779 = vor.u32 %v2775, %v2778
      %v2780 = vrot.slane %v2779, 4
      %v2782 = vshll.u32 %v2385, 16
      %v2784 = vrot.slane %v2782, 5
      %v2785 = vsel %vm1430, %v2780, %v2784
      %v2787 = vshrl.u32 %v2386, 16
      %v2789 = vrot.slane %v2787, 4
      %v2790 = vshll.u32 %v2386, 16
      %v2792 = vrot.slane %v2790, 5
      %v2793 = vor.u32 %v2789, %v2792
      %v2794 = vrot.slane %v2793, 4
      %v2796 = vshll.u32 %v2387, 16
      %v2798 = vrot.slane %v2796, 5
      %v2799 = vsel %vm1430, %v2794, %v2798
      %v2801 = vshrl.u32 %v2388, 16
      %v2803 = vrot.slane %v2801, 4
      %v2804 = vshll.u32 %v2388, 16
      %v2806 = vrot.slane %v2804, 5
      %v2807 = vor.u32 %v2803, %v2806
      %v2808 = vrot.slane %v2807, 4
      %v2810 = vshll.u32 %v2389, 16
      %v2812 = vrot.slane %v2810, 5
      %v2813 = vsel %vm1430, %v2808, %v2812
      %v2815 = vshrl.u32 %v2390, 16
      %v2817 = vrot.slane %v2815, 4
      %v2818 = vshll.u32 %v2390, 16
      %v2820 = vrot.slane %v2818, 5
      %v2821 = vor.u32 %v2817, %v2820
      %v2822 = vrot.slane %v2821, 4
      %v2824 = vshll.u32 %v2391, 16
      %v2826 = vrot.slane %v2824, 5
      %v2827 = vsel %vm1430, %v2822, %v2826
      %v2829 = vshrl.u32 %v2392, 16
      %v2831 = vrot.slane %v2829, 4
      %v2832 = vshll.u32 %v2392, 16
      %v2834 = vrot.slane %v2832, 5
      %v2835 = vor.u32 %v2831, %v2834
      %v2836 = vrot.slane %v2835, 4
      %v2838 = vshll.u32 %v2393, 16
      %v2840 = vrot.slane %v2838, 5
      %v2841 = vsel %vm1430, %v2836, %v2840
      %2874 = vst [vmem:[#allocation4 + $0x10] sm:$0xf] %v2407
      %2875 = vst [vmem:[#allocation4 + $0x34] sm:$0xf] %v2421
      %2876 = vst [vmem:[#allocation4 + $0x58] sm:$0xf] %v2435
      %2877 = vst [vmem:[#allocation4 + $0x7c] sm:$0xf] %v2449
      %2878 = vst [vmem:[#allocation4 + $0xa0] sm:$0xf] %v2463
      %2879 = vst [vmem:[#allocation4 + $0xc4] sm:$0xf] %v2477
      %2880 = vst [vmem:[#allocation4 + $0xe8] sm:$0xf] %v2491
      %2881 = vst [vmem:[#allocation4 + $0x10c] sm:$0xf] %v2505
      %2882 = vst [vmem:[#allocation4 + $0x130] sm:$0xf] %v2519
      %2883 = vst [vmem:[#allocation4 + $0x154] sm:$0xf] %v2533
      %2884 = vst [vmem:[#allocation4 + $0x178] sm:$0xf] %v2547
      %2885 = vst [vmem:[#allocation4 + $0x19c] sm:$0xf] %v2561
      %2886 = vst [vmem:[#allocation4 + $0x1c0] sm:$0xf] %v2575
      %2887 = vst [vmem:[#allocation4 + $0x1e4] sm:$0xf] %v2589
      %2888 = vst [vmem:[#allocation4 + $0x208] sm:$0xf] %v2603
      %2889 = vst [vmem:[#allocation4 + $0x22c] sm:$0xf] %v2617
      %2890 = vst [vmem:[#allocation4 + $0x250] sm:$0xf] %v2631
      %2891 = vst [vmem:[#allocation4 + $0x274] sm:$0xf] %v2645
      %2892 = vst [vmem:[#allocation4 + $0x298] sm:$0xf] %v2659
      %2893 = vst [vmem:[#allocation4 + $0x2bc] sm:$0xf] %v2673
      %2894 = vst [vmem:[#allocation4 + $0x2e0] sm:$0xf] %v2687
      %2895 = vst [vmem:[#allocation4 + $0x304] sm:$0xf] %v2701
      %2896 = vst [vmem:[#allocation4 + $0x328] sm:$0xf] %v2715
      %2897 = vst [vmem:[#allocation4 + $0x34c] sm:$0xf] %v2729
      %2898 = vst [vmem:[#allocation4 + $0x370] sm:$0xf] %v2743
      %2899 = vst [vmem:[#allocation4 + $0x394] sm:$0xf] %v2757
      %2900 = vst [vmem:[#allocation4 + $0x3b8] sm:$0xf] %v2771
      %2901 = vst [vmem:[#allocation4 + $0x3dc] sm:$0xf] %v2785
      %2902 = vst [vmem:[#allocation4 + $0x400] sm:$0xf] %v2799
      %2903 = vst [vmem:[#allocation4 + $0x424] sm:$0xf] %v2813
      %2904 = vst [vmem:[#allocation4 + $0x448] sm:$0xf] %v2827
      %2905 = vst [vmem:[#allocation4 + $0x46c] sm:$0xf] %v2841
      %v2906 = vld [vmem:[%s1105] sm:$0xe]
      %v2907 = vld [vmem:[%s1105 + $0x4] sm:$0x1]
      %v2908 = vld [vmem:[%s1105 + $0x8] sm:$0xe]
      %v2909 = vld [vmem:[%s1105 + $0xc] sm:$0x1]
      %v2910 = vld [vmem:[%s1105 + $0x10] sm:$0xe]
      %v2911 = vld [vmem:[%s1105 + $0x14] sm:$0x1]
      %v2912 = vld [vmem:[%s1105 + $0x18] sm:$0xe]
      %v2913 = vld [vmem:[%s1105 + $0x1c] sm:$0x1]
      %v2914 = vld [vmem:[%s1105 + $0x20] sm:$0xe]
      %v2915 = vld [vmem:[%s1105 + $0x24] sm:$0x1]
      %v2916 = vld [vmem:[%s1105 + $0x28] sm:$0xe]
      %v2917 = vld [vmem:[%s1105 + $0x2c] sm:$0x1]
      %v2918 = vld [vmem:[%s1105 + $0x30] sm:$0xe]
      %v2919 = vld [vmem:[%s1105 + $0x34] sm:$0x1]
      %v2920 = vld [vmem:[%s1105 + $0x38] sm:$0xe]
      %v2921 = vld [vmem:[%s1105 + $0x3c] sm:$0x1]
      %v2922 = vld [vmem:[%s1105 + $0x50] sm:$0xe]
      %v2923 = vld [vmem:[%s1105 + $0x54] sm:$0x1]
      %v2924 = vld [vmem:[%s1105 + $0x58] sm:$0xe]
      %v2925 = vld [vmem:[%s1105 + $0x5c] sm:$0x1]
      %v2926 = vld [vmem:[%s1105 + $0x60] sm:$0xe]
      %v2927 = vld [vmem:[%s1105 + $0x64] sm:$0x1]
      %v2928 = vld [vmem:[%s1105 + $0x68] sm:$0xe]
      %v2929 = vld [vmem:[%s1105 + $0x6c] sm:$0x1]
      %v2930 = vld [vmem:[%s1105 + $0x70] sm:$0xe]
      %v2931 = vld [vmem:[%s1105 + $0x74] sm:$0x1]
      %v2932 = vld [vmem:[%s1105 + $0x78] sm:$0xe]
      %v2933 = vld [vmem:[%s1105 + $0x7c] sm:$0x1]
      %v2934 = vld [vmem:[%s1105 + $0x80] sm:$0xe]
      %v2935 = vld [vmem:[%s1105 + $0x84] sm:$0x1]
      %v2936 = vld [vmem:[%s1105 + $0x88] sm:$0xe]
      %v2937 = vld [vmem:[%s1105 + $0x8c] sm:$0x1]
      %v2938 = vld [vmem:[%s1105 + $0xa0] sm:$0xe]
      %v2939 = vld [vmem:[%s1105 + $0xa4] sm:$0x1]
      %v2940 = vld [vmem:[%s1105 + $0xa8] sm:$0xe]
      %v2941 = vld [vmem:[%s1105 + $0xac] sm:$0x1]
      %v2942 = vld [vmem:[%s1105 + $0xb0] sm:$0xe]
      %v2943 = vld [vmem:[%s1105 + $0xb4] sm:$0x1]
      %v2944 = vld [vmem:[%s1105 + $0xb8] sm:$0xe]
      %v2945 = vld [vmem:[%s1105 + $0xbc] sm:$0x1]
      %v2946 = vld [vmem:[%s1105 + $0xc0] sm:$0xe]
      %v2947 = vld [vmem:[%s1105 + $0xc4] sm:$0x1]
      %v2948 = vld [vmem:[%s1105 + $0xc8] sm:$0xe]
      %v2949 = vld [vmem:[%s1105 + $0xcc] sm:$0x1]
      %v2950 = vld [vmem:[%s1105 + $0xd0] sm:$0xe]
      %v2951 = vld [vmem:[%s1105 + $0xd4] sm:$0x1]
      %v2952 = vld [vmem:[%s1105 + $0xd8] sm:$0xe]
      %v2953 = vld [vmem:[%s1105 + $0xdc] sm:$0x1]
      %v2954 = vld [vmem:[%s1105 + $0xf0] sm:$0xe]
      %v2955 = vld [vmem:[%s1105 + $0xf4] sm:$0x1]
      %v2956 = vld [vmem:[%s1105 + $0xf8] sm:$0xe]
      %v2957 = vld [vmem:[%s1105 + $0xfc] sm:$0x1]
      %v2958 = vld [vmem:[%s1105 + $0x100] sm:$0xe]
      %v2959 = vld [vmem:[%s1105 + $0x104] sm:$0x1]
      %v2960 = vld [vmem:[%s1105 + $0x108] sm:$0xe]
      %v2961 = vld [vmem:[%s1105 + $0x10c] sm:$0x1]
      %v2962 = vld [vmem:[%s1105 + $0x110] sm:$0xe]
      %v2963 = vld [vmem:[%s1105 + $0x114] sm:$0x1]
      %v2964 = vld [vmem:[%s1105 + $0x118] sm:$0xe]
      %v2965 = vld [vmem:[%s1105 + $0x11c] sm:$0x1]
      %v2966 = vld [vmem:[%s1105 + $0x120] sm:$0xe]
      %v2967 = vld [vmem:[%s1105 + $0x124] sm:$0x1]
      %v2968 = vld [vmem:[%s1105 + $0x128] sm:$0xe]
      %v2969 = vld [vmem:[%s1105 + $0x12c] sm:$0x1]
      %v3034 = vrot.slane %v2906, 5
      %v3035 = vrot.slane %v3034, 4
      %v3036 = vrot.slane %v2907, 5
      %v3037 = vsel %vm2073, %v3035, %v3036
      %v3038 = vrot.slane %v2908, 5
      %v3039 = vrot.slane %v3038, 4
      %v3040 = vrot.slane %v2909, 5
      %v3041 = vsel %vm2073, %v3039, %v3040
      %v3042 = vrot.slane %v2910, 5
      %v3043 = vrot.slane %v3042, 4
      %v3044 = vrot.slane %v2911, 5
      %v3045 = vsel %vm2073, %v3043, %v3044
      %v3046 = vrot.slane %v2912, 5
      %v3047 = vrot.slane %v3046, 4
      %v3048 = vrot.slane %v2913, 5
      %v3049 = vsel %vm2073, %v3047, %v3048
      %v3050 = vrot.slane %v2914, 5
      %v3051 = vrot.slane %v3050, 4
      %v3052 = vrot.slane %v2915, 5
      %v3053 = vsel %vm2073, %v3051, %v3052
      %v3054 = vrot.slane %v2916, 5
      %v3055 = vrot.slane %v3054, 4
      %v3056 = vrot.slane %v2917, 5
      %v3057 = vsel %vm2073, %v3055, %v3056
      %v3058 = vrot.slane %v2918, 5
      %v3059 = vrot.slane %v3058, 4
      %v3060 = vrot.slane %v2919, 5
      %v3061 = vsel %vm2073, %v3059, %v3060
      %v3062 = vrot.slane %v2920, 5
      %v3063 = vrot.slane %v3062, 4
      %v3064 = vrot.slane %v2921, 5
      %v3065 = vsel %vm2073, %v3063, %v3064
      %v3066 = vrot.slane %v2922, 5
      %v3067 = vrot.slane %v3066, 4
      %v3068 = vrot.slane %v2923, 5
      %v3069 = vsel %vm2073, %v3067, %v3068
      %v3070 = vrot.slane %v2924, 5
      %v3071 = vrot.slane %v3070, 4
      %v3072 = vrot.slane %v2925, 5
      %v3073 = vsel %vm2073, %v3071, %v3072
      %v3074 = vrot.slane %v2926, 5
      %v3075 = vrot.slane %v3074, 4
      %v3076 = vrot.slane %v2927, 5
      %v3077 = vsel %vm2073, %v3075, %v3076
      %v3078 = vrot.slane %v2928, 5
      %v3079 = vrot.slane %v3078, 4
      %v3080 = vrot.slane %v2929, 5
      %v3081 = vsel %vm2073, %v3079, %v3080
      %v3082 = vrot.slane %v2930, 5
      %v3083 = vrot.slane %v3082, 4
      %v3084 = vrot.slane %v2931, 5
      %v3085 = vsel %vm2073, %v3083, %v3084
      %v3086 = vrot.slane %v2932, 5
      %v3087 = vrot.slane %v3086, 4
      %v3088 = vrot.slane %v2933, 5
      %v3089 = vsel %vm2073, %v3087, %v3088
      %v3090 = vrot.slane %v2934, 5
      %v3091 = vrot.slane %v3090, 4
      %v3092 = vrot.slane %v2935, 5
      %v3093 = vsel %vm2073, %v3091, %v3092
      %v3094 = vrot.slane %v2936, 5
      %v3095 = vrot.slane %v3094, 4
      %v3096 = vrot.slane %v2937, 5
      %v3097 = vsel %vm2073, %v3095, %v3096
      %v3098 = vrot.slane %v2938, 5
      %v3099 = vrot.slane %v3098, 4
      %v3100 = vrot.slane %v2939, 5
      %v3101 = vsel %vm2073, %v3099, %v3100
      %v3102 = vrot.slane %v2940, 5
      %v3103 = vrot.slane %v3102, 4
      %v3104 = vrot.slane %v2941, 5
      %v3105 = vsel %vm2073, %v3103, %v3104
      %v3106 = vrot.slane %v2942, 5
      %v3107 = vrot.slane %v3106, 4
      %v3108 = vrot.slane %v2943, 5
      %v3109 = vsel %vm2073, %v3107, %v3108
      %v3110 = vrot.slane %v2944, 5
      %v3111 = vrot.slane %v3110, 4
      %v3112 = vrot.slane %v2945, 5
      %v3113 = vsel %vm2073, %v3111, %v3112
      %v3114 = vrot.slane %v2946, 5
      %v3115 = vrot.slane %v3114, 4
      %v3116 = vrot.slane %v2947, 5
      %v3117 = vsel %vm2073, %v3115, %v3116
      %v3118 = vrot.slane %v2948, 5
      %v3119 = vrot.slane %v3118, 4
      %v3120 = vrot.slane %v2949, 5
      %v3121 = vsel %vm2073, %v3119, %v3120
      %v3122 = vrot.slane %v2950, 5
      %v3123 = vrot.slane %v3122, 4
      %v3124 = vrot.slane %v2951, 5
      %v3125 = vsel %vm2073, %v3123, %v3124
      %v3126 = vrot.slane %v2952, 5
      %v3127 = vrot.slane %v3126, 4
      %v3128 = vrot.slane %v2953, 5
      %v3129 = vsel %vm2073, %v3127, %v3128
      %v3130 = vrot.slane %v2954, 5
      %v3131 = vrot.slane %v3130, 4
      %v3132 = vrot.slane %v2955, 5
      %v3133 = vsel %vm2073, %v3131, %v3132
      %v3134 = vrot.slane %v2956, 5
      %v3135 = vrot.slane %v3134, 4
      %v3136 = vrot.slane %v2957, 5
      %v3137 = vsel %vm2073, %v3135, %v3136
      %v3138 = vrot.slane %v2958, 5
      %v3139 = vrot.slane %v3138, 4
      %v3140 = vrot.slane %v2959, 5
      %v3141 = vsel %vm2073, %v3139, %v3140
      %v3142 = vrot.slane %v2960, 5
      %v3143 = vrot.slane %v3142, 4
      %v3144 = vrot.slane %v2961, 5
      %v3145 = vsel %vm2073, %v3143, %v3144
      %v3146 = vrot.slane %v2962, 5
      %v3147 = vrot.slane %v3146, 4
      %v3148 = vrot.slane %v2963, 5
      %v3149 = vsel %vm2073, %v3147, %v3148
      %v3150 = vrot.slane %v2964, 5
      %v3151 = vrot.slane %v3150, 4
      %v3152 = vrot.slane %v2965, 5
      %v3153 = vsel %vm2073, %v3151, %v3152
      %v3154 = vrot.slane %v2966, 5
      %v3155 = vrot.slane %v3154, 4
      %v3156 = vrot.slane %v2967, 5
      %v3157 = vsel %vm2073, %v3155, %v3156
      %v3158 = vrot.slane %v2968, 5
      %v3159 = vrot.slane %v3158, 4
      %v3160 = vrot.slane %v2969, 5
      %v3161 = vsel %vm2073, %v3159, %v3160
      %3194 = vst [vmem:[#allocation4 + $0x14] sm:$0xf] %v3037
      %3195 = vst [vmem:[#allocation4 + $0x38] sm:$0xf] %v3041
      %3196 = vst [vmem:[#allocation4 + $0x5c] sm:$0xf] %v3045
      %3197 = vst [vmem:[#allocation4 + $0x80] sm:$0xf] %v3049
      %3198 = vst [vmem:[#allocation4 + $0xa4] sm:$0xf] %v3053
      %3199 = vst [vmem:[#allocation4 + $0xc8] sm:$0xf] %v3057
      %3200 = vst [vmem:[#allocation4 + $0xec] sm:$0xf] %v3061
      %3201 = vst [vmem:[#allocation4 + $0x110] sm:$0xf] %v3065
      %3202 = vst [vmem:[#allocation4 + $0x134] sm:$0xf] %v3069
      %3203 = vst [vmem:[#allocation4 + $0x158] sm:$0xf] %v3073
      %3204 = vst [vmem:[#allocation4 + $0x17c] sm:$0xf] %v3077
      %3205 = vst [vmem:[#allocation4 + $0x1a0] sm:$0xf] %v3081
      %3206 = vst [vmem:[#allocation4 + $0x1c4] sm:$0xf] %v3085
      %3207 = vst [vmem:[#allocation4 + $0x1e8] sm:$0xf] %v3089
      %3208 = vst [vmem:[#allocation4 + $0x20c] sm:$0xf] %v3093
      %3209 = vst [vmem:[#allocation4 + $0x230] sm:$0xf] %v3097
      %3210 = vst [vmem:[#allocation4 + $0x254] sm:$0xf] %v3101
      %3211 = vst [vmem:[#allocation4 + $0x278] sm:$0xf] %v3105
      %3212 = vst [vmem:[#allocation4 + $0x29c] sm:$0xf] %v3109
      %3213 = vst [vmem:[#allocation4 + $0x2c0] sm:$0xf] %v3113
      %3214 = vst [vmem:[#allocation4 + $0x2e4] sm:$0xf] %v3117
      %3215 = vst [vmem:[#allocation4 + $0x308] sm:$0xf] %v3121
      %3216 = vst [vmem:[#allocation4 + $0x32c] sm:$0xf] %v3125
      %3217 = vst [vmem:[#allocation4 + $0x350] sm:$0xf] %v3129
      %3218 = vst [vmem:[#allocation4 + $0x374] sm:$0xf] %v3133
      %3219 = vst [vmem:[#allocation4 + $0x398] sm:$0xf] %v3137
      %3220 = vst [vmem:[#allocation4 + $0x3bc] sm:$0xf] %v3141
      %3221 = vst [vmem:[#allocation4 + $0x3e0] sm:$0xf] %v3145
      %3222 = vst [vmem:[#allocation4 + $0x404] sm:$0xf] %v3149
      %3223 = vst [vmem:[#allocation4 + $0x428] sm:$0xf] %v3153
      %3224 = vst [vmem:[#allocation4 + $0x44c] sm:$0xf] %v3157
      %3225 = vst [vmem:[#allocation4 + $0x470] sm:$0xf] %v3161
      %s3226 = scalar_lea.vmem [#allocation2], 16
      %v3227 = vld [vmem:[%s3226] sm:$0xf]
      %v3228 = vld [vmem:[%s3226 + $0x8] sm:$0xf]
      %v3229 = vld [vmem:[%s3226 + $0x10] sm:$0xf]
      %v3230 = vld [vmem:[%s3226 + $0x18] sm:$0xf]
      %v3231 = vld [vmem:[%s3226 + $0x20] sm:$0xf]
      %v3232 = vld [vmem:[%s3226 + $0x28] sm:$0xf]
      %v3233 = vld [vmem:[%s3226 + $0x30] sm:$0xf]
      %v3234 = vld [vmem:[%s3226 + $0x38] sm:$0xf]
      %v3235 = vld [vmem:[%s3226 + $0x50] sm:$0xf]
      %v3236 = vld [vmem:[%s3226 + $0x58] sm:$0xf]
      %v3237 = vld [vmem:[%s3226 + $0x60] sm:$0xf]
      %v3238 = vld [vmem:[%s3226 + $0x68] sm:$0xf]
      %v3239 = vld [vmem:[%s3226 + $0x70] sm:$0xf]
      %v3240 = vld [vmem:[%s3226 + $0x78] sm:$0xf]
      %v3241 = vld [vmem:[%s3226 + $0x80] sm:$0xf]
      %v3242 = vld [vmem:[%s3226 + $0x88] sm:$0xf]
      %v3243 = vld [vmem:[%s3226 + $0xa0] sm:$0xf]
      %v3244 = vld [vmem:[%s3226 + $0xa8] sm:$0xf]
      %v3245 = vld [vmem:[%s3226 + $0xb0] sm:$0xf]
      %v3246 = vld [vmem:[%s3226 + $0xb8] sm:$0xf]
      %v3247 = vld [vmem:[%s3226 + $0xc0] sm:$0xf]
      %v3248 = vld [vmem:[%s3226 + $0xc8] sm:$0xf]
      %v3249 = vld [vmem:[%s3226 + $0xd0] sm:$0xf]
      %v3250 = vld [vmem:[%s3226 + $0xd8] sm:$0xf]
      %v3251 = vld [vmem:[%s3226 + $0xf0] sm:$0xf]
      %v3252 = vld [vmem:[%s3226 + $0xf8] sm:$0xf]
      %v3253 = vld [vmem:[%s3226 + $0x100] sm:$0xf]
      %v3254 = vld [vmem:[%s3226 + $0x108] sm:$0xf]
      %v3255 = vld [vmem:[%s3226 + $0x110] sm:$0xf]
      %v3256 = vld [vmem:[%s3226 + $0x118] sm:$0xf]
      %v3257 = vld [vmem:[%s3226 + $0x120] sm:$0xf]
      %v3258 = vld [vmem:[%s3226 + $0x128] sm:$0xf]
      %3259 = vst [vmem:[#allocation4 + $0x18] sm:$0xf] %v3227
      %3260 = vst [vmem:[#allocation4 + $0x3c] sm:$0xf] %v3228
      %3261 = vst [vmem:[#allocation4 + $0x60] sm:$0xf] %v3229
      %3262 = vst [vmem:[#allocation4 + $0x84] sm:$0xf] %v3230
      %3263 = vst [vmem:[#allocation4 + $0xa8] sm:$0xf] %v3231
      %3264 = vst [vmem:[#allocation4 + $0xcc] sm:$0xf] %v3232
      %3265 = vst [vmem:[#allocation4 + $0xf0] sm:$0xf] %v3233
      %3266 = vst [vmem:[#allocation4 + $0x114] sm:$0xf] %v3234
      %3267 = vst [vmem:[#allocation4 + $0x138] sm:$0xf] %v3235
      %3268 = vst [vmem:[#allocation4 + $0x15c] sm:$0xf] %v3236
      %3269 = vst [vmem:[#allocation4 + $0x180] sm:$0xf] %v3237
      %3270 = vst [vmem:[#allocation4 + $0x1a4] sm:$0xf] %v3238
      %3271 = vst [vmem:[#allocation4 + $0x1c8] sm:$0xf] %v3239
      %3272 = vst [vmem:[#allocation4 + $0x1ec] sm:$0xf] %v3240
      %3273 = vst [vmem:[#allocation4 + $0x210] sm:$0xf] %v3241
      %3274 = vst [vmem:[#allocation4 + $0x234] sm:$0xf] %v3242
      %3275 = vst [vmem:[#allocation4 + $0x258] sm:$0xf] %v3243
      %3276 = vst [vmem:[#allocation4 + $0x27c] sm:$0xf] %v3244
      %3277 = vst [vmem:[#allocation4 + $0x2a0] sm:$0xf] %v3245
      %3278 = vst [vmem:[#allocation4 + $0x2c4] sm:$0xf] %v3246
      %3279 = vst [vmem:[#allocation4 + $0x2e8] sm:$0xf] %v3247
      %3280 = vst [vmem:[#allocation4 + $0x30c] sm:$0xf] %v3248
      %3281 = vst [vmem:[#allocation4 + $0x330] sm:$0xf] %v3249
      %3282 = vst [vmem:[#allocation4 + $0x354] sm:$0xf] %v3250
      %3283 = vst [vmem:[#allocation4 + $0x378] sm:$0xf] %v3251
      %3284 = vst [vmem:[#allocation4 + $0x39c] sm:$0xf] %v3252
      %3285 = vst [vmem:[#allocation4 + $0x3c0] sm:$0xf] %v3253
      %3286 = vst [vmem:[#allocation4 + $0x3e4] sm:$0xf] %v3254
      %3287 = vst [vmem:[#allocation4 + $0x408] sm:$0xf] %v3255
      %3288 = vst [vmem:[#allocation4 + $0x42c] sm:$0xf] %v3256
      %3289 = vst [vmem:[#allocation4 + $0x450] sm:$0xf] %v3257
      %3290 = vst [vmem:[#allocation4 + $0x474] sm:$0xf] %v3258
      %v3291 = vld [vmem:[%s3226] sm:$0xf]
      %v3292 = vld [vmem:[%s3226 + $0x4] sm:$0x1]
      %v3293 = vld [vmem:[%s3226 + $0x8] sm:$0xf]
      %v3294 = vld [vmem:[%s3226 + $0xc] sm:$0x1]
      %v3295 = vld [vmem:[%s3226 + $0x10] sm:$0xf]
      %v3296 = vld [vmem:[%s3226 + $0x14] sm:$0x1]
      %v3297 = vld [vmem:[%s3226 + $0x18] sm:$0xf]
      %v3298 = vld [vmem:[%s3226 + $0x1c] sm:$0x1]
      %v3299 = vld [vmem:[%s3226 + $0x20] sm:$0xf]
      %v3300 = vld [vmem:[%s3226 + $0x24] sm:$0x1]
      %v3301 = vld [vmem:[%s3226 + $0x28] sm:$0xf]
      %v3302 = vld [vmem:[%s3226 + $0x2c] sm:$0x1]
      %v3303 = vld [vmem:[%s3226 + $0x30] sm:$0xf]
      %v3304 = vld [vmem:[%s3226 + $0x34] sm:$0x1]
      %v3305 = vld [vmem:[%s3226 + $0x38] sm:$0xf]
      %v3306 = vld [vmem:[%s3226 + $0x3c] sm:$0x1]
      %v3307 = vld [vmem:[%s3226 + $0x50] sm:$0xf]
      %v3308 = vld [vmem:[%s3226 + $0x54] sm:$0x1]
      %v3309 = vld [vmem:[%s3226 + $0x58] sm:$0xf]
      %v3310 = vld [vmem:[%s3226 + $0x5c] sm:$0x1]
      %v3311 = vld [vmem:[%s3226 + $0x60] sm:$0xf]
      %v3312 = vld [vmem:[%s3226 + $0x64] sm:$0x1]
      %v3313 = vld [vmem:[%s3226 + $0x68] sm:$0xf]
      %v3314 = vld [vmem:[%s3226 + $0x6c] sm:$0x1]
      %v3315 = vld [vmem:[%s3226 + $0x70] sm:$0xf]
      %v3316 = vld [vmem:[%s3226 + $0x74] sm:$0x1]
      %v3317 = vld [vmem:[%s3226 + $0x78] sm:$0xf]
      %v3318 = vld [vmem:[%s3226 + $0x7c] sm:$0x1]
      %v3319 = vld [vmem:[%s3226 + $0x80] sm:$0xf]
      %v3320 = vld [vmem:[%s3226 + $0x84] sm:$0x1]
      %v3321 = vld [vmem:[%s3226 + $0x88] sm:$0xf]
      %v3322 = vld [vmem:[%s3226 + $0x8c] sm:$0x1]
      %v3323 = vld [vmem:[%s3226 + $0xa0] sm:$0xf]
      %v3324 = vld [vmem:[%s3226 + $0xa4] sm:$0x1]
      %v3325 = vld [vmem:[%s3226 + $0xa8] sm:$0xf]
      %v3326 = vld [vmem:[%s3226 + $0xac] sm:$0x1]
      %v3327 = vld [vmem:[%s3226 + $0xb0] sm:$0xf]
      %v3328 = vld [vmem:[%s3226 + $0xb4] sm:$0x1]
      %v3329 = vld [vmem:[%s3226 + $0xb8] sm:$0xf]
      %v3330 = vld [vmem:[%s3226 + $0xbc] sm:$0x1]
      %v3331 = vld [vmem:[%s3226 + $0xc0] sm:$0xf]
      %v3332 = vld [vmem:[%s3226 + $0xc4] sm:$0x1]
      %v3333 = vld [vmem:[%s3226 + $0xc8] sm:$0xf]
      %v3334 = vld [vmem:[%s3226 + $0xcc] sm:$0x1]
      %v3335 = vld [vmem:[%s3226 + $0xd0] sm:$0xf]
      %v3336 = vld [vmem:[%s3226 + $0xd4] sm:$0x1]
      %v3337 = vld [vmem:[%s3226 + $0xd8] sm:$0xf]
      %v3338 = vld [vmem:[%s3226 + $0xdc] sm:$0x1]
      %v3339 = vld [vmem:[%s3226 + $0xf0] sm:$0xf]
      %v3340 = vld [vmem:[%s3226 + $0xf4] sm:$0x1]
      %v3341 = vld [vmem:[%s3226 + $0xf8] sm:$0xf]
      %v3342 = vld [vmem:[%s3226 + $0xfc] sm:$0x1]
      %v3343 = vld [vmem:[%s3226 + $0x100] sm:$0xf]
      %v3344 = vld [vmem:[%s3226 + $0x104] sm:$0x1]
      %v3345 = vld [vmem:[%s3226 + $0x108] sm:$0xf]
      %v3346 = vld [vmem:[%s3226 + $0x10c] sm:$0x1]
      %v3347 = vld [vmem:[%s3226 + $0x110] sm:$0xf]
      %v3348 = vld [vmem:[%s3226 + $0x114] sm:$0x1]
      %v3349 = vld [vmem:[%s3226 + $0x118] sm:$0xf]
      %v3350 = vld [vmem:[%s3226 + $0x11c] sm:$0x1]
      %v3351 = vld [vmem:[%s3226 + $0x120] sm:$0xf]
      %v3352 = vld [vmem:[%s3226 + $0x124] sm:$0x1]
      %v3353 = vld [vmem:[%s3226 + $0x128] sm:$0xf]
      %v3354 = vld [vmem:[%s3226 + $0x12c] sm:$0x1]
      %v3356 = vshrl.u32 %v3291, 16
      %v3358 = vrot.slane %v3356, 4
      %v3359 = vshll.u32 %v3291, 16
      %v3361 = vrot.slane %v3359, 5
      %v3362 = vor.u32 %v3358, %v3361
      %v3363 = vrot.slane %v3362, 4
      %v3365 = vshll.u32 %v3292, 16
      %v3367 = vrot.slane %v3365, 5
      %v3368 = vsel %vm1430, %v3363, %v3367
      %v3370 = vshrl.u32 %v3293, 16
      %v3372 = vrot.slane %v3370, 4
      %v3373 = vshll.u32 %v3293, 16
      %v3375 = vrot.slane %v3373, 5
      %v3376 = vor.u32 %v3372, %v3375
      %v3377 = vrot.slane %v3376, 4
      %v3379 = vshll.u32 %v3294, 16
      %v3381 = vrot.slane %v3379, 5
      %v3382 = vsel %vm1430, %v3377, %v3381
      %v3384 = vshrl.u32 %v3295, 16
      %v3386 = vrot.slane %v3384, 4
      %v3387 = vshll.u32 %v3295, 16
      %v3389 = vrot.slane %v3387, 5
      %v3390 = vor.u32 %v3386, %v3389
      %v3391 = vrot.slane %v3390, 4
      %v3393 = vshll.u32 %v3296, 16
      %v3395 = vrot.slane %v3393, 5
      %v3396 = vsel %vm1430, %v3391, %v3395
      %v3398 = vshrl.u32 %v3297, 16
      %v3400 = vrot.slane %v3398, 4
      %v3401 = vshll.u32 %v3297, 16
      %v3403 = vrot.slane %v3401, 5
      %v3404 = vor.u32 %v3400, %v3403
      %v3405 = vrot.slane %v3404, 4
      %v3407 = vshll.u32 %v3298, 16
      %v3409 = vrot.slane %v3407, 5
      %v3410 = vsel %vm1430, %v3405, %v3409
      %v3412 = vshrl.u32 %v3299, 16
      %v3414 = vrot.slane %v3412, 4
      %v3415 = vshll.u32 %v3299, 16
      %v3417 = vrot.slane %v3415, 5
      %v3418 = vor.u32 %v3414, %v3417
      %v3419 = vrot.slane %v3418, 4
      %v3421 = vshll.u32 %v3300, 16
      %v3423 = vrot.slane %v3421, 5
      %v3424 = vsel %vm1430, %v3419, %v3423
      %v3426 = vshrl.u32 %v3301, 16
      %v3428 = vrot.slane %v3426, 4
      %v3429 = vshll.u32 %v3301, 16
      %v3431 = vrot.slane %v3429, 5
      %v3432 = vor.u32 %v3428, %v3431
      %v3433 = vrot.slane %v3432, 4
      %v3435 = vshll.u32 %v3302, 16
      %v3437 = vrot.slane %v3435, 5
      %v3438 = vsel %vm1430, %v3433, %v3437
      %v3440 = vshrl.u32 %v3303, 16
      %v3442 = vrot.slane %v3440, 4
      %v3443 = vshll.u32 %v3303, 16
      %v3445 = vrot.slane %v3443, 5
      %v3446 = vor.u32 %v3442, %v3445
      %v3447 = vrot.slane %v3446, 4
      %v3449 = vshll.u32 %v3304, 16
      %v3451 = vrot.slane %v3449, 5
      %v3452 = vsel %vm1430, %v3447, %v3451
      %v3454 = vshrl.u32 %v3305, 16
      %v3456 = vrot.slane %v3454, 4
      %v3457 = vshll.u32 %v3305, 16
      %v3459 = vrot.slane %v3457, 5
      %v3460 = vor.u32 %v3456, %v3459
      %v3461 = vrot.slane %v3460, 4
      %v3463 = vshll.u32 %v3306, 16
      %v3465 = vrot.slane %v3463, 5
      %v3466 = vsel %vm1430, %v3461, %v3465
      %v3468 = vshrl.u32 %v3307, 16
      %v3470 = vrot.slane %v3468, 4
      %v3471 = vshll.u32 %v3307, 16
      %v3473 = vrot.slane %v3471, 5
      %v3474 = vor.u32 %v3470, %v3473
      %v3475 = vrot.slane %v3474, 4
      %v3477 = vshll.u32 %v3308, 16
      %v3479 = vrot.slane %v3477, 5
      %v3480 = vsel %vm1430, %v3475, %v3479
      %v3482 = vshrl.u32 %v3309, 16
      %v3484 = vrot.slane %v3482, 4
      %v3485 = vshll.u32 %v3309, 16
      %v3487 = vrot.slane %v3485, 5
      %v3488 = vor.u32 %v3484, %v3487
      %v3489 = vrot.slane %v3488, 4
      %v3491 = vshll.u32 %v3310, 16
      %v3493 = vrot.slane %v3491, 5
      %v3494 = vsel %vm1430, %v3489, %v3493
      %v3496 = vshrl.u32 %v3311, 16
      %v3498 = vrot.slane %v3496, 4
      %v3499 = vshll.u32 %v3311, 16
      %v3501 = vrot.slane %v3499, 5
      %v3502 = vor.u32 %v3498, %v3501
      %v3503 = vrot.slane %v3502, 4
      %v3505 = vshll.u32 %v3312, 16
      %v3507 = vrot.slane %v3505, 5
      %v3508 = vsel %vm1430, %v3503, %v3507
      %v3510 = vshrl.u32 %v3313, 16
      %v3512 = vrot.slane %v3510, 4
      %v3513 = vshll.u32 %v3313, 16
      %v3515 = vrot.slane %v3513, 5
      %v3516 = vor.u32 %v3512, %v3515
      %v3517 = vrot.slane %v3516, 4
      %v3519 = vshll.u32 %v3314, 16
      %v3521 = vrot.slane %v3519, 5
      %v3522 = vsel %vm1430, %v3517, %v3521
      %v3524 = vshrl.u32 %v3315, 16
      %v3526 = vrot.slane %v3524, 4
      %v3527 = vshll.u32 %v3315, 16
      %v3529 = vrot.slane %v3527, 5
      %v3530 = vor.u32 %v3526, %v3529
      %v3531 = vrot.slane %v3530, 4
      %v3533 = vshll.u32 %v3316, 16
      %v3535 = vrot.slane %v3533, 5
      %v3536 = vsel %vm1430, %v3531, %v3535
      %v3538 = vshrl.u32 %v3317, 16
      %v3540 = vrot.slane %v3538, 4
      %v3541 = vshll.u32 %v3317, 16
      %v3543 = vrot.slane %v3541, 5
      %v3544 = vor.u32 %v3540, %v3543
      %v3545 = vrot.slane %v3544, 4
      %v3547 = vshll.u32 %v3318, 16
      %v3549 = vrot.slane %v3547, 5
      %v3550 = vsel %vm1430, %v3545, %v3549
      %v3552 = vshrl.u32 %v3319, 16
      %v3554 = vrot.slane %v3552, 4
      %v3555 = vshll.u32 %v3319, 16
      %v3557 = vrot.slane %v3555, 5
      %v3558 = vor.u32 %v3554, %v3557
      %v3559 = vrot.slane %v3558, 4
      %v3561 = vshll.u32 %v3320, 16
      %v3563 = vrot.slane %v3561, 5
      %v3564 = vsel %vm1430, %v3559, %v3563
      %v3566 = vshrl.u32 %v3321, 16
      %v3568 = vrot.slane %v3566, 4
      %v3569 = vshll.u32 %v3321, 16
      %v3571 = vrot.slane %v3569, 5
      %v3572 = vor.u32 %v3568, %v3571
      %v3573 = vrot.slane %v3572, 4
      %v3575 = vshll.u32 %v3322, 16
      %v3577 = vrot.slane %v3575, 5
      %v3578 = vsel %vm1430, %v3573, %v3577
      %v3580 = vshrl.u32 %v3323, 16
      %v3582 = vrot.slane %v3580, 4
      %v3583 = vshll.u32 %v3323, 16
      %v3585 = vrot.slane %v3583, 5
      %v3586 = vor.u32 %v3582, %v3585
      %v3587 = vrot.slane %v3586, 4
      %v3589 = vshll.u32 %v3324, 16
      %v3591 = vrot.slane %v3589, 5
      %v3592 = vsel %vm1430, %v3587, %v3591
      %v3594 = vshrl.u32 %v3325, 16
      %v3596 = vrot.slane %v3594, 4
      %v3597 = vshll.u32 %v3325, 16
      %v3599 = vrot.slane %v3597, 5
      %v3600 = vor.u32 %v3596, %v3599
      %v3601 = vrot.slane %v3600, 4
      %v3603 = vshll.u32 %v3326, 16
      %v3605 = vrot.slane %v3603, 5
      %v3606 = vsel %vm1430, %v3601, %v3605
      %v3608 = vshrl.u32 %v3327, 16
      %v3610 = vrot.slane %v3608, 4
      %v3611 = vshll.u32 %v3327, 16
      %v3613 = vrot.slane %v3611, 5
      %v3614 = vor.u32 %v3610, %v3613
      %v3615 = vrot.slane %v3614, 4
      %v3617 = vshll.u32 %v3328, 16
      %v3619 = vrot.slane %v3617, 5
      %v3620 = vsel %vm1430, %v3615, %v3619
      %v3622 = vshrl.u32 %v3329, 16
      %v3624 = vrot.slane %v3622, 4
      %v3625 = vshll.u32 %v3329, 16
      %v3627 = vrot.slane %v3625, 5
      %v3628 = vor.u32 %v3624, %v3627
      %v3629 = vrot.slane %v3628, 4
      %v3631 = vshll.u32 %v3330, 16
      %v3633 = vrot.slane %v3631, 5
      %v3634 = vsel %vm1430, %v3629, %v3633
      %v3636 = vshrl.u32 %v3331, 16
      %v3638 = vrot.slane %v3636, 4
      %v3639 = vshll.u32 %v3331, 16
      %v3641 = vrot.slane %v3639, 5
      %v3642 = vor.u32 %v3638, %v3641
      %v3643 = vrot.slane %v3642, 4
      %v3645 = vshll.u32 %v3332, 16
      %v3647 = vrot.slane %v3645, 5
      %v3648 = vsel %vm1430, %v3643, %v3647
      %v3650 = vshrl.u32 %v3333, 16
      %v3652 = vrot.slane %v3650, 4
      %v3653 = vshll.u32 %v3333, 16
      %v3655 = vrot.slane %v3653, 5
      %v3656 = vor.u32 %v3652, %v3655
      %v3657 = vrot.slane %v3656, 4
      %v3659 = vshll.u32 %v3334, 16
      %v3661 = vrot.slane %v3659, 5
      %v3662 = vsel %vm1430, %v3657, %v3661
      %v3664 = vshrl.u32 %v3335, 16
      %v3666 = vrot.slane %v3664, 4
      %v3667 = vshll.u32 %v3335, 16
      %v3669 = vrot.slane %v3667, 5
      %v3670 = vor.u32 %v3666, %v3669
      %v3671 = vrot.slane %v3670, 4
      %v3673 = vshll.u32 %v3336, 16
      %v3675 = vrot.slane %v3673, 5
      %v3676 = vsel %vm1430, %v3671, %v3675
      %v3678 = vshrl.u32 %v3337, 16
      %v3680 = vrot.slane %v3678, 4
      %v3681 = vshll.u32 %v3337, 16
      %v3683 = vrot.slane %v3681, 5
      %v3684 = vor.u32 %v3680, %v3683
      %v3685 = vrot.slane %v3684, 4
      %v3687 = vshll.u32 %v3338, 16
      %v3689 = vrot.slane %v3687, 5
      %v3690 = vsel %vm1430, %v3685, %v3689
      %v3692 = vshrl.u32 %v3339, 16
      %v3694 = vrot.slane %v3692, 4
      %v3695 = vshll.u32 %v3339, 16
      %v3697 = vrot.slane %v3695, 5
      %v3698 = vor.u32 %v3694, %v3697
      %v3699 = vrot.slane %v3698, 4
      %v3701 = vshll.u32 %v3340, 16
      %v3703 = vrot.slane %v3701, 5
      %v3704 = vsel %vm1430, %v3699, %v3703
      %v3706 = vshrl.u32 %v3341, 16
      %v3708 = vrot.slane %v3706, 4
      %v3709 = vshll.u32 %v3341, 16
      %v3711 = vrot.slane %v3709, 5
      %v3712 = vor.u32 %v3708, %v3711
      %v3713 = vrot.slane %v3712, 4
      %v3715 = vshll.u32 %v3342, 16
      %v3717 = vrot.slane %v3715, 5
      %v3718 = vsel %vm1430, %v3713, %v3717
      %v3720 = vshrl.u32 %v3343, 16
      %v3722 = vrot.slane %v3720, 4
      %v3723 = vshll.u32 %v3343, 16
      %v3725 = vrot.slane %v3723, 5
      %v3726 = vor.u32 %v3722, %v3725
      %v3727 = vrot.slane %v3726, 4
      %v3729 = vshll.u32 %v3344, 16
      %v3731 = vrot.slane %v3729, 5
      %v3732 = vsel %vm1430, %v3727, %v3731
      %v3734 = vshrl.u32 %v3345, 16
      %v3736 = vrot.slane %v3734, 4
      %v3737 = vshll.u32 %v3345, 16
      %v3739 = vrot.slane %v3737, 5
      %v3740 = vor.u32 %v3736, %v3739
      %v3741 = vrot.slane %v3740, 4
      %v3743 = vshll.u32 %v3346, 16
      %v3745 = vrot.slane %v3743, 5
      %v3746 = vsel %vm1430, %v3741, %v3745
      %v3748 = vshrl.u32 %v3347, 16
      %v3750 = vrot.slane %v3748, 4
      %v3751 = vshll.u32 %v3347, 16
      %v3753 = vrot.slane %v3751, 5
      %v3754 = vor.u32 %v3750, %v3753
      %v3755 = vrot.slane %v3754, 4
      %v3757 = vshll.u32 %v3348, 16
      %v3759 = vrot.slane %v3757, 5
      %v3760 = vsel %vm1430, %v3755, %v3759
      %v3762 = vshrl.u32 %v3349, 16
      %v3764 = vrot.slane %v3762, 4
      %v3765 = vshll.u32 %v3349, 16
      %v3767 = vrot.slane %v3765, 5
      %v3768 = vor.u32 %v3764, %v3767
      %v3769 = vrot.slane %v3768, 4
      %v3771 = vshll.u32 %v3350, 16
      %v3773 = vrot.slane %v3771, 5
      %v3774 = vsel %vm1430, %v3769, %v3773
      %v3776 = vshrl.u32 %v3351, 16
      %v3778 = vrot.slane %v3776, 4
      %v3779 = vshll.u32 %v3351, 16
      %v3781 = vrot.slane %v3779, 5
      %v3782 = vor.u32 %v3778, %v3781
      %v3783 = vrot.slane %v3782, 4
      %v3785 = vshll.u32 %v3352, 16
      %v3787 = vrot.slane %v3785, 5
      %v3788 = vsel %vm1430, %v3783, %v3787
      %v3790 = vshrl.u32 %v3353, 16
      %v3792 = vrot.slane %v3790, 4
      %v3793 = vshll.u32 %v3353, 16
      %v3795 = vrot.slane %v3793, 5
      %v3796 = vor.u32 %v3792, %v3795
      %v3797 = vrot.slane %v3796, 4
      %v3799 = vshll.u32 %v3354, 16
      %v3801 = vrot.slane %v3799, 5
      %v3802 = vsel %vm1430, %v3797, %v3801
      %3835 = vst [vmem:[#allocation4 + $0x1c] sm:$0xf] %v3368
      %3836 = vst [vmem:[#allocation4 + $0x40] sm:$0xf] %v3382
      %3837 = vst [vmem:[#allocation4 + $0x64] sm:$0xf] %v3396
      %3838 = vst [vmem:[#allocation4 + $0x88] sm:$0xf] %v3410
      %3839 = vst [vmem:[#allocation4 + $0xac] sm:$0xf] %v3424
      %3840 = vst [vmem:[#allocation4 + $0xd0] sm:$0xf] %v3438
      %3841 = vst [vmem:[#allocation4 + $0xf4] sm:$0xf] %v3452
      %3842 = vst [vmem:[#allocation4 + $0x118] sm:$0xf] %v3466
      %3843 = vst [vmem:[#allocation4 + $0x13c] sm:$0xf] %v3480
      %3844 = vst [vmem:[#allocation4 + $0x160] sm:$0xf] %v3494
      %3845 = vst [vmem:[#allocation4 + $0x184] sm:$0xf] %v3508
      %3846 = vst [vmem:[#allocation4 + $0x1a8] sm:$0xf] %v3522
      %3847 = vst [vmem:[#allocation4 + $0x1cc] sm:$0xf] %v3536
      %3848 = vst [vmem:[#allocation4 + $0x1f0] sm:$0xf] %v3550
      %3849 = vst [vmem:[#allocation4 + $0x214] sm:$0xf] %v3564
      %3850 = vst [vmem:[#allocation4 + $0x238] sm:$0xf] %v3578
      %3851 = vst [vmem:[#allocation4 + $0x25c] sm:$0xf] %v3592
      %3852 = vst [vmem:[#allocation4 + $0x280] sm:$0xf] %v3606
      %3853 = vst [vmem:[#allocation4 + $0x2a4] sm:$0xf] %v3620
      %3854 = vst [vmem:[#allocation4 + $0x2c8] sm:$0xf] %v3634
      %3855 = vst [vmem:[#allocation4 + $0x2ec] sm:$0xf] %v3648
      %3856 = vst [vmem:[#allocation4 + $0x310] sm:$0xf] %v3662
      %3857 = vst [vmem:[#allocation4 + $0x334] sm:$0xf] %v3676
      %3858 = vst [vmem:[#allocation4 + $0x358] sm:$0xf] %v3690
      %3859 = vst [vmem:[#allocation4 + $0x37c] sm:$0xf] %v3704
      %3860 = vst [vmem:[#allocation4 + $0x3a0] sm:$0xf] %v3718
      %3861 = vst [vmem:[#allocation4 + $0x3c4] sm:$0xf] %v3732
      %3862 = vst [vmem:[#allocation4 + $0x3e8] sm:$0xf] %v3746
      %3863 = vst [vmem:[#allocation4 + $0x40c] sm:$0xf] %v3760
      %3864 = vst [vmem:[#allocation4 + $0x430] sm:$0xf] %v3774
      %3865 = vst [vmem:[#allocation4 + $0x454] sm:$0xf] %v3788
      %3866 = vst [vmem:[#allocation4 + $0x478] sm:$0xf] %v3802
      %v3867 = vld [vmem:[%s3226] sm:$0xe]
      %v3868 = vld [vmem:[%s3226 + $0x4] sm:$0x1]
      %v3869 = vld [vmem:[%s3226 + $0x8] sm:$0xe]
      %v3870 = vld [vmem:[%s3226 + $0xc] sm:$0x1]
      %v3871 = vld [vmem:[%s3226 + $0x10] sm:$0xe]
      %v3872 = vld [vmem:[%s3226 + $0x14] sm:$0x1]
      %v3873 = vld [vmem:[%s3226 + $0x18] sm:$0xe]
      %v3874 = vld [vmem:[%s3226 + $0x1c] sm:$0x1]
      %v3875 = vld [vmem:[%s3226 + $0x20] sm:$0xe]
      %v3876 = vld [vmem:[%s3226 + $0x24] sm:$0x1]
      %v3877 = vld [vmem:[%s3226 + $0x28] sm:$0xe]
      %v3878 = vld [vmem:[%s3226 + $0x2c] sm:$0x1]
      %v3879 = vld [vmem:[%s3226 + $0x30] sm:$0xe]
      %v3880 = vld [vmem:[%s3226 + $0x34] sm:$0x1]
      %v3881 = vld [vmem:[%s3226 + $0x38] sm:$0xe]
      %v3882 = vld [vmem:[%s3226 + $0x3c] sm:$0x1]
      %v3883 = vld [vmem:[%s3226 + $0x50] sm:$0xe]
      %v3884 = vld [vmem:[%s3226 + $0x54] sm:$0x1]
      %v3885 = vld [vmem:[%s3226 + $0x58] sm:$0xe]
      %v3886 = vld [vmem:[%s3226 + $0x5c] sm:$0x1]
      %v3887 = vld [vmem:[%s3226 + $0x60] sm:$0xe]
      %v3888 = vld [vmem:[%s3226 + $0x64] sm:$0x1]
      %v3889 = vld [vmem:[%s3226 + $0x68] sm:$0xe]
      %v3890 = vld [vmem:[%s3226 + $0x6c] sm:$0x1]
      %v3891 = vld [vmem:[%s3226 + $0x70] sm:$0xe]
      %v3892 = vld [vmem:[%s3226 + $0x74] sm:$0x1]
      %v3893 = vld [vmem:[%s3226 + $0x78] sm:$0xe]
      %v3894 = vld [vmem:[%s3226 + $0x7c] sm:$0x1]
      %v3895 = vld [vmem:[%s3226 + $0x80] sm:$0xe]
      %v3896 = vld [vmem:[%s3226 + $0x84] sm:$0x1]
      %v3897 = vld [vmem:[%s3226 + $0x88] sm:$0xe]
      %v3898 = vld [vmem:[%s3226 + $0x8c] sm:$0x1]
      %v3899 = vld [vmem:[%s3226 + $0xa0] sm:$0xe]
      %v3900 = vld [vmem:[%s3226 + $0xa4] sm:$0x1]
      %v3901 = vld [vmem:[%s3226 + $0xa8] sm:$0xe]
      %v3902 = vld [vmem:[%s3226 + $0xac] sm:$0x1]
      %v3903 = vld [vmem:[%s3226 + $0xb0] sm:$0xe]
      %v3904 = vld [vmem:[%s3226 + $0xb4] sm:$0x1]
      %v3905 = vld [vmem:[%s3226 + $0xb8] sm:$0xe]
      %v3906 = vld [vmem:[%s3226 + $0xbc] sm:$0x1]
      %v3907 = vld [vmem:[%s3226 + $0xc0] sm:$0xe]
      %v3908 = vld [vmem:[%s3226 + $0xc4] sm:$0x1]
      %v3909 = vld [vmem:[%s3226 + $0xc8] sm:$0xe]
      %v3910 = vld [vmem:[%s3226 + $0xcc] sm:$0x1]
      %v3911 = vld [vmem:[%s3226 + $0xd0] sm:$0xe]
      %v3912 = vld [vmem:[%s3226 + $0xd4] sm:$0x1]
      %v3913 = vld [vmem:[%s3226 + $0xd8] sm:$0xe]
      %v3914 = vld [vmem:[%s3226 + $0xdc] sm:$0x1]
      %v3915 = vld [vmem:[%s3226 + $0xf0] sm:$0xe]
      %v3916 = vld [vmem:[%s3226 + $0xf4] sm:$0x1]
      %v3917 = vld [vmem:[%s3226 + $0xf8] sm:$0xe]
      %v3918 = vld [vmem:[%s3226 + $0xfc] sm:$0x1]
      %v3919 = vld [vmem:[%s3226 + $0x100] sm:$0xe]
      %v3920 = vld [vmem:[%s3226 + $0x104] sm:$0x1]
      %v3921 = vld [vmem:[%s3226 + $0x108] sm:$0xe]
      %v3922 = vld [vmem:[%s3226 + $0x10c] sm:$0x1]
      %v3923 = vld [vmem:[%s3226 + $0x110] sm:$0xe]
      %v3924 = vld [vmem:[%s3226 + $0x114] sm:$0x1]
      %v3925 = vld [vmem:[%s3226 + $0x118] sm:$0xe]
      %v3926 = vld [vmem:[%s3226 + $0x11c] sm:$0x1]
      %v3927 = vld [vmem:[%s3226 + $0x120] sm:$0xe]
      %v3928 = vld [vmem:[%s3226 + $0x124] sm:$0x1]
      %v3929 = vld [vmem:[%s3226 + $0x128] sm:$0xe]
      %v3930 = vld [vmem:[%s3226 + $0x12c] sm:$0x1]
      %v3995 = vrot.slane %v3867, 5
      %v3996 = vrot.slane %v3995, 4
      %v3997 = vrot.slane %v3868, 5
      %v3998 = vsel %vm2073, %v3996, %v3997
      %v3999 = vrot.slane %v3869, 5
      %v4000 = vrot.slane %v3999, 4
      %v4001 = vrot.slane %v3870, 5
      %v4002 = vsel %vm2073, %v4000, %v4001
      %v4003 = vrot.slane %v3871, 5
      %v4004 = vrot.slane %v4003, 4
      %v4005 = vrot.slane %v3872, 5
      %v4006 = vsel %vm2073, %v4004, %v4005
      %v4007 = vrot.slane %v3873, 5
      %v4008 = vrot.slane %v4007, 4
      %v4009 = vrot.slane %v3874, 5
      %v4010 = vsel %vm2073, %v4008, %v4009
      %v4011 = vrot.slane %v3875, 5
      %v4012 = vrot.slane %v4011, 4
      %v4013 = vrot.slane %v3876, 5
      %v4014 = vsel %vm2073, %v4012, %v4013
      %v4015 = vrot.slane %v3877, 5
      %v4016 = vrot.slane %v4015, 4
      %v4017 = vrot.slane %v3878, 5
      %v4018 = vsel %vm2073, %v4016, %v4017
      %v4019 = vrot.slane %v3879, 5
      %v4020 = vrot.slane %v4019, 4
      %v4021 = vrot.slane %v3880, 5
      %v4022 = vsel %vm2073, %v4020, %v4021
      %v4023 = vrot.slane %v3881, 5
      %v4024 = vrot.slane %v4023, 4
      %v4025 = vrot.slane %v3882, 5
      %v4026 = vsel %vm2073, %v4024, %v4025
      %v4027 = vrot.slane %v3883, 5
      %v4028 = vrot.slane %v4027, 4
      %v4029 = vrot.slane %v3884, 5
      %v4030 = vsel %vm2073, %v4028, %v4029
      %v4031 = vrot.slane %v3885, 5
      %v4032 = vrot.slane %v4031, 4
      %v4033 = vrot.slane %v3886, 5
      %v4034 = vsel %vm2073, %v4032, %v4033
      %v4035 = vrot.slane %v3887, 5
      %v4036 = vrot.slane %v4035, 4
      %v4037 = vrot.slane %v3888, 5
      %v4038 = vsel %vm2073, %v4036, %v4037
      %v4039 = vrot.slane %v3889, 5
      %v4040 = vrot.slane %v4039, 4
      %v4041 = vrot.slane %v3890, 5
      %v4042 = vsel %vm2073, %v4040, %v4041
      %v4043 = vrot.slane %v3891, 5
      %v4044 = vrot.slane %v4043, 4
      %v4045 = vrot.slane %v3892, 5
      %v4046 = vsel %vm2073, %v4044, %v4045
      %v4047 = vrot.slane %v3893, 5
      %v4048 = vrot.slane %v4047, 4
      %v4049 = vrot.slane %v3894, 5
      %v4050 = vsel %vm2073, %v4048, %v4049
      %v4051 = vrot.slane %v3895, 5
      %v4052 = vrot.slane %v4051, 4
      %v4053 = vrot.slane %v3896, 5
      %v4054 = vsel %vm2073, %v4052, %v4053
      %v4055 = vrot.slane %v3897, 5
      %v4056 = vrot.slane %v4055, 4
      %v4057 = vrot.slane %v3898, 5
      %v4058 = vsel %vm2073, %v4056, %v4057
      %v4059 = vrot.slane %v3899, 5
      %v4060 = vrot.slane %v4059, 4
      %v4061 = vrot.slane %v3900, 5
      %v4062 = vsel %vm2073, %v4060, %v4061
      %v4063 = vrot.slane %v3901, 5
      %v4064 = vrot.slane %v4063, 4
      %v4065 = vrot.slane %v3902, 5
      %v4066 = vsel %vm2073, %v4064, %v4065
      %v4067 = vrot.slane %v3903, 5
      %v4068 = vrot.slane %v4067, 4
      %v4069 = vrot.slane %v3904, 5
      %v4070 = vsel %vm2073, %v4068, %v4069
      %v4071 = vrot.slane %v3905, 5
      %v4072 = vrot.slane %v4071, 4
      %v4073 = vrot.slane %v3906, 5
      %v4074 = vsel %vm2073, %v4072, %v4073
      %v4075 = vrot.slane %v3907, 5
      %v4076 = vrot.slane %v4075, 4
      %v4077 = vrot.slane %v3908, 5
      %v4078 = vsel %vm2073, %v4076, %v4077
      %v4079 = vrot.slane %v3909, 5
      %v4080 = vrot.slane %v4079, 4
      %v4081 = vrot.slane %v3910, 5
      %v4082 = vsel %vm2073, %v4080, %v4081
      %v4083 = vrot.slane %v3911, 5
      %v4084 = vrot.slane %v4083, 4
      %v4085 = vrot.slane %v3912, 5
      %v4086 = vsel %vm2073, %v4084, %v4085
      %v4087 = vrot.slane %v3913, 5
      %v4088 = vrot.slane %v4087, 4
      %v4089 = vrot.slane %v3914, 5
      %v4090 = vsel %vm2073, %v4088, %v4089
      %v4091 = vrot.slane %v3915, 5
      %v4092 = vrot.slane %v4091, 4
      %v4093 = vrot.slane %v3916, 5
      %v4094 = vsel %vm2073, %v4092, %v4093
      %v4095 = vrot.slane %v3917, 5
      %v4096 = vrot.slane %v4095, 4
      %v4097 = vrot.slane %v3918, 5
      %v4098 = vsel %vm2073, %v4096, %v4097
      %v4099 = vrot.slane %v3919, 5
      %v4100 = vrot.slane %v4099, 4
      %v4101 = vrot.slane %v3920, 5
      %v4102 = vsel %vm2073, %v4100, %v4101
      %v4103 = vrot.slane %v3921, 5
      %v4104 = vrot.slane %v4103, 4
      %v4105 = vrot.slane %v3922, 5
      %v4106 = vsel %vm2073, %v4104, %v4105
      %v4107 = vrot.slane %v3923, 5
      %v4108 = vrot.slane %v4107, 4
      %v4109 = vrot.slane %v3924, 5
      %v4110 = vsel %vm2073, %v4108, %v4109
      %v4111 = vrot.slane %v3925, 5
      %v4112 = vrot.slane %v4111, 4
      %v4113 = vrot.slane %v3926, 5
      %v4114 = vsel %vm2073, %v4112, %v4113
      %v4115 = vrot.slane %v3927, 5
      %v4116 = vrot.slane %v4115, 4
      %v4117 = vrot.slane %v3928, 5
      %v4118 = vsel %vm2073, %v4116, %v4117
      %v4119 = vrot.slane %v3929, 5
      %v4120 = vrot.slane %v4119, 4
      %v4121 = vrot.slane %v3930, 5
      %v4122 = vsel %vm2073, %v4120, %v4121
      %4155 = vst [vmem:[#allocation4 + $0x20] sm:$0xf] %v3998
      %4156 = vst [vmem:[#allocation4 + $0x44] sm:$0xf] %v4002
      %4157 = vst [vmem:[#allocation4 + $0x68] sm:$0xf] %v4006
      %4158 = vst [vmem:[#allocation4 + $0x8c] sm:$0xf] %v4010
      %4159 = vst [vmem:[#allocation4 + $0xb0] sm:$0xf] %v4014
      %4160 = vst [vmem:[#allocation4 + $0xd4] sm:$0xf] %v4018
      %4161 = vst [vmem:[#allocation4 + $0xf8] sm:$0xf] %v4022
      %4162 = vst [vmem:[#allocation4 + $0x11c] sm:$0xf] %v4026
      %4163 = vst [vmem:[#allocation4 + $0x140] sm:$0xf] %v4030
      %4164 = vst [vmem:[#allocation4 + $0x164] sm:$0xf] %v4034
      %4165 = vst [vmem:[#allocation4 + $0x188] sm:$0xf] %v4038
      %4166 = vst [vmem:[#allocation4 + $0x1ac] sm:$0xf] %v4042
      %4167 = vst [vmem:[#allocation4 + $0x1d0] sm:$0xf] %v4046
      %4168 = vst [vmem:[#allocation4 + $0x1f4] sm:$0xf] %v4050
      %4169 = vst [vmem:[#allocation4 + $0x218] sm:$0xf] %v4054
      %4170 = vst [vmem:[#allocation4 + $0x23c] sm:$0xf] %v4058
      %4171 = vst [vmem:[#allocation4 + $0x260] sm:$0xf] %v4062
      %4172 = vst [vmem:[#allocation4 + $0x284] sm:$0xf] %v4066
      %4173 = vst [vmem:[#allocation4 + $0x2a8] sm:$0xf] %v4070
      %4174 = vst [vmem:[#allocation4 + $0x2cc] sm:$0xf] %v4074
      %4175 = vst [vmem:[#allocation4 + $0x2f0] sm:$0xf] %v4078
      %4176 = vst [vmem:[#allocation4 + $0x314] sm:$0xf] %v4082
      %4177 = vst [vmem:[#allocation4 + $0x338] sm:$0xf] %v4086
      %4178 = vst [vmem:[#allocation4 + $0x35c] sm:$0xf] %v4090
      %4179 = vst [vmem:[#allocation4 + $0x380] sm:$0xf] %v4094
      %4180 = vst [vmem:[#allocation4 + $0x3a4] sm:$0xf] %v4098
      %4181 = vst [vmem:[#allocation4 + $0x3c8] sm:$0xf] %v4102
      %4182 = vst [vmem:[#allocation4 + $0x3ec] sm:$0xf] %v4106
      %4183 = vst [vmem:[#allocation4 + $0x410] sm:$0xf] %v4110
      %4184 = vst [vmem:[#allocation4 + $0x434] sm:$0xf] %v4114
      %4185 = vst [vmem:[#allocation4 + $0x458] sm:$0xf] %v4118
      %4186 = vst [vmem:[#allocation4 + $0x47c] sm:$0xf] %v4122
      %v4187 = vld [vmem:[#allocation4] sm:$0xff]
      %v4188 = vld [vmem:[#allocation4 + $0x8] sm:$0xff]
      %v4189 = vld [vmem:[#allocation4 + $0x10] sm:$0xff]
      %v4190 = vld [vmem:[#allocation4 + $0x18] sm:$0xff]
      %v4191 = vld [vmem:[#allocation4 + $0x20] sm:$0xf]
      %v4192 = vld [vmem:[#allocation4 + $0x24] sm:$0xff]
      %v4193 = vld [vmem:[#allocation4 + $0x2c] sm:$0xff]
      %v4194 = vld [vmem:[#allocation4 + $0x34] sm:$0xff]
      %v4195 = vld [vmem:[#allocation4 + $0x3c] sm:$0xff]
      %v4196 = vld [vmem:[#allocation4 + $0x44] sm:$0xf]
      %v4197 = vld [vmem:[#allocation4 + $0x48] sm:$0xff]
      %v4198 = vld [vmem:[#allocation4 + $0x50] sm:$0xff]
      %v4199 = vld [vmem:[#allocation4 + $0x58] sm:$0xff]
      %v4200 = vld [vmem:[#allocation4 + $0x60] sm:$0xff]
      %v4201 = vld [vmem:[#allocation4 + $0x68] sm:$0xf]
      %v4202 = vld [vmem:[#allocation4 + $0x6c] sm:$0xff]
      %v4203 = vld [vmem:[#allocation4 + $0x74] sm:$0xff]
      %v4204 = vld [vmem:[#allocation4 + $0x7c] sm:$0xff]
      %v4205 = vld [vmem:[#allocation4 + $0x84] sm:$0xff]
      %v4206 = vld [vmem:[#allocation4 + $0x8c] sm:$0xf]
      %v4207 = vld [vmem:[#allocation4 + $0x90] sm:$0xff]
      %v4208 = vld [vmem:[#allocation4 + $0x98] sm:$0xff]
      %v4209 = vld [vmem:[#allocation4 + $0xa0] sm:$0xff]
      %v4210 = vld [vmem:[#allocation4 + $0xa8] sm:$0xff]
      %v4211 = vld [vmem:[#allocation4 + $0xb0] sm:$0xf]
      %v4212 = vld [vmem:[#allocation4 + $0xb4] sm:$0xff]
      %v4213 = vld [vmem:[#allocation4 + $0xbc] sm:$0xff]
      %v4214 = vld [vmem:[#allocation4 + $0xc4] sm:$0xff]
      %v4215 = vld [vmem:[#allocation4 + $0xcc] sm:$0xff]
      %v4216 = vld [vmem:[#allocation4 + $0xd4] sm:$0xf]
      %v4217 = vld [vmem:[#allocation4 + $0xd8] sm:$0xff]
      %v4218 = vld [vmem:[#allocation4 + $0xe0] sm:$0xff]
      %v4219 = vld [vmem:[#allocation4 + $0xe8] sm:$0xff]
      %v4220 = vld [vmem:[#allocation4 + $0xf0] sm:$0xff]
      %v4221 = vld [vmem:[#allocation4 + $0xf8] sm:$0xf]
      %v4222 = vld [vmem:[#allocation4 + $0xfc] sm:$0xff]
      %v4223 = vld [vmem:[#allocation4 + $0x104] sm:$0xff]
      %v4224 = vld [vmem:[#allocation4 + $0x10c] sm:$0xff]
      %v4225 = vld [vmem:[#allocation4 + $0x114] sm:$0xff]
      %v4226 = vld [vmem:[#allocation4 + $0x11c] sm:$0xf]
      %v4227 = vld [vmem:[#allocation4 + $0x120] sm:$0xff]
      %v4228 = vld [vmem:[#allocation4 + $0x128] sm:$0xff]
      %v4229 = vld [vmem:[#allocation4 + $0x130] sm:$0xff]
      %v4230 = vld [vmem:[#allocation4 + $0x138] sm:$0xff]
      %v4231 = vld [vmem:[#allocation4 + $0x140] sm:$0xf]
      %v4232 = vld [vmem:[#allocation4 + $0x144] sm:$0xff]
      %v4233 = vld [vmem:[#allocation4 + $0x14c] sm:$0xff]
      %v4234 = vld [vmem:[#allocation4 + $0x154] sm:$0xff]
      %v4235 = vld [vmem:[#allocation4 + $0x15c] sm:$0xff]
      %v4236 = vld [vmem:[#allocation4 + $0x164] sm:$0xf]
      %v4237 = vld [vmem:[#allocation4 + $0x168] sm:$0xff]
      %v4238 = vld [vmem:[#allocation4 + $0x170] sm:$0xff]
      %v4239 = vld [vmem:[#allocation4 + $0x178] sm:$0xff]
      %v4240 = vld [vmem:[#allocation4 + $0x180] sm:$0xff]
      %v4241 = vld [vmem:[#allocation4 + $0x188] sm:$0xf]
      %v4242 = vld [vmem:[#allocation4 + $0x18c] sm:$0xff]
      %v4243 = vld [vmem:[#allocation4 + $0x194] sm:$0xff]
      %v4244 = vld [vmem:[#allocation4 + $0x19c] sm:$0xff]
      %v4245 = vld [vmem:[#allocation4 + $0x1a4] sm:$0xff]
      %v4246 = vld [vmem:[#allocation4 + $0x1ac] sm:$0xf]
      %v4247 = vld [vmem:[#allocation4 + $0x1b0] sm:$0xff]
      %v4248 = vld [vmem:[#allocation4 + $0x1b8] sm:$0xff]
      %v4249 = vld [vmem:[#allocation4 + $0x1c0] sm:$0xff]
      %v4250 = vld [vmem:[#allocation4 + $0x1c8] sm:$0xff]
      %v4251 = vld [vmem:[#allocation4 + $0x1d0] sm:$0xf]
      %v4252 = vld [vmem:[#allocation4 + $0x1d4] sm:$0xff]
      %v4253 = vld [vmem:[#allocation4 + $0x1dc] sm:$0xff]
      %v4254 = vld [vmem:[#allocation4 + $0x1e4] sm:$0xff]
      %v4255 = vld [vmem:[#allocation4 + $0x1ec] sm:$0xff]
      %v4256 = vld [vmem:[#allocation4 + $0x1f4] sm:$0xf]
      %v4257 = vld [vmem:[#allocation4 + $0x1f8] sm:$0xff]
      %v4258 = vld [vmem:[#allocation4 + $0x200] sm:$0xff]
      %v4259 = vld [vmem:[#allocation4 + $0x208] sm:$0xff]
      %v4260 = vld [vmem:[#allocation4 + $0x210] sm:$0xff]
      %v4261 = vld [vmem:[#allocation4 + $0x218] sm:$0xf]
      %v4262 = vld [vmem:[#allocation4 + $0x21c] sm:$0xff]
      %v4263 = vld [vmem:[#allocation4 + $0x224] sm:$0xff]
      %v4264 = vld [vmem:[#allocation4 + $0x22c] sm:$0xff]
      %v4265 = vld [vmem:[#allocation4 + $0x234] sm:$0xff]
      %v4266 = vld [vmem:[#allocation4 + $0x23c] sm:$0xf]
      %v4267 = vld [vmem:[#allocation4 + $0x240] sm:$0xff]
      %v4268 = vld [vmem:[#allocation4 + $0x248] sm:$0xff]
      %v4269 = vld [vmem:[#allocation4 + $0x250] sm:$0xff]
      %v4270 = vld [vmem:[#allocation4 + $0x258] sm:$0xff]
      %v4271 = vld [vmem:[#allocation4 + $0x260] sm:$0xf]
      %v4272 = vld [vmem:[#allocation4 + $0x264] sm:$0xff]
      %v4273 = vld [vmem:[#allocation4 + $0x26c] sm:$0xff]
      %v4274 = vld [vmem:[#allocation4 + $0x274] sm:$0xff]
      %v4275 = vld [vmem:[#allocation4 + $0x27c] sm:$0xff]
      %v4276 = vld [vmem:[#allocation4 + $0x284] sm:$0xf]
      %v4277 = vld [vmem:[#allocation4 + $0x288] sm:$0xff]
      %v4278 = vld [vmem:[#allocation4 + $0x290] sm:$0xff]
      %v4279 = vld [vmem:[#allocation4 + $0x298] sm:$0xff]
      %v4280 = vld [vmem:[#allocation4 + $0x2a0] sm:$0xff]
      %v4281 = vld [vmem:[#allocation4 + $0x2a8] sm:$0xf]
      %v4282 = vld [vmem:[#allocation4 + $0x2ac] sm:$0xff]
      %v4283 = vld [vmem:[#allocation4 + $0x2b4] sm:$0xff]
      %v4284 = vld [vmem:[#allocation4 + $0x2bc] sm:$0xff]
      %v4285 = vld [vmem:[#allocation4 + $0x2c4] sm:$0xff]
      %v4286 = vld [vmem:[#allocation4 + $0x2cc] sm:$0xf]
      %v4287 = vld [vmem:[#allocation4 + $0x2d0] sm:$0xff]
      %v4288 = vld [vmem:[#allocation4 + $0x2d8] sm:$0xff]
      %v4289 = vld [vmem:[#allocation4 + $0x2e0] sm:$0xff]
      %v4290 = vld [vmem:[#allocation4 + $0x2e8] sm:$0xff]
      %v4291 = vld [vmem:[#allocation4 + $0x2f0] sm:$0xf]
      %v4292 = vld [vmem:[#allocation4 + $0x2f4] sm:$0xff]
      %v4293 = vld [vmem:[#allocation4 + $0x2fc] sm:$0xff]
      %v4294 = vld [vmem:[#allocation4 + $0x304] sm:$0xff]
      %v4295 = vld [vmem:[#allocation4 + $0x30c] sm:$0xff]
      %v4296 = vld [vmem:[#allocation4 + $0x314] sm:$0xf]
      %v4297 = vld [vmem:[#allocation4 + $0x318] sm:$0xff]
      %v4298 = vld [vmem:[#allocation4 + $0x320] sm:$0xff]
      %v4299 = vld [vmem:[#allocation4 + $0x328] sm:$0xff]
      %v4300 = vld [vmem:[#allocation4 + $0x330] sm:$0xff]
      %v4301 = vld [vmem:[#allocation4 + $0x338] sm:$0xf]
      %v4302 = vld [vmem:[#allocation4 + $0x33c] sm:$0xff]
      %v4303 = vld [vmem:[#allocation4 + $0x344] sm:$0xff]
      %v4304 = vld [vmem:[#allocation4 + $0x34c] sm:$0xff]
      %v4305 = vld [vmem:[#allocation4 + $0x354] sm:$0xff]
      %v4306 = vld [vmem:[#allocation4 + $0x35c] sm:$0xf]
      %v4307 = vld [vmem:[#allocation4 + $0x360] sm:$0xff]
      %v4308 = vld [vmem:[#allocation4 + $0x368] sm:$0xff]
      %v4309 = vld [vmem:[#allocation4 + $0x370] sm:$0xff]
      %v4310 = vld [vmem:[#allocation4 + $0x378] sm:$0xff]
      %v4311 = vld [vmem:[#allocation4 + $0x380] sm:$0xf]
      %v4312 = vld [vmem:[#allocation4 + $0x384] sm:$0xff]
      %v4313 = vld [vmem:[#allocation4 + $0x38c] sm:$0xff]
      %v4314 = vld [vmem:[#allocation4 + $0x394] sm:$0xff]
      %v4315 = vld [vmem:[#allocation4 + $0x39c] sm:$0xff]
      %v4316 = vld [vmem:[#allocation4 + $0x3a4] sm:$0xf]
      %v4317 = vld [vmem:[#allocation4 + $0x3a8] sm:$0xff]
      %v4318 = vld [vmem:[#allocation4 + $0x3b0] sm:$0xff]
      %v4319 = vld [vmem:[#allocation4 + $0x3b8] sm:$0xff]
      %v4320 = vld [vmem:[#allocation4 + $0x3c0] sm:$0xff]
      %v4321 = vld [vmem:[#allocation4 + $0x3c8] sm:$0xf]
      %v4322 = vld [vmem:[#allocation4 + $0x3cc] sm:$0xff]
      %v4323 = vld [vmem:[#allocation4 + $0x3d4] sm:$0xff]
      %v4324 = vld [vmem:[#allocation4 + $0x3dc] sm:$0xff]
      %v4325 = vld [vmem:[#allocation4 + $0x3e4] sm:$0xff]
      %v4326 = vld [vmem:[#allocation4 + $0x3ec] sm:$0xf]
      %v4327 = vld [vmem:[#allocation4 + $0x3f0] sm:$0xff]
      %v4328 = vld [vmem:[#allocation4 + $0x3f8] sm:$0xff]
      %v4329 = vld [vmem:[#allocation4 + $0x400] sm:$0xff]
      %v4330 = vld [vmem:[#allocation4 + $0x408] sm:$0xff]
      %v4331 = vld [vmem:[#allocation4 + $0x410] sm:$0xf]
      %v4332 = vld [vmem:[#allocation4 + $0x414] sm:$0xff]
      %v4333 = vld [vmem:[#allocation4 + $0x41c] sm:$0xff]
      %v4334 = vld [vmem:[#allocation4 + $0x424] sm:$0xff]
      %v4335 = vld [vmem:[#allocation4 + $0x42c] sm:$0xff]
      %v4336 = vld [vmem:[#allocation4 + $0x434] sm:$0xf]
      %v4337 = vld [vmem:[#allocation4 + $0x438] sm:$0xff]
      %v4338 = vld [vmem:[#allocation4 + $0x440] sm:$0xff]
      %v4339 = vld [vmem:[#allocation4 + $0x448] sm:$0xff]
      %v4340 = vld [vmem:[#allocation4 + $0x450] sm:$0xff]
      %v4341 = vld [vmem:[#allocation4 + $0x458] sm:$0xf]
      %v4342 = vld [vmem:[#allocation4 + $0x45c] sm:$0xff]
      %v4343 = vld [vmem:[#allocation4 + $0x464] sm:$0xff]
      %v4344 = vld [vmem:[#allocation4 + $0x46c] sm:$0xff]
      %v4345 = vld [vmem:[#allocation4 + $0x474] sm:$0xff]
      %v4346 = vld [vmem:[#allocation4 + $0x47c] sm:$0xf]
      %v4347 = vld [vmem:[%s1] sm:$0xf]
      %v4348 = vld [vmem:[%s1 + $0x4] sm:$0xf]
      %v4349 = vld [vmem:[%s1 + $0x8] sm:$0xf]
      %v4350 = vld [vmem:[%s1 + $0xc] sm:$0xf]
      %v4351 = vld [vmem:[%s1 + $0x10] sm:$0xf]
      %v4352 = vld [vmem:[%s1 + $0x14] sm:$0xf]
      %v4353 = vld [vmem:[%s1 + $0x18] sm:$0xf]
      %v4354 = vld [vmem:[%s1 + $0x1c] sm:$0xf]
      %v4355 = vld [vmem:[%s1 + $0x20] sm:$0xf]
      %v4356 = vld [vmem:[%s1 + $0x24] sm:$0xf]
      %v4357 = vld [vmem:[%s1 + $0x28] sm:$0xf]
      %v4358 = vld [vmem:[%s1 + $0x2c] sm:$0xf]
      %v4359 = vld [vmem:[%s1 + $0x30] sm:$0xf]
      %v4360 = vld [vmem:[%s1 + $0x34] sm:$0xf]
      %v4361 = vld [vmem:[%s1 + $0x38] sm:$0xf]
      %v4362 = vld [vmem:[%s1 + $0x3c] sm:$0xf]
      %v4363 = vld [vmem:[%s1 + $0x40] sm:$0xf]
      %v4364 = vld [vmem:[%s1 + $0x44] sm:$0xf]
      %v4365 = vld [vmem:[%s1 + $0x48] sm:$0xf]
      %v4366 = vld [vmem:[%s1 + $0x4c] sm:$0xf]
      %v4367 = vld [vmem:[%s1 + $0x50] sm:$0xf]
      %v4368 = vld [vmem:[%s1 + $0x54] sm:$0xf]
      %v4369 = vld [vmem:[%s1 + $0x58] sm:$0xf]
      %v4370 = vld [vmem:[%s1 + $0x5c] sm:$0xf]
      %v4371 = vld [vmem:[%s1 + $0x60] sm:$0xf]
      %v4372 = vld [vmem:[%s1 + $0x64] sm:$0xf]
      %v4373 = vld [vmem:[%s1 + $0x68] sm:$0xf]
      %v4374 = vld [vmem:[%s1 + $0x6c] sm:$0xf]
      %v4375 = vld [vmem:[%s1 + $0x70] sm:$0xf]
      %v4376 = vld [vmem:[%s1 + $0x74] sm:$0xf]
      %v4377 = vld [vmem:[%s1 + $0x78] sm:$0xf]
      %v4378 = vld [vmem:[%s1 + $0x7c] sm:$0xf]
      %v4379 = vld [vmem:[%s1 + $0x80] sm:$0xf]
      %v4380 = vld [vmem:[%s1 + $0x84] sm:$0xf]
      %v4381 = vld [vmem:[%s1 + $0x88] sm:$0xf]
      %v4382 = vld [vmem:[%s1 + $0x8c] sm:$0xf]
      %v4383 = vld [vmem:[%s1 + $0x90] sm:$0xf]
      %v4384 = vld [vmem:[%s1 + $0x94] sm:$0xf]
      %v4385 = vld [vmem:[%s1 + $0x98] sm:$0xf]
      %v4386 = vld [vmem:[%s1 + $0x9c] sm:$0xf]
      %v4387 = vld [vmem:[%s1 + $0xa0] sm:$0xf]
      %v4388 = vld [vmem:[%s1 + $0xa4] sm:$0xf]
      %v4389 = vld [vmem:[%s1 + $0xa8] sm:$0xf]
      %v4390 = vld [vmem:[%s1 + $0xac] sm:$0xf]
      %v4391 = vld [vmem:[%s1 + $0xb0] sm:$0xf]
      %v4392 = vld [vmem:[%s1 + $0xb4] sm:$0xf]
      %v4393 = vld [vmem:[%s1 + $0xb8] sm:$0xf]
      %v4394 = vld [vmem:[%s1 + $0xbc] sm:$0xf]
      %v4395 = vld [vmem:[%s1 + $0xc0] sm:$0xf]
      %v4396 = vld [vmem:[%s1 + $0xc4] sm:$0xf]
      %v4397 = vld [vmem:[%s1 + $0xc8] sm:$0xf]
      %v4398 = vld [vmem:[%s1 + $0xcc] sm:$0xf]
      %v4399 = vld [vmem:[%s1 + $0xd0] sm:$0xf]
      %v4400 = vld [vmem:[%s1 + $0xd4] sm:$0xf]
      %v4401 = vld [vmem:[%s1 + $0xd8] sm:$0xf]
      %v4402 = vld [vmem:[%s1 + $0xdc] sm:$0xf]
      %v4403 = vld [vmem:[%s1 + $0xe0] sm:$0xf]
      %v4404 = vld [vmem:[%s1 + $0xe4] sm:$0xf]
      %v4405 = vld [vmem:[%s1 + $0xe8] sm:$0xf]
      %v4406 = vld [vmem:[%s1 + $0xec] sm:$0xf]
      %v4407 = vld [vmem:[%s1 + $0xf0] sm:$0xf]
      %v4408 = vld [vmem:[%s1 + $0xf4] sm:$0xf]
      %v4409 = vld [vmem:[%s1 + $0xf8] sm:$0xf]
      %v4410 = vld [vmem:[%s1 + $0xfc] sm:$0xf]
      %v4411 = vld [vmem:[%s1 + $0x100] sm:$0xf]
      %v4412 = vld [vmem:[%s1 + $0x104] sm:$0xf]
      %v4413 = vld [vmem:[%s1 + $0x108] sm:$0xf]
      %v4414 = vld [vmem:[%s1 + $0x10c] sm:$0xf]
      %v4415 = vld [vmem:[%s1 + $0x110] sm:$0xf]
      %v4416 = vld [vmem:[%s1 + $0x114] sm:$0xf]
      %v4417 = vld [vmem:[%s1 + $0x118] sm:$0xf]
      %v4418 = vld [vmem:[%s1 + $0x11c] sm:$0xf]
      %v4419 = vld [vmem:[%s1 + $0x120] sm:$0xf]
      %v4420 = vld [vmem:[%s1 + $0x124] sm:$0xf]
      %v4421 = vld [vmem:[%s1 + $0x128] sm:$0xf]
      %v4422 = vld [vmem:[%s1 + $0x12c] sm:$0xf]
      %v4423 = vld [vmem:[%s1 + $0x130] sm:$0xf]
      %v4424 = vld [vmem:[%s1 + $0x134] sm:$0xf]
      %v4425 = vld [vmem:[%s1 + $0x138] sm:$0xf]
      %v4426 = vld [vmem:[%s1 + $0x13c] sm:$0xf]
      %v4427 = vld [vmem:[%s1 + $0x140] sm:$0xf]
      %v4428 = vld [vmem:[%s1 + $0x144] sm:$0xf]
      %v4429 = vld [vmem:[%s1 + $0x148] sm:$0xf]
      %v4430 = vld [vmem:[%s1 + $0x14c] sm:$0xf]
      %v4431 = vld [vmem:[%s1 + $0x150] sm:$0xf]
      %v4432 = vld [vmem:[%s1 + $0x154] sm:$0xf]
      %v4433 = vld [vmem:[%s1 + $0x158] sm:$0xf]
      %v4434 = vld [vmem:[%s1 + $0x15c] sm:$0xf]
      %v4435 = vld [vmem:[%s1 + $0x160] sm:$0xf]
      %v4436 = vld [vmem:[%s1 + $0x164] sm:$0xf]
      %v4437 = vld [vmem:[%s1 + $0x168] sm:$0xf]
      %v4438 = vld [vmem:[%s1 + $0x16c] sm:$0xf]
      %v4439 = vld [vmem:[%s1 + $0x170] sm:$0xf]
      %v4440 = vld [vmem:[%s1 + $0x174] sm:$0xf]
      %v4441 = vld [vmem:[%s1 + $0x178] sm:$0xf]
      %v4442 = vld [vmem:[%s1 + $0x17c] sm:$0xf]
      %v4443 = vld [vmem:[%s1 + $0x180] sm:$0xf]
      %v4444 = vld [vmem:[%s1 + $0x184] sm:$0xf]
      %v4445 = vld [vmem:[%s1 + $0x188] sm:$0xf]
      %v4446 = vld [vmem:[%s1 + $0x18c] sm:$0xf]
      %v4447 = vld [vmem:[%s1 + $0x190] sm:$0xf]
      %v4448 = vld [vmem:[%s1 + $0x194] sm:$0xf]
      %v4449 = vld [vmem:[%s1 + $0x198] sm:$0xf]
      %v4450 = vld [vmem:[%s1 + $0x19c] sm:$0xf]
      %v4451 = vld [vmem:[%s1 + $0x1a0] sm:$0xf]
      %v4452 = vld [vmem:[%s1 + $0x1a4] sm:$0xf]
      %v4453 = vld [vmem:[%s1 + $0x1a8] sm:$0xf]
      %v4454 = vld [vmem:[%s1 + $0x1ac] sm:$0xf]
      %v4455 = vld [vmem:[%s1 + $0x1b0] sm:$0xf]
      %v4456 = vld [vmem:[%s1 + $0x1b4] sm:$0xf]
      %v4457 = vld [vmem:[%s1 + $0x1b8] sm:$0xf]
      %v4458 = vld [vmem:[%s1 + $0x1bc] sm:$0xf]
      %v4459 = vld [vmem:[%s1 + $0x1c0] sm:$0xf]
      %v4460 = vld [vmem:[%s1 + $0x1c4] sm:$0xf]
      %v4461 = vld [vmem:[%s1 + $0x1c8] sm:$0xf]
      %v4462 = vld [vmem:[%s1 + $0x1cc] sm:$0xf]
      %v4463 = vld [vmem:[%s1 + $0x1d0] sm:$0xf]
      %v4464 = vld [vmem:[%s1 + $0x1d4] sm:$0xf]
      %v4465 = vld [vmem:[%s1 + $0x1d8] sm:$0xf]
      %v4466 = vld [vmem:[%s1 + $0x1dc] sm:$0xf]
      %v4467 = vld [vmem:[%s1 + $0x1e0] sm:$0xf]
      %v4468 = vld [vmem:[%s1 + $0x1e4] sm:$0xf]
      %v4469 = vld [vmem:[%s1 + $0x1e8] sm:$0xf]
      %v4470 = vld [vmem:[%s1 + $0x1ec] sm:$0xf]
      %v4471 = vld [vmem:[%s1 + $0x1f0] sm:$0xf]
      %v4472 = vld [vmem:[%s1 + $0x1f4] sm:$0xf]
      %v4473 = vld [vmem:[%s1 + $0x1f8] sm:$0xf]
      %v4474 = vld [vmem:[%s1 + $0x1fc] sm:$0xf]
      %v4475 = vld [vmem:[%s1 + $0x200] sm:$0xf]
      %v4476 = vld [vmem:[%s1 + $0x204] sm:$0xf]
      %v4477 = vld [vmem:[%s1 + $0x208] sm:$0xf]
      %v4478 = vld [vmem:[%s1 + $0x20c] sm:$0xf]
      %v4479 = vld [vmem:[%s1 + $0x210] sm:$0xf]
      %v4480 = vld [vmem:[%s1 + $0x214] sm:$0xf]
      %v4481 = vld [vmem:[%s1 + $0x218] sm:$0xf]
      %v4482 = vld [vmem:[%s1 + $0x21c] sm:$0xf]
      %v4483 = vld [vmem:[%s1 + $0x220] sm:$0xf]
      %v4484 = vld [vmem:[%s1 + $0x224] sm:$0xf]
      %v4485 = vld [vmem:[%s1 + $0x228] sm:$0xf]
      %v4486 = vld [vmem:[%s1 + $0x22c] sm:$0xf]
      %v4487 = vld [vmem:[%s1 + $0x230] sm:$0xf]
      %v4488 = vld [vmem:[%s1 + $0x234] sm:$0xf]
      %v4489 = vld [vmem:[%s1 + $0x238] sm:$0xf]
      %v4490 = vld [vmem:[%s1 + $0x23c] sm:$0xf]
      %v4491 = vld [vmem:[%s2] sm:$0x1]
      %v4493 = vperm.slane %v4491, 0
      %v4655 = vunpack.c.l.b16 %v4187
      %v4656 = vunpack.c.h.b16 %v4187
      %v4657 = vunpack.c.l.b16 %v4188
      %v4658 = vunpack.c.h.b16 %v4188
      %v4659 = vunpack.c.l.b16 %v4189
      %v4660 = vunpack.c.h.b16 %v4189
      %v4661 = vunpack.c.l.b16 %v4190
      %v4662 = vunpack.c.h.b16 %v4190
      %v4663 = vunpack.c.l.b16 %v4191
      %v4664 = vunpack.c.l.b16 %v4192
      %v4665 = vunpack.c.h.b16 %v4192
      %v4666 = vunpack.c.l.b16 %v4193
      %v4667 = vunpack.c.h.b16 %v4193
      %v4668 = vunpack.c.l.b16 %v4194
      %v4669 = vunpack.c.h.b16 %v4194
      %v4670 = vunpack.c.l.b16 %v4195
      %v4671 = vunpack.c.h.b16 %v4195
      %v4672 = vunpack.c.l.b16 %v4196
      %v4673 = vunpack.c.l.b16 %v4197
      %v4674 = vunpack.c.h.b16 %v4197
      %v4675 = vunpack.c.l.b16 %v4198
      %v4676 = vunpack.c.h.b16 %v4198
      %v4677 = vunpack.c.l.b16 %v4199
      %v4678 = vunpack.c.h.b16 %v4199
      %v4679 = vunpack.c.l.b16 %v4200
      %v4680 = vunpack.c.h.b16 %v4200
      %v4681 = vunpack.c.l.b16 %v4201
      %v4682 = vunpack.c.l.b16 %v4202
      %v4683 = vunpack.c.h.b16 %v4202
      %v4684 = vunpack.c.l.b16 %v4203
      %v4685 = vunpack.c.h.b16 %v4203
      %v4686 = vunpack.c.l.b16 %v4204
      %v4687 = vunpack.c.h.b16 %v4204
      %v4688 = vunpack.c.l.b16 %v4205
      %v4689 = vunpack.c.h.b16 %v4205
      %v4690 = vunpack.c.l.b16 %v4206
      %v4691 = vunpack.c.l.b16 %v4207
      %v4692 = vunpack.c.h.b16 %v4207
      %v4693 = vunpack.c.l.b16 %v4208
      %v4694 = vunpack.c.h.b16 %v4208
      %v4695 = vunpack.c.l.b16 %v4209
      %v4696 = vunpack.c.h.b16 %v4209
      %v4697 = vunpack.c.l.b16 %v4210
      %v4698 = vunpack.c.h.b16 %v4210
      %v4699 = vunpack.c.l.b16 %v4211
      %v4700 = vunpack.c.l.b16 %v4212
      %v4701 = vunpack.c.h.b16 %v4212
      %v4702 = vunpack.c.l.b16 %v4213
      %v4703 = vunpack.c.h.b16 %v4213
      %v4704 = vunpack.c.l.b16 %v4214
      %v4705 = vunpack.c.h.b16 %v4214
      %v4706 = vunpack.c.l.b16 %v4215
      %v4707 = vunpack.c.h.b16 %v4215
      %v4708 = vunpack.c.l.b16 %v4216
      %v4709 = vunpack.c.l.b16 %v4217
      %v4710 = vunpack.c.h.b16 %v4217
      %v4711 = vunpack.c.l.b16 %v4218
      %v4712 = vunpack.c.h.b16 %v4218
      %v4713 = vunpack.c.l.b16 %v4219
      %v4714 = vunpack.c.h.b16 %v4219
      %v4715 = vunpack.c.l.b16 %v4220
      %v4716 = vunpack.c.h.b16 %v4220
      %v4717 = vunpack.c.l.b16 %v4221
      %v4718 = vunpack.c.l.b16 %v4222
      %v4719 = vunpack.c.h.b16 %v4222
      %v4720 = vunpack.c.l.b16 %v4223
      %v4721 = vunpack.c.h.b16 %v4223
      %v4722 = vunpack.c.l.b16 %v4224
      %v4723 = vunpack.c.h.b16 %v4224
      %v4724 = vunpack.c.l.b16 %v4225
      %v4725 = vunpack.c.h.b16 %v4225
      %v4726 = vunpack.c.l.b16 %v4226
      %v4727 = vunpack.c.l.b16 %v4227
      %v4728 = vunpack.c.h.b16 %v4227
      %v4729 = vunpack.c.l.b16 %v4228
      %v4730 = vunpack.c.h.b16 %v4228
      %v4731 = vunpack.c.l.b16 %v4229
      %v4732 = vunpack.c.h.b16 %v4229
      %v4733 = vunpack.c.l.b16 %v4230
      %v4734 = vunpack.c.h.b16 %v4230
      %v4735 = vunpack.c.l.b16 %v4231
      %v4736 = vunpack.c.l.b16 %v4232
      %v4737 = vunpack.c.h.b16 %v4232
      %v4738 = vunpack.c.l.b16 %v4233
      %v4739 = vunpack.c.h.b16 %v4233
      %v4740 = vunpack.c.l.b16 %v4234
      %v4741 = vunpack.c.h.b16 %v4234
      %v4742 = vunpack.c.l.b16 %v4235
      %v4743 = vunpack.c.h.b16 %v4235
      %v4744 = vunpack.c.l.b16 %v4236
      %v4745 = vunpack.c.l.b16 %v4237
      %v4746 = vunpack.c.h.b16 %v4237
      %v4747 = vunpack.c.l.b16 %v4238
      %v4748 = vunpack.c.h.b16 %v4238
      %v4749 = vunpack.c.l.b16 %v4239
      %v4750 = vunpack.c.h.b16 %v4239
      %v4751 = vunpack.c.l.b16 %v4240
      %v4752 = vunpack.c.h.b16 %v4240
      %v4753 = vunpack.c.l.b16 %v4241
      %v4754 = vunpack.c.l.b16 %v4242
      %v4755 = vunpack.c.h.b16 %v4242
      %v4756 = vunpack.c.l.b16 %v4243
      %v4757 = vunpack.c.h.b16 %v4243
      %v4758 = vunpack.c.l.b16 %v4244
      %v4759 = vunpack.c.h.b16 %v4244
      %v4760 = vunpack.c.l.b16 %v4245
      %v4761 = vunpack.c.h.b16 %v4245
      %v4762 = vunpack.c.l.b16 %v4246
      %v4763 = vunpack.c.l.b16 %v4247
      %v4764 = vunpack.c.h.b16 %v4247
      %v4765 = vunpack.c.l.b16 %v4248
      %v4766 = vunpack.c.h.b16 %v4248
      %v4767 = vunpack.c.l.b16 %v4249
      %v4768 = vunpack.c.h.b16 %v4249
      %v4769 = vunpack.c.l.b16 %v4250
      %v4770 = vunpack.c.h.b16 %v4250
      %v4771 = vunpack.c.l.b16 %v4251
      %v4772 = vunpack.c.l.b16 %v4252
      %v4773 = vunpack.c.h.b16 %v4252
      %v4774 = vunpack.c.l.b16 %v4253
      %v4775 = vunpack.c.h.b16 %v4253
      %v4776 = vunpack.c.l.b16 %v4254
      %v4777 = vunpack.c.h.b16 %v4254
      %v4778 = vunpack.c.l.b16 %v4255
      %v4779 = vunpack.c.h.b16 %v4255
      %v4780 = vunpack.c.l.b16 %v4256
      %v4781 = vunpack.c.l.b16 %v4257
      %v4782 = vunpack.c.h.b16 %v4257
      %v4783 = vunpack.c.l.b16 %v4258
      %v4784 = vunpack.c.h.b16 %v4258
      %v4785 = vunpack.c.l.b16 %v4259
      %v4786 = vunpack.c.h.b16 %v4259
      %v4787 = vunpack.c.l.b16 %v4260
      %v4788 = vunpack.c.h.b16 %v4260
      %v4789 = vunpack.c.l.b16 %v4261
      %v4790 = vunpack.c.l.b16 %v4262
      %v4791 = vunpack.c.h.b16 %v4262
      %v4792 = vunpack.c.l.b16 %v4263
      %v4793 = vunpack.c.h.b16 %v4263
      %v4794 = vunpack.c.l.b16 %v4264
      %v4795 = vunpack.c.h.b16 %v4264
      %v4796 = vunpack.c.l.b16 %v4265
      %v4797 = vunpack.c.h.b16 %v4265
      %v4798 = vunpack.c.l.b16 %v4266
      %v4799 = vunpack.c.l.b16 %v4267
      %v4800 = vunpack.c.h.b16 %v4267
      %v4801 = vunpack.c.l.b16 %v4268
      %v4802 = vunpack.c.h.b16 %v4268
      %v4803 = vunpack.c.l.b16 %v4269
      %v4804 = vunpack.c.h.b16 %v4269
      %v4805 = vunpack.c.l.b16 %v4270
      %v4806 = vunpack.c.h.b16 %v4270
      %v4807 = vunpack.c.l.b16 %v4271
      %v4808 = vunpack.c.l.b16 %v4272
      %v4809 = vunpack.c.h.b16 %v4272
      %v4810 = vunpack.c.l.b16 %v4273
      %v4811 = vunpack.c.h.b16 %v4273
      %v4812 = vunpack.c.l.b16 %v4274
      %v4813 = vunpack.c.h.b16 %v4274
      %v4814 = vunpack.c.l.b16 %v4275
      %v4815 = vunpack.c.h.b16 %v4275
      %v4816 = vunpack.c.l.b16 %v4276
      %v4817 = vunpack.c.l.b16 %v4277
      %v4818 = vunpack.c.h.b16 %v4277
      %v4819 = vunpack.c.l.b16 %v4278
      %v4820 = vunpack.c.h.b16 %v4278
      %v4821 = vunpack.c.l.b16 %v4279
      %v4822 = vunpack.c.h.b16 %v4279
      %v4823 = vunpack.c.l.b16 %v4280
      %v4824 = vunpack.c.h.b16 %v4280
      %v4825 = vunpack.c.l.b16 %v4281
      %v4826 = vunpack.c.l.b16 %v4282
      %v4827 = vunpack.c.h.b16 %v4282
      %v4828 = vunpack.c.l.b16 %v4283
      %v4829 = vunpack.c.h.b16 %v4283
      %v4830 = vunpack.c.l.b16 %v4284
      %v4831 = vunpack.c.h.b16 %v4284
      %v4832 = vunpack.c.l.b16 %v4285
      %v4833 = vunpack.c.h.b16 %v4285
      %v4834 = vunpack.c.l.b16 %v4286
      %v4835 = vunpack.c.l.b16 %v4287
      %v4836 = vunpack.c.h.b16 %v4287
      %v4837 = vunpack.c.l.b16 %v4288
      %v4838 = vunpack.c.h.b16 %v4288
      %v4839 = vunpack.c.l.b16 %v4289
      %v4840 = vunpack.c.h.b16 %v4289
      %v4841 = vunpack.c.l.b16 %v4290
      %v4842 = vunpack.c.h.b16 %v4290
      %v4843 = vunpack.c.l.b16 %v4291
      %v4844 = vunpack.c.l.b16 %v4292
      %v4845 = vunpack.c.h.b16 %v4292
      %v4846 = vunpack.c.l.b16 %v4293
      %v4847 = vunpack.c.h.b16 %v4293
      %v4848 = vunpack.c.l.b16 %v4294
      %v4849 = vunpack.c.h.b16 %v4294
      %v4850 = vunpack.c.l.b16 %v4295
      %v4851 = vunpack.c.h.b16 %v4295
      %v4852 = vunpack.c.l.b16 %v4296
      %v4853 = vunpack.c.l.b16 %v4297
      %v4854 = vunpack.c.h.b16 %v4297
      %v4855 = vunpack.c.l.b16 %v4298
      %v4856 = vunpack.c.h.b16 %v4298
      %v4857 = vunpack.c.l.b16 %v4299
      %v4858 = vunpack.c.h.b16 %v4299
      %v4859 = vunpack.c.l.b16 %v4300
      %v4860 = vunpack.c.h.b16 %v4300
      %v4861 = vunpack.c.l.b16 %v4301
      %v4862 = vunpack.c.l.b16 %v4302
      %v4863 = vunpack.c.h.b16 %v4302
      %v4864 = vunpack.c.l.b16 %v4303
      %v4865 = vunpack.c.h.b16 %v4303
      %v4866 = vunpack.c.l.b16 %v4304
      %v4867 = vunpack.c.h.b16 %v4304
      %v4868 = vunpack.c.l.b16 %v4305
      %v4869 = vunpack.c.h.b16 %v4305
      %v4870 = vunpack.c.l.b16 %v4306
      %v4871 = vunpack.c.l.b16 %v4307
      %v4872 = vunpack.c.h.b16 %v4307
      %v4873 = vunpack.c.l.b16 %v4308
      %v4874 = vunpack.c.h.b16 %v4308
      %v4875 = vunpack.c.l.b16 %v4309
      %v4876 = vunpack.c.h.b16 %v4309
      %v4877 = vunpack.c.l.b16 %v4310
      %v4878 = vunpack.c.h.b16 %v4310
      %v4879 = vunpack.c.l.b16 %v4311
      %v4880 = vunpack.c.l.b16 %v4312
      %v4881 = vunpack.c.h.b16 %v4312
      %v4882 = vunpack.c.l.b16 %v4313
      %v4883 = vunpack.c.h.b16 %v4313
      %v4884 = vunpack.c.l.b16 %v4314
      %v4885 = vunpack.c.h.b16 %v4314
      %v4886 = vunpack.c.l.b16 %v4315
      %v4887 = vunpack.c.h.b16 %v4315
      %v4888 = vunpack.c.l.b16 %v4316
      %v4889 = vunpack.c.l.b16 %v4317
      %v4890 = vunpack.c.h.b16 %v4317
      %v4891 = vunpack.c.l.b16 %v4318
      %v4892 = vunpack.c.h.b16 %v4318
      %v4893 = vunpack.c.l.b16 %v4319
      %v4894 = vunpack.c.h.b16 %v4319
      %v4895 = vunpack.c.l.b16 %v4320
      %v4896 = vunpack.c.h.b16 %v4320
      %v4897 = vunpack.c.l.b16 %v4321
      %v4898 = vunpack.c.l.b16 %v4322
      %v4899 = vunpack.c.h.b16 %v4322
      %v4900 = vunpack.c.l.b16 %v4323
      %v4901 = vunpack.c.h.b16 %v4323
      %v4902 = vunpack.c.l.b16 %v4324
      %v4903 = vunpack.c.h.b16 %v4324
      %v4904 = vunpack.c.l.b16 %v4325
      %v4905 = vunpack.c.h.b16 %v4325
      %v4906 = vunpack.c.l.b16 %v4326
      %v4907 = vunpack.c.l.b16 %v4327
      %v4908 = vunpack.c.h.b16 %v4327
      %v4909 = vunpack.c.l.b16 %v4328
      %v4910 = vunpack.c.h.b16 %v4328
      %v4911 = vunpack.c.l.b16 %v4329
      %v4912 = vunpack.c.h.b16 %v4329
      %v4913 = vunpack.c.l.b16 %v4330
      %v4914 = vunpack.c.h.b16 %v4330
      %v4915 = vunpack.c.l.b16 %v4331
      %v4916 = vunpack.c.l.b16 %v4332
      %v4917 = vunpack.c.h.b16 %v4332
      %v4918 = vunpack.c.l.b16 %v4333
      %v4919 = vunpack.c.h.b16 %v4333
      %v4920 = vunpack.c.l.b16 %v4334
      %v4921 = vunpack.c.h.b16 %v4334
      %v4922 = vunpack.c.l.b16 %v4335
      %v4923 = vunpack.c.h.b16 %v4335
      %v4924 = vunpack.c.l.b16 %v4336
      %v4925 = vunpack.c.l.b16 %v4337
      %v4926 = vunpack.c.h.b16 %v4337
      %v4927 = vunpack.c.l.b16 %v4338
      %v4928 = vunpack.c.h.b16 %v4338
      %v4929 = vunpack.c.l.b16 %v4339
      %v4930 = vunpack.c.h.b16 %v4339
      %v4931 = vunpack.c.l.b16 %v4340
      %v4932 = vunpack.c.h.b16 %v4340
      %v4933 = vunpack.c.l.b16 %v4341
      %v4934 = vunpack.c.l.b16 %v4342
      %v4935 = vunpack.c.h.b16 %v4342
      %v4936 = vunpack.c.l.b16 %v4343
      %v4937 = vunpack.c.h.b16 %v4343
      %v4938 = vunpack.c.l.b16 %v4344
      %v4939 = vunpack.c.h.b16 %v4344
      %v4940 = vunpack.c.l.b16 %v4345
      %v4941 = vunpack.c.h.b16 %v4345
      %v4942 = vunpack.c.l.b16 %v4346
      %v4943 = vpack.c.b16 %v4664, %v4655
      %v4944 = vpack.c.b16 %v4665, %v4656
      %v4945 = vpack.c.b16 %v4666, %v4657
      %v4946 = vpack.c.b16 %v4667, %v4658
      %v4947 = vpack.c.b16 %v4668, %v4659
      %v4948 = vpack.c.b16 %v4669, %v4660
      %v4949 = vpack.c.b16 %v4670, %v4661
      %v4950 = vpack.c.b16 %v4671, %v4662
      %v4951 = vpack.c.b16 %v4672, %v4663
      %v4952 = vpack.c.b16 %v4682, %v4673
      %v4953 = vpack.c.b16 %v4683, %v4674
      %v4954 = vpack.c.b16 %v4684, %v4675
      %v4955 = vpack.c.b16 %v4685, %v4676
      %v4956 = vpack.c.b16 %v4686, %v4677
      %v4957 = vpack.c.b16 %v4687, %v4678
      %v4958 = vpack.c.b16 %v4688, %v4679
      %v4959 = vpack.c.b16 %v4689, %v4680
      %v4960 = vpack.c.b16 %v4690, %v4681
      %v4961 = vpack.c.b16 %v4700, %v4691
      %v4962 = vpack.c.b16 %v4701, %v4692
      %v4963 = vpack.c.b16 %v4702, %v4693
      %v4964 = vpack.c.b16 %v4703, %v4694
      %v4965 = vpack.c.b16 %v4704, %v4695
      %v4966 = vpack.c.b16 %v4705, %v4696
      %v4967 = vpack.c.b16 %v4706, %v4697
      %v4968 = vpack.c.b16 %v4707, %v4698
      %v4969 = vpack.c.b16 %v4708, %v4699
      %v4970 = vpack.c.b16 %v4718, %v4709
      %v4971 = vpack.c.b16 %v4719, %v4710
      %v4972 = vpack.c.b16 %v4720, %v4711
      %v4973 = vpack.c.b16 %v4721, %v4712
      %v4974 = vpack.c.b16 %v4722, %v4713
      %v4975 = vpack.c.b16 %v4723, %v4714
      %v4976 = vpack.c.b16 %v4724, %v4715
      %v4977 = vpack.c.b16 %v4725, %v4716
      %v4978 = vpack.c.b16 %v4726, %v4717
      %v4979 = vpack.c.b16 %v4736, %v4727
      %v4980 = vpack.c.b16 %v4737, %v4728
      %v4981 = vpack.c.b16 %v4738, %v4729
      %v4982 = vpack.c.b16 %v4739, %v4730
      %v4983 = vpack.c.b16 %v4740, %v4731
      %v4984 = vpack.c.b16 %v4741, %v4732
      %v4985 = vpack.c.b16 %v4742, %v4733
      %v4986 = vpack.c.b16 %v4743, %v4734
      %v4987 = vpack.c.b16 %v4744, %v4735
      %v4988 = vpack.c.b16 %v4754, %v4745
      %v4989 = vpack.c.b16 %v4755, %v4746
      %v4990 = vpack.c.b16 %v4756, %v4747
      %v4991 = vpack.c.b16 %v4757, %v4748
      %v4992 = vpack.c.b16 %v4758, %v4749
      %v4993 = vpack.c.b16 %v4759, %v4750
      %v4994 = vpack.c.b16 %v4760, %v4751
      %v4995 = vpack.c.b16 %v4761, %v4752
      %v4996 = vpack.c.b16 %v4762, %v4753
      %v4997 = vpack.c.b16 %v4772, %v4763
      %v4998 = vpack.c.b16 %v4773, %v4764
      %v4999 = vpack.c.b16 %v4774, %v4765
      %v5000 = vpack.c.b16 %v4775, %v4766
      %v5001 = vpack.c.b16 %v4776, %v4767
      %v5002 = vpack.c.b16 %v4777, %v4768
      %v5003 = vpack.c.b16 %v4778, %v4769
      %v5004 = vpack.c.b16 %v4779, %v4770
      %v5005 = vpack.c.b16 %v4780, %v4771
      %v5006 = vpack.c.b16 %v4790, %v4781
      %v5007 = vpack.c.b16 %v4791, %v4782
      %v5008 = vpack.c.b16 %v4792, %v4783
      %v5009 = vpack.c.b16 %v4793, %v4784
      %v5010 = vpack.c.b16 %v4794, %v4785
      %v5011 = vpack.c.b16 %v4795, %v4786
      %v5012 = vpack.c.b16 %v4796, %v4787
      %v5013 = vpack.c.b16 %v4797, %v4788
      %v5014 = vpack.c.b16 %v4798, %v4789
      %v5015 = vpack.c.b16 %v4808, %v4799
      %v5016 = vpack.c.b16 %v4809, %v4800
      %v5017 = vpack.c.b16 %v4810, %v4801
      %v5018 = vpack.c.b16 %v4811, %v4802
      %v5019 = vpack.c.b16 %v4812, %v4803
      %v5020 = vpack.c.b16 %v4813, %v4804
      %v5021 = vpack.c.b16 %v4814, %v4805
      %v5022 = vpack.c.b16 %v4815, %v4806
      %v5023 = vpack.c.b16 %v4816, %v4807
      %v5024 = vpack.c.b16 %v4826, %v4817
      %v5025 = vpack.c.b16 %v4827, %v4818
      %v5026 = vpack.c.b16 %v4828, %v4819
      %v5027 = vpack.c.b16 %v4829, %v4820
      %v5028 = vpack.c.b16 %v4830, %v4821
      %v5029 = vpack.c.b16 %v4831, %v4822
      %v5030 = vpack.c.b16 %v4832, %v4823
      %v5031 = vpack.c.b16 %v4833, %v4824
      %v5032 = vpack.c.b16 %v4834, %v4825
      %v5033 = vpack.c.b16 %v4844, %v4835
      %v5034 = vpack.c.b16 %v4845, %v4836
      %v5035 = vpack.c.b16 %v4846, %v4837
      %v5036 = vpack.c.b16 %v4847, %v4838
      %v5037 = vpack.c.b16 %v4848, %v4839
      %v5038 = vpack.c.b16 %v4849, %v4840
      %v5039 = vpack.c.b16 %v4850, %v4841
      %v5040 = vpack.c.b16 %v4851, %v4842
      %v5041 = vpack.c.b16 %v4852, %v4843
      %v5042 = vpack.c.b16 %v4862, %v4853
      %v5043 = vpack.c.b16 %v4863, %v4854
      %v5044 = vpack.c.b16 %v4864, %v4855
      %v5045 = vpack.c.b16 %v4865, %v4856
      %v5046 = vpack.c.b16 %v4866, %v4857
      %v5047 = vpack.c.b16 %v4867, %v4858
      %v5048 = vpack.c.b16 %v4868, %v4859
      %v5049 = vpack.c.b16 %v4869, %v4860
      %v5050 = vpack.c.b16 %v4870, %v4861
      %v5051 = vpack.c.b16 %v4880, %v4871
      %v5052 = vpack.c.b16 %v4881, %v4872
      %v5053 = vpack.c.b16 %v4882, %v4873
      %v5054 = vpack.c.b16 %v4883, %v4874
      %v5055 = vpack.c.b16 %v4884, %v4875
      %v5056 = vpack.c.b16 %v4885, %v4876
      %v5057 = vpack.c.b16 %v4886, %v4877
      %v5058 = vpack.c.b16 %v4887, %v4878
      %v5059 = vpack.c.b16 %v4888, %v4879
      %v5060 = vpack.c.b16 %v4898, %v4889
      %v5061 = vpack.c.b16 %v4899, %v4890
      %v5062 = vpack.c.b16 %v4900, %v4891
      %v5063 = vpack.c.b16 %v4901, %v4892
      %v5064 = vpack.c.b16 %v4902, %v4893
      %v5065 = vpack.c.b16 %v4903, %v4894
      %v5066 = vpack.c.b16 %v4904, %v4895
      %v5067 = vpack.c.b16 %v4905, %v4896
      %v5068 = vpack.c.b16 %v4906, %v4897
      %v5069 = vpack.c.b16 %v4916, %v4907
      %v5070 = vpack.c.b16 %v4917, %v4908
      %v5071 = vpack.c.b16 %v4918, %v4909
      %v5072 = vpack.c.b16 %v4919, %v4910
      %v5073 = vpack.c.b16 %v4920, %v4911
      %v5074 = vpack.c.b16 %v4921, %v4912
      %v5075 = vpack.c.b16 %v4922, %v4913
      %v5076 = vpack.c.b16 %v4923, %v4914
      %v5077 = vpack.c.b16 %v4924, %v4915
      %v5078 = vpack.c.b16 %v4934, %v4925
      %v5079 = vpack.c.b16 %v4935, %v4926
      %v5080 = vpack.c.b16 %v4936, %v4927
      %v5081 = vpack.c.b16 %v4937, %v4928
      %v5082 = vpack.c.b16 %v4938, %v4929
      %v5083 = vpack.c.b16 %v4939, %v4930
      %v5084 = vpack.c.b16 %v4940, %v4931
      %v5085 = vpack.c.b16 %v4941, %v4932
      %v5086 = vpack.c.b16 %v4942, %v4933
      %v5375 = vunpack.c.l.b16 %v4347
      %v5376 = vunpack.c.l.b16 %v4348
      %v5377 = vunpack.c.l.b16 %v4349
      %v5378 = vunpack.c.l.b16 %v4350
      %v5379 = vunpack.c.l.b16 %v4351
      %v5380 = vunpack.c.l.b16 %v4352
      %v5381 = vunpack.c.l.b16 %v4353
      %v5382 = vunpack.c.l.b16 %v4354
      %v5383 = vunpack.c.l.b16 %v4355
      %v5384 = vunpack.c.l.b16 %v4356
      %v5385 = vunpack.c.l.b16 %v4357
      %v5386 = vunpack.c.l.b16 %v4358
      %v5387 = vunpack.c.l.b16 %v4359
      %v5388 = vunpack.c.l.b16 %v4360
      %v5389 = vunpack.c.l.b16 %v4361
      %v5390 = vunpack.c.l.b16 %v4362
      %v5391 = vunpack.c.l.b16 %v4363
      %v5392 = vunpack.c.l.b16 %v4364
      %v5393 = vunpack.c.l.b16 %v4365
      %v5394 = vunpack.c.l.b16 %v4366
      %v5395 = vunpack.c.l.b16 %v4367
      %v5396 = vunpack.c.l.b16 %v4368
      %v5397 = vunpack.c.l.b16 %v4369
      %v5398 = vunpack.c.l.b16 %v4370
      %v5399 = vunpack.c.l.b16 %v4371
      %v5400 = vunpack.c.l.b16 %v4372
      %v5401 = vunpack.c.l.b16 %v4373
      %v5402 = vunpack.c.l.b16 %v4374
      %v5403 = vunpack.c.l.b16 %v4375
      %v5404 = vunpack.c.l.b16 %v4376
      %v5405 = vunpack.c.l.b16 %v4377
      %v5406 = vunpack.c.l.b16 %v4378
      %v5407 = vunpack.c.l.b16 %v4379
      %v5408 = vunpack.c.l.b16 %v4380
      %v5409 = vunpack.c.l.b16 %v4381
      %v5410 = vunpack.c.l.b16 %v4382
      %v5411 = vunpack.c.l.b16 %v4383
      %v5412 = vunpack.c.l.b16 %v4384
      %v5413 = vunpack.c.l.b16 %v4385
      %v5414 = vunpack.c.l.b16 %v4386
      %v5415 = vunpack.c.l.b16 %v4387
      %v5416 = vunpack.c.l.b16 %v4388
      %v5417 = vunpack.c.l.b16 %v4389
      %v5418 = vunpack.c.l.b16 %v4390
      %v5419 = vunpack.c.l.b16 %v4391
      %v5420 = vunpack.c.l.b16 %v4392
      %v5421 = vunpack.c.l.b16 %v4393
      %v5422 = vunpack.c.l.b16 %v4394
      %v5423 = vunpack.c.l.b16 %v4395
      %v5424 = vunpack.c.l.b16 %v4396
      %v5425 = vunpack.c.l.b16 %v4397
      %v5426 = vunpack.c.l.b16 %v4398
      %v5427 = vunpack.c.l.b16 %v4399
      %v5428 = vunpack.c.l.b16 %v4400
      %v5429 = vunpack.c.l.b16 %v4401
      %v5430 = vunpack.c.l.b16 %v4402
      %v5431 = vunpack.c.l.b16 %v4403
      %v5432 = vunpack.c.l.b16 %v4404
      %v5433 = vunpack.c.l.b16 %v4405
      %v5434 = vunpack.c.l.b16 %v4406
      %v5435 = vunpack.c.l.b16 %v4407
      %v5436 = vunpack.c.l.b16 %v4408
      %v5437 = vunpack.c.l.b16 %v4409
      %v5438 = vunpack.c.l.b16 %v4410
      %v5439 = vunpack.c.l.b16 %v4411
      %v5440 = vunpack.c.l.b16 %v4412
      %v5441 = vunpack.c.l.b16 %v4413
      %v5442 = vunpack.c.l.b16 %v4414
      %v5443 = vunpack.c.l.b16 %v4415
      %v5444 = vunpack.c.l.b16 %v4416
      %v5445 = vunpack.c.l.b16 %v4417
      %v5446 = vunpack.c.l.b16 %v4418
      %v5447 = vunpack.c.l.b16 %v4419
      %v5448 = vunpack.c.l.b16 %v4420
      %v5449 = vunpack.c.l.b16 %v4421
      %v5450 = vunpack.c.l.b16 %v4422
      %v5451 = vunpack.c.l.b16 %v4423
      %v5452 = vunpack.c.l.b16 %v4424
      %v5453 = vunpack.c.l.b16 %v4425
      %v5454 = vunpack.c.l.b16 %v4426
      %v5455 = vunpack.c.l.b16 %v4427
      %v5456 = vunpack.c.l.b16 %v4428
      %v5457 = vunpack.c.l.b16 %v4429
      %v5458 = vunpack.c.l.b16 %v4430
      %v5459 = vunpack.c.l.b16 %v4431
      %v5460 = vunpack.c.l.b16 %v4432
      %v5461 = vunpack.c.l.b16 %v4433
      %v5462 = vunpack.c.l.b16 %v4434
      %v5463 = vunpack.c.l.b16 %v4435
      %v5464 = vunpack.c.l.b16 %v4436
      %v5465 = vunpack.c.l.b16 %v4437
      %v5466 = vunpack.c.l.b16 %v4438
      %v5467 = vunpack.c.l.b16 %v4439
      %v5468 = vunpack.c.l.b16 %v4440
      %v5469 = vunpack.c.l.b16 %v4441
      %v5470 = vunpack.c.l.b16 %v4442
      %v5471 = vunpack.c.l.b16 %v4443
      %v5472 = vunpack.c.l.b16 %v4444
      %v5473 = vunpack.c.l.b16 %v4445
      %v5474 = vunpack.c.l.b16 %v4446
      %v5475 = vunpack.c.l.b16 %v4447
      %v5476 = vunpack.c.l.b16 %v4448
      %v5477 = vunpack.c.l.b16 %v4449
      %v5478 = vunpack.c.l.b16 %v4450
      %v5479 = vunpack.c.l.b16 %v4451
      %v5480 = vunpack.c.l.b16 %v4452
      %v5481 = vunpack.c.l.b16 %v4453
      %v5482 = vunpack.c.l.b16 %v4454
      %v5483 = vunpack.c.l.b16 %v4455
      %v5484 = vunpack.c.l.b16 %v4456
      %v5485 = vunpack.c.l.b16 %v4457
      %v5486 = vunpack.c.l.b16 %v4458
      %v5487 = vunpack.c.l.b16 %v4459
      %v5488 = vunpack.c.l.b16 %v4460
      %v5489 = vunpack.c.l.b16 %v4461
      %v5490 = vunpack.c.l.b16 %v4462
      %v5491 = vunpack.c.l.b16 %v4463
      %v5492 = vunpack.c.l.b16 %v4464
      %v5493 = vunpack.c.l.b16 %v4465
      %v5494 = vunpack.c.l.b16 %v4466
      %v5495 = vunpack.c.l.b16 %v4467
      %v5496 = vunpack.c.l.b16 %v4468
      %v5497 = vunpack.c.l.b16 %v4469
      %v5498 = vunpack.c.l.b16 %v4470
      %v5499 = vunpack.c.l.b16 %v4471
      %v5500 = vunpack.c.l.b16 %v4472
      %v5501 = vunpack.c.l.b16 %v4473
      %v5502 = vunpack.c.l.b16 %v4474
      %v5503 = vunpack.c.l.b16 %v4475
      %v5504 = vunpack.c.l.b16 %v4476
      %v5505 = vunpack.c.l.b16 %v4477
      %v5506 = vunpack.c.l.b16 %v4478
      %v5507 = vunpack.c.l.b16 %v4479
      %v5508 = vunpack.c.l.b16 %v4480
      %v5509 = vunpack.c.l.b16 %v4481
      %v5510 = vunpack.c.l.b16 %v4482
      %v5511 = vunpack.c.l.b16 %v4483
      %v5512 = vunpack.c.l.b16 %v4484
      %v5513 = vunpack.c.l.b16 %v4485
      %v5514 = vunpack.c.l.b16 %v4486
      %v5515 = vunpack.c.l.b16 %v4487
      %v5516 = vunpack.c.l.b16 %v4488
      %v5517 = vunpack.c.l.b16 %v4489
      %v5518 = vunpack.c.l.b16 %v4490
      %v5519 = vpack.c.b16 %v5376, %v5375
      %v5520 = vpack.c.b16 %v5378, %v5377
      %v5521 = vpack.c.b16 %v5380, %v5379
      %v5522 = vpack.c.b16 %v5382, %v5381
      %v5523 = vpack.c.b16 %v5384, %v5383
      %v5524 = vpack.c.b16 %v5386, %v5385
      %v5525 = vpack.c.b16 %v5388, %v5387
      %v5526 = vpack.c.b16 %v5390, %v5389
      %v5527 = vpack.c.b16 %v5392, %v5391
      %v5528 = vpack.c.b16 %v5394, %v5393
      %v5529 = vpack.c.b16 %v5396, %v5395
      %v5530 = vpack.c.b16 %v5398, %v5397
      %v5531 = vpack.c.b16 %v5400, %v5399
      %v5532 = vpack.c.b16 %v5402, %v5401
      %v5533 = vpack.c.b16 %v5404, %v5403
      %v5534 = vpack.c.b16 %v5406, %v5405
      %v5535 = vpack.c.b16 %v5408, %v5407
      %v5536 = vpack.c.b16 %v5410, %v5409
      %v5537 = vpack.c.b16 %v5412, %v5411
      %v5538 = vpack.c.b16 %v5414, %v5413
      %v5539 = vpack.c.b16 %v5416, %v5415
      %v5540 = vpack.c.b16 %v5418, %v5417
      %v5541 = vpack.c.b16 %v5420, %v5419
      %v5542 = vpack.c.b16 %v5422, %v5421
      %v5543 = vpack.c.b16 %v5424, %v5423
      %v5544 = vpack.c.b16 %v5426, %v5425
      %v5545 = vpack.c.b16 %v5428, %v5427
      %v5546 = vpack.c.b16 %v5430, %v5429
      %v5547 = vpack.c.b16 %v5432, %v5431
      %v5548 = vpack.c.b16 %v5434, %v5433
      %v5549 = vpack.c.b16 %v5436, %v5435
      %v5550 = vpack.c.b16 %v5438, %v5437
      %v5551 = vpack.c.b16 %v5440, %v5439
      %v5552 = vpack.c.b16 %v5442, %v5441
      %v5553 = vpack.c.b16 %v5444, %v5443
      %v5554 = vpack.c.b16 %v5446, %v5445
      %v5555 = vpack.c.b16 %v5448, %v5447
      %v5556 = vpack.c.b16 %v5450, %v5449
      %v5557 = vpack.c.b16 %v5452, %v5451
      %v5558 = vpack.c.b16 %v5454, %v5453
      %v5559 = vpack.c.b16 %v5456, %v5455
      %v5560 = vpack.c.b16 %v5458, %v5457
      %v5561 = vpack.c.b16 %v5460, %v5459
      %v5562 = vpack.c.b16 %v5462, %v5461
      %v5563 = vpack.c.b16 %v5464, %v5463
      %v5564 = vpack.c.b16 %v5466, %v5465
      %v5565 = vpack.c.b16 %v5468, %v5467
      %v5566 = vpack.c.b16 %v5470, %v5469
      %v5567 = vpack.c.b16 %v5472, %v5471
      %v5568 = vpack.c.b16 %v5474, %v5473
      %v5569 = vpack.c.b16 %v5476, %v5475
      %v5570 = vpack.c.b16 %v5478, %v5477
      %v5571 = vpack.c.b16 %v5480, %v5479
      %v5572 = vpack.c.b16 %v5482, %v5481
      %v5573 = vpack.c.b16 %v5484, %v5483
      %v5574 = vpack.c.b16 %v5486, %v5485
      %v5575 = vpack.c.b16 %v5488, %v5487
      %v5576 = vpack.c.b16 %v5490, %v5489
      %v5577 = vpack.c.b16 %v5492, %v5491
      %v5578 = vpack.c.b16 %v5494, %v5493
      %v5579 = vpack.c.b16 %v5496, %v5495
      %v5580 = vpack.c.b16 %v5498, %v5497
      %v5581 = vpack.c.b16 %v5500, %v5499
      %v5582 = vpack.c.b16 %v5502, %v5501
      %v5583 = vpack.c.b16 %v5504, %v5503
      %v5584 = vpack.c.b16 %v5506, %v5505
      %v5585 = vpack.c.b16 %v5508, %v5507
      %v5586 = vpack.c.b16 %v5510, %v5509
      %v5587 = vpack.c.b16 %v5512, %v5511
      %v5588 = vpack.c.b16 %v5514, %v5513
      %v5589 = vpack.c.b16 %v5516, %v5515
      %v5590 = vpack.c.b16 %v5518, %v5517
      %5663 = vmatpush.bf16.msra.mxu0 %v5526
      %5664 = vmatpush.bf16.msra.mxu0 %v5525
      %5665 = vmatpush.bf16.msra.mxu0 %v5524
      %5666 = vmatpush.bf16.msra.mxu0 %v5523
      %5667 = vmatpush.bf16.msra.mxu0 %v5522
      %5668 = vmatpush.bf16.msra.mxu0 %v5521
      %5669 = vmatpush.bf16.msra.mxu0 %v5520
      %5670 = vmatpush.bf16.msra.mxu0 %v5519
      %5671 = vmatmul.bf16.gmra.mxu0 %v4943
      %v5672 = vpop.f32.mrf.mxu0
      %v5673 = vadd.f32 %v4493, %v5672
      %v5674 = vpop.f32.mrf.mxu0
      %v5675 = vadd.f32 %v4493, %v5674
      %5676 = vmatmul.bf16.gmra.mxu0 %v4952
      %v5677 = vpop.f32.mrf.mxu0
      %v5678 = vadd.f32 %v4493, %v5677
      %v5679 = vpop.f32.mrf.mxu0
      %v5680 = vadd.f32 %v4493, %v5679
      %5681 = vmatmul.bf16.gmra.mxu0 %v4961
      %v5682 = vpop.f32.mrf.mxu0
      %v5683 = vadd.f32 %v4493, %v5682
      %v5684 = vpop.f32.mrf.mxu0
      %v5685 = vadd.f32 %v4493, %v5684
      %5686 = vmatmul.bf16.gmra.mxu0 %v4970
      %v5687 = vpop.f32.mrf.mxu0
      %v5688 = vadd.f32 %v4493, %v5687
      %v5689 = vpop.f32.mrf.mxu0
      %v5690 = vadd.f32 %v4493, %v5689
      %5691 = vmatmul.bf16.gmra.mxu0 %v4979
      %v5692 = vpop.f32.mrf.mxu0
      %v5693 = vadd.f32 %v4493, %v5692
      %v5694 = vpop.f32.mrf.mxu0
      %v5695 = vadd.f32 %v4493, %v5694
      %5696 = vmatmul.bf16.gmra.mxu0 %v4988
      %v5697 = vpop.f32.mrf.mxu0
      %v5698 = vadd.f32 %v4493, %v5697
      %v5699 = vpop.f32.mrf.mxu0
      %v5700 = vadd.f32 %v4493, %v5699
      %5701 = vmatmul.bf16.gmra.mxu0 %v4997
      %v5702 = vpop.f32.mrf.mxu0
      %v5703 = vadd.f32 %v4493, %v5702
      %v5704 = vpop.f32.mrf.mxu0
      %v5705 = vadd.f32 %v4493, %v5704
      %5706 = vmatmul.bf16.gmra.mxu0 %v5006
      %v5707 = vpop.f32.mrf.mxu0
      %v5708 = vadd.f32 %v4493, %v5707
      %v5709 = vpop.f32.mrf.mxu0
      %v5710 = vadd.f32 %v4493, %v5709
      %5711 = vmatmul.bf16.gmra.mxu0 %v5015
      %v5712 = vpop.f32.mrf.mxu0
      %v5713 = vadd.f32 %v4493, %v5712
      %v5714 = vpop.f32.mrf.mxu0
      %v5715 = vadd.f32 %v4493, %v5714
      %5716 = vmatmul.bf16.gmra.mxu0 %v5024
      %v5717 = vpop.f32.mrf.mxu0
      %v5718 = vadd.f32 %v4493, %v5717
      %v5719 = vpop.f32.mrf.mxu0
      %v5720 = vadd.f32 %v4493, %v5719
      %5721 = vmatmul.bf16.gmra.mxu0 %v5033
      %v5722 = vpop.f32.mrf.mxu0
      %v5723 = vadd.f32 %v4493, %v5722
      %v5724 = vpop.f32.mrf.mxu0
      %v5725 = vadd.f32 %v4493, %v5724
      %5726 = vmatmul.bf16.gmra.mxu0 %v5042
      %v5727 = vpop.f32.mrf.mxu0
      %v5728 = vadd.f32 %v4493, %v5727
      %v5729 = vpop.f32.mrf.mxu0
      %v5730 = vadd.f32 %v4493, %v5729
      %5731 = vmatmul.bf16.gmra.mxu0 %v5051
      %v5732 = vpop.f32.mrf.mxu0
      %v5733 = vadd.f32 %v4493, %v5732
      %v5734 = vpop.f32.mrf.mxu0
      %v5735 = vadd.f32 %v4493, %v5734
      %5736 = vmatmul.bf16.gmra.mxu0 %v5060
      %v5737 = vpop.f32.mrf.mxu0
      %v5738 = vadd.f32 %v4493, %v5737
      %v5739 = vpop.f32.mrf.mxu0
      %v5740 = vadd.f32 %v4493, %v5739
      %5741 = vmatmul.bf16.gmra.mxu0 %v5069
      %v5742 = vpop.f32.mrf.mxu0
      %v5743 = vadd.f32 %v4493, %v5742
      %v5744 = vpop.f32.mrf.mxu0
      %v5745 = vadd.f32 %v4493, %v5744
      %5746 = vmatmul.bf16.gmra.mxu0 %v5078
      %v5747 = vpop.f32.mrf.mxu0
      %v5748 = vadd.f32 %v4493, %v5747
      %v5749 = vpop.f32.mrf.mxu0
      %v5750 = vadd.f32 %v4493, %v5749
      %5751 = vdwg.mxu0
      %5752 = vmatpush.bf16.msra.mxu0 %v5534
      %5753 = vmatpush.bf16.msra.mxu0 %v5533
      %5754 = vmatpush.bf16.msra.mxu0 %v5532
      %5755 = vmatpush.bf16.msra.mxu0 %v5531
      %5756 = vmatpush.bf16.msra.mxu0 %v5530
      %5757 = vmatpush.bf16.msra.mxu0 %v5529
      %5758 = vmatpush.bf16.msra.mxu0 %v5528
      %5759 = vmatpush.bf16.msra.mxu0 %v5527
      %5760 = vmatmul.bf16.gmra.mxu0 %v4944
      %v5761 = vpop.f32.mrf.mxu0
      %v5762 = vadd.f32 %v5673, %v5761
      %v5763 = vpop.f32.mrf.mxu0
      %v5764 = vadd.f32 %v5675, %v5763
      %5765 = vmatmul.bf16.gmra.mxu0 %v4953
      %v5766 = vpop.f32.mrf.mxu0
      %v5767 = vadd.f32 %v5678, %v5766
      %v5768 = vpop.f32.mrf.mxu0
      %v5769 = vadd.f32 %v5680, %v5768
      %5770 = vmatmul.bf16.gmra.mxu0 %v4962
      %v5771 = vpop.f32.mrf.mxu0
      %v5772 = vadd.f32 %v5683, %v5771
      %v5773 = vpop.f32.mrf.mxu0
      %v5774 = vadd.f32 %v5685, %v5773
      %5775 = vmatmul.bf16.gmra.mxu0 %v4971
      %v5776 = vpop.f32.mrf.mxu0
      %v5777 = vadd.f32 %v5688, %v5776
      %v5778 = vpop.f32.mrf.mxu0
      %v5779 = vadd.f32 %v5690, %v5778
      %5780 = vmatmul.bf16.gmra.mxu0 %v4980
      %v5781 = vpop.f32.mrf.mxu0
      %v5782 = vadd.f32 %v5693, %v5781
      %v5783 = vpop.f32.mrf.mxu0
      %v5784 = vadd.f32 %v5695, %v5783
      %5785 = vmatmul.bf16.gmra.mxu0 %v4989
      %v5786 = vpop.f32.mrf.mxu0
      %v5787 = vadd.f32 %v5698, %v5786
      %v5788 = vpop.f32.mrf.mxu0
      %v5789 = vadd.f32 %v5700, %v5788
      %5790 = vmatmul.bf16.gmra.mxu0 %v4998
      %v5791 = vpop.f32.mrf.mxu0
      %v5792 = vadd.f32 %v5703, %v5791
      %v5793 = vpop.f32.mrf.mxu0
      %v5794 = vadd.f32 %v5705, %v5793
      %5795 = vmatmul.bf16.gmra.mxu0 %v5007
      %v5796 = vpop.f32.mrf.mxu0
      %v5797 = vadd.f32 %v5708, %v5796
      %v5798 = vpop.f32.mrf.mxu0
      %v5799 = vadd.f32 %v5710, %v5798
      %5800 = vmatmul.bf16.gmra.mxu0 %v5016
      %v5801 = vpop.f32.mrf.mxu0
      %v5802 = vadd.f32 %v5713, %v5801
      %v5803 = vpop.f32.mrf.mxu0
      %v5804 = vadd.f32 %v5715, %v5803
      %5805 = vmatmul.bf16.gmra.mxu0 %v5025
      %v5806 = vpop.f32.mrf.mxu0
      %v5807 = vadd.f32 %v5718, %v5806
      %v5808 = vpop.f32.mrf.mxu0
      %v5809 = vadd.f32 %v5720, %v5808
      %5810 = vmatmul.bf16.gmra.mxu0 %v5034
      %v5811 = vpop.f32.mrf.mxu0
      %v5812 = vadd.f32 %v5723, %v5811
      %v5813 = vpop.f32.mrf.mxu0
      %v5814 = vadd.f32 %v5725, %v5813
      %5815 = vmatmul.bf16.gmra.mxu0 %v5043
      %v5816 = vpop.f32.mrf.mxu0
      %v5817 = vadd.f32 %v5728, %v5816
      %v5818 = vpop.f32.mrf.mxu0
      %v5819 = vadd.f32 %v5730, %v5818
      %5820 = vmatmul.bf16.gmra.mxu0 %v5052
      %v5821 = vpop.f32.mrf.mxu0
      %v5822 = vadd.f32 %v5733, %v5821
      %v5823 = vpop.f32.mrf.mxu0
      %v5824 = vadd.f32 %v5735, %v5823
      %5825 = vmatmul.bf16.gmra.mxu0 %v5061
      %v5826 = vpop.f32.mrf.mxu0
      %v5827 = vadd.f32 %v5738, %v5826
      %v5828 = vpop.f32.mrf.mxu0
      %v5829 = vadd.f32 %v5740, %v5828
      %5830 = vmatmul.bf16.gmra.mxu0 %v5070
      %v5831 = vpop.f32.mrf.mxu0
      %v5832 = vadd.f32 %v5743, %v5831
      %v5833 = vpop.f32.mrf.mxu0
      %v5834 = vadd.f32 %v5745, %v5833
      %5835 = vmatmul.bf16.gmra.mxu0 %v5079
      %v5836 = vpop.f32.mrf.mxu0
      %v5837 = vadd.f32 %v5748, %v5836
      %v5838 = vpop.f32.mrf.mxu0
      %v5839 = vadd.f32 %v5750, %v5838
      %5840 = vdwg.mxu0
      %5841 = vmatpush.bf16.msra.mxu0 %v5542
      %5842 = vmatpush.bf16.msra.mxu0 %v5541
      %5843 = vmatpush.bf16.msra.mxu0 %v5540
      %5844 = vmatpush.bf16.msra.mxu0 %v5539
      %5845 = vmatpush.bf16.msra.mxu0 %v5538
      %5846 = vmatpush.bf16.msra.mxu0 %v5537
      %5847 = vmatpush.bf16.msra.mxu0 %v5536
      %5848 = vmatpush.bf16.msra.mxu0 %v5535
      %5849 = vmatmul.bf16.gmra.mxu0 %v4945
      %v5850 = vpop.f32.mrf.mxu0
      %v5851 = vadd.f32 %v5762, %v5850
      %v5852 = vpop.f32.mrf.mxu0
      %v5853 = vadd.f32 %v5764, %v5852
      %5854 = vmatmul.bf16.gmra.mxu0 %v4954
      %v5855 = vpop.f32.mrf.mxu0
      %v5856 = vadd.f32 %v5767, %v5855
      %v5857 = vpop.f32.mrf.mxu0
      %v5858 = vadd.f32 %v5769, %v5857
      %5859 = vmatmul.bf16.gmra.mxu0 %v4963
      %v5860 = vpop.f32.mrf.mxu0
      %v5861 = vadd.f32 %v5772, %v5860
      %v5862 = vpop.f32.mrf.mxu0
      %v5863 = vadd.f32 %v5774, %v5862
      %5864 = vmatmul.bf16.gmra.mxu0 %v4972
      %v5865 = vpop.f32.mrf.mxu0
      %v5866 = vadd.f32 %v5777, %v5865
      %v5867 = vpop.f32.mrf.mxu0
      %v5868 = vadd.f32 %v5779, %v5867
      %5869 = vmatmul.bf16.gmra.mxu0 %v4981
      %v5870 = vpop.f32.mrf.mxu0
      %v5871 = vadd.f32 %v5782, %v5870
      %v5872 = vpop.f32.mrf.mxu0
      %v5873 = vadd.f32 %v5784, %v5872
      %5874 = vmatmul.bf16.gmra.mxu0 %v4990
      %v5875 = vpop.f32.mrf.mxu0
      %v5876 = vadd.f32 %v5787, %v5875
      %v5877 = vpop.f32.mrf.mxu0
      %v5878 = vadd.f32 %v5789, %v5877
      %5879 = vmatmul.bf16.gmra.mxu0 %v4999
      %v5880 = vpop.f32.mrf.mxu0
      %v5881 = vadd.f32 %v5792, %v5880
      %v5882 = vpop.f32.mrf.mxu0
      %v5883 = vadd.f32 %v5794, %v5882
      %5884 = vmatmul.bf16.gmra.mxu0 %v5008
      %v5885 = vpop.f32.mrf.mxu0
      %v5886 = vadd.f32 %v5797, %v5885
      %v5887 = vpop.f32.mrf.mxu0
      %v5888 = vadd.f32 %v5799, %v5887
      %5889 = vmatmul.bf16.gmra.mxu0 %v5017
      %v5890 = vpop.f32.mrf.mxu0
      %v5891 = vadd.f32 %v5802, %v5890
      %v5892 = vpop.f32.mrf.mxu0
      %v5893 = vadd.f32 %v5804, %v5892
      %5894 = vmatmul.bf16.gmra.mxu0 %v5026
      %v5895 = vpop.f32.mrf.mxu0
      %v5896 = vadd.f32 %v5807, %v5895
      %v5897 = vpop.f32.mrf.mxu0
      %v5898 = vadd.f32 %v5809, %v5897
      %5899 = vmatmul.bf16.gmra.mxu0 %v5035
      %v5900 = vpop.f32.mrf.mxu0
      %v5901 = vadd.f32 %v5812, %v5900
      %v5902 = vpop.f32.mrf.mxu0
      %v5903 = vadd.f32 %v5814, %v5902
      %5904 = vmatmul.bf16.gmra.mxu0 %v5044
      %v5905 = vpop.f32.mrf.mxu0
      %v5906 = vadd.f32 %v5817, %v5905
      %v5907 = vpop.f32.mrf.mxu0
      %v5908 = vadd.f32 %v5819, %v5907
      %5909 = vmatmul.bf16.gmra.mxu0 %v5053
      %v5910 = vpop.f32.mrf.mxu0
      %v5911 = vadd.f32 %v5822, %v5910
      %v5912 = vpop.f32.mrf.mxu0
      %v5913 = vadd.f32 %v5824, %v5912
      %5914 = vmatmul.bf16.gmra.mxu0 %v5062
      %v5915 = vpop.f32.mrf.mxu0
      %v5916 = vadd.f32 %v5827, %v5915
      %v5917 = vpop.f32.mrf.mxu0
      %v5918 = vadd.f32 %v5829, %v5917
      %5919 = vmatmul.bf16.gmra.mxu0 %v5071
      %v5920 = vpop.f32.mrf.mxu0
      %v5921 = vadd.f32 %v5832, %v5920
      %v5922 = vpop.f32.mrf.mxu0
      %v5923 = vadd.f32 %v5834, %v5922
      %5924 = vmatmul.bf16.gmra.mxu0 %v5080
      %v5925 = vpop.f32.mrf.mxu0
      %v5926 = vadd.f32 %v5837, %v5925
      %v5927 = vpop.f32.mrf.mxu0
      %v5928 = vadd.f32 %v5839, %v5927
      %5929 = vdwg.mxu0
      %5930 = vmatpush.bf16.msra.mxu0 %v5550
      %5931 = vmatpush.bf16.msra.mxu0 %v5549
      %5932 = vmatpush.bf16.msra.mxu0 %v5548
      %5933 = vmatpush.bf16.msra.mxu0 %v5547
      %5934 = vmatpush.bf16.msra.mxu0 %v5546
      %5935 = vmatpush.bf16.msra.mxu0 %v5545
      %5936 = vmatpush.bf16.msra.mxu0 %v5544
      %5937 = vmatpush.bf16.msra.mxu0 %v5543
      %5938 = vmatmul.bf16.gmra.mxu0 %v4946
      %v5939 = vpop.f32.mrf.mxu0
      %v5940 = vadd.f32 %v5851, %v5939
      %v5941 = vpop.f32.mrf.mxu0
      %v5942 = vadd.f32 %v5853, %v5941
      %5943 = vmatmul.bf16.gmra.mxu0 %v4955
      %v5944 = vpop.f32.mrf.mxu0
      %v5945 = vadd.f32 %v5856, %v5944
      %v5946 = vpop.f32.mrf.mxu0
      %v5947 = vadd.f32 %v5858, %v5946
      %5948 = vmatmul.bf16.gmra.mxu0 %v4964
      %v5949 = vpop.f32.mrf.mxu0
      %v5950 = vadd.f32 %v5861, %v5949
      %v5951 = vpop.f32.mrf.mxu0
      %v5952 = vadd.f32 %v5863, %v5951
      %5953 = vmatmul.bf16.gmra.mxu0 %v4973
      %v5954 = vpop.f32.mrf.mxu0
      %v5955 = vadd.f32 %v5866, %v5954
      %v5956 = vpop.f32.mrf.mxu0
      %v5957 = vadd.f32 %v5868, %v5956
      %5958 = vmatmul.bf16.gmra.mxu0 %v4982
      %v5959 = vpop.f32.mrf.mxu0
      %v5960 = vadd.f32 %v5871, %v5959
      %v5961 = vpop.f32.mrf.mxu0
      %v5962 = vadd.f32 %v5873, %v5961
      %5963 = vmatmul.bf16.gmra.mxu0 %v4991
      %v5964 = vpop.f32.mrf.mxu0
      %v5965 = vadd.f32 %v5876, %v5964
      %v5966 = vpop.f32.mrf.mxu0
      %v5967 = vadd.f32 %v5878, %v5966
      %5968 = vmatmul.bf16.gmra.mxu0 %v5000
      %v5969 = vpop.f32.mrf.mxu0
      %v5970 = vadd.f32 %v5881, %v5969
      %v5971 = vpop.f32.mrf.mxu0
      %v5972 = vadd.f32 %v5883, %v5971
      %5973 = vmatmul.bf16.gmra.mxu0 %v5009
      %v5974 = vpop.f32.mrf.mxu0
      %v5975 = vadd.f32 %v5886, %v5974
      %v5976 = vpop.f32.mrf.mxu0
      %v5977 = vadd.f32 %v5888, %v5976
      %5978 = vmatmul.bf16.gmra.mxu0 %v5018
      %v5979 = vpop.f32.mrf.mxu0
      %v5980 = vadd.f32 %v5891, %v5979
      %v5981 = vpop.f32.mrf.mxu0
      %v5982 = vadd.f32 %v5893, %v5981
      %5983 = vmatmul.bf16.gmra.mxu0 %v5027
      %v5984 = vpop.f32.mrf.mxu0
      %v5985 = vadd.f32 %v5896, %v5984
      %v5986 = vpop.f32.mrf.mxu0
      %v5987 = vadd.f32 %v5898, %v5986
      %5988 = vmatmul.bf16.gmra.mxu0 %v5036
      %v5989 = vpop.f32.mrf.mxu0
      %v5990 = vadd.f32 %v5901, %v5989
      %v5991 = vpop.f32.mrf.mxu0
      %v5992 = vadd.f32 %v5903, %v5991
      %5993 = vmatmul.bf16.gmra.mxu0 %v5045
      %v5994 = vpop.f32.mrf.mxu0
      %v5995 = vadd.f32 %v5906, %v5994
      %v5996 = vpop.f32.mrf.mxu0
      %v5997 = vadd.f32 %v5908, %v5996
      %5998 = vmatmul.bf16.gmra.mxu0 %v5054
      %v5999 = vpop.f32.mrf.mxu0
      %v6000 = vadd.f32 %v5911, %v5999
      %v6001 = vpop.f32.mrf.mxu0
      %v6002 = vadd.f32 %v5913, %v6001
      %6003 = vmatmul.bf16.gmra.mxu0 %v5063
      %v6004 = vpop.f32.mrf.mxu0
      %v6005 = vadd.f32 %v5916, %v6004
      %v6006 = vpop.f32.mrf.mxu0
      %v6007 = vadd.f32 %v5918, %v6006
      %6008 = vmatmul.bf16.gmra.mxu0 %v5072
      %v6009 = vpop.f32.mrf.mxu0
      %v6010 = vadd.f32 %v5921, %v6009
      %v6011 = vpop.f32.mrf.mxu0
      %v6012 = vadd.f32 %v5923, %v6011
      %6013 = vmatmul.bf16.gmra.mxu0 %v5081
      %v6014 = vpop.f32.mrf.mxu0
      %v6015 = vadd.f32 %v5926, %v6014
      %v6016 = vpop.f32.mrf.mxu0
      %v6017 = vadd.f32 %v5928, %v6016
      %6018 = vdwg.mxu0
      %6019 = vmatpush.bf16.msra.mxu0 %v5558
      %6020 = vmatpush.bf16.msra.mxu0 %v5557
      %6021 = vmatpush.bf16.msra.mxu0 %v5556
      %6022 = vmatpush.bf16.msra.mxu0 %v5555
      %6023 = vmatpush.bf16.msra.mxu0 %v5554
      %6024 = vmatpush.bf16.msra.mxu0 %v5553
      %6025 = vmatpush.bf16.msra.mxu0 %v5552
      %6026 = vmatpush.bf16.msra.mxu0 %v5551
      %6027 = vmatmul.bf16.gmra.mxu0 %v4947
      %v6028 = vpop.f32.mrf.mxu0
      %v6029 = vadd.f32 %v5940, %v6028
      %v6030 = vpop.f32.mrf.mxu0
      %v6031 = vadd.f32 %v5942, %v6030
      %6032 = vmatmul.bf16.gmra.mxu0 %v4956
      %v6033 = vpop.f32.mrf.mxu0
      %v6034 = vadd.f32 %v5945, %v6033
      %v6035 = vpop.f32.mrf.mxu0
      %v6036 = vadd.f32 %v5947, %v6035
      %6037 = vmatmul.bf16.gmra.mxu0 %v4965
      %v6038 = vpop.f32.mrf.mxu0
      %v6039 = vadd.f32 %v5950, %v6038
      %v6040 = vpop.f32.mrf.mxu0
      %v6041 = vadd.f32 %v5952, %v6040
      %6042 = vmatmul.bf16.gmra.mxu0 %v4974
      %v6043 = vpop.f32.mrf.mxu0
      %v6044 = vadd.f32 %v5955, %v6043
      %v6045 = vpop.f32.mrf.mxu0
      %v6046 = vadd.f32 %v5957, %v6045
      %6047 = vmatmul.bf16.gmra.mxu0 %v4983
      %v6048 = vpop.f32.mrf.mxu0
      %v6049 = vadd.f32 %v5960, %v6048
      %v6050 = vpop.f32.mrf.mxu0
      %v6051 = vadd.f32 %v5962, %v6050
      %6052 = vmatmul.bf16.gmra.mxu0 %v4992
      %v6053 = vpop.f32.mrf.mxu0
      %v6054 = vadd.f32 %v5965, %v6053
      %v6055 = vpop.f32.mrf.mxu0
      %v6056 = vadd.f32 %v5967, %v6055
      %6057 = vmatmul.bf16.gmra.mxu0 %v5001
      %v6058 = vpop.f32.mrf.mxu0
      %v6059 = vadd.f32 %v5970, %v6058
      %v6060 = vpop.f32.mrf.mxu0
      %v6061 = vadd.f32 %v5972, %v6060
      %6062 = vmatmul.bf16.gmra.mxu0 %v5010
      %v6063 = vpop.f32.mrf.mxu0
      %v6064 = vadd.f32 %v5975, %v6063
      %v6065 = vpop.f32.mrf.mxu0
      %v6066 = vadd.f32 %v5977, %v6065
      %6067 = vmatmul.bf16.gmra.mxu0 %v5019
      %v6068 = vpop.f32.mrf.mxu0
      %v6069 = vadd.f32 %v5980, %v6068
      %v6070 = vpop.f32.mrf.mxu0
      %v6071 = vadd.f32 %v5982, %v6070
      %6072 = vmatmul.bf16.gmra.mxu0 %v5028
      %v6073 = vpop.f32.mrf.mxu0
      %v6074 = vadd.f32 %v5985, %v6073
      %v6075 = vpop.f32.mrf.mxu0
      %v6076 = vadd.f32 %v5987, %v6075
      %6077 = vmatmul.bf16.gmra.mxu0 %v5037
      %v6078 = vpop.f32.mrf.mxu0
      %v6079 = vadd.f32 %v5990, %v6078
      %v6080 = vpop.f32.mrf.mxu0
      %v6081 = vadd.f32 %v5992, %v6080
      %6082 = vmatmul.bf16.gmra.mxu0 %v5046
      %v6083 = vpop.f32.mrf.mxu0
      %v6084 = vadd.f32 %v5995, %v6083
      %v6085 = vpop.f32.mrf.mxu0
      %v6086 = vadd.f32 %v5997, %v6085
      %6087 = vmatmul.bf16.gmra.mxu0 %v5055
      %v6088 = vpop.f32.mrf.mxu0
      %v6089 = vadd.f32 %v6000, %v6088
      %v6090 = vpop.f32.mrf.mxu0
      %v6091 = vadd.f32 %v6002, %v6090
      %6092 = vmatmul.bf16.gmra.mxu0 %v5064
      %v6093 = vpop.f32.mrf.mxu0
      %v6094 = vadd.f32 %v6005, %v6093
      %v6095 = vpop.f32.mrf.mxu0
      %v6096 = vadd.f32 %v6007, %v6095
      %6097 = vmatmul.bf16.gmra.mxu0 %v5073
      %v6098 = vpop.f32.mrf.mxu0
      %v6099 = vadd.f32 %v6010, %v6098
      %v6100 = vpop.f32.mrf.mxu0
      %v6101 = vadd.f32 %v6012, %v6100
      %6102 = vmatmul.bf16.gmra.mxu0 %v5082
      %v6103 = vpop.f32.mrf.mxu0
      %v6104 = vadd.f32 %v6015, %v6103
      %v6105 = vpop.f32.mrf.mxu0
      %v6106 = vadd.f32 %v6017, %v6105
      %6107 = vdwg.mxu0
      %6108 = vmatpush.bf16.msra.mxu0 %v5566
      %6109 = vmatpush.bf16.msra.mxu0 %v5565
      %6110 = vmatpush.bf16.msra.mxu0 %v5564
      %6111 = vmatpush.bf16.msra.mxu0 %v5563
      %6112 = vmatpush.bf16.msra.mxu0 %v5562
      %6113 = vmatpush.bf16.msra.mxu0 %v5561
      %6114 = vmatpush.bf16.msra.mxu0 %v5560
      %6115 = vmatpush.bf16.msra.mxu0 %v5559
      %6116 = vmatmul.bf16.gmra.mxu0 %v4948
      %v6117 = vpop.f32.mrf.mxu0
      %v6118 = vadd.f32 %v6029, %v6117
      %v6119 = vpop.f32.mrf.mxu0
      %v6120 = vadd.f32 %v6031, %v6119
      %6121 = vmatmul.bf16.gmra.mxu0 %v4957
      %v6122 = vpop.f32.mrf.mxu0
      %v6123 = vadd.f32 %v6034, %v6122
      %v6124 = vpop.f32.mrf.mxu0
      %v6125 = vadd.f32 %v6036, %v6124
      %6126 = vmatmul.bf16.gmra.mxu0 %v4966
      %v6127 = vpop.f32.mrf.mxu0
      %v6128 = vadd.f32 %v6039, %v6127
      %v6129 = vpop.f32.mrf.mxu0
      %v6130 = vadd.f32 %v6041, %v6129
      %6131 = vmatmul.bf16.gmra.mxu0 %v4975
      %v6132 = vpop.f32.mrf.mxu0
      %v6133 = vadd.f32 %v6044, %v6132
      %v6134 = vpop.f32.mrf.mxu0
      %v6135 = vadd.f32 %v6046, %v6134
      %6136 = vmatmul.bf16.gmra.mxu0 %v4984
      %v6137 = vpop.f32.mrf.mxu0
      %v6138 = vadd.f32 %v6049, %v6137
      %v6139 = vpop.f32.mrf.mxu0
      %v6140 = vadd.f32 %v6051, %v6139
      %6141 = vmatmul.bf16.gmra.mxu0 %v4993
      %v6142 = vpop.f32.mrf.mxu0
      %v6143 = vadd.f32 %v6054, %v6142
      %v6144 = vpop.f32.mrf.mxu0
      %v6145 = vadd.f32 %v6056, %v6144
      %6146 = vmatmul.bf16.gmra.mxu0 %v5002
      %v6147 = vpop.f32.mrf.mxu0
      %v6148 = vadd.f32 %v6059, %v6147
      %v6149 = vpop.f32.mrf.mxu0
      %v6150 = vadd.f32 %v6061, %v6149
      %6151 = vmatmul.bf16.gmra.mxu0 %v5011
      %v6152 = vpop.f32.mrf.mxu0
      %v6153 = vadd.f32 %v6064, %v6152
      %v6154 = vpop.f32.mrf.mxu0
      %v6155 = vadd.f32 %v6066, %v6154
      %6156 = vmatmul.bf16.gmra.mxu0 %v5020
      %v6157 = vpop.f32.mrf.mxu0
      %v6158 = vadd.f32 %v6069, %v6157
      %v6159 = vpop.f32.mrf.mxu0
      %v6160 = vadd.f32 %v6071, %v6159
      %6161 = vmatmul.bf16.gmra.mxu0 %v5029
      %v6162 = vpop.f32.mrf.mxu0
      %v6163 = vadd.f32 %v6074, %v6162
      %v6164 = vpop.f32.mrf.mxu0
      %v6165 = vadd.f32 %v6076, %v6164
      %6166 = vmatmul.bf16.gmra.mxu0 %v5038
      %v6167 = vpop.f32.mrf.mxu0
      %v6168 = vadd.f32 %v6079, %v6167
      %v6169 = vpop.f32.mrf.mxu0
      %v6170 = vadd.f32 %v6081, %v6169
      %6171 = vmatmul.bf16.gmra.mxu0 %v5047
      %v6172 = vpop.f32.mrf.mxu0
      %v6173 = vadd.f32 %v6084, %v6172
      %v6174 = vpop.f32.mrf.mxu0
      %v6175 = vadd.f32 %v6086, %v6174
      %6176 = vmatmul.bf16.gmra.mxu0 %v5056
      %v6177 = vpop.f32.mrf.mxu0
      %v6178 = vadd.f32 %v6089, %v6177
      %v6179 = vpop.f32.mrf.mxu0
      %v6180 = vadd.f32 %v6091, %v6179
      %6181 = vmatmul.bf16.gmra.mxu0 %v5065
      %v6182 = vpop.f32.mrf.mxu0
      %v6183 = vadd.f32 %v6094, %v6182
      %v6184 = vpop.f32.mrf.mxu0
      %v6185 = vadd.f32 %v6096, %v6184
      %6186 = vmatmul.bf16.gmra.mxu0 %v5074
      %v6187 = vpop.f32.mrf.mxu0
      %v6188 = vadd.f32 %v6099, %v6187
      %v6189 = vpop.f32.mrf.mxu0
      %v6190 = vadd.f32 %v6101, %v6189
      %6191 = vmatmul.bf16.gmra.mxu0 %v5083
      %v6192 = vpop.f32.mrf.mxu0
      %v6193 = vadd.f32 %v6104, %v6192
      %v6194 = vpop.f32.mrf.mxu0
      %v6195 = vadd.f32 %v6106, %v6194
      %6196 = vdwg.mxu0
      %6197 = vmatpush.bf16.msra.mxu0 %v5574
      %6198 = vmatpush.bf16.msra.mxu0 %v5573
      %6199 = vmatpush.bf16.msra.mxu0 %v5572
      %6200 = vmatpush.bf16.msra.mxu0 %v5571
      %6201 = vmatpush.bf16.msra.mxu0 %v5570
      %6202 = vmatpush.bf16.msra.mxu0 %v5569
      %6203 = vmatpush.bf16.msra.mxu0 %v5568
      %6204 = vmatpush.bf16.msra.mxu0 %v5567
      %6205 = vmatmul.bf16.gmra.mxu0 %v4949
      %v6206 = vpop.f32.mrf.mxu0
      %v6207 = vadd.f32 %v6118, %v6206
      %v6208 = vpop.f32.mrf.mxu0
      %v6209 = vadd.f32 %v6120, %v6208
      %6210 = vmatmul.bf16.gmra.mxu0 %v4958
      %v6211 = vpop.f32.mrf.mxu0
      %v6212 = vadd.f32 %v6123, %v6211
      %v6213 = vpop.f32.mrf.mxu0
      %v6214 = vadd.f32 %v6125, %v6213
      %6215 = vmatmul.bf16.gmra.mxu0 %v4967
      %v6216 = vpop.f32.mrf.mxu0
      %v6217 = vadd.f32 %v6128, %v6216
      %v6218 = vpop.f32.mrf.mxu0
      %v6219 = vadd.f32 %v6130, %v6218
      %6220 = vmatmul.bf16.gmra.mxu0 %v4976
      %v6221 = vpop.f32.mrf.mxu0
      %v6222 = vadd.f32 %v6133, %v6221
      %v6223 = vpop.f32.mrf.mxu0
      %v6224 = vadd.f32 %v6135, %v6223
      %6225 = vmatmul.bf16.gmra.mxu0 %v4985
      %v6226 = vpop.f32.mrf.mxu0
      %v6227 = vadd.f32 %v6138, %v6226
      %v6228 = vpop.f32.mrf.mxu0
      %v6229 = vadd.f32 %v6140, %v6228
      %6230 = vmatmul.bf16.gmra.mxu0 %v4994
      %v6231 = vpop.f32.mrf.mxu0
      %v6232 = vadd.f32 %v6143, %v6231
      %v6233 = vpop.f32.mrf.mxu0
      %v6234 = vadd.f32 %v6145, %v6233
      %6235 = vmatmul.bf16.gmra.mxu0 %v5003
      %v6236 = vpop.f32.mrf.mxu0
      %v6237 = vadd.f32 %v6148, %v6236
      %v6238 = vpop.f32.mrf.mxu0
      %v6239 = vadd.f32 %v6150, %v6238
      %6240 = vmatmul.bf16.gmra.mxu0 %v5012
      %v6241 = vpop.f32.mrf.mxu0
      %v6242 = vadd.f32 %v6153, %v6241
      %v6243 = vpop.f32.mrf.mxu0
      %v6244 = vadd.f32 %v6155, %v6243
      %6245 = vmatmul.bf16.gmra.mxu0 %v5021
      %v6246 = vpop.f32.mrf.mxu0
      %v6247 = vadd.f32 %v6158, %v6246
      %v6248 = vpop.f32.mrf.mxu0
      %v6249 = vadd.f32 %v6160, %v6248
      %6250 = vmatmul.bf16.gmra.mxu0 %v5030
      %v6251 = vpop.f32.mrf.mxu0
      %v6252 = vadd.f32 %v6163, %v6251
      %v6253 = vpop.f32.mrf.mxu0
      %v6254 = vadd.f32 %v6165, %v6253
      %6255 = vmatmul.bf16.gmra.mxu0 %v5039
      %v6256 = vpop.f32.mrf.mxu0
      %v6257 = vadd.f32 %v6168, %v6256
      %v6258 = vpop.f32.mrf.mxu0
      %v6259 = vadd.f32 %v6170, %v6258
      %6260 = vmatmul.bf16.gmra.mxu0 %v5048
      %v6261 = vpop.f32.mrf.mxu0
      %v6262 = vadd.f32 %v6173, %v6261
      %v6263 = vpop.f32.mrf.mxu0
      %v6264 = vadd.f32 %v6175, %v6263
      %6265 = vmatmul.bf16.gmra.mxu0 %v5057
      %v6266 = vpop.f32.mrf.mxu0
      %v6267 = vadd.f32 %v6178, %v6266
      %v6268 = vpop.f32.mrf.mxu0
      %v6269 = vadd.f32 %v6180, %v6268
      %6270 = vmatmul.bf16.gmra.mxu0 %v5066
      %v6271 = vpop.f32.mrf.mxu0
      %v6272 = vadd.f32 %v6183, %v6271
      %v6273 = vpop.f32.mrf.mxu0
      %v6274 = vadd.f32 %v6185, %v6273
      %6275 = vmatmul.bf16.gmra.mxu0 %v5075
      %v6276 = vpop.f32.mrf.mxu0
      %v6277 = vadd.f32 %v6188, %v6276
      %v6278 = vpop.f32.mrf.mxu0
      %v6279 = vadd.f32 %v6190, %v6278
      %6280 = vmatmul.bf16.gmra.mxu0 %v5084
      %v6281 = vpop.f32.mrf.mxu0
      %v6282 = vadd.f32 %v6193, %v6281
      %v6283 = vpop.f32.mrf.mxu0
      %v6284 = vadd.f32 %v6195, %v6283
      %6285 = vdwg.mxu0
      %6286 = vmatpush.bf16.msra.mxu0 %v5582
      %6287 = vmatpush.bf16.msra.mxu0 %v5581
      %6288 = vmatpush.bf16.msra.mxu0 %v5580
      %6289 = vmatpush.bf16.msra.mxu0 %v5579
      %6290 = vmatpush.bf16.msra.mxu0 %v5578
      %6291 = vmatpush.bf16.msra.mxu0 %v5577
      %6292 = vmatpush.bf16.msra.mxu0 %v5576
      %6293 = vmatpush.bf16.msra.mxu0 %v5575
      %6294 = vmatmul.bf16.gmra.mxu0 %v4950
      %v6295 = vpop.f32.mrf.mxu0
      %v6296 = vadd.f32 %v6207, %v6295
      %v6297 = vpop.f32.mrf.mxu0
      %v6298 = vadd.f32 %v6209, %v6297
      %6299 = vmatmul.bf16.gmra.mxu0 %v4959
      %v6300 = vpop.f32.mrf.mxu0
      %v6301 = vadd.f32 %v6212, %v6300
      %v6302 = vpop.f32.mrf.mxu0
      %v6303 = vadd.f32 %v6214, %v6302
      %6304 = vmatmul.bf16.gmra.mxu0 %v4968
      %v6305 = vpop.f32.mrf.mxu0
      %v6306 = vadd.f32 %v6217, %v6305
      %v6307 = vpop.f32.mrf.mxu0
      %v6308 = vadd.f32 %v6219, %v6307
      %6309 = vmatmul.bf16.gmra.mxu0 %v4977
      %v6310 = vpop.f32.mrf.mxu0
      %v6311 = vadd.f32 %v6222, %v6310
      %v6312 = vpop.f32.mrf.mxu0
      %v6313 = vadd.f32 %v6224, %v6312
      %6314 = vmatmul.bf16.gmra.mxu0 %v4986
      %v6315 = vpop.f32.mrf.mxu0
      %v6316 = vadd.f32 %v6227, %v6315
      %v6317 = vpop.f32.mrf.mxu0
      %v6318 = vadd.f32 %v6229, %v6317
      %6319 = vmatmul.bf16.gmra.mxu0 %v4995
      %v6320 = vpop.f32.mrf.mxu0
      %v6321 = vadd.f32 %v6232, %v6320
      %v6322 = vpop.f32.mrf.mxu0
      %v6323 = vadd.f32 %v6234, %v6322
      %6324 = vmatmul.bf16.gmra.mxu0 %v5004
      %v6325 = vpop.f32.mrf.mxu0
      %v6326 = vadd.f32 %v6237, %v6325
      %v6327 = vpop.f32.mrf.mxu0
      %v6328 = vadd.f32 %v6239, %v6327
      %6329 = vmatmul.bf16.gmra.mxu0 %v5013
      %v6330 = vpop.f32.mrf.mxu0
      %v6331 = vadd.f32 %v6242, %v6330
      %v6332 = vpop.f32.mrf.mxu0
      %v6333 = vadd.f32 %v6244, %v6332
      %6334 = vmatmul.bf16.gmra.mxu0 %v5022
      %v6335 = vpop.f32.mrf.mxu0
      %v6336 = vadd.f32 %v6247, %v6335
      %v6337 = vpop.f32.mrf.mxu0
      %v6338 = vadd.f32 %v6249, %v6337
      %6339 = vmatmul.bf16.gmra.mxu0 %v5031
      %v6340 = vpop.f32.mrf.mxu0
      %v6341 = vadd.f32 %v6252, %v6340
      %v6342 = vpop.f32.mrf.mxu0
      %v6343 = vadd.f32 %v6254, %v6342
      %6344 = vmatmul.bf16.gmra.mxu0 %v5040
      %v6345 = vpop.f32.mrf.mxu0
      %v6346 = vadd.f32 %v6257, %v6345
      %v6347 = vpop.f32.mrf.mxu0
      %v6348 = vadd.f32 %v6259, %v6347
      %6349 = vmatmul.bf16.gmra.mxu0 %v5049
      %v6350 = vpop.f32.mrf.mxu0
      %v6351 = vadd.f32 %v6262, %v6350
      %v6352 = vpop.f32.mrf.mxu0
      %v6353 = vadd.f32 %v6264, %v6352
      %6354 = vmatmul.bf16.gmra.mxu0 %v5058
      %v6355 = vpop.f32.mrf.mxu0
      %v6356 = vadd.f32 %v6267, %v6355
      %v6357 = vpop.f32.mrf.mxu0
      %v6358 = vadd.f32 %v6269, %v6357
      %6359 = vmatmul.bf16.gmra.mxu0 %v5067
      %v6360 = vpop.f32.mrf.mxu0
      %v6361 = vadd.f32 %v6272, %v6360
      %v6362 = vpop.f32.mrf.mxu0
      %v6363 = vadd.f32 %v6274, %v6362
      %6364 = vmatmul.bf16.gmra.mxu0 %v5076
      %v6365 = vpop.f32.mrf.mxu0
      %v6366 = vadd.f32 %v6277, %v6365
      %v6367 = vpop.f32.mrf.mxu0
      %v6368 = vadd.f32 %v6279, %v6367
      %6369 = vmatmul.bf16.gmra.mxu0 %v5085
      %v6370 = vpop.f32.mrf.mxu0
      %v6371 = vadd.f32 %v6282, %v6370
      %v6372 = vpop.f32.mrf.mxu0
      %v6373 = vadd.f32 %v6284, %v6372
      %6374 = vdwg.mxu0
      %6375 = vmatpush.bf16.msra.mxu0 %v5590
      %6376 = vmatpush.bf16.msra.mxu0 %v5589
      %6377 = vmatpush.bf16.msra.mxu0 %v5588
      %6378 = vmatpush.bf16.msra.mxu0 %v5587
      %6379 = vmatpush.bf16.msra.mxu0 %v5586
      %6380 = vmatpush.bf16.msra.mxu0 %v5585
      %6381 = vmatpush.bf16.msra.mxu0 %v5584
      %6382 = vmatpush.bf16.msra.mxu0 %v5583
      %6383 = vmatmul.bf16.gmra.mxu0 %v4951
      %v6384 = vpop.f32.mrf.mxu0
      %v6385 = vadd.f32 %v6296, %v6384
      %v6386 = vpop.f32.mrf.mxu0
      %v6387 = vadd.f32 %v6298, %v6386
      %6388 = vmatmul.bf16.gmra.mxu0 %v4960
      %v6389 = vpop.f32.mrf.mxu0
      %v6390 = vadd.f32 %v6301, %v6389
      %v6391 = vpop.f32.mrf.mxu0
      %v6392 = vadd.f32 %v6303, %v6391
      %6393 = vmatmul.bf16.gmra.mxu0 %v4969
      %v6394 = vpop.f32.mrf.mxu0
      %v6395 = vadd.f32 %v6306, %v6394
      %v6396 = vpop.f32.mrf.mxu0
      %v6397 = vadd.f32 %v6308, %v6396
      %6398 = vmatmul.bf16.gmra.mxu0 %v4978
      %v6399 = vpop.f32.mrf.mxu0
      %v6400 = vadd.f32 %v6311, %v6399
      %v6401 = vpop.f32.mrf.mxu0
      %v6402 = vadd.f32 %v6313, %v6401
      %6403 = vmatmul.bf16.gmra.mxu0 %v4987
      %v6404 = vpop.f32.mrf.mxu0
      %v6405 = vadd.f32 %v6316, %v6404
      %v6406 = vpop.f32.mrf.mxu0
      %v6407 = vadd.f32 %v6318, %v6406
      %6408 = vmatmul.bf16.gmra.mxu0 %v4996
      %v6409 = vpop.f32.mrf.mxu0
      %v6410 = vadd.f32 %v6321, %v6409
      %v6411 = vpop.f32.mrf.mxu0
      %v6412 = vadd.f32 %v6323, %v6411
      %6413 = vmatmul.bf16.gmra.mxu0 %v5005
      %v6414 = vpop.f32.mrf.mxu0
      %v6415 = vadd.f32 %v6326, %v6414
      %v6416 = vpop.f32.mrf.mxu0
      %v6417 = vadd.f32 %v6328, %v6416
      %6418 = vmatmul.bf16.gmra.mxu0 %v5014
      %v6419 = vpop.f32.mrf.mxu0
      %v6420 = vadd.f32 %v6331, %v6419
      %v6421 = vpop.f32.mrf.mxu0
      %v6422 = vadd.f32 %v6333, %v6421
      %6423 = vmatmul.bf16.gmra.mxu0 %v5023
      %v6424 = vpop.f32.mrf.mxu0
      %v6425 = vadd.f32 %v6336, %v6424
      %v6426 = vpop.f32.mrf.mxu0
      %v6427 = vadd.f32 %v6338, %v6426
      %6428 = vmatmul.bf16.gmra.mxu0 %v5032
      %v6429 = vpop.f32.mrf.mxu0
      %v6430 = vadd.f32 %v6341, %v6429
      %v6431 = vpop.f32.mrf.mxu0
      %v6432 = vadd.f32 %v6343, %v6431
      %6433 = vmatmul.bf16.gmra.mxu0 %v5041
      %v6434 = vpop.f32.mrf.mxu0
      %v6435 = vadd.f32 %v6346, %v6434
      %v6436 = vpop.f32.mrf.mxu0
      %v6437 = vadd.f32 %v6348, %v6436
      %6438 = vmatmul.bf16.gmra.mxu0 %v5050
      %v6439 = vpop.f32.mrf.mxu0
      %v6440 = vadd.f32 %v6351, %v6439
      %v6441 = vpop.f32.mrf.mxu0
      %v6442 = vadd.f32 %v6353, %v6441
      %6443 = vmatmul.bf16.gmra.mxu0 %v5059
      %v6444 = vpop.f32.mrf.mxu0
      %v6445 = vadd.f32 %v6356, %v6444
      %v6446 = vpop.f32.mrf.mxu0
      %v6447 = vadd.f32 %v6358, %v6446
      %6448 = vmatmul.bf16.gmra.mxu0 %v5068
      %v6449 = vpop.f32.mrf.mxu0
      %v6450 = vadd.f32 %v6361, %v6449
      %v6451 = vpop.f32.mrf.mxu0
      %v6452 = vadd.f32 %v6363, %v6451
      %6453 = vmatmul.bf16.gmra.mxu0 %v5077
      %v6454 = vpop.f32.mrf.mxu0
      %v6455 = vadd.f32 %v6366, %v6454
      %v6456 = vpop.f32.mrf.mxu0
      %v6457 = vadd.f32 %v6368, %v6456
      %6458 = vmatmul.bf16.gmra.mxu0 %v5086
      %v6459 = vpop.f32.mrf.mxu0
      %v6460 = vadd.f32 %v6371, %v6459
      %v6461 = vpop.f32.mrf.mxu0
      %v6462 = vadd.f32 %v6373, %v6461
      %6463 = vdwg.mxu0
      %v6464 = vmax.f32 %v6385, 0.0
      %v6465 = vmax.f32 %v6387, 0.0
      %v6466 = vmax.f32 %v6390, 0.0
      %v6467 = vmax.f32 %v6392, 0.0
      %v6468 = vmax.f32 %v6395, 0.0
      %v6469 = vmax.f32 %v6397, 0.0
      %v6470 = vmax.f32 %v6400, 0.0
      %v6471 = vmax.f32 %v6402, 0.0
      %v6472 = vmax.f32 %v6405, 0.0
      %v6473 = vmax.f32 %v6407, 0.0
      %v6474 = vmax.f32 %v6410, 0.0
      %v6475 = vmax.f32 %v6412, 0.0
      %v6476 = vmax.f32 %v6415, 0.0
      %v6477 = vmax.f32 %v6417, 0.0
      %v6478 = vmax.f32 %v6420, 0.0
      %v6479 = vmax.f32 %v6422, 0.0
      %v6480 = vmax.f32 %v6425, 0.0
      %v6481 = vmax.f32 %v6427, 0.0
      %v6482 = vmax.f32 %v6430, 0.0
      %v6483 = vmax.f32 %v6432, 0.0
      %v6484 = vmax.f32 %v6435, 0.0
      %v6485 = vmax.f32 %v6437, 0.0
      %v6486 = vmax.f32 %v6440, 0.0
      %v6487 = vmax.f32 %v6442, 0.0
      %v6488 = vmax.f32 %v6445, 0.0
      %v6489 = vmax.f32 %v6447, 0.0
      %v6490 = vmax.f32 %v6450, 0.0
      %v6491 = vmax.f32 %v6452, 0.0
      %v6492 = vmax.f32 %v6455, 0.0
      %v6493 = vmax.f32 %v6457, 0.0
      %v6494 = vmax.f32 %v6460, 0.0
      %v6495 = vmax.f32 %v6462, 0.0
      %v6496 = vpack.c.bf16 %v6464, %v6464
      %v6497 = vpack.c.bf16 %v6465, %v6465
      %v6498 = vpack.c.bf16 %v6466, %v6466
      %v6499 = vpack.c.bf16 %v6467, %v6467
      %v6500 = vpack.c.bf16 %v6468, %v6468
      %v6501 = vpack.c.bf16 %v6469, %v6469
      %v6502 = vpack.c.bf16 %v6470, %v6470
      %v6503 = vpack.c.bf16 %v6471, %v6471
      %v6504 = vpack.c.bf16 %v6472, %v6472
      %v6505 = vpack.c.bf16 %v6473, %v6473
      %v6506 = vpack.c.bf16 %v6474, %v6474
      %v6507 = vpack.c.bf16 %v6475, %v6475
      %v6508 = vpack.c.bf16 %v6476, %v6476
      %v6509 = vpack.c.bf16 %v6477, %v6477
      %v6510 = vpack.c.bf16 %v6478, %v6478
      %v6511 = vpack.c.bf16 %v6479, %v6479
      %v6512 = vpack.c.bf16 %v6480, %v6480
      %v6513 = vpack.c.bf16 %v6481, %v6481
      %v6514 = vpack.c.bf16 %v6482, %v6482
      %v6515 = vpack.c.bf16 %v6483, %v6483
      %v6516 = vpack.c.bf16 %v6484, %v6484
      %v6517 = vpack.c.bf16 %v6485, %v6485
      %v6518 = vpack.c.bf16 %v6486, %v6486
      %v6519 = vpack.c.bf16 %v6487, %v6487
      %v6520 = vpack.c.bf16 %v6488, %v6488
      %v6521 = vpack.c.bf16 %v6489, %v6489
      %v6522 = vpack.c.bf16 %v6490, %v6490
      %v6523 = vpack.c.bf16 %v6491, %v6491
      %v6524 = vpack.c.bf16 %v6492, %v6492
      %v6525 = vpack.c.bf16 %v6493, %v6493
      %v6526 = vpack.c.bf16 %v6494, %v6494
      %v6527 = vpack.c.bf16 %v6495, %v6495
      %v6529 = vshrl.u32 %v6496, 16
      %v6531 = vrot.slane %v6529, 7
      %v6532 = vshll.u32 %v6496, 16
      %v6534 = vor.u32 %v6531, %v6532
      %v6535 = vrot.slane %v6531, 4
      %v6537 = vshrl.u32 %v6497, 16
      %v6539 = vrot.slane %v6537, 7
      %v6540 = vshll.u32 %v6497, 16
      %v6542 = vor.u32 %v6539, %v6540
      %v6543 = vrot.slane %v6539, 4
      %v6545 = vshrl.u32 %v6498, 16
      %v6547 = vrot.slane %v6545, 7
      %v6548 = vshll.u32 %v6498, 16
      %v6550 = vor.u32 %v6547, %v6548
      %v6551 = vrot.slane %v6547, 4
      %v6553 = vshrl.u32 %v6499, 16
      %v6555 = vrot.slane %v6553, 7
      %v6556 = vshll.u32 %v6499, 16
      %v6558 = vor.u32 %v6555, %v6556
      %v6559 = vrot.slane %v6555, 4
      %v6561 = vshrl.u32 %v6500, 16
      %v6563 = vrot.slane %v6561, 7
      %v6564 = vshll.u32 %v6500, 16
      %v6566 = vor.u32 %v6563, %v6564
      %v6567 = vrot.slane %v6563, 4
      %v6569 = vshrl.u32 %v6501, 16
      %v6571 = vrot.slane %v6569, 7
      %v6572 = vshll.u32 %v6501, 16
      %v6574 = vor.u32 %v6571, %v6572
      %v6575 = vrot.slane %v6571, 4
      %v6577 = vshrl.u32 %v6502, 16
      %v6579 = vrot.slane %v6577, 7
      %v6580 = vshll.u32 %v6502, 16
      %v6582 = vor.u32 %v6579, %v6580
      %v6583 = vrot.slane %v6579, 4
      %v6585 = vshrl.u32 %v6503, 16
      %v6587 = vrot.slane %v6585, 7
      %v6588 = vshll.u32 %v6503, 16
      %v6590 = vor.u32 %v6587, %v6588
      %v6591 = vrot.slane %v6587, 4
      %v6593 = vshrl.u32 %v6504, 16
      %v6595 = vrot.slane %v6593, 7
      %v6596 = vshll.u32 %v6504, 16
      %v6598 = vor.u32 %v6595, %v6596
      %v6599 = vrot.slane %v6595, 4
      %v6601 = vshrl.u32 %v6505, 16
      %v6603 = vrot.slane %v6601, 7
      %v6604 = vshll.u32 %v6505, 16
      %v6606 = vor.u32 %v6603, %v6604
      %v6607 = vrot.slane %v6603, 4
      %v6609 = vshrl.u32 %v6506, 16
      %v6611 = vrot.slane %v6609, 7
      %v6612 = vshll.u32 %v6506, 16
      %v6614 = vor.u32 %v6611, %v6612
      %v6615 = vrot.slane %v6611, 4
      %v6617 = vshrl.u32 %v6507, 16
      %v6619 = vrot.slane %v6617, 7
      %v6620 = vshll.u32 %v6507, 16
      %v6622 = vor.u32 %v6619, %v6620
      %v6623 = vrot.slane %v6619, 4
      %v6625 = vshrl.u32 %v6508, 16
      %v6627 = vrot.slane %v6625, 7
      %v6628 = vshll.u32 %v6508, 16
      %v6630 = vor.u32 %v6627, %v6628
      %v6631 = vrot.slane %v6627, 4
      %v6633 = vshrl.u32 %v6509, 16
      %v6635 = vrot.slane %v6633, 7
      %v6636 = vshll.u32 %v6509, 16
      %v6638 = vor.u32 %v6635, %v6636
      %v6639 = vrot.slane %v6635, 4
      %v6641 = vshrl.u32 %v6510, 16
      %v6643 = vrot.slane %v6641, 7
      %v6644 = vshll.u32 %v6510, 16
      %v6646 = vor.u32 %v6643, %v6644
      %v6647 = vrot.slane %v6643, 4
      %v6649 = vshrl.u32 %v6511, 16
      %v6651 = vrot.slane %v6649, 7
      %v6652 = vshll.u32 %v6511, 16
      %v6654 = vor.u32 %v6651, %v6652
      %v6655 = vrot.slane %v6651, 4
      %v6657 = vshrl.u32 %v6512, 16
      %v6659 = vrot.slane %v6657, 7
      %v6660 = vshll.u32 %v6512, 16
      %v6662 = vor.u32 %v6659, %v6660
      %v6663 = vrot.slane %v6659, 4
      %v6665 = vshrl.u32 %v6513, 16
      %v6667 = vrot.slane %v6665, 7
      %v6668 = vshll.u32 %v6513, 16
      %v6670 = vor.u32 %v6667, %v6668
      %v6671 = vrot.slane %v6667, 4
      %v6673 = vshrl.u32 %v6514, 16
      %v6675 = vrot.slane %v6673, 7
      %v6676 = vshll.u32 %v6514, 16
      %v6678 = vor.u32 %v6675, %v6676
      %v6679 = vrot.slane %v6675, 4
      %v6681 = vshrl.u32 %v6515, 16
      %v6683 = vrot.slane %v6681, 7
      %v6684 = vshll.u32 %v6515, 16
      %v6686 = vor.u32 %v6683, %v6684
      %v6687 = vrot.slane %v6683, 4
      %v6689 = vshrl.u32 %v6516, 16
      %v6691 = vrot.slane %v6689, 7
      %v6692 = vshll.u32 %v6516, 16
      %v6694 = vor.u32 %v6691, %v6692
      %v6695 = vrot.slane %v6691, 4
      %v6697 = vshrl.u32 %v6517, 16
      %v6699 = vrot.slane %v6697, 7
      %v6700 = vshll.u32 %v6517, 16
      %v6702 = vor.u32 %v6699, %v6700
      %v6703 = vrot.slane %v6699, 4
      %v6705 = vshrl.u32 %v6518, 16
      %v6707 = vrot.slane %v6705, 7
      %v6708 = vshll.u32 %v6518, 16
      %v6710 = vor.u32 %v6707, %v6708
      %v6711 = vrot.slane %v6707, 4
      %v6713 = vshrl.u32 %v6519, 16
      %v6715 = vrot.slane %v6713, 7
      %v6716 = vshll.u32 %v6519, 16
      %v6718 = vor.u32 %v6715, %v6716
      %v6719 = vrot.slane %v6715, 4
      %v6721 = vshrl.u32 %v6520, 16
      %v6723 = vrot.slane %v6721, 7
      %v6724 = vshll.u32 %v6520, 16
      %v6726 = vor.u32 %v6723, %v6724
      %v6727 = vrot.slane %v6723, 4
      %v6729 = vshrl.u32 %v6521, 16
      %v6731 = vrot.slane %v6729, 7
      %v6732 = vshll.u32 %v6521, 16
      %v6734 = vor.u32 %v6731, %v6732
      %v6735 = vrot.slane %v6731, 4
      %v6737 = vshrl.u32 %v6522, 16
      %v6739 = vrot.slane %v6737, 7
      %v6740 = vshll.u32 %v6522, 16
      %v6742 = vor.u32 %v6739, %v6740
      %v6743 = vrot.slane %v6739, 4
      %v6745 = vshrl.u32 %v6523, 16
      %v6747 = vrot.slane %v6745, 7
      %v6748 = vshll.u32 %v6523, 16
      %v6750 = vor.u32 %v6747, %v6748
      %v6751 = vrot.slane %v6747, 4
      %v6753 = vshrl.u32 %v6524, 16
      %v6755 = vrot.slane %v6753, 7
      %v6756 = vshll.u32 %v6524, 16
      %v6758 = vor.u32 %v6755, %v6756
      %v6759 = vrot.slane %v6755, 4
      %v6761 = vshrl.u32 %v6525, 16
      %v6763 = vrot.slane %v6761, 7
      %v6764 = vshll.u32 %v6525, 16
      %v6766 = vor.u32 %v6763, %v6764
      %v6767 = vrot.slane %v6763, 4
      %v6769 = vshrl.u32 %v6526, 16
      %v6771 = vrot.slane %v6769, 7
      %v6772 = vshll.u32 %v6526, 16
      %v6774 = vor.u32 %v6771, %v6772
      %v6775 = vrot.slane %v6771, 4
      %v6777 = vshrl.u32 %v6527, 16
      %v6779 = vrot.slane %v6777, 7
      %v6780 = vshll.u32 %v6527, 16
      %v6782 = vor.u32 %v6779, %v6780
      %v6783 = vrot.slane %v6779, 4
      %s6848 = scalar_lea.vmem [#allocation3], 8
      %v6849 = vld [vmem:[%s6848] sm:$0xf]
      %v6850 = vsel %vm1107, %v6534, %v6849
      %6851 = vst [vmem:[%s6848] sm:$0xf] %v6850
      %v6852 = vld [vmem:[%s6848 + $0x4] sm:$0x1]
      %v6853 = vsel %vm285, %v6535, %v6852
      %6854 = vst [vmem:[%s6848 + $0x4] sm:$0x1] %v6853
      %v6855 = vld [vmem:[%s6848 + $0x8] sm:$0xf]
      %v6856 = vsel %vm1107, %v6542, %v6855
      %6857 = vst [vmem:[%s6848 + $0x8] sm:$0xf] %v6856
      %v6858 = vld [vmem:[%s6848 + $0xc] sm:$0x1]
      %v6859 = vsel %vm285, %v6543, %v6858
      %6860 = vst [vmem:[%s6848 + $0xc] sm:$0x1] %v6859
      %v6861 = vld [vmem:[%s6848 + $0x10] sm:$0xf]
      %v6862 = vsel %vm1107, %v6550, %v6861
      %6863 = vst [vmem:[%s6848 + $0x10] sm:$0xf] %v6862
      %v6864 = vld [vmem:[%s6848 + $0x14] sm:$0x1]
      %v6865 = vsel %vm285, %v6551, %v6864
      %6866 = vst [vmem:[%s6848 + $0x14] sm:$0x1] %v6865
      %v6867 = vld [vmem:[%s6848 + $0x18] sm:$0xf]
      %v6868 = vsel %vm1107, %v6558, %v6867
      %6869 = vst [vmem:[%s6848 + $0x18] sm:$0xf] %v6868
      %v6870 = vld [vmem:[%s6848 + $0x1c] sm:$0x1]
      %v6871 = vsel %vm285, %v6559, %v6870
      %6872 = vst [vmem:[%s6848 + $0x1c] sm:$0x1] %v6871
      %v6873 = vld [vmem:[%s6848 + $0x20] sm:$0xf]
      %v6874 = vsel %vm1107, %v6566, %v6873
      %6875 = vst [vmem:[%s6848 + $0x20] sm:$0xf] %v6874
      %v6876 = vld [vmem:[%s6848 + $0x24] sm:$0x1]
      %v6877 = vsel %vm285, %v6567, %v6876
      %6878 = vst [vmem:[%s6848 + $0x24] sm:$0x1] %v6877
      %v6879 = vld [vmem:[%s6848 + $0x28] sm:$0xf]
      %v6880 = vsel %vm1107, %v6574, %v6879
      %6881 = vst [vmem:[%s6848 + $0x28] sm:$0xf] %v6880
      %v6882 = vld [vmem:[%s6848 + $0x2c] sm:$0x1]
      %v6883 = vsel %vm285, %v6575, %v6882
      %6884 = vst [vmem:[%s6848 + $0x2c] sm:$0x1] %v6883
      %v6885 = vld [vmem:[%s6848 + $0x30] sm:$0xf]
      %v6886 = vsel %vm1107, %v6582, %v6885
      %6887 = vst [vmem:[%s6848 + $0x30] sm:$0xf] %v6886
      %v6888 = vld [vmem:[%s6848 + $0x34] sm:$0x1]
      %v6889 = vsel %vm285, %v6583, %v6888
      %6890 = vst [vmem:[%s6848 + $0x34] sm:$0x1] %v6889
      %v6891 = vld [vmem:[%s6848 + $0x38] sm:$0xf]
      %v6892 = vsel %vm1107, %v6590, %v6891
      %6893 = vst [vmem:[%s6848 + $0x38] sm:$0xf] %v6892
      %v6894 = vld [vmem:[%s6848 + $0x3c] sm:$0x1]
      %v6895 = vsel %vm285, %v6591, %v6894
      %6896 = vst [vmem:[%s6848 + $0x3c] sm:$0x1] %v6895
      %v6897 = vld [vmem:[%s6848 + $0x50] sm:$0xf]
      %v6898 = vsel %vm1107, %v6598, %v6897
      %6899 = vst [vmem:[%s6848 + $0x50] sm:$0xf] %v6898
      %v6900 = vld [vmem:[%s6848 + $0x54] sm:$0x1]
      %v6901 = vsel %vm285, %v6599, %v6900
      %6902 = vst [vmem:[%s6848 + $0x54] sm:$0x1] %v6901
      %v6903 = vld [vmem:[%s6848 + $0x58] sm:$0xf]
      %v6904 = vsel %vm1107, %v6606, %v6903
      %6905 = vst [vmem:[%s6848 + $0x58] sm:$0xf] %v6904
      %v6906 = vld [vmem:[%s6848 + $0x5c] sm:$0x1]
      %v6907 = vsel %vm285, %v6607, %v6906
      %6908 = vst [vmem:[%s6848 + $0x5c] sm:$0x1] %v6907
      %v6909 = vld [vmem:[%s6848 + $0x60] sm:$0xf]
      %v6910 = vsel %vm1107, %v6614, %v6909
      %6911 = vst [vmem:[%s6848 + $0x60] sm:$0xf] %v6910
      %v6912 = vld [vmem:[%s6848 + $0x64] sm:$0x1]
      %v6913 = vsel %vm285, %v6615, %v6912
      %6914 = vst [vmem:[%s6848 + $0x64] sm:$0x1] %v6913
      %v6915 = vld [vmem:[%s6848 + $0x68] sm:$0xf]
      %v6916 = vsel %vm1107, %v6622, %v6915
      %6917 = vst [vmem:[%s6848 + $0x68] sm:$0xf] %v6916
      %v6918 = vld [vmem:[%s6848 + $0x6c] sm:$0x1]
      %v6919 = vsel %vm285, %v6623, %v6918
      %6920 = vst [vmem:[%s6848 + $0x6c] sm:$0x1] %v6919
      %v6921 = vld [vmem:[%s6848 + $0x70] sm:$0xf]
      %v6922 = vsel %vm1107, %v6630, %v6921
      %6923 = vst [vmem:[%s6848 + $0x70] sm:$0xf] %v6922
      %v6924 = vld [vmem:[%s6848 + $0x74] sm:$0x1]
      %v6925 = vsel %vm285, %v6631, %v6924
      %6926 = vst [vmem:[%s6848 + $0x74] sm:$0x1] %v6925
      %v6927 = vld [vmem:[%s6848 + $0x78] sm:$0xf]
      %v6928 = vsel %vm1107, %v6638, %v6927
      %6929 = vst [vmem:[%s6848 + $0x78] sm:$0xf] %v6928
      %v6930 = vld [vmem:[%s6848 + $0x7c] sm:$0x1]
      %v6931 = vsel %vm285, %v6639, %v6930
      %6932 = vst [vmem:[%s6848 + $0x7c] sm:$0x1] %v6931
      %v6933 = vld [vmem:[%s6848 + $0x80] sm:$0xf]
      %v6934 = vsel %vm1107, %v6646, %v6933
      %6935 = vst [vmem:[%s6848 + $0x80] sm:$0xf] %v6934
      %v6936 = vld [vmem:[%s6848 + $0x84] sm:$0x1]
      %v6937 = vsel %vm285, %v6647, %v6936
      %6938 = vst [vmem:[%s6848 + $0x84] sm:$0x1] %v6937
      %v6939 = vld [vmem:[%s6848 + $0x88] sm:$0xf]
      %v6940 = vsel %vm1107, %v6654, %v6939
      %6941 = vst [vmem:[%s6848 + $0x88] sm:$0xf] %v6940
      %v6942 = vld [vmem:[%s6848 + $0x8c] sm:$0x1]
      %v6943 = vsel %vm285, %v6655, %v6942
      %6944 = vst [vmem:[%s6848 + $0x8c] sm:$0x1] %v6943
      %v6945 = vld [vmem:[%s6848 + $0xa0] sm:$0xf]
      %v6946 = vsel %vm1107, %v6662, %v6945
      %6947 = vst [vmem:[%s6848 + $0xa0] sm:$0xf] %v6946
      %v6948 = vld [vmem:[%s6848 + $0xa4] sm:$0x1]
      %v6949 = vsel %vm285, %v6663, %v6948
      %6950 = vst [vmem:[%s6848 + $0xa4] sm:$0x1] %v6949
      %v6951 = vld [vmem:[%s6848 + $0xa8] sm:$0xf]
      %v6952 = vsel %vm1107, %v6670, %v6951
      %6953 = vst [vmem:[%s6848 + $0xa8] sm:$0xf] %v6952
      %v6954 = vld [vmem:[%s6848 + $0xac] sm:$0x1]
      %v6955 = vsel %vm285, %v6671, %v6954
      %6956 = vst [vmem:[%s6848 + $0xac] sm:$0x1] %v6955
      %v6957 = vld [vmem:[%s6848 + $0xb0] sm:$0xf]
      %v6958 = vsel %vm1107, %v6678, %v6957
      %6959 = vst [vmem:[%s6848 + $0xb0] sm:$0xf] %v6958
      %v6960 = vld [vmem:[%s6848 + $0xb4] sm:$0x1]
      %v6961 = vsel %vm285, %v6679, %v6960
      %6962 = vst [vmem:[%s6848 + $0xb4] sm:$0x1] %v6961
      %v6963 = vld [vmem:[%s6848 + $0xb8] sm:$0xf]
      %v6964 = vsel %vm1107, %v6686, %v6963
      %6965 = vst [vmem:[%s6848 + $0xb8] sm:$0xf] %v6964
      %v6966 = vld [vmem:[%s6848 + $0xbc] sm:$0x1]
      %v6967 = vsel %vm285, %v6687, %v6966
      %6968 = vst [vmem:[%s6848 + $0xbc] sm:$0x1] %v6967
      %v6969 = vld [vmem:[%s6848 + $0xc0] sm:$0xf]
      %v6970 = vsel %vm1107, %v6694, %v6969
      %6971 = vst [vmem:[%s6848 + $0xc0] sm:$0xf] %v6970
      %v6972 = vld [vmem:[%s6848 + $0xc4] sm:$0x1]
      %v6973 = vsel %vm285, %v6695, %v6972
      %6974 = vst [vmem:[%s6848 + $0xc4] sm:$0x1] %v6973
      %v6975 = vld [vmem:[%s6848 + $0xc8] sm:$0xf]
      %v6976 = vsel %vm1107, %v6702, %v6975
      %6977 = vst [vmem:[%s6848 + $0xc8] sm:$0xf] %v6976
      %v6978 = vld [vmem:[%s6848 + $0xcc] sm:$0x1]
      %v6979 = vsel %vm285, %v6703, %v6978
      %6980 = vst [vmem:[%s6848 + $0xcc] sm:$0x1] %v6979
      %v6981 = vld [vmem:[%s6848 + $0xd0] sm:$0xf]
      %v6982 = vsel %vm1107, %v6710, %v6981
      %6983 = vst [vmem:[%s6848 + $0xd0] sm:$0xf] %v6982
      %v6984 = vld [vmem:[%s6848 + $0xd4] sm:$0x1]
      %v6985 = vsel %vm285, %v6711, %v6984
      %6986 = vst [vmem:[%s6848 + $0xd4] sm:$0x1] %v6985
      %v6987 = vld [vmem:[%s6848 + $0xd8] sm:$0xf]
      %v6988 = vsel %vm1107, %v6718, %v6987
      %6989 = vst [vmem:[%s6848 + $0xd8] sm:$0xf] %v6988
      %v6990 = vld [vmem:[%s6848 + $0xdc] sm:$0x1]
      %v6991 = vsel %vm285, %v6719, %v6990
      %6992 = vst [vmem:[%s6848 + $0xdc] sm:$0x1] %v6991
      %v6993 = vld [vmem:[%s6848 + $0xf0] sm:$0xf]
      %v6994 = vsel %vm1107, %v6726, %v6993
      %6995 = vst [vmem:[%s6848 + $0xf0] sm:$0xf] %v6994
      %v6996 = vld [vmem:[%s6848 + $0xf4] sm:$0x1]
      %v6997 = vsel %vm285, %v6727, %v6996
      %6998 = vst [vmem:[%s6848 + $0xf4] sm:$0x1] %v6997
      %v6999 = vld [vmem:[%s6848 + $0xf8] sm:$0xf]
      %v7000 = vsel %vm1107, %v6734, %v6999
      %7001 = vst [vmem:[%s6848 + $0xf8] sm:$0xf] %v7000
      %v7002 = vld [vmem:[%s6848 + $0xfc] sm:$0x1]
      %v7003 = vsel %vm285, %v6735, %v7002
      %7004 = vst [vmem:[%s6848 + $0xfc] sm:$0x1] %v7003
      %v7005 = vld [vmem:[%s6848 + $0x100] sm:$0xf]
      %v7006 = vsel %vm1107, %v6742, %v7005
      %7007 = vst [vmem:[%s6848 + $0x100] sm:$0xf] %v7006
      %v7008 = vld [vmem:[%s6848 + $0x104] sm:$0x1]
      %v7009 = vsel %vm285, %v6743, %v7008
      %7010 = vst [vmem:[%s6848 + $0x104] sm:$0x1] %v7009
      %v7011 = vld [vmem:[%s6848 + $0x108] sm:$0xf]
      %v7012 = vsel %vm1107, %v6750, %v7011
      %7013 = vst [vmem:[%s6848 + $0x108] sm:$0xf] %v7012
      %v7014 = vld [vmem:[%s6848 + $0x10c] sm:$0x1]
      %v7015 = vsel %vm285, %v6751, %v7014
      %7016 = vst [vmem:[%s6848 + $0x10c] sm:$0x1] %v7015
      %v7017 = vld [vmem:[%s6848 + $0x110] sm:$0xf]
      %v7018 = vsel %vm1107, %v6758, %v7017
      %7019 = vst [vmem:[%s6848 + $0x110] sm:$0xf] %v7018
      %v7020 = vld [vmem:[%s6848 + $0x114] sm:$0x1]
      %v7021 = vsel %vm285, %v6759, %v7020
      %7022 = vst [vmem:[%s6848 + $0x114] sm:$0x1] %v7021
      %v7023 = vld [vmem:[%s6848 + $0x118] sm:$0xf]
      %v7024 = vsel %vm1107, %v6766, %v7023
      %7025 = vst [vmem:[%s6848 + $0x118] sm:$0xf] %v7024
      %v7026 = vld [vmem:[%s6848 + $0x11c] sm:$0x1]
      %v7027 = vsel %vm285, %v6767, %v7026
      %7028 = vst [vmem:[%s6848 + $0x11c] sm:$0x1] %v7027
      %v7029 = vld [vmem:[%s6848 + $0x120] sm:$0xf]
      %v7030 = vsel %vm1107, %v6774, %v7029
      %7031 = vst [vmem:[%s6848 + $0x120] sm:$0xf] %v7030
      %v7032 = vld [vmem:[%s6848 + $0x124] sm:$0x1]
      %v7033 = vsel %vm285, %v6775, %v7032
      %7034 = vst [vmem:[%s6848 + $0x124] sm:$0x1] %v7033
      %v7035 = vld [vmem:[%s6848 + $0x128] sm:$0xf]
      %v7036 = vsel %vm1107, %v6782, %v7035
      %7037 = vst [vmem:[%s6848 + $0x128] sm:$0xf] %v7036
      %v7038 = vld [vmem:[%s6848 + $0x12c] sm:$0x1]
      %v7039 = vsel %vm285, %v6783, %v7038
      %7040 = vst [vmem:[%s6848 + $0x12c] sm:$0x1] %v7039
      %v7041 = vld [vmem:[#allocation3] sm:$0xf]
      %v7042 = vld [vmem:[#allocation3 + $0x8] sm:$0xf]
      %v7043 = vld [vmem:[#allocation3 + $0x10] sm:$0xf]
      %v7044 = vld [vmem:[#allocation3 + $0x18] sm:$0xf]
      %v7045 = vld [vmem:[#allocation3 + $0x20] sm:$0xf]
      %v7046 = vld [vmem:[#allocation3 + $0x28] sm:$0xf]
      %v7047 = vld [vmem:[#allocation3 + $0x30] sm:$0xf]
      %v7048 = vld [vmem:[#allocation3 + $0x38] sm:$0xf]
      %v7049 = vld [vmem:[#allocation3 + $0x50] sm:$0xf]
      %v7050 = vld [vmem:[#allocation3 + $0x58] sm:$0xf]
      %v7051 = vld [vmem:[#allocation3 + $0x60] sm:$0xf]
      %v7052 = vld [vmem:[#allocation3 + $0x68] sm:$0xf]
      %v7053 = vld [vmem:[#allocation3 + $0x70] sm:$0xf]
      %v7054 = vld [vmem:[#allocation3 + $0x78] sm:$0xf]
      %v7055 = vld [vmem:[#allocation3 + $0x80] sm:$0xf]
      %v7056 = vld [vmem:[#allocation3 + $0x88] sm:$0xf]
      %v7057 = vld [vmem:[#allocation3 + $0xa0] sm:$0xf]
      %v7058 = vld [vmem:[#allocation3 + $0xa8] sm:$0xf]
      %v7059 = vld [vmem:[#allocation3 + $0xb0] sm:$0xf]
      %v7060 = vld [vmem:[#allocation3 + $0xb8] sm:$0xf]
      %v7061 = vld [vmem:[#allocation3 + $0xc0] sm:$0xf]
      %v7062 = vld [vmem:[#allocation3 + $0xc8] sm:$0xf]
      %v7063 = vld [vmem:[#allocation3 + $0xd0] sm:$0xf]
      %v7064 = vld [vmem:[#allocation3 + $0xd8] sm:$0xf]
      %v7065 = vld [vmem:[#allocation3 + $0xf0] sm:$0xf]
      %v7066 = vld [vmem:[#allocation3 + $0xf8] sm:$0xf]
      %v7067 = vld [vmem:[#allocation3 + $0x100] sm:$0xf]
      %v7068 = vld [vmem:[#allocation3 + $0x108] sm:$0xf]
      %v7069 = vld [vmem:[#allocation3 + $0x110] sm:$0xf]
      %v7070 = vld [vmem:[#allocation3 + $0x118] sm:$0xf]
      %v7071 = vld [vmem:[#allocation3 + $0x120] sm:$0xf]
      %v7072 = vld [vmem:[#allocation3 + $0x128] sm:$0xf]
      %7073 = vst [vmem:[#allocation4] sm:$0xf] %v7041
      %7074 = vst [vmem:[#allocation4 + $0x24] sm:$0xf] %v7042
      %7075 = vst [vmem:[#allocation4 + $0x48] sm:$0xf] %v7043
      %7076 = vst [vmem:[#allocation4 + $0x6c] sm:$0xf] %v7044
      %7077 = vst [vmem:[#allocation4 + $0x90] sm:$0xf] %v7045
      %7078 = vst [vmem:[#allocation4 + $0xb4] sm:$0xf] %v7046
      %7079 = vst [vmem:[#allocation4 + $0xd8] sm:$0xf] %v7047
      %7080 = vst [vmem:[#allocation4 + $0xfc] sm:$0xf] %v7048
      %7081 = vst [vmem:[#allocation4 + $0x120] sm:$0xf] %v7049
      %7082 = vst [vmem:[#allocation4 + $0x144] sm:$0xf] %v7050
      %7083 = vst [vmem:[#allocation4 + $0x168] sm:$0xf] %v7051
      %7084 = vst [vmem:[#allocation4 + $0x18c] sm:$0xf] %v7052
      %7085 = vst [vmem:[#allocation4 + $0x1b0] sm:$0xf] %v7053
      %7086 = vst [vmem:[#allocation4 + $0x1d4] sm:$0xf] %v7054
      %7087 = vst [vmem:[#allocation4 + $0x1f8] sm:$0xf] %v7055
      %7088 = vst [vmem:[#allocation4 + $0x21c] sm:$0xf] %v7056
      %7089 = vst [vmem:[#allocation4 + $0x240] sm:$0xf] %v7057
      %7090 = vst [vmem:[#allocation4 + $0x264] sm:$0xf] %v7058
      %7091 = vst [vmem:[#allocation4 + $0x288] sm:$0xf] %v7059
      %7092 = vst [vmem:[#allocation4 + $0x2ac] sm:$0xf] %v7060
      %7093 = vst [vmem:[#allocation4 + $0x2d0] sm:$0xf] %v7061
      %7094 = vst [vmem:[#allocation4 + $0x2f4] sm:$0xf] %v7062
      %7095 = vst [vmem:[#allocation4 + $0x318] sm:$0xf] %v7063
      %7096 = vst [vmem:[#allocation4 + $0x33c] sm:$0xf] %v7064
      %7097 = vst [vmem:[#allocation4 + $0x360] sm:$0xf] %v7065
      %7098 = vst [vmem:[#allocation4 + $0x384] sm:$0xf] %v7066
      %7099 = vst [vmem:[#allocation4 + $0x3a8] sm:$0xf] %v7067
      %7100 = vst [vmem:[#allocation4 + $0x3cc] sm:$0xf] %v7068
      %7101 = vst [vmem:[#allocation4 + $0x3f0] sm:$0xf] %v7069
      %7102 = vst [vmem:[#allocation4 + $0x414] sm:$0xf] %v7070
      %7103 = vst [vmem:[#allocation4 + $0x438] sm:$0xf] %v7071
      %7104 = vst [vmem:[#allocation4 + $0x45c] sm:$0xf] %v7072
      %v7105 = vld [vmem:[#allocation3] sm:$0xf]
      %v7106 = vld [vmem:[#allocation3 + $0x4] sm:$0x1]
      %v7107 = vld [vmem:[#allocation3 + $0x8] sm:$0xf]
      %v7108 = vld [vmem:[#allocation3 + $0xc] sm:$0x1]
      %v7109 = vld [vmem:[#allocation3 + $0x10] sm:$0xf]
      %v7110 = vld [vmem:[#allocation3 + $0x14] sm:$0x1]
      %v7111 = vld [vmem:[#allocation3 + $0x18] sm:$0xf]
      %v7112 = vld [vmem:[#allocation3 + $0x1c] sm:$0x1]
      %v7113 = vld [vmem:[#allocation3 + $0x20] sm:$0xf]
      %v7114 = vld [vmem:[#allocation3 + $0x24] sm:$0x1]
      %v7115 = vld [vmem:[#allocation3 + $0x28] sm:$0xf]
      %v7116 = vld [vmem:[#allocation3 + $0x2c] sm:$0x1]
      %v7117 = vld [vmem:[#allocation3 + $0x30] sm:$0xf]
      %v7118 = vld [vmem:[#allocation3 + $0x34] sm:$0x1]
      %v7119 = vld [vmem:[#allocation3 + $0x38] sm:$0xf]
      %v7120 = vld [vmem:[#allocation3 + $0x3c] sm:$0x1]
      %v7121 = vld [vmem:[#allocation3 + $0x50] sm:$0xf]
      %v7122 = vld [vmem:[#allocation3 + $0x54] sm:$0x1]
      %v7123 = vld [vmem:[#allocation3 + $0x58] sm:$0xf]
      %v7124 = vld [vmem:[#allocation3 + $0x5c] sm:$0x1]
      %v7125 = vld [vmem:[#allocation3 + $0x60] sm:$0xf]
      %v7126 = vld [vmem:[#allocation3 + $0x64] sm:$0x1]
      %v7127 = vld [vmem:[#allocation3 + $0x68] sm:$0xf]
      %v7128 = vld [vmem:[#allocation3 + $0x6c] sm:$0x1]
      %v7129 = vld [vmem:[#allocation3 + $0x70] sm:$0xf]
      %v7130 = vld [vmem:[#allocation3 + $0x74] sm:$0x1]
      %v7131 = vld [vmem:[#allocation3 + $0x78] sm:$0xf]
      %v7132 = vld [vmem:[#allocation3 + $0x7c] sm:$0x1]
      %v7133 = vld [vmem:[#allocation3 + $0x80] sm:$0xf]
      %v7134 = vld [vmem:[#allocation3 + $0x84] sm:$0x1]
      %v7135 = vld [vmem:[#allocation3 + $0x88] sm:$0xf]
      %v7136 = vld [vmem:[#allocation3 + $0x8c] sm:$0x1]
      %v7137 = vld [vmem:[#allocation3 + $0xa0] sm:$0xf]
      %v7138 = vld [vmem:[#allocation3 + $0xa4] sm:$0x1]
      %v7139 = vld [vmem:[#allocation3 + $0xa8] sm:$0xf]
      %v7140 = vld [vmem:[#allocation3 + $0xac] sm:$0x1]
      %v7141 = vld [vmem:[#allocation3 + $0xb0] sm:$0xf]
      %v7142 = vld [vmem:[#allocation3 + $0xb4] sm:$0x1]
      %v7143 = vld [vmem:[#allocation3 + $0xb8] sm:$0xf]
      %v7144 = vld [vmem:[#allocation3 + $0xbc] sm:$0x1]
      %v7145 = vld [vmem:[#allocation3 + $0xc0] sm:$0xf]
      %v7146 = vld [vmem:[#allocation3 + $0xc4] sm:$0x1]
      %v7147 = vld [vmem:[#allocation3 + $0xc8] sm:$0xf]
      %v7148 = vld [vmem:[#allocation3 + $0xcc] sm:$0x1]
      %v7149 = vld [vmem:[#allocation3 + $0xd0] sm:$0xf]
      %v7150 = vld [vmem:[#allocation3 + $0xd4] sm:$0x1]
      %v7151 = vld [vmem:[#allocation3 + $0xd8] sm:$0xf]
      %v7152 = vld [vmem:[#allocation3 + $0xdc] sm:$0x1]
      %v7153 = vld [vmem:[#allocation3 + $0xf0] sm:$0xf]
      %v7154 = vld [vmem:[#allocation3 + $0xf4] sm:$0x1]
      %v7155 = vld [vmem:[#allocation3 + $0xf8] sm:$0xf]
      %v7156 = vld [vmem:[#allocation3 + $0xfc] sm:$0x1]
      %v7157 = vld [vmem:[#allocation3 + $0x100] sm:$0xf]
      %v7158 = vld [vmem:[#allocation3 + $0x104] sm:$0x1]
      %v7159 = vld [vmem:[#allocation3 + $0x108] sm:$0xf]
      %v7160 = vld [vmem:[#allocation3 + $0x10c] sm:$0x1]
      %v7161 = vld [vmem:[#allocation3 + $0x110] sm:$0xf]
      %v7162 = vld [vmem:[#allocation3 + $0x114] sm:$0x1]
      %v7163 = vld [vmem:[#allocation3 + $0x118] sm:$0xf]
      %v7164 = vld [vmem:[#allocation3 + $0x11c] sm:$0x1]
      %v7165 = vld [vmem:[#allocation3 + $0x120] sm:$0xf]
      %v7166 = vld [vmem:[#allocation3 + $0x124] sm:$0x1]
      %v7167 = vld [vmem:[#allocation3 + $0x128] sm:$0xf]
      %v7168 = vld [vmem:[#allocation3 + $0x12c] sm:$0x1]
      %v7170 = vshrl.u32 %v7105, 16
      %v7172 = vrot.slane %v7170, 4
      %v7173 = vshll.u32 %v7105, 16
      %v7175 = vrot.slane %v7173, 5
      %v7176 = vor.u32 %v7172, %v7175
      %v7177 = vrot.slane %v7176, 4
      %v7179 = vshll.u32 %v7106, 16
      %v7181 = vrot.slane %v7179, 5
      %v7182 = vsel %vm1430, %v7177, %v7181
      %v7184 = vshrl.u32 %v7107, 16
      %v7186 = vrot.slane %v7184, 4
      %v7187 = vshll.u32 %v7107, 16
      %v7189 = vrot.slane %v7187, 5
      %v7190 = vor.u32 %v7186, %v7189
      %v7191 = vrot.slane %v7190, 4
      %v7193 = vshll.u32 %v7108, 16
      %v7195 = vrot.slane %v7193, 5
      %v7196 = vsel %vm1430, %v7191, %v7195
      %v7198 = vshrl.u32 %v7109, 16
      %v7200 = vrot.slane %v7198, 4
      %v7201 = vshll.u32 %v7109, 16
      %v7203 = vrot.slane %v7201, 5
      %v7204 = vor.u32 %v7200, %v7203
      %v7205 = vrot.slane %v7204, 4
      %v7207 = vshll.u32 %v7110, 16
      %v7209 = vrot.slane %v7207, 5
      %v7210 = vsel %vm1430, %v7205, %v7209
      %v7212 = vshrl.u32 %v7111, 16
      %v7214 = vrot.slane %v7212, 4
      %v7215 = vshll.u32 %v7111, 16
      %v7217 = vrot.slane %v7215, 5
      %v7218 = vor.u32 %v7214, %v7217
      %v7219 = vrot.slane %v7218, 4
      %v7221 = vshll.u32 %v7112, 16
      %v7223 = vrot.slane %v7221, 5
      %v7224 = vsel %vm1430, %v7219, %v7223
      %v7226 = vshrl.u32 %v7113, 16
      %v7228 = vrot.slane %v7226, 4
      %v7229 = vshll.u32 %v7113, 16
      %v7231 = vrot.slane %v7229, 5
      %v7232 = vor.u32 %v7228, %v7231
      %v7233 = vrot.slane %v7232, 4
      %v7235 = vshll.u32 %v7114, 16
      %v7237 = vrot.slane %v7235, 5
      %v7238 = vsel %vm1430, %v7233, %v7237
      %v7240 = vshrl.u32 %v7115, 16
      %v7242 = vrot.slane %v7240, 4
      %v7243 = vshll.u32 %v7115, 16
      %v7245 = vrot.slane %v7243, 5
      %v7246 = vor.u32 %v7242, %v7245
      %v7247 = vrot.slane %v7246, 4
      %v7249 = vshll.u32 %v7116, 16
      %v7251 = vrot.slane %v7249, 5
      %v7252 = vsel %vm1430, %v7247, %v7251
      %v7254 = vshrl.u32 %v7117, 16
      %v7256 = vrot.slane %v7254, 4
      %v7257 = vshll.u32 %v7117, 16
      %v7259 = vrot.slane %v7257, 5
      %v7260 = vor.u32 %v7256, %v7259
      %v7261 = vrot.slane %v7260, 4
      %v7263 = vshll.u32 %v7118, 16
      %v7265 = vrot.slane %v7263, 5
      %v7266 = vsel %vm1430, %v7261, %v7265
      %v7268 = vshrl.u32 %v7119, 16
      %v7270 = vrot.slane %v7268, 4
      %v7271 = vshll.u32 %v7119, 16
      %v7273 = vrot.slane %v7271, 5
      %v7274 = vor.u32 %v7270, %v7273
      %v7275 = vrot.slane %v7274, 4
      %v7277 = vshll.u32 %v7120, 16
      %v7279 = vrot.slane %v7277, 5
      %v7280 = vsel %vm1430, %v7275, %v7279
      %v7282 = vshrl.u32 %v7121, 16
      %v7284 = vrot.slane %v7282, 4
      %v7285 = vshll.u32 %v7121, 16
      %v7287 = vrot.slane %v7285, 5
      %v7288 = vor.u32 %v7284, %v7287
      %v7289 = vrot.slane %v7288, 4
      %v7291 = vshll.u32 %v7122, 16
      %v7293 = vrot.slane %v7291, 5
      %v7294 = vsel %vm1430, %v7289, %v7293
      %v7296 = vshrl.u32 %v7123, 16
      %v7298 = vrot.slane %v7296, 4
      %v7299 = vshll.u32 %v7123, 16
      %v7301 = vrot.slane %v7299, 5
      %v7302 = vor.u32 %v7298, %v7301
      %v7303 = vrot.slane %v7302, 4
      %v7305 = vshll.u32 %v7124, 16
      %v7307 = vrot.slane %v7305, 5
      %v7308 = vsel %vm1430, %v7303, %v7307
      %v7310 = vshrl.u32 %v7125, 16
      %v7312 = vrot.slane %v7310, 4
      %v7313 = vshll.u32 %v7125, 16
      %v7315 = vrot.slane %v7313, 5
      %v7316 = vor.u32 %v7312, %v7315
      %v7317 = vrot.slane %v7316, 4
      %v7319 = vshll.u32 %v7126, 16
      %v7321 = vrot.slane %v7319, 5
      %v7322 = vsel %vm1430, %v7317, %v7321
      %v7324 = vshrl.u32 %v7127, 16
      %v7326 = vrot.slane %v7324, 4
      %v7327 = vshll.u32 %v7127, 16
      %v7329 = vrot.slane %v7327, 5
      %v7330 = vor.u32 %v7326, %v7329
      %v7331 = vrot.slane %v7330, 4
      %v7333 = vshll.u32 %v7128, 16
      %v7335 = vrot.slane %v7333, 5
      %v7336 = vsel %vm1430, %v7331, %v7335
      %v7338 = vshrl.u32 %v7129, 16
      %v7340 = vrot.slane %v7338, 4
      %v7341 = vshll.u32 %v7129, 16
      %v7343 = vrot.slane %v7341, 5
      %v7344 = vor.u32 %v7340, %v7343
      %v7345 = vrot.slane %v7344, 4
      %v7347 = vshll.u32 %v7130, 16
      %v7349 = vrot.slane %v7347, 5
      %v7350 = vsel %vm1430, %v7345, %v7349
      %v7352 = vshrl.u32 %v7131, 16
      %v7354 = vrot.slane %v7352, 4
      %v7355 = vshll.u32 %v7131, 16
      %v7357 = vrot.slane %v7355, 5
      %v7358 = vor.u32 %v7354, %v7357
      %v7359 = vrot.slane %v7358, 4
      %v7361 = vshll.u32 %v7132, 16
      %v7363 = vrot.slane %v7361, 5
      %v7364 = vsel %vm1430, %v7359, %v7363
      %v7366 = vshrl.u32 %v7133, 16
      %v7368 = vrot.slane %v7366, 4
      %v7369 = vshll.u32 %v7133, 16
      %v7371 = vrot.slane %v7369, 5
      %v7372 = vor.u32 %v7368, %v7371
      %v7373 = vrot.slane %v7372, 4
      %v7375 = vshll.u32 %v7134, 16
      %v7377 = vrot.slane %v7375, 5
      %v7378 = vsel %vm1430, %v7373, %v7377
      %v7380 = vshrl.u32 %v7135, 16
      %v7382 = vrot.slane %v7380, 4
      %v7383 = vshll.u32 %v7135, 16
      %v7385 = vrot.slane %v7383, 5
      %v7386 = vor.u32 %v7382, %v7385
      %v7387 = vrot.slane %v7386, 4
      %v7389 = vshll.u32 %v7136, 16
      %v7391 = vrot.slane %v7389, 5
      %v7392 = vsel %vm1430, %v7387, %v7391
      %v7394 = vshrl.u32 %v7137, 16
      %v7396 = vrot.slane %v7394, 4
      %v7397 = vshll.u32 %v7137, 16
      %v7399 = vrot.slane %v7397, 5
      %v7400 = vor.u32 %v7396, %v7399
      %v7401 = vrot.slane %v7400, 4
      %v7403 = vshll.u32 %v7138, 16
      %v7405 = vrot.slane %v7403, 5
      %v7406 = vsel %vm1430, %v7401, %v7405
      %v7408 = vshrl.u32 %v7139, 16
      %v7410 = vrot.slane %v7408, 4
      %v7411 = vshll.u32 %v7139, 16
      %v7413 = vrot.slane %v7411, 5
      %v7414 = vor.u32 %v7410, %v7413
      %v7415 = vrot.slane %v7414, 4
      %v7417 = vshll.u32 %v7140, 16
      %v7419 = vrot.slane %v7417, 5
      %v7420 = vsel %vm1430, %v7415, %v7419
      %v7422 = vshrl.u32 %v7141, 16
      %v7424 = vrot.slane %v7422, 4
      %v7425 = vshll.u32 %v7141, 16
      %v7427 = vrot.slane %v7425, 5
      %v7428 = vor.u32 %v7424, %v7427
      %v7429 = vrot.slane %v7428, 4
      %v7431 = vshll.u32 %v7142, 16
      %v7433 = vrot.slane %v7431, 5
      %v7434 = vsel %vm1430, %v7429, %v7433
      %v7436 = vshrl.u32 %v7143, 16
      %v7438 = vrot.slane %v7436, 4
      %v7439 = vshll.u32 %v7143, 16
      %v7441 = vrot.slane %v7439, 5
      %v7442 = vor.u32 %v7438, %v7441
      %v7443 = vrot.slane %v7442, 4
      %v7445 = vshll.u32 %v7144, 16
      %v7447 = vrot.slane %v7445, 5
      %v7448 = vsel %vm1430, %v7443, %v7447
      %v7450 = vshrl.u32 %v7145, 16
      %v7452 = vrot.slane %v7450, 4
      %v7453 = vshll.u32 %v7145, 16
      %v7455 = vrot.slane %v7453, 5
      %v7456 = vor.u32 %v7452, %v7455
      %v7457 = vrot.slane %v7456, 4
      %v7459 = vshll.u32 %v7146, 16
      %v7461 = vrot.slane %v7459, 5
      %v7462 = vsel %vm1430, %v7457, %v7461
      %v7464 = vshrl.u32 %v7147, 16
      %v7466 = vrot.slane %v7464, 4
      %v7467 = vshll.u32 %v7147, 16
      %v7469 = vrot.slane %v7467, 5
      %v7470 = vor.u32 %v7466, %v7469
      %v7471 = vrot.slane %v7470, 4
      %v7473 = vshll.u32 %v7148, 16
      %v7475 = vrot.slane %v7473, 5
      %v7476 = vsel %vm1430, %v7471, %v7475
      %v7478 = vshrl.u32 %v7149, 16
      %v7480 = vrot.slane %v7478, 4
      %v7481 = vshll.u32 %v7149, 16
      %v7483 = vrot.slane %v7481, 5
      %v7484 = vor.u32 %v7480, %v7483
      %v7485 = vrot.slane %v7484, 4
      %v7487 = vshll.u32 %v7150, 16
      %v7489 = vrot.slane %v7487, 5
      %v7490 = vsel %vm1430, %v7485, %v7489
      %v7492 = vshrl.u32 %v7151, 16
      %v7494 = vrot.slane %v7492, 4
      %v7495 = vshll.u32 %v7151, 16
      %v7497 = vrot.slane %v7495, 5
      %v7498 = vor.u32 %v7494, %v7497
      %v7499 = vrot.slane %v7498, 4
      %v7501 = vshll.u32 %v7152, 16
      %v7503 = vrot.slane %v7501, 5
      %v7504 = vsel %vm1430, %v7499, %v7503
      %v7506 = vshrl.u32 %v7153, 16
      %v7508 = vrot.slane %v7506, 4
      %v7509 = vshll.u32 %v7153, 16
      %v7511 = vrot.slane %v7509, 5
      %v7512 = vor.u32 %v7508, %v7511
      %v7513 = vrot.slane %v7512, 4
      %v7515 = vshll.u32 %v7154, 16
      %v7517 = vrot.slane %v7515, 5
      %v7518 = vsel %vm1430, %v7513, %v7517
      %v7520 = vshrl.u32 %v7155, 16
      %v7522 = vrot.slane %v7520, 4
      %v7523 = vshll.u32 %v7155, 16
      %v7525 = vrot.slane %v7523, 5
      %v7526 = vor.u32 %v7522, %v7525
      %v7527 = vrot.slane %v7526, 4
      %v7529 = vshll.u32 %v7156, 16
      %v7531 = vrot.slane %v7529, 5
      %v7532 = vsel %vm1430, %v7527, %v7531
      %v7534 = vshrl.u32 %v7157, 16
      %v7536 = vrot.slane %v7534, 4
      %v7537 = vshll.u32 %v7157, 16
      %v7539 = vrot.slane %v7537, 5
      %v7540 = vor.u32 %v7536, %v7539
      %v7541 = vrot.slane %v7540, 4
      %v7543 = vshll.u32 %v7158, 16
      %v7545 = vrot.slane %v7543, 5
      %v7546 = vsel %vm1430, %v7541, %v7545
      %v7548 = vshrl.u32 %v7159, 16
      %v7550 = vrot.slane %v7548, 4
      %v7551 = vshll.u32 %v7159, 16
      %v7553 = vrot.slane %v7551, 5
      %v7554 = vor.u32 %v7550, %v7553
      %v7555 = vrot.slane %v7554, 4
      %v7557 = vshll.u32 %v7160, 16
      %v7559 = vrot.slane %v7557, 5
      %v7560 = vsel %vm1430, %v7555, %v7559
      %v7562 = vshrl.u32 %v7161, 16
      %v7564 = vrot.slane %v7562, 4
      %v7565 = vshll.u32 %v7161, 16
      %v7567 = vrot.slane %v7565, 5
      %v7568 = vor.u32 %v7564, %v7567
      %v7569 = vrot.slane %v7568, 4
      %v7571 = vshll.u32 %v7162, 16
      %v7573 = vrot.slane %v7571, 5
      %v7574 = vsel %vm1430, %v7569, %v7573
      %v7576 = vshrl.u32 %v7163, 16
      %v7578 = vrot.slane %v7576, 4
      %v7579 = vshll.u32 %v7163, 16
      %v7581 = vrot.slane %v7579, 5
      %v7582 = vor.u32 %v7578, %v7581
      %v7583 = vrot.slane %v7582, 4
      %v7585 = vshll.u32 %v7164, 16
      %v7587 = vrot.slane %v7585, 5
      %v7588 = vsel %vm1430, %v7583, %v7587
      %v7590 = vshrl.u32 %v7165, 16
      %v7592 = vrot.slane %v7590, 4
      %v7593 = vshll.u32 %v7165, 16
      %v7595 = vrot.slane %v7593, 5
      %v7596 = vor.u32 %v7592, %v7595
      %v7597 = vrot.slane %v7596, 4
      %v7599 = vshll.u32 %v7166, 16
      %v7601 = vrot.slane %v7599, 5
      %v7602 = vsel %vm1430, %v7597, %v7601
      %v7604 = vshrl.u32 %v7167, 16
      %v7606 = vrot.slane %v7604, 4
      %v7607 = vshll.u32 %v7167, 16
      %v7609 = vrot.slane %v7607, 5
      %v7610 = vor.u32 %v7606, %v7609
      %v7611 = vrot.slane %v7610, 4
      %v7613 = vshll.u32 %v7168, 16
      %v7615 = vrot.slane %v7613, 5
      %v7616 = vsel %vm1430, %v7611, %v7615
      %7649 = vst [vmem:[#allocation4 + $0x4] sm:$0xf] %v7182
      %7650 = vst [vmem:[#allocation4 + $0x28] sm:$0xf] %v7196
      %7651 = vst [vmem:[#allocation4 + $0x4c] sm:$0xf] %v7210
      %7652 = vst [vmem:[#allocation4 + $0x70] sm:$0xf] %v7224
      %7653 = vst [vmem:[#allocation4 + $0x94] sm:$0xf] %v7238
      %7654 = vst [vmem:[#allocation4 + $0xb8] sm:$0xf] %v7252
      %7655 = vst [vmem:[#allocation4 + $0xdc] sm:$0xf] %v7266
      %7656 = vst [vmem:[#allocation4 + $0x100] sm:$0xf] %v7280
      %7657 = vst [vmem:[#allocation4 + $0x124] sm:$0xf] %v7294
      %7658 = vst [vmem:[#allocation4 + $0x148] sm:$0xf] %v7308
      %7659 = vst [vmem:[#allocation4 + $0x16c] sm:$0xf] %v7322
      %7660 = vst [vmem:[#allocation4 + $0x190] sm:$0xf] %v7336
      %7661 = vst [vmem:[#allocation4 + $0x1b4] sm:$0xf] %v7350
      %7662 = vst [vmem:[#allocation4 + $0x1d8] sm:$0xf] %v7364
      %7663 = vst [vmem:[#allocation4 + $0x1fc] sm:$0xf] %v7378
      %7664 = vst [vmem:[#allocation4 + $0x220] sm:$0xf] %v7392
      %7665 = vst [vmem:[#allocation4 + $0x244] sm:$0xf] %v7406
      %7666 = vst [vmem:[#allocation4 + $0x268] sm:$0xf] %v7420
      %7667 = vst [vmem:[#allocation4 + $0x28c] sm:$0xf] %v7434
      %7668 = vst [vmem:[#allocation4 + $0x2b0] sm:$0xf] %v7448
      %7669 = vst [vmem:[#allocation4 + $0x2d4] sm:$0xf] %v7462
      %7670 = vst [vmem:[#allocation4 + $0x2f8] sm:$0xf] %v7476
      %7671 = vst [vmem:[#allocation4 + $0x31c] sm:$0xf] %v7490
      %7672 = vst [vmem:[#allocation4 + $0x340] sm:$0xf] %v7504
      %7673 = vst [vmem:[#allocation4 + $0x364] sm:$0xf] %v7518
      %7674 = vst [vmem:[#allocation4 + $0x388] sm:$0xf] %v7532
      %7675 = vst [vmem:[#allocation4 + $0x3ac] sm:$0xf] %v7546
      %7676 = vst [vmem:[#allocation4 + $0x3d0] sm:$0xf] %v7560
      %7677 = vst [vmem:[#allocation4 + $0x3f4] sm:$0xf] %v7574
      %7678 = vst [vmem:[#allocation4 + $0x418] sm:$0xf] %v7588
      %7679 = vst [vmem:[#allocation4 + $0x43c] sm:$0xf] %v7602
      %7680 = vst [vmem:[#allocation4 + $0x460] sm:$0xf] %v7616
      %v7681 = vld [vmem:[#allocation3] sm:$0xe]
      %v7682 = vld [vmem:[#allocation3 + $0x4] sm:$0x1]
      %v7683 = vld [vmem:[#allocation3 + $0x8] sm:$0xe]
      %v7684 = vld [vmem:[#allocation3 + $0xc] sm:$0x1]
      %v7685 = vld [vmem:[#allocation3 + $0x10] sm:$0xe]
      %v7686 = vld [vmem:[#allocation3 + $0x14] sm:$0x1]
      %v7687 = vld [vmem:[#allocation3 + $0x18] sm:$0xe]
      %v7688 = vld [vmem:[#allocation3 + $0x1c] sm:$0x1]
      %v7689 = vld [vmem:[#allocation3 + $0x20] sm:$0xe]
      %v7690 = vld [vmem:[#allocation3 + $0x24] sm:$0x1]
      %v7691 = vld [vmem:[#allocation3 + $0x28] sm:$0xe]
      %v7692 = vld [vmem:[#allocation3 + $0x2c] sm:$0x1]
      %v7693 = vld [vmem:[#allocation3 + $0x30] sm:$0xe]
      %v7694 = vld [vmem:[#allocation3 + $0x34] sm:$0x1]
      %v7695 = vld [vmem:[#allocation3 + $0x38] sm:$0xe]
      %v7696 = vld [vmem:[#allocation3 + $0x3c] sm:$0x1]
      %v7697 = vld [vmem:[#allocation3 + $0x50] sm:$0xe]
      %v7698 = vld [vmem:[#allocation3 + $0x54] sm:$0x1]
      %v7699 = vld [vmem:[#allocation3 + $0x58] sm:$0xe]
      %v7700 = vld [vmem:[#allocation3 + $0x5c] sm:$0x1]
      %v7701 = vld [vmem:[#allocation3 + $0x60] sm:$0xe]
      %v7702 = vld [vmem:[#allocation3 + $0x64] sm:$0x1]
      %v7703 = vld [vmem:[#allocation3 + $0x68] sm:$0xe]
      %v7704 = vld [vmem:[#allocation3 + $0x6c] sm:$0x1]
      %v7705 = vld [vmem:[#allocation3 + $0x70] sm:$0xe]
      %v7706 = vld [vmem:[#allocation3 + $0x74] sm:$0x1]
      %v7707 = vld [vmem:[#allocation3 + $0x78] sm:$0xe]
      %v7708 = vld [vmem:[#allocation3 + $0x7c] sm:$0x1]
      %v7709 = vld [vmem:[#allocation3 + $0x80] sm:$0xe]
      %v7710 = vld [vmem:[#allocation3 + $0x84] sm:$0x1]
      %v7711 = vld [vmem:[#allocation3 + $0x88] sm:$0xe]
      %v7712 = vld [vmem:[#allocation3 + $0x8c] sm:$0x1]
      %v7713 = vld [vmem:[#allocation3 + $0xa0] sm:$0xe]
      %v7714 = vld [vmem:[#allocation3 + $0xa4] sm:$0x1]
      %v7715 = vld [vmem:[#allocation3 + $0xa8] sm:$0xe]
      %v7716 = vld [vmem:[#allocation3 + $0xac] sm:$0x1]
      %v7717 = vld [vmem:[#allocation3 + $0xb0] sm:$0xe]
      %v7718 = vld [vmem:[#allocation3 + $0xb4] sm:$0x1]
      %v7719 = vld [vmem:[#allocation3 + $0xb8] sm:$0xe]
      %v7720 = vld [vmem:[#allocation3 + $0xbc] sm:$0x1]
      %v7721 = vld [vmem:[#allocation3 + $0xc0] sm:$0xe]
      %v7722 = vld [vmem:[#allocation3 + $0xc4] sm:$0x1]
      %v7723 = vld [vmem:[#allocation3 + $0xc8] sm:$0xe]
      %v7724 = vld [vmem:[#allocation3 + $0xcc] sm:$0x1]
      %v7725 = vld [vmem:[#allocation3 + $0xd0] sm:$0xe]
      %v7726 = vld [vmem:[#allocation3 + $0xd4] sm:$0x1]
      %v7727 = vld [vmem:[#allocation3 + $0xd8] sm:$0xe]
      %v7728 = vld [vmem:[#allocation3 + $0xdc] sm:$0x1]
      %v7729 = vld [vmem:[#allocation3 + $0xf0] sm:$0xe]
      %v7730 = vld [vmem:[#allocation3 + $0xf4] sm:$0x1]
      %v7731 = vld [vmem:[#allocation3 + $0xf8] sm:$0xe]
      %v7732 = vld [vmem:[#allocation3 + $0xfc] sm:$0x1]
      %v7733 = vld [vmem:[#allocation3 + $0x100] sm:$0xe]
      %v7734 = vld [vmem:[#allocation3 + $0x104] sm:$0x1]
      %v7735 = vld [vmem:[#allocation3 + $0x108] sm:$0xe]
      %v7736 = vld [vmem:[#allocation3 + $0x10c] sm:$0x1]
      %v7737 = vld [vmem:[#allocation3 + $0x110] sm:$0xe]
      %v7738 = vld [vmem:[#allocation3 + $0x114] sm:$0x1]
      %v7739 = vld [vmem:[#allocation3 + $0x118] sm:$0xe]
      %v7740 = vld [vmem:[#allocation3 + $0x11c] sm:$0x1]
      %v7741 = vld [vmem:[#allocation3 + $0x120] sm:$0xe]
      %v7742 = vld [vmem:[#allocation3 + $0x124] sm:$0x1]
      %v7743 = vld [vmem:[#allocation3 + $0x128] sm:$0xe]
      %v7744 = vld [vmem:[#allocation3 + $0x12c] sm:$0x1]
      %v7809 = vrot.slane %v7681, 5
      %v7810 = vrot.slane %v7809, 4
      %v7811 = vrot.slane %v7682, 5
      %v7812 = vsel %vm2073, %v7810, %v7811
      %v7813 = vrot.slane %v7683, 5
      %v7814 = vrot.slane %v7813, 4
      %v7815 = vrot.slane %v7684, 5
      %v7816 = vsel %vm2073, %v7814, %v7815
      %v7817 = vrot.slane %v7685, 5
      %v7818 = vrot.slane %v7817, 4
      %v7819 = vrot.slane %v7686, 5
      %v7820 = vsel %vm2073, %v7818, %v7819
      %v7821 = vrot.slane %v7687, 5
      %v7822 = vrot.slane %v7821, 4
      %v7823 = vrot.slane %v7688, 5
      %v7824 = vsel %vm2073, %v7822, %v7823
      %v7825 = vrot.slane %v7689, 5
      %v7826 = vrot.slane %v7825, 4
      %v7827 = vrot.slane %v7690, 5
      %v7828 = vsel %vm2073, %v7826, %v7827
      %v7829 = vrot.slane %v7691, 5
      %v7830 = vrot.slane %v7829, 4
      %v7831 = vrot.slane %v7692, 5
      %v7832 = vsel %vm2073, %v7830, %v7831
      %v7833 = vrot.slane %v7693, 5
      %v7834 = vrot.slane %v7833, 4
      %v7835 = vrot.slane %v7694, 5
      %v7836 = vsel %vm2073, %v7834, %v7835
      %v7837 = vrot.slane %v7695, 5
      %v7838 = vrot.slane %v7837, 4
      %v7839 = vrot.slane %v7696, 5
      %v7840 = vsel %vm2073, %v7838, %v7839
      %v7841 = vrot.slane %v7697, 5
      %v7842 = vrot.slane %v7841, 4
      %v7843 = vrot.slane %v7698, 5
      %v7844 = vsel %vm2073, %v7842, %v7843
      %v7845 = vrot.slane %v7699, 5
      %v7846 = vrot.slane %v7845, 4
      %v7847 = vrot.slane %v7700, 5
      %v7848 = vsel %vm2073, %v7846, %v7847
      %v7849 = vrot.slane %v7701, 5
      %v7850 = vrot.slane %v7849, 4
      %v7851 = vrot.slane %v7702, 5
      %v7852 = vsel %vm2073, %v7850, %v7851
      %v7853 = vrot.slane %v7703, 5
      %v7854 = vrot.slane %v7853, 4
      %v7855 = vrot.slane %v7704, 5
      %v7856 = vsel %vm2073, %v7854, %v7855
      %v7857 = vrot.slane %v7705, 5
      %v7858 = vrot.slane %v7857, 4
      %v7859 = vrot.slane %v7706, 5
      %v7860 = vsel %vm2073, %v7858, %v7859
      %v7861 = vrot.slane %v7707, 5
      %v7862 = vrot.slane %v7861, 4
      %v7863 = vrot.slane %v7708, 5
      %v7864 = vsel %vm2073, %v7862, %v7863
      %v7865 = vrot.slane %v7709, 5
      %v7866 = vrot.slane %v7865, 4
      %v7867 = vrot.slane %v7710, 5
      %v7868 = vsel %vm2073, %v7866, %v7867
      %v7869 = vrot.slane %v7711, 5
      %v7870 = vrot.slane %v7869, 4
      %v7871 = vrot.slane %v7712, 5
      %v7872 = vsel %vm2073, %v7870, %v7871
      %v7873 = vrot.slane %v7713, 5
      %v7874 = vrot.slane %v7873, 4
      %v7875 = vrot.slane %v7714, 5
      %v7876 = vsel %vm2073, %v7874, %v7875
      %v7877 = vrot.slane %v7715, 5
      %v7878 = vrot.slane %v7877, 4
      %v7879 = vrot.slane %v7716, 5
      %v7880 = vsel %vm2073, %v7878, %v7879
      %v7881 = vrot.slane %v7717, 5
      %v7882 = vrot.slane %v7881, 4
      %v7883 = vrot.slane %v7718, 5
      %v7884 = vsel %vm2073, %v7882, %v7883
      %v7885 = vrot.slane %v7719, 5
      %v7886 = vrot.slane %v7885, 4
      %v7887 = vrot.slane %v7720, 5
      %v7888 = vsel %vm2073, %v7886, %v7887
      %v7889 = vrot.slane %v7721, 5
      %v7890 = vrot.slane %v7889, 4
      %v7891 = vrot.slane %v7722, 5
      %v7892 = vsel %vm2073, %v7890, %v7891
      %v7893 = vrot.slane %v7723, 5
      %v7894 = vrot.slane %v7893, 4
      %v7895 = vrot.slane %v7724, 5
      %v7896 = vsel %vm2073, %v7894, %v7895
      %v7897 = vrot.slane %v7725, 5
      %v7898 = vrot.slane %v7897, 4
      %v7899 = vrot.slane %v7726, 5
      %v7900 = vsel %vm2073, %v7898, %v7899
      %v7901 = vrot.slane %v7727, 5
      %v7902 = vrot.slane %v7901, 4
      %v7903 = vrot.slane %v7728, 5
      %v7904 = vsel %vm2073, %v7902, %v7903
      %v7905 = vrot.slane %v7729, 5
      %v7906 = vrot.slane %v7905, 4
      %v7907 = vrot.slane %v7730, 5
      %v7908 = vsel %vm2073, %v7906, %v7907
      %v7909 = vrot.slane %v7731, 5
      %v7910 = vrot.slane %v7909, 4
      %v7911 = vrot.slane %v7732, 5
      %v7912 = vsel %vm2073, %v7910, %v7911
      %v7913 = vrot.slane %v7733, 5
      %v7914 = vrot.slane %v7913, 4
      %v7915 = vrot.slane %v7734, 5
      %v7916 = vsel %vm2073, %v7914, %v7915
      %v7917 = vrot.slane %v7735, 5
      %v7918 = vrot.slane %v7917, 4
      %v7919 = vrot.slane %v7736, 5
      %v7920 = vsel %vm2073, %v7918, %v7919
      %v7921 = vrot.slane %v7737, 5
      %v7922 = vrot.slane %v7921, 4
      %v7923 = vrot.slane %v7738, 5
      %v7924 = vsel %vm2073, %v7922, %v7923
      %v7925 = vrot.slane %v7739, 5
      %v7926 = vrot.slane %v7925, 4
      %v7927 = vrot.slane %v7740, 5
      %v7928 = vsel %vm2073, %v7926, %v7927
      %v7929 = vrot.slane %v7741, 5
      %v7930 = vrot.slane %v7929, 4
      %v7931 = vrot.slane %v7742, 5
      %v7932 = vsel %vm2073, %v7930, %v7931
      %v7933 = vrot.slane %v7743, 5
      %v7934 = vrot.slane %v7933, 4
      %v7935 = vrot.slane %v7744, 5
      %v7936 = vsel %vm2073, %v7934, %v7935
      %7969 = vst [vmem:[#allocation4 + $0x8] sm:$0xf] %v7812
      %7970 = vst [vmem:[#allocation4 + $0x2c] sm:$0xf] %v7816
      %7971 = vst [vmem:[#allocation4 + $0x50] sm:$0xf] %v7820
      %7972 = vst [vmem:[#allocation4 + $0x74] sm:$0xf] %v7824
      %7973 = vst [vmem:[#allocation4 + $0x98] sm:$0xf] %v7828
      %7974 = vst [vmem:[#allocation4 + $0xbc] sm:$0xf] %v7832
      %7975 = vst [vmem:[#allocation4 + $0xe0] sm:$0xf] %v7836
      %7976 = vst [vmem:[#allocation4 + $0x104] sm:$0xf] %v7840
      %7977 = vst [vmem:[#allocation4 + $0x128] sm:$0xf] %v7844
      %7978 = vst [vmem:[#allocation4 + $0x14c] sm:$0xf] %v7848
      %7979 = vst [vmem:[#allocation4 + $0x170] sm:$0xf] %v7852
      %7980 = vst [vmem:[#allocation4 + $0x194] sm:$0xf] %v7856
      %7981 = vst [vmem:[#allocation4 + $0x1b8] sm:$0xf] %v7860
      %7982 = vst [vmem:[#allocation4 + $0x1dc] sm:$0xf] %v7864
      %7983 = vst [vmem:[#allocation4 + $0x200] sm:$0xf] %v7868
      %7984 = vst [vmem:[#allocation4 + $0x224] sm:$0xf] %v7872
      %7985 = vst [vmem:[#allocation4 + $0x248] sm:$0xf] %v7876
      %7986 = vst [vmem:[#allocation4 + $0x26c] sm:$0xf] %v7880
      %7987 = vst [vmem:[#allocation4 + $0x290] sm:$0xf] %v7884
      %7988 = vst [vmem:[#allocation4 + $0x2b4] sm:$0xf] %v7888
      %7989 = vst [vmem:[#allocation4 + $0x2d8] sm:$0xf] %v7892
      %7990 = vst [vmem:[#allocation4 + $0x2fc] sm:$0xf] %v7896
      %7991 = vst [vmem:[#allocation4 + $0x320] sm:$0xf] %v7900
      %7992 = vst [vmem:[#allocation4 + $0x344] sm:$0xf] %v7904
      %7993 = vst [vmem:[#allocation4 + $0x368] sm:$0xf] %v7908
      %7994 = vst [vmem:[#allocation4 + $0x38c] sm:$0xf] %v7912
      %7995 = vst [vmem:[#allocation4 + $0x3b0] sm:$0xf] %v7916
      %7996 = vst [vmem:[#allocation4 + $0x3d4] sm:$0xf] %v7920
      %7997 = vst [vmem:[#allocation4 + $0x3f8] sm:$0xf] %v7924
      %7998 = vst [vmem:[#allocation4 + $0x41c] sm:$0xf] %v7928
      %7999 = vst [vmem:[#allocation4 + $0x440] sm:$0xf] %v7932
      %8000 = vst [vmem:[#allocation4 + $0x464] sm:$0xf] %v7936
      %v8001 = vld [vmem:[%s6848] sm:$0xf]
      %v8002 = vld [vmem:[%s6848 + $0x8] sm:$0xf]
      %v8003 = vld [vmem:[%s6848 + $0x10] sm:$0xf]
      %v8004 = vld [vmem:[%s6848 + $0x18] sm:$0xf]
      %v8005 = vld [vmem:[%s6848 + $0x20] sm:$0xf]
      %v8006 = vld [vmem:[%s6848 + $0x28] sm:$0xf]
      %v8007 = vld [vmem:[%s6848 + $0x30] sm:$0xf]
      %v8008 = vld [vmem:[%s6848 + $0x38] sm:$0xf]
      %v8009 = vld [vmem:[%s6848 + $0x50] sm:$0xf]
      %v8010 = vld [vmem:[%s6848 + $0x58] sm:$0xf]
      %v8011 = vld [vmem:[%s6848 + $0x60] sm:$0xf]
      %v8012 = vld [vmem:[%s6848 + $0x68] sm:$0xf]
      %v8013 = vld [vmem:[%s6848 + $0x70] sm:$0xf]
      %v8014 = vld [vmem:[%s6848 + $0x78] sm:$0xf]
      %v8015 = vld [vmem:[%s6848 + $0x80] sm:$0xf]
      %v8016 = vld [vmem:[%s6848 + $0x88] sm:$0xf]
      %v8017 = vld [vmem:[%s6848 + $0xa0] sm:$0xf]
      %v8018 = vld [vmem:[%s6848 + $0xa8] sm:$0xf]
      %v8019 = vld [vmem:[%s6848 + $0xb0] sm:$0xf]
      %v8020 = vld [vmem:[%s6848 + $0xb8] sm:$0xf]
      %v8021 = vld [vmem:[%s6848 + $0xc0] sm:$0xf]
      %v8022 = vld [vmem:[%s6848 + $0xc8] sm:$0xf]
      %v8023 = vld [vmem:[%s6848 + $0xd0] sm:$0xf]
      %v8024 = vld [vmem:[%s6848 + $0xd8] sm:$0xf]
      %v8025 = vld [vmem:[%s6848 + $0xf0] sm:$0xf]
      %v8026 = vld [vmem:[%s6848 + $0xf8] sm:$0xf]
      %v8027 = vld [vmem:[%s6848 + $0x100] sm:$0xf]
      %v8028 = vld [vmem:[%s6848 + $0x108] sm:$0xf]
      %v8029 = vld [vmem:[%s6848 + $0x110] sm:$0xf]
      %v8030 = vld [vmem:[%s6848 + $0x118] sm:$0xf]
      %v8031 = vld [vmem:[%s6848 + $0x120] sm:$0xf]
      %v8032 = vld [vmem:[%s6848 + $0x128] sm:$0xf]
      %8033 = vst [vmem:[#allocation4 + $0xc] sm:$0xf] %v8001
      %8034 = vst [vmem:[#allocation4 + $0x30] sm:$0xf] %v8002
      %8035 = vst [vmem:[#allocation4 + $0x54] sm:$0xf] %v8003
      %8036 = vst [vmem:[#allocation4 + $0x78] sm:$0xf] %v8004
      %8037 = vst [vmem:[#allocation4 + $0x9c] sm:$0xf] %v8005
      %8038 = vst [vmem:[#allocation4 + $0xc0] sm:$0xf] %v8006
      %8039 = vst [vmem:[#allocation4 + $0xe4] sm:$0xf] %v8007
      %8040 = vst [vmem:[#allocation4 + $0x108] sm:$0xf] %v8008
      %8041 = vst [vmem:[#allocation4 + $0x12c] sm:$0xf] %v8009
      %8042 = vst [vmem:[#allocation4 + $0x150] sm:$0xf] %v8010
      %8043 = vst [vmem:[#allocation4 + $0x174] sm:$0xf] %v8011
      %8044 = vst [vmem:[#allocation4 + $0x198] sm:$0xf] %v8012
      %8045 = vst [vmem:[#allocation4 + $0x1bc] sm:$0xf] %v8013
      %8046 = vst [vmem:[#allocation4 + $0x1e0] sm:$0xf] %v8014
      %8047 = vst [vmem:[#allocation4 + $0x204] sm:$0xf] %v8015
      %8048 = vst [vmem:[#allocation4 + $0x228] sm:$0xf] %v8016
      %8049 = vst [vmem:[#allocation4 + $0x24c] sm:$0xf] %v8017
      %8050 = vst [vmem:[#allocation4 + $0x270] sm:$0xf] %v8018
      %8051 = vst [vmem:[#allocation4 + $0x294] sm:$0xf] %v8019
      %8052 = vst [vmem:[#allocation4 + $0x2b8] sm:$0xf] %v8020
      %8053 = vst [vmem:[#allocation4 + $0x2dc] sm:$0xf] %v8021
      %8054 = vst [vmem:[#allocation4 + $0x300] sm:$0xf] %v8022
      %8055 = vst [vmem:[#allocation4 + $0x324] sm:$0xf] %v8023
      %8056 = vst [vmem:[#allocation4 + $0x348] sm:$0xf] %v8024
      %8057 = vst [vmem:[#allocation4 + $0x36c] sm:$0xf] %v8025
      %8058 = vst [vmem:[#allocation4 + $0x390] sm:$0xf] %v8026
      %8059 = vst [vmem:[#allocation4 + $0x3b4] sm:$0xf] %v8027
      %8060 = vst [vmem:[#allocation4 + $0x3d8] sm:$0xf] %v8028
      %8061 = vst [vmem:[#allocation4 + $0x3fc] sm:$0xf] %v8029
      %8062 = vst [vmem:[#allocation4 + $0x420] sm:$0xf] %v8030
      %8063 = vst [vmem:[#allocation4 + $0x444] sm:$0xf] %v8031
      %8064 = vst [vmem:[#allocation4 + $0x468] sm:$0xf] %v8032
      %v8065 = vld [vmem:[%s6848] sm:$0xf]
      %v8066 = vld [vmem:[%s6848 + $0x4] sm:$0x1]
      %v8067 = vld [vmem:[%s6848 + $0x8] sm:$0xf]
      %v8068 = vld [vmem:[%s6848 + $0xc] sm:$0x1]
      %v8069 = vld [vmem:[%s6848 + $0x10] sm:$0xf]
      %v8070 = vld [vmem:[%s6848 + $0x14] sm:$0x1]
      %v8071 = vld [vmem:[%s6848 + $0x18] sm:$0xf]
      %v8072 = vld [vmem:[%s6848 + $0x1c] sm:$0x1]
      %v8073 = vld [vmem:[%s6848 + $0x20] sm:$0xf]
      %v8074 = vld [vmem:[%s6848 + $0x24] sm:$0x1]
      %v8075 = vld [vmem:[%s6848 + $0x28] sm:$0xf]
      %v8076 = vld [vmem:[%s6848 + $0x2c] sm:$0x1]
      %v8077 = vld [vmem:[%s6848 + $0x30] sm:$0xf]
      %v8078 = vld [vmem:[%s6848 + $0x34] sm:$0x1]
      %v8079 = vld [vmem:[%s6848 + $0x38] sm:$0xf]
      %v8080 = vld [vmem:[%s6848 + $0x3c] sm:$0x1]
      %v8081 = vld [vmem:[%s6848 + $0x50] sm:$0xf]
      %v8082 = vld [vmem:[%s6848 + $0x54] sm:$0x1]
      %v8083 = vld [vmem:[%s6848 + $0x58] sm:$0xf]
      %v8084 = vld [vmem:[%s6848 + $0x5c] sm:$0x1]
      %v8085 = vld [vmem:[%s6848 + $0x60] sm:$0xf]
      %v8086 = vld [vmem:[%s6848 + $0x64] sm:$0x1]
      %v8087 = vld [vmem:[%s6848 + $0x68] sm:$0xf]
      %v8088 = vld [vmem:[%s6848 + $0x6c] sm:$0x1]
      %v8089 = vld [vmem:[%s6848 + $0x70] sm:$0xf]
      %v8090 = vld [vmem:[%s6848 + $0x74] sm:$0x1]
      %v8091 = vld [vmem:[%s6848 + $0x78] sm:$0xf]
      %v8092 = vld [vmem:[%s6848 + $0x7c] sm:$0x1]
      %v8093 = vld [vmem:[%s6848 + $0x80] sm:$0xf]
      %v8094 = vld [vmem:[%s6848 + $0x84] sm:$0x1]
      %v8095 = vld [vmem:[%s6848 + $0x88] sm:$0xf]
      %v8096 = vld [vmem:[%s6848 + $0x8c] sm:$0x1]
      %v8097 = vld [vmem:[%s6848 + $0xa0] sm:$0xf]
      %v8098 = vld [vmem:[%s6848 + $0xa4] sm:$0x1]
      %v8099 = vld [vmem:[%s6848 + $0xa8] sm:$0xf]
      %v8100 = vld [vmem:[%s6848 + $0xac] sm:$0x1]
      %v8101 = vld [vmem:[%s6848 + $0xb0] sm:$0xf]
      %v8102 = vld [vmem:[%s6848 + $0xb4] sm:$0x1]
      %v8103 = vld [vmem:[%s6848 + $0xb8] sm:$0xf]
      %v8104 = vld [vmem:[%s6848 + $0xbc] sm:$0x1]
      %v8105 = vld [vmem:[%s6848 + $0xc0] sm:$0xf]
      %v8106 = vld [vmem:[%s6848 + $0xc4] sm:$0x1]
      %v8107 = vld [vmem:[%s6848 + $0xc8] sm:$0xf]
      %v8108 = vld [vmem:[%s6848 + $0xcc] sm:$0x1]
      %v8109 = vld [vmem:[%s6848 + $0xd0] sm:$0xf]
      %v8110 = vld [vmem:[%s6848 + $0xd4] sm:$0x1]
      %v8111 = vld [vmem:[%s6848 + $0xd8] sm:$0xf]
      %v8112 = vld [vmem:[%s6848 + $0xdc] sm:$0x1]
      %v8113 = vld [vmem:[%s6848 + $0xf0] sm:$0xf]
      %v8114 = vld [vmem:[%s6848 + $0xf4] sm:$0x1]
      %v8115 = vld [vmem:[%s6848 + $0xf8] sm:$0xf]
      %v8116 = vld [vmem:[%s6848 + $0xfc] sm:$0x1]
      %v8117 = vld [vmem:[%s6848 + $0x100] sm:$0xf]
      %v8118 = vld [vmem:[%s6848 + $0x104] sm:$0x1]
      %v8119 = vld [vmem:[%s6848 + $0x108] sm:$0xf]
      %v8120 = vld [vmem:[%s6848 + $0x10c] sm:$0x1]
      %v8121 = vld [vmem:[%s6848 + $0x110] sm:$0xf]
      %v8122 = vld [vmem:[%s6848 + $0x114] sm:$0x1]
      %v8123 = vld [vmem:[%s6848 + $0x118] sm:$0xf]
      %v8124 = vld [vmem:[%s6848 + $0x11c] sm:$0x1]
      %v8125 = vld [vmem:[%s6848 + $0x120] sm:$0xf]
      %v8126 = vld [vmem:[%s6848 + $0x124] sm:$0x1]
      %v8127 = vld [vmem:[%s6848 + $0x128] sm:$0xf]
      %v8128 = vld [vmem:[%s6848 + $0x12c] sm:$0x1]
      %v8130 = vshrl.u32 %v8065, 16
      %v8132 = vrot.slane %v8130, 4
      %v8133 = vshll.u32 %v8065, 16
      %v8135 = vrot.slane %v8133, 5
      %v8136 = vor.u32 %v8132, %v8135
      %v8137 = vrot.slane %v8136, 4
      %v8139 = vshll.u32 %v8066, 16
      %v8141 = vrot.slane %v8139, 5
      %v8142 = vsel %vm1430, %v8137, %v8141
      %v8144 = vshrl.u32 %v8067, 16
      %v8146 = vrot.slane %v8144, 4
      %v8147 = vshll.u32 %v8067, 16
      %v8149 = vrot.slane %v8147, 5
      %v8150 = vor.u32 %v8146, %v8149
      %v8151 = vrot.slane %v8150, 4
      %v8153 = vshll.u32 %v8068, 16
      %v8155 = vrot.slane %v8153, 5
      %v8156 = vsel %vm1430, %v8151, %v8155
      %v8158 = vshrl.u32 %v8069, 16
      %v8160 = vrot.slane %v8158, 4
      %v8161 = vshll.u32 %v8069, 16
      %v8163 = vrot.slane %v8161, 5
      %v8164 = vor.u32 %v8160, %v8163
      %v8165 = vrot.slane %v8164, 4
      %v8167 = vshll.u32 %v8070, 16
      %v8169 = vrot.slane %v8167, 5
      %v8170 = vsel %vm1430, %v8165, %v8169
      %v8172 = vshrl.u32 %v8071, 16
      %v8174 = vrot.slane %v8172, 4
      %v8175 = vshll.u32 %v8071, 16
      %v8177 = vrot.slane %v8175, 5
      %v8178 = vor.u32 %v8174, %v8177
      %v8179 = vrot.slane %v8178, 4
      %v8181 = vshll.u32 %v8072, 16
      %v8183 = vrot.slane %v8181, 5
      %v8184 = vsel %vm1430, %v8179, %v8183
      %v8186 = vshrl.u32 %v8073, 16
      %v8188 = vrot.slane %v8186, 4
      %v8189 = vshll.u32 %v8073, 16
      %v8191 = vrot.slane %v8189, 5
      %v8192 = vor.u32 %v8188, %v8191
      %v8193 = vrot.slane %v8192, 4
      %v8195 = vshll.u32 %v8074, 16
      %v8197 = vrot.slane %v8195, 5
      %v8198 = vsel %vm1430, %v8193, %v8197
      %v8200 = vshrl.u32 %v8075, 16
      %v8202 = vrot.slane %v8200, 4
      %v8203 = vshll.u32 %v8075, 16
      %v8205 = vrot.slane %v8203, 5
      %v8206 = vor.u32 %v8202, %v8205
      %v8207 = vrot.slane %v8206, 4
      %v8209 = vshll.u32 %v8076, 16
      %v8211 = vrot.slane %v8209, 5
      %v8212 = vsel %vm1430, %v8207, %v8211
      %v8214 = vshrl.u32 %v8077, 16
      %v8216 = vrot.slane %v8214, 4
      %v8217 = vshll.u32 %v8077, 16
      %v8219 = vrot.slane %v8217, 5
      %v8220 = vor.u32 %v8216, %v8219
      %v8221 = vrot.slane %v8220, 4
      %v8223 = vshll.u32 %v8078, 16
      %v8225 = vrot.slane %v8223, 5
      %v8226 = vsel %vm1430, %v8221, %v8225
      %v8228 = vshrl.u32 %v8079, 16
      %v8230 = vrot.slane %v8228, 4
      %v8231 = vshll.u32 %v8079, 16
      %v8233 = vrot.slane %v8231, 5
      %v8234 = vor.u32 %v8230, %v8233
      %v8235 = vrot.slane %v8234, 4
      %v8237 = vshll.u32 %v8080, 16
      %v8239 = vrot.slane %v8237, 5
      %v8240 = vsel %vm1430, %v8235, %v8239
      %v8242 = vshrl.u32 %v8081, 16
      %v8244 = vrot.slane %v8242, 4
      %v8245 = vshll.u32 %v8081, 16
      %v8247 = vrot.slane %v8245, 5
      %v8248 = vor.u32 %v8244, %v8247
      %v8249 = vrot.slane %v8248, 4
      %v8251 = vshll.u32 %v8082, 16
      %v8253 = vrot.slane %v8251, 5
      %v8254 = vsel %vm1430, %v8249, %v8253
      %v8256 = vshrl.u32 %v8083, 16
      %v8258 = vrot.slane %v8256, 4
      %v8259 = vshll.u32 %v8083, 16
      %v8261 = vrot.slane %v8259, 5
      %v8262 = vor.u32 %v8258, %v8261
      %v8263 = vrot.slane %v8262, 4
      %v8265 = vshll.u32 %v8084, 16
      %v8267 = vrot.slane %v8265, 5
      %v8268 = vsel %vm1430, %v8263, %v8267
      %v8270 = vshrl.u32 %v8085, 16
      %v8272 = vrot.slane %v8270, 4
      %v8273 = vshll.u32 %v8085, 16
      %v8275 = vrot.slane %v8273, 5
      %v8276 = vor.u32 %v8272, %v8275
      %v8277 = vrot.slane %v8276, 4
      %v8279 = vshll.u32 %v8086, 16
      %v8281 = vrot.slane %v8279, 5
      %v8282 = vsel %vm1430, %v8277, %v8281
      %v8284 = vshrl.u32 %v8087, 16
      %v8286 = vrot.slane %v8284, 4
      %v8287 = vshll.u32 %v8087, 16
      %v8289 = vrot.slane %v8287, 5
      %v8290 = vor.u32 %v8286, %v8289
      %v8291 = vrot.slane %v8290, 4
      %v8293 = vshll.u32 %v8088, 16
      %v8295 = vrot.slane %v8293, 5
      %v8296 = vsel %vm1430, %v8291, %v8295
      %v8298 = vshrl.u32 %v8089, 16
      %v8300 = vrot.slane %v8298, 4
      %v8301 = vshll.u32 %v8089, 16
      %v8303 = vrot.slane %v8301, 5
      %v8304 = vor.u32 %v8300, %v8303
      %v8305 = vrot.slane %v8304, 4
      %v8307 = vshll.u32 %v8090, 16
      %v8309 = vrot.slane %v8307, 5
      %v8310 = vsel %vm1430, %v8305, %v8309
      %v8312 = vshrl.u32 %v8091, 16
      %v8314 = vrot.slane %v8312, 4
      %v8315 = vshll.u32 %v8091, 16
      %v8317 = vrot.slane %v8315, 5
      %v8318 = vor.u32 %v8314, %v8317
      %v8319 = vrot.slane %v8318, 4
      %v8321 = vshll.u32 %v8092, 16
      %v8323 = vrot.slane %v8321, 5
      %v8324 = vsel %vm1430, %v8319, %v8323
      %v8326 = vshrl.u32 %v8093, 16
      %v8328 = vrot.slane %v8326, 4
      %v8329 = vshll.u32 %v8093, 16
      %v8331 = vrot.slane %v8329, 5
      %v8332 = vor.u32 %v8328, %v8331
      %v8333 = vrot.slane %v8332, 4
      %v8335 = vshll.u32 %v8094, 16
      %v8337 = vrot.slane %v8335, 5
      %v8338 = vsel %vm1430, %v8333, %v8337
      %v8340 = vshrl.u32 %v8095, 16
      %v8342 = vrot.slane %v8340, 4
      %v8343 = vshll.u32 %v8095, 16
      %v8345 = vrot.slane %v8343, 5
      %v8346 = vor.u32 %v8342, %v8345
      %v8347 = vrot.slane %v8346, 4
      %v8349 = vshll.u32 %v8096, 16
      %v8351 = vrot.slane %v8349, 5
      %v8352 = vsel %vm1430, %v8347, %v8351
      %v8354 = vshrl.u32 %v8097, 16
      %v8356 = vrot.slane %v8354, 4
      %v8357 = vshll.u32 %v8097, 16
      %v8359 = vrot.slane %v8357, 5
      %v8360 = vor.u32 %v8356, %v8359
      %v8361 = vrot.slane %v8360, 4
      %v8363 = vshll.u32 %v8098, 16
      %v8365 = vrot.slane %v8363, 5
      %v8366 = vsel %vm1430, %v8361, %v8365
      %v8368 = vshrl.u32 %v8099, 16
      %v8370 = vrot.slane %v8368, 4
      %v8371 = vshll.u32 %v8099, 16
      %v8373 = vrot.slane %v8371, 5
      %v8374 = vor.u32 %v8370, %v8373
      %v8375 = vrot.slane %v8374, 4
      %v8377 = vshll.u32 %v8100, 16
      %v8379 = vrot.slane %v8377, 5
      %v8380 = vsel %vm1430, %v8375, %v8379
      %v8382 = vshrl.u32 %v8101, 16
      %v8384 = vrot.slane %v8382, 4
      %v8385 = vshll.u32 %v8101, 16
      %v8387 = vrot.slane %v8385, 5
      %v8388 = vor.u32 %v8384, %v8387
      %v8389 = vrot.slane %v8388, 4
      %v8391 = vshll.u32 %v8102, 16
      %v8393 = vrot.slane %v8391, 5
      %v8394 = vsel %vm1430, %v8389, %v8393
      %v8396 = vshrl.u32 %v8103, 16
      %v8398 = vrot.slane %v8396, 4
      %v8399 = vshll.u32 %v8103, 16
      %v8401 = vrot.slane %v8399, 5
      %v8402 = vor.u32 %v8398, %v8401
      %v8403 = vrot.slane %v8402, 4
      %v8405 = vshll.u32 %v8104, 16
      %v8407 = vrot.slane %v8405, 5
      %v8408 = vsel %vm1430, %v8403, %v8407
      %v8410 = vshrl.u32 %v8105, 16
      %v8412 = vrot.slane %v8410, 4
      %v8413 = vshll.u32 %v8105, 16
      %v8415 = vrot.slane %v8413, 5
      %v8416 = vor.u32 %v8412, %v8415
      %v8417 = vrot.slane %v8416, 4
      %v8419 = vshll.u32 %v8106, 16
      %v8421 = vrot.slane %v8419, 5
      %v8422 = vsel %vm1430, %v8417, %v8421
      %v8424 = vshrl.u32 %v8107, 16
      %v8426 = vrot.slane %v8424, 4
      %v8427 = vshll.u32 %v8107, 16
      %v8429 = vrot.slane %v8427, 5
      %v8430 = vor.u32 %v8426, %v8429
      %v8431 = vrot.slane %v8430, 4
      %v8433 = vshll.u32 %v8108, 16
      %v8435 = vrot.slane %v8433, 5
      %v8436 = vsel %vm1430, %v8431, %v8435
      %v8438 = vshrl.u32 %v8109, 16
      %v8440 = vrot.slane %v8438, 4
      %v8441 = vshll.u32 %v8109, 16
      %v8443 = vrot.slane %v8441, 5
      %v8444 = vor.u32 %v8440, %v8443
      %v8445 = vrot.slane %v8444, 4
      %v8447 = vshll.u32 %v8110, 16
      %v8449 = vrot.slane %v8447, 5
      %v8450 = vsel %vm1430, %v8445, %v8449
      %v8452 = vshrl.u32 %v8111, 16
      %v8454 = vrot.slane %v8452, 4
      %v8455 = vshll.u32 %v8111, 16
      %v8457 = vrot.slane %v8455, 5
      %v8458 = vor.u32 %v8454, %v8457
      %v8459 = vrot.slane %v8458, 4
      %v8461 = vshll.u32 %v8112, 16
      %v8463 = vrot.slane %v8461, 5
      %v8464 = vsel %vm1430, %v8459, %v8463
      %v8466 = vshrl.u32 %v8113, 16
      %v8468 = vrot.slane %v8466, 4
      %v8469 = vshll.u32 %v8113, 16
      %v8471 = vrot.slane %v8469, 5
      %v8472 = vor.u32 %v8468, %v8471
      %v8473 = vrot.slane %v8472, 4
      %v8475 = vshll.u32 %v8114, 16
      %v8477 = vrot.slane %v8475, 5
      %v8478 = vsel %vm1430, %v8473, %v8477
      %v8480 = vshrl.u32 %v8115, 16
      %v8482 = vrot.slane %v8480, 4
      %v8483 = vshll.u32 %v8115, 16
      %v8485 = vrot.slane %v8483, 5
      %v8486 = vor.u32 %v8482, %v8485
      %v8487 = vrot.slane %v8486, 4
      %v8489 = vshll.u32 %v8116, 16
      %v8491 = vrot.slane %v8489, 5
      %v8492 = vsel %vm1430, %v8487, %v8491
      %v8494 = vshrl.u32 %v8117, 16
      %v8496 = vrot.slane %v8494, 4
      %v8497 = vshll.u32 %v8117, 16
      %v8499 = vrot.slane %v8497, 5
      %v8500 = vor.u32 %v8496, %v8499
      %v8501 = vrot.slane %v8500, 4
      %v8503 = vshll.u32 %v8118, 16
      %v8505 = vrot.slane %v8503, 5
      %v8506 = vsel %vm1430, %v8501, %v8505
      %v8508 = vshrl.u32 %v8119, 16
      %v8510 = vrot.slane %v8508, 4
      %v8511 = vshll.u32 %v8119, 16
      %v8513 = vrot.slane %v8511, 5
      %v8514 = vor.u32 %v8510, %v8513
      %v8515 = vrot.slane %v8514, 4
      %v8517 = vshll.u32 %v8120, 16
      %v8519 = vrot.slane %v8517, 5
      %v8520 = vsel %vm1430, %v8515, %v8519
      %v8522 = vshrl.u32 %v8121, 16
      %v8524 = vrot.slane %v8522, 4
      %v8525 = vshll.u32 %v8121, 16
      %v8527 = vrot.slane %v8525, 5
      %v8528 = vor.u32 %v8524, %v8527
      %v8529 = vrot.slane %v8528, 4
      %v8531 = vshll.u32 %v8122, 16
      %v8533 = vrot.slane %v8531, 5
      %v8534 = vsel %vm1430, %v8529, %v8533
      %v8536 = vshrl.u32 %v8123, 16
      %v8538 = vrot.slane %v8536, 4
      %v8539 = vshll.u32 %v8123, 16
      %v8541 = vrot.slane %v8539, 5
      %v8542 = vor.u32 %v8538, %v8541
      %v8543 = vrot.slane %v8542, 4
      %v8545 = vshll.u32 %v8124, 16
      %v8547 = vrot.slane %v8545, 5
      %v8548 = vsel %vm1430, %v8543, %v8547
      %v8550 = vshrl.u32 %v8125, 16
      %v8552 = vrot.slane %v8550, 4
      %v8553 = vshll.u32 %v8125, 16
      %v8555 = vrot.slane %v8553, 5
      %v8556 = vor.u32 %v8552, %v8555
      %v8557 = vrot.slane %v8556, 4
      %v8559 = vshll.u32 %v8126, 16
      %v8561 = vrot.slane %v8559, 5
      %v8562 = vsel %vm1430, %v8557, %v8561
      %v8564 = vshrl.u32 %v8127, 16
      %v8566 = vrot.slane %v8564, 4
      %v8567 = vshll.u32 %v8127, 16
      %v8569 = vrot.slane %v8567, 5
      %v8570 = vor.u32 %v8566, %v8569
      %v8571 = vrot.slane %v8570, 4
      %v8573 = vshll.u32 %v8128, 16
      %v8575 = vrot.slane %v8573, 5
      %v8576 = vsel %vm1430, %v8571, %v8575
      %8609 = vst [vmem:[#allocation4 + $0x10] sm:$0xf] %v8142
      %8610 = vst [vmem:[#allocation4 + $0x34] sm:$0xf] %v8156
      %8611 = vst [vmem:[#allocation4 + $0x58] sm:$0xf] %v8170
      %8612 = vst [vmem:[#allocation4 + $0x7c] sm:$0xf] %v8184
      %8613 = vst [vmem:[#allocation4 + $0xa0] sm:$0xf] %v8198
      %8614 = vst [vmem:[#allocation4 + $0xc4] sm:$0xf] %v8212
      %8615 = vst [vmem:[#allocation4 + $0xe8] sm:$0xf] %v8226
      %8616 = vst [vmem:[#allocation4 + $0x10c] sm:$0xf] %v8240
      %8617 = vst [vmem:[#allocation4 + $0x130] sm:$0xf] %v8254
      %8618 = vst [vmem:[#allocation4 + $0x154] sm:$0xf] %v8268
      %8619 = vst [vmem:[#allocation4 + $0x178] sm:$0xf] %v8282
      %8620 = vst [vmem:[#allocation4 + $0x19c] sm:$0xf] %v8296
      %8621 = vst [vmem:[#allocation4 + $0x1c0] sm:$0xf] %v8310
      %8622 = vst [vmem:[#allocation4 + $0x1e4] sm:$0xf] %v8324
      %8623 = vst [vmem:[#allocation4 + $0x208] sm:$0xf] %v8338
      %8624 = vst [vmem:[#allocation4 + $0x22c] sm:$0xf] %v8352
      %8625 = vst [vmem:[#allocation4 + $0x250] sm:$0xf] %v8366
      %8626 = vst [vmem:[#allocation4 + $0x274] sm:$0xf] %v8380
      %8627 = vst [vmem:[#allocation4 + $0x298] sm:$0xf] %v8394
      %8628 = vst [vmem:[#allocation4 + $0x2bc] sm:$0xf] %v8408
      %8629 = vst [vmem:[#allocation4 + $0x2e0] sm:$0xf] %v8422
      %8630 = vst [vmem:[#allocation4 + $0x304] sm:$0xf] %v8436
      %8631 = vst [vmem:[#allocation4 + $0x328] sm:$0xf] %v8450
      %8632 = vst [vmem:[#allocation4 + $0x34c] sm:$0xf] %v8464
      %8633 = vst [vmem:[#allocation4 + $0x370] sm:$0xf] %v8478
      %8634 = vst [vmem:[#allocation4 + $0x394] sm:$0xf] %v8492
      %8635 = vst [vmem:[#allocation4 + $0x3b8] sm:$0xf] %v8506
      %8636 = vst [vmem:[#allocation4 + $0x3dc] sm:$0xf] %v8520
      %8637 = vst [vmem:[#allocation4 + $0x400] sm:$0xf] %v8534
      %8638 = vst [vmem:[#allocation4 + $0x424] sm:$0xf] %v8548
      %8639 = vst [vmem:[#allocation4 + $0x448] sm:$0xf] %v8562
      %8640 = vst [vmem:[#allocation4 + $0x46c] sm:$0xf] %v8576
      %v8641 = vld [vmem:[%s6848] sm:$0xe]
      %v8642 = vld [vmem:[%s6848 + $0x4] sm:$0x1]
      %v8643 = vld [vmem:[%s6848 + $0x8] sm:$0xe]
      %v8644 = vld [vmem:[%s6848 + $0xc] sm:$0x1]
      %v8645 = vld [vmem:[%s6848 + $0x10] sm:$0xe]
      %v8646 = vld [vmem:[%s6848 + $0x14] sm:$0x1]
      %v8647 = vld [vmem:[%s6848 + $0x18] sm:$0xe]
      %v8648 = vld [vmem:[%s6848 + $0x1c] sm:$0x1]
      %v8649 = vld [vmem:[%s6848 + $0x20] sm:$0xe]
      %v8650 = vld [vmem:[%s6848 + $0x24] sm:$0x1]
      %v8651 = vld [vmem:[%s6848 + $0x28] sm:$0xe]
      %v8652 = vld [vmem:[%s6848 + $0x2c] sm:$0x1]
      %v8653 = vld [vmem:[%s6848 + $0x30] sm:$0xe]
      %v8654 = vld [vmem:[%s6848 + $0x34] sm:$0x1]
      %v8655 = vld [vmem:[%s6848 + $0x38] sm:$0xe]
      %v8656 = vld [vmem:[%s6848 + $0x3c] sm:$0x1]
      %v8657 = vld [vmem:[%s6848 + $0x50] sm:$0xe]
      %v8658 = vld [vmem:[%s6848 + $0x54] sm:$0x1]
      %v8659 = vld [vmem:[%s6848 + $0x58] sm:$0xe]
      %v8660 = vld [vmem:[%s6848 + $0x5c] sm:$0x1]
      %v8661 = vld [vmem:[%s6848 + $0x60] sm:$0xe]
      %v8662 = vld [vmem:[%s6848 + $0x64] sm:$0x1]
      %v8663 = vld [vmem:[%s6848 + $0x68] sm:$0xe]
      %v8664 = vld [vmem:[%s6848 + $0x6c] sm:$0x1]
      %v8665 = vld [vmem:[%s6848 + $0x70] sm:$0xe]
      %v8666 = vld [vmem:[%s6848 + $0x74] sm:$0x1]
      %v8667 = vld [vmem:[%s6848 + $0x78] sm:$0xe]
      %v8668 = vld [vmem:[%s6848 + $0x7c] sm:$0x1]
      %v8669 = vld [vmem:[%s6848 + $0x80] sm:$0xe]
      %v8670 = vld [vmem:[%s6848 + $0x84] sm:$0x1]
      %v8671 = vld [vmem:[%s6848 + $0x88] sm:$0xe]
      %v8672 = vld [vmem:[%s6848 + $0x8c] sm:$0x1]
      %v8673 = vld [vmem:[%s6848 + $0xa0] sm:$0xe]
      %v8674 = vld [vmem:[%s6848 + $0xa4] sm:$0x1]
      %v8675 = vld [vmem:[%s6848 + $0xa8] sm:$0xe]
      %v8676 = vld [vmem:[%s6848 + $0xac] sm:$0x1]
      %v8677 = vld [vmem:[%s6848 + $0xb0] sm:$0xe]
      %v8678 = vld [vmem:[%s6848 + $0xb4] sm:$0x1]
      %v8679 = vld [vmem:[%s6848 + $0xb8] sm:$0xe]
      %v8680 = vld [vmem:[%s6848 + $0xbc] sm:$0x1]
      %v8681 = vld [vmem:[%s6848 + $0xc0] sm:$0xe]
      %v8682 = vld [vmem:[%s6848 + $0xc4] sm:$0x1]
      %v8683 = vld [vmem:[%s6848 + $0xc8] sm:$0xe]
      %v8684 = vld [vmem:[%s6848 + $0xcc] sm:$0x1]
      %v8685 = vld [vmem:[%s6848 + $0xd0] sm:$0xe]
      %v8686 = vld [vmem:[%s6848 + $0xd4] sm:$0x1]
      %v8687 = vld [vmem:[%s6848 + $0xd8] sm:$0xe]
      %v8688 = vld [vmem:[%s6848 + $0xdc] sm:$0x1]
      %v8689 = vld [vmem:[%s6848 + $0xf0] sm:$0xe]
      %v8690 = vld [vmem:[%s6848 + $0xf4] sm:$0x1]
      %v8691 = vld [vmem:[%s6848 + $0xf8] sm:$0xe]
      %v8692 = vld [vmem:[%s6848 + $0xfc] sm:$0x1]
      %v8693 = vld [vmem:[%s6848 + $0x100] sm:$0xe]
      %v8694 = vld [vmem:[%s6848 + $0x104] sm:$0x1]
      %v8695 = vld [vmem:[%s6848 + $0x108] sm:$0xe]
      %v8696 = vld [vmem:[%s6848 + $0x10c] sm:$0x1]
      %v8697 = vld [vmem:[%s6848 + $0x110] sm:$0xe]
      %v8698 = vld [vmem:[%s6848 + $0x114] sm:$0x1]
      %v8699 = vld [vmem:[%s6848 + $0x118] sm:$0xe]
      %v8700 = vld [vmem:[%s6848 + $0x11c] sm:$0x1]
      %v8701 = vld [vmem:[%s6848 + $0x120] sm:$0xe]
      %v8702 = vld [vmem:[%s6848 + $0x124] sm:$0x1]
      %v8703 = vld [vmem:[%s6848 + $0x128] sm:$0xe]
      %v8704 = vld [vmem:[%s6848 + $0x12c] sm:$0x1]
      %v8769 = vrot.slane %v8641, 5
      %v8770 = vrot.slane %v8769, 4
      %v8771 = vrot.slane %v8642, 5
      %v8772 = vsel %vm2073, %v8770, %v8771
      %v8773 = vrot.slane %v8643, 5
      %v8774 = vrot.slane %v8773, 4
      %v8775 = vrot.slane %v8644, 5
      %v8776 = vsel %vm2073, %v8774, %v8775
      %v8777 = vrot.slane %v8645, 5
      %v8778 = vrot.slane %v8777, 4
      %v8779 = vrot.slane %v8646, 5
      %v8780 = vsel %vm2073, %v8778, %v8779
      %v8781 = vrot.slane %v8647, 5
      %v8782 = vrot.slane %v8781, 4
      %v8783 = vrot.slane %v8648, 5
      %v8784 = vsel %vm2073, %v8782, %v8783
      %v8785 = vrot.slane %v8649, 5
      %v8786 = vrot.slane %v8785, 4
      %v8787 = vrot.slane %v8650, 5
      %v8788 = vsel %vm2073, %v8786, %v8787
      %v8789 = vrot.slane %v8651, 5
      %v8790 = vrot.slane %v8789, 4
      %v8791 = vrot.slane %v8652, 5
      %v8792 = vsel %vm2073, %v8790, %v8791
      %v8793 = vrot.slane %v8653, 5
      %v8794 = vrot.slane %v8793, 4
      %v8795 = vrot.slane %v8654, 5
      %v8796 = vsel %vm2073, %v8794, %v8795
      %v8797 = vrot.slane %v8655, 5
      %v8798 = vrot.slane %v8797, 4
      %v8799 = vrot.slane %v8656, 5
      %v8800 = vsel %vm2073, %v8798, %v8799
      %v8801 = vrot.slane %v8657, 5
      %v8802 = vrot.slane %v8801, 4
      %v8803 = vrot.slane %v8658, 5
      %v8804 = vsel %vm2073, %v8802, %v8803
      %v8805 = vrot.slane %v8659, 5
      %v8806 = vrot.slane %v8805, 4
      %v8807 = vrot.slane %v8660, 5
      %v8808 = vsel %vm2073, %v8806, %v8807
      %v8809 = vrot.slane %v8661, 5
      %v8810 = vrot.slane %v8809, 4
      %v8811 = vrot.slane %v8662, 5
      %v8812 = vsel %vm2073, %v8810, %v8811
      %v8813 = vrot.slane %v8663, 5
      %v8814 = vrot.slane %v8813, 4
      %v8815 = vrot.slane %v8664, 5
      %v8816 = vsel %vm2073, %v8814, %v8815
      %v8817 = vrot.slane %v8665, 5
      %v8818 = vrot.slane %v8817, 4
      %v8819 = vrot.slane %v8666, 5
      %v8820 = vsel %vm2073, %v8818, %v8819
      %v8821 = vrot.slane %v8667, 5
      %v8822 = vrot.slane %v8821, 4
      %v8823 = vrot.slane %v8668, 5
      %v8824 = vsel %vm2073, %v8822, %v8823
      %v8825 = vrot.slane %v8669, 5
      %v8826 = vrot.slane %v8825, 4
      %v8827 = vrot.slane %v8670, 5
      %v8828 = vsel %vm2073, %v8826, %v8827
      %v8829 = vrot.slane %v8671, 5
      %v8830 = vrot.slane %v8829, 4
      %v8831 = vrot.slane %v8672, 5
      %v8832 = vsel %vm2073, %v8830, %v8831
      %v8833 = vrot.slane %v8673, 5
      %v8834 = vrot.slane %v8833, 4
      %v8835 = vrot.slane %v8674, 5
      %v8836 = vsel %vm2073, %v8834, %v8835
      %v8837 = vrot.slane %v8675, 5
      %v8838 = vrot.slane %v8837, 4
      %v8839 = vrot.slane %v8676, 5
      %v8840 = vsel %vm2073, %v8838, %v8839
      %v8841 = vrot.slane %v8677, 5
      %v8842 = vrot.slane %v8841, 4
      %v8843 = vrot.slane %v8678, 5
      %v8844 = vsel %vm2073, %v8842, %v8843
      %v8845 = vrot.slane %v8679, 5
      %v8846 = vrot.slane %v8845, 4
      %v8847 = vrot.slane %v8680, 5
      %v8848 = vsel %vm2073, %v8846, %v8847
      %v8849 = vrot.slane %v8681, 5
      %v8850 = vrot.slane %v8849, 4
      %v8851 = vrot.slane %v8682, 5
      %v8852 = vsel %vm2073, %v8850, %v8851
      %v8853 = vrot.slane %v8683, 5
      %v8854 = vrot.slane %v8853, 4
      %v8855 = vrot.slane %v8684, 5
      %v8856 = vsel %vm2073, %v8854, %v8855
      %v8857 = vrot.slane %v8685, 5
      %v8858 = vrot.slane %v8857, 4
      %v8859 = vrot.slane %v8686, 5
      %v8860 = vsel %vm2073, %v8858, %v8859
      %v8861 = vrot.slane %v8687, 5
      %v8862 = vrot.slane %v8861, 4
      %v8863 = vrot.slane %v8688, 5
      %v8864 = vsel %vm2073, %v8862, %v8863
      %v8865 = vrot.slane %v8689, 5
      %v8866 = vrot.slane %v8865, 4
      %v8867 = vrot.slane %v8690, 5
      %v8868 = vsel %vm2073, %v8866, %v8867
      %v8869 = vrot.slane %v8691, 5
      %v8870 = vrot.slane %v8869, 4
      %v8871 = vrot.slane %v8692, 5
      %v8872 = vsel %vm2073, %v8870, %v8871
      %v8873 = vrot.slane %v8693, 5
      %v8874 = vrot.slane %v8873, 4
      %v8875 = vrot.slane %v8694, 5
      %v8876 = vsel %vm2073, %v8874, %v8875
      %v8877 = vrot.slane %v8695, 5
      %v8878 = vrot.slane %v8877, 4
      %v8879 = vrot.slane %v8696, 5
      %v8880 = vsel %vm2073, %v8878, %v8879
      %v8881 = vrot.slane %v8697, 5
      %v8882 = vrot.slane %v8881, 4
      %v8883 = vrot.slane %v8698, 5
      %v8884 = vsel %vm2073, %v8882, %v8883
      %v8885 = vrot.slane %v8699, 5
      %v8886 = vrot.slane %v8885, 4
      %v8887 = vrot.slane %v8700, 5
      %v8888 = vsel %vm2073, %v8886, %v8887
      %v8889 = vrot.slane %v8701, 5
      %v8890 = vrot.slane %v8889, 4
      %v8891 = vrot.slane %v8702, 5
      %v8892 = vsel %vm2073, %v8890, %v8891
      %v8893 = vrot.slane %v8703, 5
      %v8894 = vrot.slane %v8893, 4
      %v8895 = vrot.slane %v8704, 5
      %v8896 = vsel %vm2073, %v8894, %v8895
      %8929 = vst [vmem:[#allocation4 + $0x14] sm:$0xf] %v8772
      %8930 = vst [vmem:[#allocation4 + $0x38] sm:$0xf] %v8776
      %8931 = vst [vmem:[#allocation4 + $0x5c] sm:$0xf] %v8780
      %8932 = vst [vmem:[#allocation4 + $0x80] sm:$0xf] %v8784
      %8933 = vst [vmem:[#allocation4 + $0xa4] sm:$0xf] %v8788
      %8934 = vst [vmem:[#allocation4 + $0xc8] sm:$0xf] %v8792
      %8935 = vst [vmem:[#allocation4 + $0xec] sm:$0xf] %v8796
      %8936 = vst [vmem:[#allocation4 + $0x110] sm:$0xf] %v8800
      %8937 = vst [vmem:[#allocation4 + $0x134] sm:$0xf] %v8804
      %8938 = vst [vmem:[#allocation4 + $0x158] sm:$0xf] %v8808
      %8939 = vst [vmem:[#allocation4 + $0x17c] sm:$0xf] %v8812
      %8940 = vst [vmem:[#allocation4 + $0x1a0] sm:$0xf] %v8816
      %8941 = vst [vmem:[#allocation4 + $0x1c4] sm:$0xf] %v8820
      %8942 = vst [vmem:[#allocation4 + $0x1e8] sm:$0xf] %v8824
      %8943 = vst [vmem:[#allocation4 + $0x20c] sm:$0xf] %v8828
      %8944 = vst [vmem:[#allocation4 + $0x230] sm:$0xf] %v8832
      %8945 = vst [vmem:[#allocation4 + $0x254] sm:$0xf] %v8836
      %8946 = vst [vmem:[#allocation4 + $0x278] sm:$0xf] %v8840
      %8947 = vst [vmem:[#allocation4 + $0x29c] sm:$0xf] %v8844
      %8948 = vst [vmem:[#allocation4 + $0x2c0] sm:$0xf] %v8848
      %8949 = vst [vmem:[#allocation4 + $0x2e4] sm:$0xf] %v8852
      %8950 = vst [vmem:[#allocation4 + $0x308] sm:$0xf] %v8856
      %8951 = vst [vmem:[#allocation4 + $0x32c] sm:$0xf] %v8860
      %8952 = vst [vmem:[#allocation4 + $0x350] sm:$0xf] %v8864
      %8953 = vst [vmem:[#allocation4 + $0x374] sm:$0xf] %v8868
      %8954 = vst [vmem:[#allocation4 + $0x398] sm:$0xf] %v8872
      %8955 = vst [vmem:[#allocation4 + $0x3bc] sm:$0xf] %v8876
      %8956 = vst [vmem:[#allocation4 + $0x3e0] sm:$0xf] %v8880
      %8957 = vst [vmem:[#allocation4 + $0x404] sm:$0xf] %v8884
      %8958 = vst [vmem:[#allocation4 + $0x428] sm:$0xf] %v8888
      %8959 = vst [vmem:[#allocation4 + $0x44c] sm:$0xf] %v8892
      %8960 = vst [vmem:[#allocation4 + $0x470] sm:$0xf] %v8896
      %s8961 = scalar_lea.vmem [#allocation3], 16
      %v8962 = vld [vmem:[%s8961] sm:$0xf]
      %v8963 = vld [vmem:[%s8961 + $0x8] sm:$0xf]
      %v8964 = vld [vmem:[%s8961 + $0x10] sm:$0xf]
      %v8965 = vld [vmem:[%s8961 + $0x18] sm:$0xf]
      %v8966 = vld [vmem:[%s8961 + $0x20] sm:$0xf]
      %v8967 = vld [vmem:[%s8961 + $0x28] sm:$0xf]
      %v8968 = vld [vmem:[%s8961 + $0x30] sm:$0xf]
      %v8969 = vld [vmem:[%s8961 + $0x38] sm:$0xf]
      %v8970 = vld [vmem:[%s8961 + $0x50] sm:$0xf]
      %v8971 = vld [vmem:[%s8961 + $0x58] sm:$0xf]
      %v8972 = vld [vmem:[%s8961 + $0x60] sm:$0xf]
      %v8973 = vld [vmem:[%s8961 + $0x68] sm:$0xf]
      %v8974 = vld [vmem:[%s8961 + $0x70] sm:$0xf]
      %v8975 = vld [vmem:[%s8961 + $0x78] sm:$0xf]
      %v8976 = vld [vmem:[%s8961 + $0x80] sm:$0xf]
      %v8977 = vld [vmem:[%s8961 + $0x88] sm:$0xf]
      %v8978 = vld [vmem:[%s8961 + $0xa0] sm:$0xf]
      %v8979 = vld [vmem:[%s8961 + $0xa8] sm:$0xf]
      %v8980 = vld [vmem:[%s8961 + $0xb0] sm:$0xf]
      %v8981 = vld [vmem:[%s8961 + $0xb8] sm:$0xf]
      %v8982 = vld [vmem:[%s8961 + $0xc0] sm:$0xf]
      %v8983 = vld [vmem:[%s8961 + $0xc8] sm:$0xf]
      %v8984 = vld [vmem:[%s8961 + $0xd0] sm:$0xf]
      %v8985 = vld [vmem:[%s8961 + $0xd8] sm:$0xf]
      %v8986 = vld [vmem:[%s8961 + $0xf0] sm:$0xf]
      %v8987 = vld [vmem:[%s8961 + $0xf8] sm:$0xf]
      %v8988 = vld [vmem:[%s8961 + $0x100] sm:$0xf]
      %v8989 = vld [vmem:[%s8961 + $0x108] sm:$0xf]
      %v8990 = vld [vmem:[%s8961 + $0x110] sm:$0xf]
      %v8991 = vld [vmem:[%s8961 + $0x118] sm:$0xf]
      %v8992 = vld [vmem:[%s8961 + $0x120] sm:$0xf]
      %v8993 = vld [vmem:[%s8961 + $0x128] sm:$0xf]
      %8994 = vst [vmem:[#allocation4 + $0x18] sm:$0xf] %v8962
      %8995 = vst [vmem:[#allocation4 + $0x3c] sm:$0xf] %v8963
      %8996 = vst [vmem:[#allocation4 + $0x60] sm:$0xf] %v8964
      %8997 = vst [vmem:[#allocation4 + $0x84] sm:$0xf] %v8965
      %8998 = vst [vmem:[#allocation4 + $0xa8] sm:$0xf] %v8966
      %8999 = vst [vmem:[#allocation4 + $0xcc] sm:$0xf] %v8967
      %9000 = vst [vmem:[#allocation4 + $0xf0] sm:$0xf] %v8968
      %9001 = vst [vmem:[#allocation4 + $0x114] sm:$0xf] %v8969
      %9002 = vst [vmem:[#allocation4 + $0x138] sm:$0xf] %v8970
      %9003 = vst [vmem:[#allocation4 + $0x15c] sm:$0xf] %v8971
      %9004 = vst [vmem:[#allocation4 + $0x180] sm:$0xf] %v8972
      %9005 = vst [vmem:[#allocation4 + $0x1a4] sm:$0xf] %v8973
      %9006 = vst [vmem:[#allocation4 + $0x1c8] sm:$0xf] %v8974
      %9007 = vst [vmem:[#allocation4 + $0x1ec] sm:$0xf] %v8975
      %9008 = vst [vmem:[#allocation4 + $0x210] sm:$0xf] %v8976
      %9009 = vst [vmem:[#allocation4 + $0x234] sm:$0xf] %v8977
      %9010 = vst [vmem:[#allocation4 + $0x258] sm:$0xf] %v8978
      %9011 = vst [vmem:[#allocation4 + $0x27c] sm:$0xf] %v8979
      %9012 = vst [vmem:[#allocation4 + $0x2a0] sm:$0xf] %v8980
      %9013 = vst [vmem:[#allocation4 + $0x2c4] sm:$0xf] %v8981
      %9014 = vst [vmem:[#allocation4 + $0x2e8] sm:$0xf] %v8982
      %9015 = vst [vmem:[#allocation4 + $0x30c] sm:$0xf] %v8983
      %9016 = vst [vmem:[#allocation4 + $0x330] sm:$0xf] %v8984
      %9017 = vst [vmem:[#allocation4 + $0x354] sm:$0xf] %v8985
      %9018 = vst [vmem:[#allocation4 + $0x378] sm:$0xf] %v8986
      %9019 = vst [vmem:[#allocation4 + $0x39c] sm:$0xf] %v8987
      %9020 = vst [vmem:[#allocation4 + $0x3c0] sm:$0xf] %v8988
      %9021 = vst [vmem:[#allocation4 + $0x3e4] sm:$0xf] %v8989
      %9022 = vst [vmem:[#allocation4 + $0x408] sm:$0xf] %v8990
      %9023 = vst [vmem:[#allocation4 + $0x42c] sm:$0xf] %v8991
      %9024 = vst [vmem:[#allocation4 + $0x450] sm:$0xf] %v8992
      %9025 = vst [vmem:[#allocation4 + $0x474] sm:$0xf] %v8993
      %v9026 = vld [vmem:[%s8961] sm:$0xf]
      %v9027 = vld [vmem:[%s8961 + $0x4] sm:$0x1]
      %v9028 = vld [vmem:[%s8961 + $0x8] sm:$0xf]
      %v9029 = vld [vmem:[%s8961 + $0xc] sm:$0x1]
      %v9030 = vld [vmem:[%s8961 + $0x10] sm:$0xf]
      %v9031 = vld [vmem:[%s8961 + $0x14] sm:$0x1]
      %v9032 = vld [vmem:[%s8961 + $0x18] sm:$0xf]
      %v9033 = vld [vmem:[%s8961 + $0x1c] sm:$0x1]
      %v9034 = vld [vmem:[%s8961 + $0x20] sm:$0xf]
      %v9035 = vld [vmem:[%s8961 + $0x24] sm:$0x1]
      %v9036 = vld [vmem:[%s8961 + $0x28] sm:$0xf]
      %v9037 = vld [vmem:[%s8961 + $0x2c] sm:$0x1]
      %v9038 = vld [vmem:[%s8961 + $0x30] sm:$0xf]
      %v9039 = vld [vmem:[%s8961 + $0x34] sm:$0x1]
      %v9040 = vld [vmem:[%s8961 + $0x38] sm:$0xf]
      %v9041 = vld [vmem:[%s8961 + $0x3c] sm:$0x1]
      %v9042 = vld [vmem:[%s8961 + $0x50] sm:$0xf]
      %v9043 = vld [vmem:[%s8961 + $0x54] sm:$0x1]
      %v9044 = vld [vmem:[%s8961 + $0x58] sm:$0xf]
      %v9045 = vld [vmem:[%s8961 + $0x5c] sm:$0x1]
      %v9046 = vld [vmem:[%s8961 + $0x60] sm:$0xf]
      %v9047 = vld [vmem:[%s8961 + $0x64] sm:$0x1]
      %v9048 = vld [vmem:[%s8961 + $0x68] sm:$0xf]
      %v9049 = vld [vmem:[%s8961 + $0x6c] sm:$0x1]
      %v9050 = vld [vmem:[%s8961 + $0x70] sm:$0xf]
      %v9051 = vld [vmem:[%s8961 + $0x74] sm:$0x1]
      %v9052 = vld [vmem:[%s8961 + $0x78] sm:$0xf]
      %v9053 = vld [vmem:[%s8961 + $0x7c] sm:$0x1]
      %v9054 = vld [vmem:[%s8961 + $0x80] sm:$0xf]
      %v9055 = vld [vmem:[%s8961 + $0x84] sm:$0x1]
      %v9056 = vld [vmem:[%s8961 + $0x88] sm:$0xf]
      %v9057 = vld [vmem:[%s8961 + $0x8c] sm:$0x1]
      %v9058 = vld [vmem:[%s8961 + $0xa0] sm:$0xf]
      %v9059 = vld [vmem:[%s8961 + $0xa4] sm:$0x1]
      %v9060 = vld [vmem:[%s8961 + $0xa8] sm:$0xf]
      %v9061 = vld [vmem:[%s8961 + $0xac] sm:$0x1]
      %v9062 = vld [vmem:[%s8961 + $0xb0] sm:$0xf]
      %v9063 = vld [vmem:[%s8961 + $0xb4] sm:$0x1]
      %v9064 = vld [vmem:[%s8961 + $0xb8] sm:$0xf]
      %v9065 = vld [vmem:[%s8961 + $0xbc] sm:$0x1]
      %v9066 = vld [vmem:[%s8961 + $0xc0] sm:$0xf]
      %v9067 = vld [vmem:[%s8961 + $0xc4] sm:$0x1]
      %v9068 = vld [vmem:[%s8961 + $0xc8] sm:$0xf]
      %v9069 = vld [vmem:[%s8961 + $0xcc] sm:$0x1]
      %v9070 = vld [vmem:[%s8961 + $0xd0] sm:$0xf]
      %v9071 = vld [vmem:[%s8961 + $0xd4] sm:$0x1]
      %v9072 = vld [vmem:[%s8961 + $0xd8] sm:$0xf]
      %v9073 = vld [vmem:[%s8961 + $0xdc] sm:$0x1]
      %v9074 = vld [vmem:[%s8961 + $0xf0] sm:$0xf]
      %v9075 = vld [vmem:[%s8961 + $0xf4] sm:$0x1]
      %v9076 = vld [vmem:[%s8961 + $0xf8] sm:$0xf]
      %v9077 = vld [vmem:[%s8961 + $0xfc] sm:$0x1]
      %v9078 = vld [vmem:[%s8961 + $0x100] sm:$0xf]
      %v9079 = vld [vmem:[%s8961 + $0x104] sm:$0x1]
      %v9080 = vld [vmem:[%s8961 + $0x108] sm:$0xf]
      %v9081 = vld [vmem:[%s8961 + $0x10c] sm:$0x1]
      %v9082 = vld [vmem:[%s8961 + $0x110] sm:$0xf]
      %v9083 = vld [vmem:[%s8961 + $0x114] sm:$0x1]
      %v9084 = vld [vmem:[%s8961 + $0x118] sm:$0xf]
      %v9085 = vld [vmem:[%s8961 + $0x11c] sm:$0x1]
      %v9086 = vld [vmem:[%s8961 + $0x120] sm:$0xf]
      %v9087 = vld [vmem:[%s8961 + $0x124] sm:$0x1]
      %v9088 = vld [vmem:[%s8961 + $0x128] sm:$0xf]
      %v9089 = vld [vmem:[%s8961 + $0x12c] sm:$0x1]
      %v9091 = vshrl.u32 %v9026, 16
      %v9093 = vrot.slane %v9091, 4
      %v9094 = vshll.u32 %v9026, 16
      %v9096 = vrot.slane %v9094, 5
      %v9097 = vor.u32 %v9093, %v9096
      %v9098 = vrot.slane %v9097, 4
      %v9100 = vshll.u32 %v9027, 16
      %v9102 = vrot.slane %v9100, 5
      %v9103 = vsel %vm1430, %v9098, %v9102
      %v9105 = vshrl.u32 %v9028, 16
      %v9107 = vrot.slane %v9105, 4
      %v9108 = vshll.u32 %v9028, 16
      %v9110 = vrot.slane %v9108, 5
      %v9111 = vor.u32 %v9107, %v9110
      %v9112 = vrot.slane %v9111, 4
      %v9114 = vshll.u32 %v9029, 16
      %v9116 = vrot.slane %v9114, 5
      %v9117 = vsel %vm1430, %v9112, %v9116
      %v9119 = vshrl.u32 %v9030, 16
      %v9121 = vrot.slane %v9119, 4
      %v9122 = vshll.u32 %v9030, 16
      %v9124 = vrot.slane %v9122, 5
      %v9125 = vor.u32 %v9121, %v9124
      %v9126 = vrot.slane %v9125, 4
      %v9128 = vshll.u32 %v9031, 16
      %v9130 = vrot.slane %v9128, 5
      %v9131 = vsel %vm1430, %v9126, %v9130
      %v9133 = vshrl.u32 %v9032, 16
      %v9135 = vrot.slane %v9133, 4
      %v9136 = vshll.u32 %v9032, 16
      %v9138 = vrot.slane %v9136, 5
      %v9139 = vor.u32 %v9135, %v9138
      %v9140 = vrot.slane %v9139, 4
      %v9142 = vshll.u32 %v9033, 16
      %v9144 = vrot.slane %v9142, 5
      %v9145 = vsel %vm1430, %v9140, %v9144
      %v9147 = vshrl.u32 %v9034, 16
      %v9149 = vrot.slane %v9147, 4
      %v9150 = vshll.u32 %v9034, 16
      %v9152 = vrot.slane %v9150, 5
      %v9153 = vor.u32 %v9149, %v9152
      %v9154 = vrot.slane %v9153, 4
      %v9156 = vshll.u32 %v9035, 16
      %v9158 = vrot.slane %v9156, 5
      %v9159 = vsel %vm1430, %v9154, %v9158
      %v9161 = vshrl.u32 %v9036, 16
      %v9163 = vrot.slane %v9161, 4
      %v9164 = vshll.u32 %v9036, 16
      %v9166 = vrot.slane %v9164, 5
      %v9167 = vor.u32 %v9163, %v9166
      %v9168 = vrot.slane %v9167, 4
      %v9170 = vshll.u32 %v9037, 16
      %v9172 = vrot.slane %v9170, 5
      %v9173 = vsel %vm1430, %v9168, %v9172
      %v9175 = vshrl.u32 %v9038, 16
      %v9177 = vrot.slane %v9175, 4
      %v9178 = vshll.u32 %v9038, 16
      %v9180 = vrot.slane %v9178, 5
      %v9181 = vor.u32 %v9177, %v9180
      %v9182 = vrot.slane %v9181, 4
      %v9184 = vshll.u32 %v9039, 16
      %v9186 = vrot.slane %v9184, 5
      %v9187 = vsel %vm1430, %v9182, %v9186
      %v9189 = vshrl.u32 %v9040, 16
      %v9191 = vrot.slane %v9189, 4
      %v9192 = vshll.u32 %v9040, 16
      %v9194 = vrot.slane %v9192, 5
      %v9195 = vor.u32 %v9191, %v9194
      %v9196 = vrot.slane %v9195, 4
      %v9198 = vshll.u32 %v9041, 16
      %v9200 = vrot.slane %v9198, 5
      %v9201 = vsel %vm1430, %v9196, %v9200
      %v9203 = vshrl.u32 %v9042, 16
      %v9205 = vrot.slane %v9203, 4
      %v9206 = vshll.u32 %v9042, 16
      %v9208 = vrot.slane %v9206, 5
      %v9209 = vor.u32 %v9205, %v9208
      %v9210 = vrot.slane %v9209, 4
      %v9212 = vshll.u32 %v9043, 16
      %v9214 = vrot.slane %v9212, 5
      %v9215 = vsel %vm1430, %v9210, %v9214
      %v9217 = vshrl.u32 %v9044, 16
      %v9219 = vrot.slane %v9217, 4
      %v9220 = vshll.u32 %v9044, 16
      %v9222 = vrot.slane %v9220, 5
      %v9223 = vor.u32 %v9219, %v9222
      %v9224 = vrot.slane %v9223, 4
      %v9226 = vshll.u32 %v9045, 16
      %v9228 = vrot.slane %v9226, 5
      %v9229 = vsel %vm1430, %v9224, %v9228
      %v9231 = vshrl.u32 %v9046, 16
      %v9233 = vrot.slane %v9231, 4
      %v9234 = vshll.u32 %v9046, 16
      %v9236 = vrot.slane %v9234, 5
      %v9237 = vor.u32 %v9233, %v9236
      %v9238 = vrot.slane %v9237, 4
      %v9240 = vshll.u32 %v9047, 16
      %v9242 = vrot.slane %v9240, 5
      %v9243 = vsel %vm1430, %v9238, %v9242
      %v9245 = vshrl.u32 %v9048, 16
      %v9247 = vrot.slane %v9245, 4
      %v9248 = vshll.u32 %v9048, 16
      %v9250 = vrot.slane %v9248, 5
      %v9251 = vor.u32 %v9247, %v9250
      %v9252 = vrot.slane %v9251, 4
      %v9254 = vshll.u32 %v9049, 16
      %v9256 = vrot.slane %v9254, 5
      %v9257 = vsel %vm1430, %v9252, %v9256
      %v9259 = vshrl.u32 %v9050, 16
      %v9261 = vrot.slane %v9259, 4
      %v9262 = vshll.u32 %v9050, 16
      %v9264 = vrot.slane %v9262, 5
      %v9265 = vor.u32 %v9261, %v9264
      %v9266 = vrot.slane %v9265, 4
      %v9268 = vshll.u32 %v9051, 16
      %v9270 = vrot.slane %v9268, 5
      %v9271 = vsel %vm1430, %v9266, %v9270
      %v9273 = vshrl.u32 %v9052, 16
      %v9275 = vrot.slane %v9273, 4
      %v9276 = vshll.u32 %v9052, 16
      %v9278 = vrot.slane %v9276, 5
      %v9279 = vor.u32 %v9275, %v9278
      %v9280 = vrot.slane %v9279, 4
      %v9282 = vshll.u32 %v9053, 16
      %v9284 = vrot.slane %v9282, 5
      %v9285 = vsel %vm1430, %v9280, %v9284
      %v9287 = vshrl.u32 %v9054, 16
      %v9289 = vrot.slane %v9287, 4
      %v9290 = vshll.u32 %v9054, 16
      %v9292 = vrot.slane %v9290, 5
      %v9293 = vor.u32 %v9289, %v9292
      %v9294 = vrot.slane %v9293, 4
      %v9296 = vshll.u32 %v9055, 16
      %v9298 = vrot.slane %v9296, 5
      %v9299 = vsel %vm1430, %v9294, %v9298
      %v9301 = vshrl.u32 %v9056, 16
      %v9303 = vrot.slane %v9301, 4
      %v9304 = vshll.u32 %v9056, 16
      %v9306 = vrot.slane %v9304, 5
      %v9307 = vor.u32 %v9303, %v9306
      %v9308 = vrot.slane %v9307, 4
      %v9310 = vshll.u32 %v9057, 16
      %v9312 = vrot.slane %v9310, 5
      %v9313 = vsel %vm1430, %v9308, %v9312
      %v9315 = vshrl.u32 %v9058, 16
      %v9317 = vrot.slane %v9315, 4
      %v9318 = vshll.u32 %v9058, 16
      %v9320 = vrot.slane %v9318, 5
      %v9321 = vor.u32 %v9317, %v9320
      %v9322 = vrot.slane %v9321, 4
      %v9324 = vshll.u32 %v9059, 16
      %v9326 = vrot.slane %v9324, 5
      %v9327 = vsel %vm1430, %v9322, %v9326
      %v9329 = vshrl.u32 %v9060, 16
      %v9331 = vrot.slane %v9329, 4
      %v9332 = vshll.u32 %v9060, 16
      %v9334 = vrot.slane %v9332, 5
      %v9335 = vor.u32 %v9331, %v9334
      %v9336 = vrot.slane %v9335, 4
      %v9338 = vshll.u32 %v9061, 16
      %v9340 = vrot.slane %v9338, 5
      %v9341 = vsel %vm1430, %v9336, %v9340
      %v9343 = vshrl.u32 %v9062, 16
      %v9345 = vrot.slane %v9343, 4
      %v9346 = vshll.u32 %v9062, 16
      %v9348 = vrot.slane %v9346, 5
      %v9349 = vor.u32 %v9345, %v9348
      %v9350 = vrot.slane %v9349, 4
      %v9352 = vshll.u32 %v9063, 16
      %v9354 = vrot.slane %v9352, 5
      %v9355 = vsel %vm1430, %v9350, %v9354
      %v9357 = vshrl.u32 %v9064, 16
      %v9359 = vrot.slane %v9357, 4
      %v9360 = vshll.u32 %v9064, 16
      %v9362 = vrot.slane %v9360, 5
      %v9363 = vor.u32 %v9359, %v9362
      %v9364 = vrot.slane %v9363, 4
      %v9366 = vshll.u32 %v9065, 16
      %v9368 = vrot.slane %v9366, 5
      %v9369 = vsel %vm1430, %v9364, %v9368
      %v9371 = vshrl.u32 %v9066, 16
      %v9373 = vrot.slane %v9371, 4
      %v9374 = vshll.u32 %v9066, 16
      %v9376 = vrot.slane %v9374, 5
      %v9377 = vor.u32 %v9373, %v9376
      %v9378 = vrot.slane %v9377, 4
      %v9380 = vshll.u32 %v9067, 16
      %v9382 = vrot.slane %v9380, 5
      %v9383 = vsel %vm1430, %v9378, %v9382
      %v9385 = vshrl.u32 %v9068, 16
      %v9387 = vrot.slane %v9385, 4
      %v9388 = vshll.u32 %v9068, 16
      %v9390 = vrot.slane %v9388, 5
      %v9391 = vor.u32 %v9387, %v9390
      %v9392 = vrot.slane %v9391, 4
      %v9394 = vshll.u32 %v9069, 16
      %v9396 = vrot.slane %v9394, 5
      %v9397 = vsel %vm1430, %v9392, %v9396
      %v9399 = vshrl.u32 %v9070, 16
      %v9401 = vrot.slane %v9399, 4
      %v9402 = vshll.u32 %v9070, 16
      %v9404 = vrot.slane %v9402, 5
      %v9405 = vor.u32 %v9401, %v9404
      %v9406 = vrot.slane %v9405, 4
      %v9408 = vshll.u32 %v9071, 16
      %v9410 = vrot.slane %v9408, 5
      %v9411 = vsel %vm1430, %v9406, %v9410
      %v9413 = vshrl.u32 %v9072, 16
      %v9415 = vrot.slane %v9413, 4
      %v9416 = vshll.u32 %v9072, 16
      %v9418 = vrot.slane %v9416, 5
      %v9419 = vor.u32 %v9415, %v9418
      %v9420 = vrot.slane %v9419, 4
      %v9422 = vshll.u32 %v9073, 16
      %v9424 = vrot.slane %v9422, 5
      %v9425 = vsel %vm1430, %v9420, %v9424
      %v9427 = vshrl.u32 %v9074, 16
      %v9429 = vrot.slane %v9427, 4
      %v9430 = vshll.u32 %v9074, 16
      %v9432 = vrot.slane %v9430, 5
      %v9433 = vor.u32 %v9429, %v9432
      %v9434 = vrot.slane %v9433, 4
      %v9436 = vshll.u32 %v9075, 16
      %v9438 = vrot.slane %v9436, 5
      %v9439 = vsel %vm1430, %v9434, %v9438
      %v9441 = vshrl.u32 %v9076, 16
      %v9443 = vrot.slane %v9441, 4
      %v9444 = vshll.u32 %v9076, 16
      %v9446 = vrot.slane %v9444, 5
      %v9447 = vor.u32 %v9443, %v9446
      %v9448 = vrot.slane %v9447, 4
      %v9450 = vshll.u32 %v9077, 16
      %v9452 = vrot.slane %v9450, 5
      %v9453 = vsel %vm1430, %v9448, %v9452
      %v9455 = vshrl.u32 %v9078, 16
      %v9457 = vrot.slane %v9455, 4
      %v9458 = vshll.u32 %v9078, 16
      %v9460 = vrot.slane %v9458, 5
      %v9461 = vor.u32 %v9457, %v9460
      %v9462 = vrot.slane %v9461, 4
      %v9464 = vshll.u32 %v9079, 16
      %v9466 = vrot.slane %v9464, 5
      %v9467 = vsel %vm1430, %v9462, %v9466
      %v9469 = vshrl.u32 %v9080, 16
      %v9471 = vrot.slane %v9469, 4
      %v9472 = vshll.u32 %v9080, 16
      %v9474 = vrot.slane %v9472, 5
      %v9475 = vor.u32 %v9471, %v9474
      %v9476 = vrot.slane %v9475, 4
      %v9478 = vshll.u32 %v9081, 16
      %v9480 = vrot.slane %v9478, 5
      %v9481 = vsel %vm1430, %v9476, %v9480
      %v9483 = vshrl.u32 %v9082, 16
      %v9485 = vrot.slane %v9483, 4
      %v9486 = vshll.u32 %v9082, 16
      %v9488 = vrot.slane %v9486, 5
      %v9489 = vor.u32 %v9485, %v9488
      %v9490 = vrot.slane %v9489, 4
      %v9492 = vshll.u32 %v9083, 16
      %v9494 = vrot.slane %v9492, 5
      %v9495 = vsel %vm1430, %v9490, %v9494
      %v9497 = vshrl.u32 %v9084, 16
      %v9499 = vrot.slane %v9497, 4
      %v9500 = vshll.u32 %v9084, 16
      %v9502 = vrot.slane %v9500, 5
      %v9503 = vor.u32 %v9499, %v9502
      %v9504 = vrot.slane %v9503, 4
      %v9506 = vshll.u32 %v9085, 16
      %v9508 = vrot.slane %v9506, 5
      %v9509 = vsel %vm1430, %v9504, %v9508
      %v9511 = vshrl.u32 %v9086, 16
      %v9513 = vrot.slane %v9511, 4
      %v9514 = vshll.u32 %v9086, 16
      %v9516 = vrot.slane %v9514, 5
      %v9517 = vor.u32 %v9513, %v9516
      %v9518 = vrot.slane %v9517, 4
      %v9520 = vshll.u32 %v9087, 16
      %v9522 = vrot.slane %v9520, 5
      %v9523 = vsel %vm1430, %v9518, %v9522
      %v9525 = vshrl.u32 %v9088, 16
      %v9527 = vrot.slane %v9525, 4
      %v9528 = vshll.u32 %v9088, 16
      %v9530 = vrot.slane %v9528, 5
      %v9531 = vor.u32 %v9527, %v9530
      %v9532 = vrot.slane %v9531, 4
      %v9534 = vshll.u32 %v9089, 16
      %v9536 = vrot.slane %v9534, 5
      %v9537 = vsel %vm1430, %v9532, %v9536
      %9570 = vst [vmem:[#allocation4 + $0x1c] sm:$0xf] %v9103
      %9571 = vst [vmem:[#allocation4 + $0x40] sm:$0xf] %v9117
      %9572 = vst [vmem:[#allocation4 + $0x64] sm:$0xf] %v9131
      %9573 = vst [vmem:[#allocation4 + $0x88] sm:$0xf] %v9145
      %9574 = vst [vmem:[#allocation4 + $0xac] sm:$0xf] %v9159
      %9575 = vst [vmem:[#allocation4 + $0xd0] sm:$0xf] %v9173
      %9576 = vst [vmem:[#allocation4 + $0xf4] sm:$0xf] %v9187
      %9577 = vst [vmem:[#allocation4 + $0x118] sm:$0xf] %v9201
      %9578 = vst [vmem:[#allocation4 + $0x13c] sm:$0xf] %v9215
      %9579 = vst [vmem:[#allocation4 + $0x160] sm:$0xf] %v9229
      %9580 = vst [vmem:[#allocation4 + $0x184] sm:$0xf] %v9243
      %9581 = vst [vmem:[#allocation4 + $0x1a8] sm:$0xf] %v9257
      %9582 = vst [vmem:[#allocation4 + $0x1cc] sm:$0xf] %v9271
      %9583 = vst [vmem:[#allocation4 + $0x1f0] sm:$0xf] %v9285
      %9584 = vst [vmem:[#allocation4 + $0x214] sm:$0xf] %v9299
      %9585 = vst [vmem:[#allocation4 + $0x238] sm:$0xf] %v9313
      %9586 = vst [vmem:[#allocation4 + $0x25c] sm:$0xf] %v9327
      %9587 = vst [vmem:[#allocation4 + $0x280] sm:$0xf] %v9341
      %9588 = vst [vmem:[#allocation4 + $0x2a4] sm:$0xf] %v9355
      %9589 = vst [vmem:[#allocation4 + $0x2c8] sm:$0xf] %v9369
      %9590 = vst [vmem:[#allocation4 + $0x2ec] sm:$0xf] %v9383
      %9591 = vst [vmem:[#allocation4 + $0x310] sm:$0xf] %v9397
      %9592 = vst [vmem:[#allocation4 + $0x334] sm:$0xf] %v9411
      %9593 = vst [vmem:[#allocation4 + $0x358] sm:$0xf] %v9425
      %9594 = vst [vmem:[#allocation4 + $0x37c] sm:$0xf] %v9439
      %9595 = vst [vmem:[#allocation4 + $0x3a0] sm:$0xf] %v9453
      %9596 = vst [vmem:[#allocation4 + $0x3c4] sm:$0xf] %v9467
      %9597 = vst [vmem:[#allocation4 + $0x3e8] sm:$0xf] %v9481
      %9598 = vst [vmem:[#allocation4 + $0x40c] sm:$0xf] %v9495
      %9599 = vst [vmem:[#allocation4 + $0x430] sm:$0xf] %v9509
      %9600 = vst [vmem:[#allocation4 + $0x454] sm:$0xf] %v9523
      %9601 = vst [vmem:[#allocation4 + $0x478] sm:$0xf] %v9537
      %v9602 = vld [vmem:[%s8961] sm:$0xe]
      %v9603 = vld [vmem:[%s8961 + $0x4] sm:$0x1]
      %v9604 = vld [vmem:[%s8961 + $0x8] sm:$0xe]
      %v9605 = vld [vmem:[%s8961 + $0xc] sm:$0x1]
      %v9606 = vld [vmem:[%s8961 + $0x10] sm:$0xe]
      %v9607 = vld [vmem:[%s8961 + $0x14] sm:$0x1]
      %v9608 = vld [vmem:[%s8961 + $0x18] sm:$0xe]
      %v9609 = vld [vmem:[%s8961 + $0x1c] sm:$0x1]
      %v9610 = vld [vmem:[%s8961 + $0x20] sm:$0xe]
      %v9611 = vld [vmem:[%s8961 + $0x24] sm:$0x1]
      %v9612 = vld [vmem:[%s8961 + $0x28] sm:$0xe]
      %v9613 = vld [vmem:[%s8961 + $0x2c] sm:$0x1]
      %v9614 = vld [vmem:[%s8961 + $0x30] sm:$0xe]
      %v9615 = vld [vmem:[%s8961 + $0x34] sm:$0x1]
      %v9616 = vld [vmem:[%s8961 + $0x38] sm:$0xe]
      %v9617 = vld [vmem:[%s8961 + $0x3c] sm:$0x1]
      %v9618 = vld [vmem:[%s8961 + $0x50] sm:$0xe]
      %v9619 = vld [vmem:[%s8961 + $0x54] sm:$0x1]
      %v9620 = vld [vmem:[%s8961 + $0x58] sm:$0xe]
      %v9621 = vld [vmem:[%s8961 + $0x5c] sm:$0x1]
      %v9622 = vld [vmem:[%s8961 + $0x60] sm:$0xe]
      %v9623 = vld [vmem:[%s8961 + $0x64] sm:$0x1]
      %v9624 = vld [vmem:[%s8961 + $0x68] sm:$0xe]
      %v9625 = vld [vmem:[%s8961 + $0x6c] sm:$0x1]
      %v9626 = vld [vmem:[%s8961 + $0x70] sm:$0xe]
      %v9627 = vld [vmem:[%s8961 + $0x74] sm:$0x1]
      %v9628 = vld [vmem:[%s8961 + $0x78] sm:$0xe]
      %v9629 = vld [vmem:[%s8961 + $0x7c] sm:$0x1]
      %v9630 = vld [vmem:[%s8961 + $0x80] sm:$0xe]
      %v9631 = vld [vmem:[%s8961 + $0x84] sm:$0x1]
      %v9632 = vld [vmem:[%s8961 + $0x88] sm:$0xe]
      %v9633 = vld [vmem:[%s8961 + $0x8c] sm:$0x1]
      %v9634 = vld [vmem:[%s8961 + $0xa0] sm:$0xe]
      %v9635 = vld [vmem:[%s8961 + $0xa4] sm:$0x1]
      %v9636 = vld [vmem:[%s8961 + $0xa8] sm:$0xe]
      %v9637 = vld [vmem:[%s8961 + $0xac] sm:$0x1]
      %v9638 = vld [vmem:[%s8961 + $0xb0] sm:$0xe]
      %v9639 = vld [vmem:[%s8961 + $0xb4] sm:$0x1]
      %v9640 = vld [vmem:[%s8961 + $0xb8] sm:$0xe]
      %v9641 = vld [vmem:[%s8961 + $0xbc] sm:$0x1]
      %v9642 = vld [vmem:[%s8961 + $0xc0] sm:$0xe]
      %v9643 = vld [vmem:[%s8961 + $0xc4] sm:$0x1]
      %v9644 = vld [vmem:[%s8961 + $0xc8] sm:$0xe]
      %v9645 = vld [vmem:[%s8961 + $0xcc] sm:$0x1]
      %v9646 = vld [vmem:[%s8961 + $0xd0] sm:$0xe]
      %v9647 = vld [vmem:[%s8961 + $0xd4] sm:$0x1]
      %v9648 = vld [vmem:[%s8961 + $0xd8] sm:$0xe]
      %v9649 = vld [vmem:[%s8961 + $0xdc] sm:$0x1]
      %v9650 = vld [vmem:[%s8961 + $0xf0] sm:$0xe]
      %v9651 = vld [vmem:[%s8961 + $0xf4] sm:$0x1]
      %v9652 = vld [vmem:[%s8961 + $0xf8] sm:$0xe]
      %v9653 = vld [vmem:[%s8961 + $0xfc] sm:$0x1]
      %v9654 = vld [vmem:[%s8961 + $0x100] sm:$0xe]
      %v9655 = vld [vmem:[%s8961 + $0x104] sm:$0x1]
      %v9656 = vld [vmem:[%s8961 + $0x108] sm:$0xe]
      %v9657 = vld [vmem:[%s8961 + $0x10c] sm:$0x1]
      %v9658 = vld [vmem:[%s8961 + $0x110] sm:$0xe]
      %v9659 = vld [vmem:[%s8961 + $0x114] sm:$0x1]
      %v9660 = vld [vmem:[%s8961 + $0x118] sm:$0xe]
      %v9661 = vld [vmem:[%s8961 + $0x11c] sm:$0x1]
      %v9662 = vld [vmem:[%s8961 + $0x120] sm:$0xe]
      %v9663 = vld [vmem:[%s8961 + $0x124] sm:$0x1]
      %v9664 = vld [vmem:[%s8961 + $0x128] sm:$0xe]
      %v9665 = vld [vmem:[%s8961 + $0x12c] sm:$0x1]
      %v9730 = vrot.slane %v9602, 5
      %v9731 = vrot.slane %v9730, 4
      %v9732 = vrot.slane %v9603, 5
      %v9733 = vsel %vm2073, %v9731, %v9732
      %v9734 = vrot.slane %v9604, 5
      %v9735 = vrot.slane %v9734, 4
      %v9736 = vrot.slane %v9605, 5
      %v9737 = vsel %vm2073, %v9735, %v9736
      %v9738 = vrot.slane %v9606, 5
      %v9739 = vrot.slane %v9738, 4
      %v9740 = vrot.slane %v9607, 5
      %v9741 = vsel %vm2073, %v9739, %v9740
      %v9742 = vrot.slane %v9608, 5
      %v9743 = vrot.slane %v9742, 4
      %v9744 = vrot.slane %v9609, 5
      %v9745 = vsel %vm2073, %v9743, %v9744
      %v9746 = vrot.slane %v9610, 5
      %v9747 = vrot.slane %v9746, 4
      %v9748 = vrot.slane %v9611, 5
      %v9749 = vsel %vm2073, %v9747, %v9748
      %v9750 = vrot.slane %v9612, 5
      %v9751 = vrot.slane %v9750, 4
      %v9752 = vrot.slane %v9613, 5
      %v9753 = vsel %vm2073, %v9751, %v9752
      %v9754 = vrot.slane %v9614, 5
      %v9755 = vrot.slane %v9754, 4
      %v9756 = vrot.slane %v9615, 5
      %v9757 = vsel %vm2073, %v9755, %v9756
      %v9758 = vrot.slane %v9616, 5
      %v9759 = vrot.slane %v9758, 4
      %v9760 = vrot.slane %v9617, 5
      %v9761 = vsel %vm2073, %v9759, %v9760
      %v9762 = vrot.slane %v9618, 5
      %v9763 = vrot.slane %v9762, 4
      %v9764 = vrot.slane %v9619, 5
      %v9765 = vsel %vm2073, %v9763, %v9764
      %v9766 = vrot.slane %v9620, 5
      %v9767 = vrot.slane %v9766, 4
      %v9768 = vrot.slane %v9621, 5
      %v9769 = vsel %vm2073, %v9767, %v9768
      %v9770 = vrot.slane %v9622, 5
      %v9771 = vrot.slane %v9770, 4
      %v9772 = vrot.slane %v9623, 5
      %v9773 = vsel %vm2073, %v9771, %v9772
      %v9774 = vrot.slane %v9624, 5
      %v9775 = vrot.slane %v9774, 4
      %v9776 = vrot.slane %v9625, 5
      %v9777 = vsel %vm2073, %v9775, %v9776
      %v9778 = vrot.slane %v9626, 5
      %v9779 = vrot.slane %v9778, 4
      %v9780 = vrot.slane %v9627, 5
      %v9781 = vsel %vm2073, %v9779, %v9780
      %v9782 = vrot.slane %v9628, 5
      %v9783 = vrot.slane %v9782, 4
      %v9784 = vrot.slane %v9629, 5
      %v9785 = vsel %vm2073, %v9783, %v9784
      %v9786 = vrot.slane %v9630, 5
      %v9787 = vrot.slane %v9786, 4
      %v9788 = vrot.slane %v9631, 5
      %v9789 = vsel %vm2073, %v9787, %v9788
      %v9790 = vrot.slane %v9632, 5
      %v9791 = vrot.slane %v9790, 4
      %v9792 = vrot.slane %v9633, 5
      %v9793 = vsel %vm2073, %v9791, %v9792
      %v9794 = vrot.slane %v9634, 5
      %v9795 = vrot.slane %v9794, 4
      %v9796 = vrot.slane %v9635, 5
      %v9797 = vsel %vm2073, %v9795, %v9796
      %v9798 = vrot.slane %v9636, 5
      %v9799 = vrot.slane %v9798, 4
      %v9800 = vrot.slane %v9637, 5
      %v9801 = vsel %vm2073, %v9799, %v9800
      %v9802 = vrot.slane %v9638, 5
      %v9803 = vrot.slane %v9802, 4
      %v9804 = vrot.slane %v9639, 5
      %v9805 = vsel %vm2073, %v9803, %v9804
      %v9806 = vrot.slane %v9640, 5
      %v9807 = vrot.slane %v9806, 4
      %v9808 = vrot.slane %v9641, 5
      %v9809 = vsel %vm2073, %v9807, %v9808
      %v9810 = vrot.slane %v9642, 5
      %v9811 = vrot.slane %v9810, 4
      %v9812 = vrot.slane %v9643, 5
      %v9813 = vsel %vm2073, %v9811, %v9812
      %v9814 = vrot.slane %v9644, 5
      %v9815 = vrot.slane %v9814, 4
      %v9816 = vrot.slane %v9645, 5
      %v9817 = vsel %vm2073, %v9815, %v9816
      %v9818 = vrot.slane %v9646, 5
      %v9819 = vrot.slane %v9818, 4
      %v9820 = vrot.slane %v9647, 5
      %v9821 = vsel %vm2073, %v9819, %v9820
      %v9822 = vrot.slane %v9648, 5
      %v9823 = vrot.slane %v9822, 4
      %v9824 = vrot.slane %v9649, 5
      %v9825 = vsel %vm2073, %v9823, %v9824
      %v9826 = vrot.slane %v9650, 5
      %v9827 = vrot.slane %v9826, 4
      %v9828 = vrot.slane %v9651, 5
      %v9829 = vsel %vm2073, %v9827, %v9828
      %v9830 = vrot.slane %v9652, 5
      %v9831 = vrot.slane %v9830, 4
      %v9832 = vrot.slane %v9653, 5
      %v9833 = vsel %vm2073, %v9831, %v9832
      %v9834 = vrot.slane %v9654, 5
      %v9835 = vrot.slane %v9834, 4
      %v9836 = vrot.slane %v9655, 5
      %v9837 = vsel %vm2073, %v9835, %v9836
      %v9838 = vrot.slane %v9656, 5
      %v9839 = vrot.slane %v9838, 4
      %v9840 = vrot.slane %v9657, 5
      %v9841 = vsel %vm2073, %v9839, %v9840
      %v9842 = vrot.slane %v9658, 5
      %v9843 = vrot.slane %v9842, 4
      %v9844 = vrot.slane %v9659, 5
      %v9845 = vsel %vm2073, %v9843, %v9844
      %v9846 = vrot.slane %v9660, 5
      %v9847 = vrot.slane %v9846, 4
      %v9848 = vrot.slane %v9661, 5
      %v9849 = vsel %vm2073, %v9847, %v9848
      %v9850 = vrot.slane %v9662, 5
      %v9851 = vrot.slane %v9850, 4
      %v9852 = vrot.slane %v9663, 5
      %v9853 = vsel %vm2073, %v9851, %v9852
      %v9854 = vrot.slane %v9664, 5
      %v9855 = vrot.slane %v9854, 4
      %v9856 = vrot.slane %v9665, 5
      %v9857 = vsel %vm2073, %v9855, %v9856
      %9890 = vst [vmem:[#allocation4 + $0x20] sm:$0xf] %v9733
      %9891 = vst [vmem:[#allocation4 + $0x44] sm:$0xf] %v9737
      %9892 = vst [vmem:[#allocation4 + $0x68] sm:$0xf] %v9741
      %9893 = vst [vmem:[#allocation4 + $0x8c] sm:$0xf] %v9745
      %9894 = vst [vmem:[#allocation4 + $0xb0] sm:$0xf] %v9749
      %9895 = vst [vmem:[#allocation4 + $0xd4] sm:$0xf] %v9753
      %9896 = vst [vmem:[#allocation4 + $0xf8] sm:$0xf] %v9757
      %9897 = vst [vmem:[#allocation4 + $0x11c] sm:$0xf] %v9761
      %9898 = vst [vmem:[#allocation4 + $0x140] sm:$0xf] %v9765
      %9899 = vst [vmem:[#allocation4 + $0x164] sm:$0xf] %v9769
      %9900 = vst [vmem:[#allocation4 + $0x188] sm:$0xf] %v9773
      %9901 = vst [vmem:[#allocation4 + $0x1ac] sm:$0xf] %v9777
      %9902 = vst [vmem:[#allocation4 + $0x1d0] sm:$0xf] %v9781
      %9903 = vst [vmem:[#allocation4 + $0x1f4] sm:$0xf] %v9785
      %9904 = vst [vmem:[#allocation4 + $0x218] sm:$0xf] %v9789
      %9905 = vst [vmem:[#allocation4 + $0x23c] sm:$0xf] %v9793
      %9906 = vst [vmem:[#allocation4 + $0x260] sm:$0xf] %v9797
      %9907 = vst [vmem:[#allocation4 + $0x284] sm:$0xf] %v9801
      %9908 = vst [vmem:[#allocation4 + $0x2a8] sm:$0xf] %v9805
      %9909 = vst [vmem:[#allocation4 + $0x2cc] sm:$0xf] %v9809
      %9910 = vst [vmem:[#allocation4 + $0x2f0] sm:$0xf] %v9813
      %9911 = vst [vmem:[#allocation4 + $0x314] sm:$0xf] %v9817
      %9912 = vst [vmem:[#allocation4 + $0x338] sm:$0xf] %v9821
      %9913 = vst [vmem:[#allocation4 + $0x35c] sm:$0xf] %v9825
      %9914 = vst [vmem:[#allocation4 + $0x380] sm:$0xf] %v9829
      %9915 = vst [vmem:[#allocation4 + $0x3a4] sm:$0xf] %v9833
      %9916 = vst [vmem:[#allocation4 + $0x3c8] sm:$0xf] %v9837
      %9917 = vst [vmem:[#allocation4 + $0x3ec] sm:$0xf] %v9841
      %9918 = vst [vmem:[#allocation4 + $0x410] sm:$0xf] %v9845
      %9919 = vst [vmem:[#allocation4 + $0x434] sm:$0xf] %v9849
      %9920 = vst [vmem:[#allocation4 + $0x458] sm:$0xf] %v9853
      %9921 = vst [vmem:[#allocation4 + $0x47c] sm:$0xf] %v9857
      %v9922 = vld [vmem:[#allocation4] sm:$0xff]
      %v9923 = vld [vmem:[#allocation4 + $0x8] sm:$0xff]
      %v9924 = vld [vmem:[#allocation4 + $0x10] sm:$0xff]
      %v9925 = vld [vmem:[#allocation4 + $0x18] sm:$0xff]
      %v9926 = vld [vmem:[#allocation4 + $0x20] sm:$0xf]
      %v9927 = vld [vmem:[#allocation4 + $0x24] sm:$0xff]
      %v9928 = vld [vmem:[#allocation4 + $0x2c] sm:$0xff]
      %v9929 = vld [vmem:[#allocation4 + $0x34] sm:$0xff]
      %v9930 = vld [vmem:[#allocation4 + $0x3c] sm:$0xff]
      %v9931 = vld [vmem:[#allocation4 + $0x44] sm:$0xf]
      %v9932 = vld [vmem:[#allocation4 + $0x48] sm:$0xff]
      %v9933 = vld [vmem:[#allocation4 + $0x50] sm:$0xff]
      %v9934 = vld [vmem:[#allocation4 + $0x58] sm:$0xff]
      %v9935 = vld [vmem:[#allocation4 + $0x60] sm:$0xff]
      %v9936 = vld [vmem:[#allocation4 + $0x68] sm:$0xf]
      %v9937 = vld [vmem:[#allocation4 + $0x6c] sm:$0xff]
      %v9938 = vld [vmem:[#allocation4 + $0x74] sm:$0xff]
      %v9939 = vld [vmem:[#allocation4 + $0x7c] sm:$0xff]
      %v9940 = vld [vmem:[#allocation4 + $0x84] sm:$0xff]
      %v9941 = vld [vmem:[#allocation4 + $0x8c] sm:$0xf]
      %v9942 = vld [vmem:[#allocation4 + $0x90] sm:$0xff]
      %v9943 = vld [vmem:[#allocation4 + $0x98] sm:$0xff]
      %v9944 = vld [vmem:[#allocation4 + $0xa0] sm:$0xff]
      %v9945 = vld [vmem:[#allocation4 + $0xa8] sm:$0xff]
      %v9946 = vld [vmem:[#allocation4 + $0xb0] sm:$0xf]
      %v9947 = vld [vmem:[#allocation4 + $0xb4] sm:$0xff]
      %v9948 = vld [vmem:[#allocation4 + $0xbc] sm:$0xff]
      %v9949 = vld [vmem:[#allocation4 + $0xc4] sm:$0xff]
      %v9950 = vld [vmem:[#allocation4 + $0xcc] sm:$0xff]
      %v9951 = vld [vmem:[#allocation4 + $0xd4] sm:$0xf]
      %v9952 = vld [vmem:[#allocation4 + $0xd8] sm:$0xff]
      %v9953 = vld [vmem:[#allocation4 + $0xe0] sm:$0xff]
      %v9954 = vld [vmem:[#allocation4 + $0xe8] sm:$0xff]
      %v9955 = vld [vmem:[#allocation4 + $0xf0] sm:$0xff]
      %v9956 = vld [vmem:[#allocation4 + $0xf8] sm:$0xf]
      %v9957 = vld [vmem:[#allocation4 + $0xfc] sm:$0xff]
      %v9958 = vld [vmem:[#allocation4 + $0x104] sm:$0xff]
      %v9959 = vld [vmem:[#allocation4 + $0x10c] sm:$0xff]
      %v9960 = vld [vmem:[#allocation4 + $0x114] sm:$0xff]
      %v9961 = vld [vmem:[#allocation4 + $0x11c] sm:$0xf]
      %v9962 = vld [vmem:[#allocation4 + $0x120] sm:$0xff]
      %v9963 = vld [vmem:[#allocation4 + $0x128] sm:$0xff]
      %v9964 = vld [vmem:[#allocation4 + $0x130] sm:$0xff]
      %v9965 = vld [vmem:[#allocation4 + $0x138] sm:$0xff]
      %v9966 = vld [vmem:[#allocation4 + $0x140] sm:$0xf]
      %v9967 = vld [vmem:[#allocation4 + $0x144] sm:$0xff]
      %v9968 = vld [vmem:[#allocation4 + $0x14c] sm:$0xff]
      %v9969 = vld [vmem:[#allocation4 + $0x154] sm:$0xff]
      %v9970 = vld [vmem:[#allocation4 + $0x15c] sm:$0xff]
      %v9971 = vld [vmem:[#allocation4 + $0x164] sm:$0xf]
      %v9972 = vld [vmem:[#allocation4 + $0x168] sm:$0xff]
      %v9973 = vld [vmem:[#allocation4 + $0x170] sm:$0xff]
      %v9974 = vld [vmem:[#allocation4 + $0x178] sm:$0xff]
      %v9975 = vld [vmem:[#allocation4 + $0x180] sm:$0xff]
      %v9976 = vld [vmem:[#allocation4 + $0x188] sm:$0xf]
      %v9977 = vld [vmem:[#allocation4 + $0x18c] sm:$0xff]
      %v9978 = vld [vmem:[#allocation4 + $0x194] sm:$0xff]
      %v9979 = vld [vmem:[#allocation4 + $0x19c] sm:$0xff]
      %v9980 = vld [vmem:[#allocation4 + $0x1a4] sm:$0xff]
      %v9981 = vld [vmem:[#allocation4 + $0x1ac] sm:$0xf]
      %v9982 = vld [vmem:[#allocation4 + $0x1b0] sm:$0xff]
      %v9983 = vld [vmem:[#allocation4 + $0x1b8] sm:$0xff]
      %v9984 = vld [vmem:[#allocation4 + $0x1c0] sm:$0xff]
      %v9985 = vld [vmem:[#allocation4 + $0x1c8] sm:$0xff]
      %v9986 = vld [vmem:[#allocation4 + $0x1d0] sm:$0xf]
      %v9987 = vld [vmem:[#allocation4 + $0x1d4] sm:$0xff]
      %v9988 = vld [vmem:[#allocation4 + $0x1dc] sm:$0xff]
      %v9989 = vld [vmem:[#allocation4 + $0x1e4] sm:$0xff]
      %v9990 = vld [vmem:[#allocation4 + $0x1ec] sm:$0xff]
      %v9991 = vld [vmem:[#allocation4 + $0x1f4] sm:$0xf]
      %v9992 = vld [vmem:[#allocation4 + $0x1f8] sm:$0xff]
      %v9993 = vld [vmem:[#allocation4 + $0x200] sm:$0xff]
      %v9994 = vld [vmem:[#allocation4 + $0x208] sm:$0xff]
      %v9995 = vld [vmem:[#allocation4 + $0x210] sm:$0xff]
      %v9996 = vld [vmem:[#allocation4 + $0x218] sm:$0xf]
      %v9997 = vld [vmem:[#allocation4 + $0x21c] sm:$0xff]
      %v9998 = vld [vmem:[#allocation4 + $0x224] sm:$0xff]
      %v9999 = vld [vmem:[#allocation4 + $0x22c] sm:$0xff]
      %v10000 = vld [vmem:[#allocation4 + $0x234] sm:$0xff]
      %v10001 = vld [vmem:[#allocation4 + $0x23c] sm:$0xf]
      %v10002 = vld [vmem:[#allocation4 + $0x240] sm:$0xff]
      %v10003 = vld [vmem:[#allocation4 + $0x248] sm:$0xff]
      %v10004 = vld [vmem:[#allocation4 + $0x250] sm:$0xff]
      %v10005 = vld [vmem:[#allocation4 + $0x258] sm:$0xff]
      %v10006 = vld [vmem:[#allocation4 + $0x260] sm:$0xf]
      %v10007 = vld [vmem:[#allocation4 + $0x264] sm:$0xff]
      %v10008 = vld [vmem:[#allocation4 + $0x26c] sm:$0xff]
      %v10009 = vld [vmem:[#allocation4 + $0x274] sm:$0xff]
      %v10010 = vld [vmem:[#allocation4 + $0x27c] sm:$0xff]
      %v10011 = vld [vmem:[#allocation4 + $0x284] sm:$0xf]
      %v10012 = vld [vmem:[#allocation4 + $0x288] sm:$0xff]
      %v10013 = vld [vmem:[#allocation4 + $0x290] sm:$0xff]
      %v10014 = vld [vmem:[#allocation4 + $0x298] sm:$0xff]
      %v10015 = vld [vmem:[#allocation4 + $0x2a0] sm:$0xff]
      %v10016 = vld [vmem:[#allocation4 + $0x2a8] sm:$0xf]
      %v10017 = vld [vmem:[#allocation4 + $0x2ac] sm:$0xff]
      %v10018 = vld [vmem:[#allocation4 + $0x2b4] sm:$0xff]
      %v10019 = vld [vmem:[#allocation4 + $0x2bc] sm:$0xff]
      %v10020 = vld [vmem:[#allocation4 + $0x2c4] sm:$0xff]
      %v10021 = vld [vmem:[#allocation4 + $0x2cc] sm:$0xf]
      %v10022 = vld [vmem:[#allocation4 + $0x2d0] sm:$0xff]
      %v10023 = vld [vmem:[#allocation4 + $0x2d8] sm:$0xff]
      %v10024 = vld [vmem:[#allocation4 + $0x2e0] sm:$0xff]
      %v10025 = vld [vmem:[#allocation4 + $0x2e8] sm:$0xff]
      %v10026 = vld [vmem:[#allocation4 + $0x2f0] sm:$0xf]
      %v10027 = vld [vmem:[#allocation4 + $0x2f4] sm:$0xff]
      %v10028 = vld [vmem:[#allocation4 + $0x2fc] sm:$0xff]
      %v10029 = vld [vmem:[#allocation4 + $0x304] sm:$0xff]
      %v10030 = vld [vmem:[#allocation4 + $0x30c] sm:$0xff]
      %v10031 = vld [vmem:[#allocation4 + $0x314] sm:$0xf]
      %v10032 = vld [vmem:[#allocation4 + $0x318] sm:$0xff]
      %v10033 = vld [vmem:[#allocation4 + $0x320] sm:$0xff]
      %v10034 = vld [vmem:[#allocation4 + $0x328] sm:$0xff]
      %v10035 = vld [vmem:[#allocation4 + $0x330] sm:$0xff]
      %v10036 = vld [vmem:[#allocation4 + $0x338] sm:$0xf]
      %v10037 = vld [vmem:[#allocation4 + $0x33c] sm:$0xff]
      %v10038 = vld [vmem:[#allocation4 + $0x344] sm:$0xff]
      %v10039 = vld [vmem:[#allocation4 + $0x34c] sm:$0xff]
      %v10040 = vld [vmem:[#allocation4 + $0x354] sm:$0xff]
      %v10041 = vld [vmem:[#allocation4 + $0x35c] sm:$0xf]
      %v10042 = vld [vmem:[#allocation4 + $0x360] sm:$0xff]
      %v10043 = vld [vmem:[#allocation4 + $0x368] sm:$0xff]
      %v10044 = vld [vmem:[#allocation4 + $0x370] sm:$0xff]
      %v10045 = vld [vmem:[#allocation4 + $0x378] sm:$0xff]
      %v10046 = vld [vmem:[#allocation4 + $0x380] sm:$0xf]
      %v10047 = vld [vmem:[#allocation4 + $0x384] sm:$0xff]
      %v10048 = vld [vmem:[#allocation4 + $0x38c] sm:$0xff]
      %v10049 = vld [vmem:[#allocation4 + $0x394] sm:$0xff]
      %v10050 = vld [vmem:[#allocation4 + $0x39c] sm:$0xff]
      %v10051 = vld [vmem:[#allocation4 + $0x3a4] sm:$0xf]
      %v10052 = vld [vmem:[#allocation4 + $0x3a8] sm:$0xff]
      %v10053 = vld [vmem:[#allocation4 + $0x3b0] sm:$0xff]
      %v10054 = vld [vmem:[#allocation4 + $0x3b8] sm:$0xff]
      %v10055 = vld [vmem:[#allocation4 + $0x3c0] sm:$0xff]
      %v10056 = vld [vmem:[#allocation4 + $0x3c8] sm:$0xf]
      %v10057 = vld [vmem:[#allocation4 + $0x3cc] sm:$0xff]
      %v10058 = vld [vmem:[#allocation4 + $0x3d4] sm:$0xff]
      %v10059 = vld [vmem:[#allocation4 + $0x3dc] sm:$0xff]
      %v10060 = vld [vmem:[#allocation4 + $0x3e4] sm:$0xff]
      %v10061 = vld [vmem:[#allocation4 + $0x3ec] sm:$0xf]
      %v10062 = vld [vmem:[#allocation4 + $0x3f0] sm:$0xff]
      %v10063 = vld [vmem:[#allocation4 + $0x3f8] sm:$0xff]
      %v10064 = vld [vmem:[#allocation4 + $0x400] sm:$0xff]
      %v10065 = vld [vmem:[#allocation4 + $0x408] sm:$0xff]
      %v10066 = vld [vmem:[#allocation4 + $0x410] sm:$0xf]
      %v10067 = vld [vmem:[#allocation4 + $0x414] sm:$0xff]
      %v10068 = vld [vmem:[#allocation4 + $0x41c] sm:$0xff]
      %v10069 = vld [vmem:[#allocation4 + $0x424] sm:$0xff]
      %v10070 = vld [vmem:[#allocation4 + $0x42c] sm:$0xff]
      %v10071 = vld [vmem:[#allocation4 + $0x434] sm:$0xf]
      %v10072 = vld [vmem:[#allocation4 + $0x438] sm:$0xff]
      %v10073 = vld [vmem:[#allocation4 + $0x440] sm:$0xff]
      %v10074 = vld [vmem:[#allocation4 + $0x448] sm:$0xff]
      %v10075 = vld [vmem:[#allocation4 + $0x450] sm:$0xff]
      %v10076 = vld [vmem:[#allocation4 + $0x458] sm:$0xf]
      %v10077 = vld [vmem:[#allocation4 + $0x45c] sm:$0xff]
      %v10078 = vld [vmem:[#allocation4 + $0x464] sm:$0xff]
      %v10079 = vld [vmem:[#allocation4 + $0x46c] sm:$0xff]
      %v10080 = vld [vmem:[#allocation4 + $0x474] sm:$0xff]
      %v10081 = vld [vmem:[#allocation4 + $0x47c] sm:$0xf]
      %v10082 = vld [vmem:[%s3] sm:$0xf]
      %v10083 = vld [vmem:[%s3 + $0x4] sm:$0xf]
      %v10084 = vld [vmem:[%s3 + $0x8] sm:$0xf]
      %v10085 = vld [vmem:[%s3 + $0xc] sm:$0xf]
      %v10086 = vld [vmem:[%s3 + $0x10] sm:$0xf]
      %v10087 = vld [vmem:[%s3 + $0x14] sm:$0xf]
      %v10088 = vld [vmem:[%s3 + $0x18] sm:$0xf]
      %v10089 = vld [vmem:[%s3 + $0x1c] sm:$0xf]
      %v10090 = vld [vmem:[%s3 + $0x20] sm:$0xf]
      %v10091 = vld [vmem:[%s3 + $0x24] sm:$0xf]
      %v10092 = vld [vmem:[%s3 + $0x28] sm:$0xf]
      %v10093 = vld [vmem:[%s3 + $0x2c] sm:$0xf]
      %v10094 = vld [vmem:[%s3 + $0x30] sm:$0xf]
      %v10095 = vld [vmem:[%s3 + $0x34] sm:$0xf]
      %v10096 = vld [vmem:[%s3 + $0x38] sm:$0xf]
      %v10097 = vld [vmem:[%s3 + $0x3c] sm:$0xf]
      %v10098 = vld [vmem:[%s3 + $0x40] sm:$0xf]
      %v10099 = vld [vmem:[%s3 + $0x44] sm:$0xf]
      %v10100 = vld [vmem:[%s3 + $0x48] sm:$0xf]
      %v10101 = vld [vmem:[%s3 + $0x4c] sm:$0xf]
      %v10102 = vld [vmem:[%s3 + $0x50] sm:$0xf]
      %v10103 = vld [vmem:[%s3 + $0x54] sm:$0xf]
      %v10104 = vld [vmem:[%s3 + $0x58] sm:$0xf]
      %v10105 = vld [vmem:[%s3 + $0x5c] sm:$0xf]
      %v10106 = vld [vmem:[%s3 + $0x60] sm:$0xf]
      %v10107 = vld [vmem:[%s3 + $0x64] sm:$0xf]
      %v10108 = vld [vmem:[%s3 + $0x68] sm:$0xf]
      %v10109 = vld [vmem:[%s3 + $0x6c] sm:$0xf]
      %v10110 = vld [vmem:[%s3 + $0x70] sm:$0xf]
      %v10111 = vld [vmem:[%s3 + $0x74] sm:$0xf]
      %v10112 = vld [vmem:[%s3 + $0x78] sm:$0xf]
      %v10113 = vld [vmem:[%s3 + $0x7c] sm:$0xf]
      %v10114 = vld [vmem:[%s3 + $0x80] sm:$0xf]
      %v10115 = vld [vmem:[%s3 + $0x84] sm:$0xf]
      %v10116 = vld [vmem:[%s3 + $0x88] sm:$0xf]
      %v10117 = vld [vmem:[%s3 + $0x8c] sm:$0xf]
      %v10118 = vld [vmem:[%s3 + $0x90] sm:$0xf]
      %v10119 = vld [vmem:[%s3 + $0x94] sm:$0xf]
      %v10120 = vld [vmem:[%s3 + $0x98] sm:$0xf]
      %v10121 = vld [vmem:[%s3 + $0x9c] sm:$0xf]
      %v10122 = vld [vmem:[%s3 + $0xa0] sm:$0xf]
      %v10123 = vld [vmem:[%s3 + $0xa4] sm:$0xf]
      %v10124 = vld [vmem:[%s3 + $0xa8] sm:$0xf]
      %v10125 = vld [vmem:[%s3 + $0xac] sm:$0xf]
      %v10126 = vld [vmem:[%s3 + $0xb0] sm:$0xf]
      %v10127 = vld [vmem:[%s3 + $0xb4] sm:$0xf]
      %v10128 = vld [vmem:[%s3 + $0xb8] sm:$0xf]
      %v10129 = vld [vmem:[%s3 + $0xbc] sm:$0xf]
      %v10130 = vld [vmem:[%s3 + $0xc0] sm:$0xf]
      %v10131 = vld [vmem:[%s3 + $0xc4] sm:$0xf]
      %v10132 = vld [vmem:[%s3 + $0xc8] sm:$0xf]
      %v10133 = vld [vmem:[%s3 + $0xcc] sm:$0xf]
      %v10134 = vld [vmem:[%s3 + $0xd0] sm:$0xf]
      %v10135 = vld [vmem:[%s3 + $0xd4] sm:$0xf]
      %v10136 = vld [vmem:[%s3 + $0xd8] sm:$0xf]
      %v10137 = vld [vmem:[%s3 + $0xdc] sm:$0xf]
      %v10138 = vld [vmem:[%s3 + $0xe0] sm:$0xf]
      %v10139 = vld [vmem:[%s3 + $0xe4] sm:$0xf]
      %v10140 = vld [vmem:[%s3 + $0xe8] sm:$0xf]
      %v10141 = vld [vmem:[%s3 + $0xec] sm:$0xf]
      %v10142 = vld [vmem:[%s3 + $0xf0] sm:$0xf]
      %v10143 = vld [vmem:[%s3 + $0xf4] sm:$0xf]
      %v10144 = vld [vmem:[%s3 + $0xf8] sm:$0xf]
      %v10145 = vld [vmem:[%s3 + $0xfc] sm:$0xf]
      %v10146 = vld [vmem:[%s3 + $0x100] sm:$0xf]
      %v10147 = vld [vmem:[%s3 + $0x104] sm:$0xf]
      %v10148 = vld [vmem:[%s3 + $0x108] sm:$0xf]
      %v10149 = vld [vmem:[%s3 + $0x10c] sm:$0xf]
      %v10150 = vld [vmem:[%s3 + $0x110] sm:$0xf]
      %v10151 = vld [vmem:[%s3 + $0x114] sm:$0xf]
      %v10152 = vld [vmem:[%s3 + $0x118] sm:$0xf]
      %v10153 = vld [vmem:[%s3 + $0x11c] sm:$0xf]
      %v10154 = vld [vmem:[%s3 + $0x120] sm:$0xf]
      %v10155 = vld [vmem:[%s3 + $0x124] sm:$0xf]
      %v10156 = vld [vmem:[%s3 + $0x128] sm:$0xf]
      %v10157 = vld [vmem:[%s3 + $0x12c] sm:$0xf]
      %v10158 = vld [vmem:[%s3 + $0x130] sm:$0xf]
      %v10159 = vld [vmem:[%s3 + $0x134] sm:$0xf]
      %v10160 = vld [vmem:[%s3 + $0x138] sm:$0xf]
      %v10161 = vld [vmem:[%s3 + $0x13c] sm:$0xf]
      %v10162 = vld [vmem:[%s3 + $0x140] sm:$0xf]
      %v10163 = vld [vmem:[%s3 + $0x144] sm:$0xf]
      %v10164 = vld [vmem:[%s3 + $0x148] sm:$0xf]
      %v10165 = vld [vmem:[%s3 + $0x14c] sm:$0xf]
      %v10166 = vld [vmem:[%s3 + $0x150] sm:$0xf]
      %v10167 = vld [vmem:[%s3 + $0x154] sm:$0xf]
      %v10168 = vld [vmem:[%s3 + $0x158] sm:$0xf]
      %v10169 = vld [vmem:[%s3 + $0x15c] sm:$0xf]
      %v10170 = vld [vmem:[%s3 + $0x160] sm:$0xf]
      %v10171 = vld [vmem:[%s3 + $0x164] sm:$0xf]
      %v10172 = vld [vmem:[%s3 + $0x168] sm:$0xf]
      %v10173 = vld [vmem:[%s3 + $0x16c] sm:$0xf]
      %v10174 = vld [vmem:[%s3 + $0x170] sm:$0xf]
      %v10175 = vld [vmem:[%s3 + $0x174] sm:$0xf]
      %v10176 = vld [vmem:[%s3 + $0x178] sm:$0xf]
      %v10177 = vld [vmem:[%s3 + $0x17c] sm:$0xf]
      %v10178 = vld [vmem:[%s3 + $0x180] sm:$0xf]
      %v10179 = vld [vmem:[%s3 + $0x184] sm:$0xf]
      %v10180 = vld [vmem:[%s3 + $0x188] sm:$0xf]
      %v10181 = vld [vmem:[%s3 + $0x18c] sm:$0xf]
      %v10182 = vld [vmem:[%s3 + $0x190] sm:$0xf]
      %v10183 = vld [vmem:[%s3 + $0x194] sm:$0xf]
      %v10184 = vld [vmem:[%s3 + $0x198] sm:$0xf]
      %v10185 = vld [vmem:[%s3 + $0x19c] sm:$0xf]
      %v10186 = vld [vmem:[%s3 + $0x1a0] sm:$0xf]
      %v10187 = vld [vmem:[%s3 + $0x1a4] sm:$0xf]
      %v10188 = vld [vmem:[%s3 + $0x1a8] sm:$0xf]
      %v10189 = vld [vmem:[%s3 + $0x1ac] sm:$0xf]
      %v10190 = vld [vmem:[%s3 + $0x1b0] sm:$0xf]
      %v10191 = vld [vmem:[%s3 + $0x1b4] sm:$0xf]
      %v10192 = vld [vmem:[%s3 + $0x1b8] sm:$0xf]
      %v10193 = vld [vmem:[%s3 + $0x1bc] sm:$0xf]
      %v10194 = vld [vmem:[%s3 + $0x1c0] sm:$0xf]
      %v10195 = vld [vmem:[%s3 + $0x1c4] sm:$0xf]
      %v10196 = vld [vmem:[%s3 + $0x1c8] sm:$0xf]
      %v10197 = vld [vmem:[%s3 + $0x1cc] sm:$0xf]
      %v10198 = vld [vmem:[%s3 + $0x1d0] sm:$0xf]
      %v10199 = vld [vmem:[%s3 + $0x1d4] sm:$0xf]
      %v10200 = vld [vmem:[%s3 + $0x1d8] sm:$0xf]
      %v10201 = vld [vmem:[%s3 + $0x1dc] sm:$0xf]
      %v10202 = vld [vmem:[%s3 + $0x1e0] sm:$0xf]
      %v10203 = vld [vmem:[%s3 + $0x1e4] sm:$0xf]
      %v10204 = vld [vmem:[%s3 + $0x1e8] sm:$0xf]
      %v10205 = vld [vmem:[%s3 + $0x1ec] sm:$0xf]
      %v10206 = vld [vmem:[%s3 + $0x1f0] sm:$0xf]
      %v10207 = vld [vmem:[%s3 + $0x1f4] sm:$0xf]
      %v10208 = vld [vmem:[%s3 + $0x1f8] sm:$0xf]
      %v10209 = vld [vmem:[%s3 + $0x1fc] sm:$0xf]
      %v10210 = vld [vmem:[%s3 + $0x200] sm:$0xf]
      %v10211 = vld [vmem:[%s3 + $0x204] sm:$0xf]
      %v10212 = vld [vmem:[%s3 + $0x208] sm:$0xf]
      %v10213 = vld [vmem:[%s3 + $0x20c] sm:$0xf]
      %v10214 = vld [vmem:[%s3 + $0x210] sm:$0xf]
      %v10215 = vld [vmem:[%s3 + $0x214] sm:$0xf]
      %v10216 = vld [vmem:[%s3 + $0x218] sm:$0xf]
      %v10217 = vld [vmem:[%s3 + $0x21c] sm:$0xf]
      %v10218 = vld [vmem:[%s3 + $0x220] sm:$0xf]
      %v10219 = vld [vmem:[%s3 + $0x224] sm:$0xf]
      %v10220 = vld [vmem:[%s3 + $0x228] sm:$0xf]
      %v10221 = vld [vmem:[%s3 + $0x22c] sm:$0xf]
      %v10222 = vld [vmem:[%s3 + $0x230] sm:$0xf]
      %v10223 = vld [vmem:[%s3 + $0x234] sm:$0xf]
      %v10224 = vld [vmem:[%s3 + $0x238] sm:$0xf]
      %v10225 = vld [vmem:[%s3 + $0x23c] sm:$0xf]
      %v10226 = vld [vmem:[%s4] sm:$0x1]
      %v10228 = vperm.slane %v10226, 0
      %v10390 = vunpack.c.l.b16 %v9922
      %v10391 = vunpack.c.h.b16 %v9922
      %v10392 = vunpack.c.l.b16 %v9923
      %v10393 = vunpack.c.h.b16 %v9923
      %v10394 = vunpack.c.l.b16 %v9924
      %v10395 = vunpack.c.h.b16 %v9924
      %v10396 = vunpack.c.l.b16 %v9925
      %v10397 = vunpack.c.h.b16 %v9925
      %v10398 = vunpack.c.l.b16 %v9926
      %v10399 = vunpack.c.l.b16 %v9927
      %v10400 = vunpack.c.h.b16 %v9927
      %v10401 = vunpack.c.l.b16 %v9928
      %v10402 = vunpack.c.h.b16 %v9928
      %v10403 = vunpack.c.l.b16 %v9929
      %v10404 = vunpack.c.h.b16 %v9929
      %v10405 = vunpack.c.l.b16 %v9930
      %v10406 = vunpack.c.h.b16 %v9930
      %v10407 = vunpack.c.l.b16 %v9931
      %v10408 = vunpack.c.l.b16 %v9932
      %v10409 = vunpack.c.h.b16 %v9932
      %v10410 = vunpack.c.l.b16 %v9933
      %v10411 = vunpack.c.h.b16 %v9933
      %v10412 = vunpack.c.l.b16 %v9934
      %v10413 = vunpack.c.h.b16 %v9934
      %v10414 = vunpack.c.l.b16 %v9935
      %v10415 = vunpack.c.h.b16 %v9935
      %v10416 = vunpack.c.l.b16 %v9936
      %v10417 = vunpack.c.l.b16 %v9937
      %v10418 = vunpack.c.h.b16 %v9937
      %v10419 = vunpack.c.l.b16 %v9938
      %v10420 = vunpack.c.h.b16 %v9938
      %v10421 = vunpack.c.l.b16 %v9939
      %v10422 = vunpack.c.h.b16 %v9939
      %v10423 = vunpack.c.l.b16 %v9940
      %v10424 = vunpack.c.h.b16 %v9940
      %v10425 = vunpack.c.l.b16 %v9941
      %v10426 = vunpack.c.l.b16 %v9942
      %v10427 = vunpack.c.h.b16 %v9942
      %v10428 = vunpack.c.l.b16 %v9943
      %v10429 = vunpack.c.h.b16 %v9943
      %v10430 = vunpack.c.l.b16 %v9944
      %v10431 = vunpack.c.h.b16 %v9944
      %v10432 = vunpack.c.l.b16 %v9945
      %v10433 = vunpack.c.h.b16 %v9945
      %v10434 = vunpack.c.l.b16 %v9946
      %v10435 = vunpack.c.l.b16 %v9947
      %v10436 = vunpack.c.h.b16 %v9947
      %v10437 = vunpack.c.l.b16 %v9948
      %v10438 = vunpack.c.h.b16 %v9948
      %v10439 = vunpack.c.l.b16 %v9949
      %v10440 = vunpack.c.h.b16 %v9949
      %v10441 = vunpack.c.l.b16 %v9950
      %v10442 = vunpack.c.h.b16 %v9950
      %v10443 = vunpack.c.l.b16 %v9951
      %v10444 = vunpack.c.l.b16 %v9952
      %v10445 = vunpack.c.h.b16 %v9952
      %v10446 = vunpack.c.l.b16 %v9953
      %v10447 = vunpack.c.h.b16 %v9953
      %v10448 = vunpack.c.l.b16 %v9954
      %v10449 = vunpack.c.h.b16 %v9954
      %v10450 = vunpack.c.l.b16 %v9955
      %v10451 = vunpack.c.h.b16 %v9955
      %v10452 = vunpack.c.l.b16 %v9956
      %v10453 = vunpack.c.l.b16 %v9957
      %v10454 = vunpack.c.h.b16 %v9957
      %v10455 = vunpack.c.l.b16 %v9958
      %v10456 = vunpack.c.h.b16 %v9958
      %v10457 = vunpack.c.l.b16 %v9959
      %v10458 = vunpack.c.h.b16 %v9959
      %v10459 = vunpack.c.l.b16 %v9960
      %v10460 = vunpack.c.h.b16 %v9960
      %v10461 = vunpack.c.l.b16 %v9961
      %v10462 = vunpack.c.l.b16 %v9962
      %v10463 = vunpack.c.h.b16 %v9962
      %v10464 = vunpack.c.l.b16 %v9963
      %v10465 = vunpack.c.h.b16 %v9963
      %v10466 = vunpack.c.l.b16 %v9964
      %v10467 = vunpack.c.h.b16 %v9964
      %v10468 = vunpack.c.l.b16 %v9965
      %v10469 = vunpack.c.h.b16 %v9965
      %v10470 = vunpack.c.l.b16 %v9966
      %v10471 = vunpack.c.l.b16 %v9967
      %v10472 = vunpack.c.h.b16 %v9967
      %v10473 = vunpack.c.l.b16 %v9968
      %v10474 = vunpack.c.h.b16 %v9968
      %v10475 = vunpack.c.l.b16 %v9969
      %v10476 = vunpack.c.h.b16 %v9969
      %v10477 = vunpack.c.l.b16 %v9970
      %v10478 = vunpack.c.h.b16 %v9970
      %v10479 = vunpack.c.l.b16 %v9971
      %v10480 = vunpack.c.l.b16 %v9972
      %v10481 = vunpack.c.h.b16 %v9972
      %v10482 = vunpack.c.l.b16 %v9973
      %v10483 = vunpack.c.h.b16 %v9973
      %v10484 = vunpack.c.l.b16 %v9974
      %v10485 = vunpack.c.h.b16 %v9974
      %v10486 = vunpack.c.l.b16 %v9975
      %v10487 = vunpack.c.h.b16 %v9975
      %v10488 = vunpack.c.l.b16 %v9976
      %v10489 = vunpack.c.l.b16 %v9977
      %v10490 = vunpack.c.h.b16 %v9977
      %v10491 = vunpack.c.l.b16 %v9978
      %v10492 = vunpack.c.h.b16 %v9978
      %v10493 = vunpack.c.l.b16 %v9979
      %v10494 = vunpack.c.h.b16 %v9979
      %v10495 = vunpack.c.l.b16 %v9980
      %v10496 = vunpack.c.h.b16 %v9980
      %v10497 = vunpack.c.l.b16 %v9981
      %v10498 = vunpack.c.l.b16 %v9982
      %v10499 = vunpack.c.h.b16 %v9982
      %v10500 = vunpack.c.l.b16 %v9983
      %v10501 = vunpack.c.h.b16 %v9983
      %v10502 = vunpack.c.l.b16 %v9984
      %v10503 = vunpack.c.h.b16 %v9984
      %v10504 = vunpack.c.l.b16 %v9985
      %v10505 = vunpack.c.h.b16 %v9985
      %v10506 = vunpack.c.l.b16 %v9986
      %v10507 = vunpack.c.l.b16 %v9987
      %v10508 = vunpack.c.h.b16 %v9987
      %v10509 = vunpack.c.l.b16 %v9988
      %v10510 = vunpack.c.h.b16 %v9988
      %v10511 = vunpack.c.l.b16 %v9989
      %v10512 = vunpack.c.h.b16 %v9989
      %v10513 = vunpack.c.l.b16 %v9990
      %v10514 = vunpack.c.h.b16 %v9990
      %v10515 = vunpack.c.l.b16 %v9991
      %v10516 = vunpack.c.l.b16 %v9992
      %v10517 = vunpack.c.h.b16 %v9992
      %v10518 = vunpack.c.l.b16 %v9993
      %v10519 = vunpack.c.h.b16 %v9993
      %v10520 = vunpack.c.l.b16 %v9994
      %v10521 = vunpack.c.h.b16 %v9994
      %v10522 = vunpack.c.l.b16 %v9995
      %v10523 = vunpack.c.h.b16 %v9995
      %v10524 = vunpack.c.l.b16 %v9996
      %v10525 = vunpack.c.l.b16 %v9997
      %v10526 = vunpack.c.h.b16 %v9997
      %v10527 = vunpack.c.l.b16 %v9998
      %v10528 = vunpack.c.h.b16 %v9998
      %v10529 = vunpack.c.l.b16 %v9999
      %v10530 = vunpack.c.h.b16 %v9999
      %v10531 = vunpack.c.l.b16 %v10000
      %v10532 = vunpack.c.h.b16 %v10000
      %v10533 = vunpack.c.l.b16 %v10001
      %v10534 = vunpack.c.l.b16 %v10002
      %v10535 = vunpack.c.h.b16 %v10002
      %v10536 = vunpack.c.l.b16 %v10003
      %v10537 = vunpack.c.h.b16 %v10003
      %v10538 = vunpack.c.l.b16 %v10004
      %v10539 = vunpack.c.h.b16 %v10004
      %v10540 = vunpack.c.l.b16 %v10005
      %v10541 = vunpack.c.h.b16 %v10005
      %v10542 = vunpack.c.l.b16 %v10006
      %v10543 = vunpack.c.l.b16 %v10007
      %v10544 = vunpack.c.h.b16 %v10007
      %v10545 = vunpack.c.l.b16 %v10008
      %v10546 = vunpack.c.h.b16 %v10008
      %v10547 = vunpack.c.l.b16 %v10009
      %v10548 = vunpack.c.h.b16 %v10009
      %v10549 = vunpack.c.l.b16 %v10010
      %v10550 = vunpack.c.h.b16 %v10010
      %v10551 = vunpack.c.l.b16 %v10011
      %v10552 = vunpack.c.l.b16 %v10012
      %v10553 = vunpack.c.h.b16 %v10012
      %v10554 = vunpack.c.l.b16 %v10013
      %v10555 = vunpack.c.h.b16 %v10013
      %v10556 = vunpack.c.l.b16 %v10014
      %v10557 = vunpack.c.h.b16 %v10014
      %v10558 = vunpack.c.l.b16 %v10015
      %v10559 = vunpack.c.h.b16 %v10015
      %v10560 = vunpack.c.l.b16 %v10016
      %v10561 = vunpack.c.l.b16 %v10017
      %v10562 = vunpack.c.h.b16 %v10017
      %v10563 = vunpack.c.l.b16 %v10018
      %v10564 = vunpack.c.h.b16 %v10018
      %v10565 = vunpack.c.l.b16 %v10019
      %v10566 = vunpack.c.h.b16 %v10019
      %v10567 = vunpack.c.l.b16 %v10020
      %v10568 = vunpack.c.h.b16 %v10020
      %v10569 = vunpack.c.l.b16 %v10021
      %v10570 = vunpack.c.l.b16 %v10022
      %v10571 = vunpack.c.h.b16 %v10022
      %v10572 = vunpack.c.l.b16 %v10023
      %v10573 = vunpack.c.h.b16 %v10023
      %v10574 = vunpack.c.l.b16 %v10024
      %v10575 = vunpack.c.h.b16 %v10024
      %v10576 = vunpack.c.l.b16 %v10025
      %v10577 = vunpack.c.h.b16 %v10025
      %v10578 = vunpack.c.l.b16 %v10026
      %v10579 = vunpack.c.l.b16 %v10027
      %v10580 = vunpack.c.h.b16 %v10027
      %v10581 = vunpack.c.l.b16 %v10028
      %v10582 = vunpack.c.h.b16 %v10028
      %v10583 = vunpack.c.l.b16 %v10029
      %v10584 = vunpack.c.h.b16 %v10029
      %v10585 = vunpack.c.l.b16 %v10030
      %v10586 = vunpack.c.h.b16 %v10030
      %v10587 = vunpack.c.l.b16 %v10031
      %v10588 = vunpack.c.l.b16 %v10032
      %v10589 = vunpack.c.h.b16 %v10032
      %v10590 = vunpack.c.l.b16 %v10033
      %v10591 = vunpack.c.h.b16 %v10033
      %v10592 = vunpack.c.l.b16 %v10034
      %v10593 = vunpack.c.h.b16 %v10034
      %v10594 = vunpack.c.l.b16 %v10035
      %v10595 = vunpack.c.h.b16 %v10035
      %v10596 = vunpack.c.l.b16 %v10036
      %v10597 = vunpack.c.l.b16 %v10037
      %v10598 = vunpack.c.h.b16 %v10037
      %v10599 = vunpack.c.l.b16 %v10038
      %v10600 = vunpack.c.h.b16 %v10038
      %v10601 = vunpack.c.l.b16 %v10039
      %v10602 = vunpack.c.h.b16 %v10039
      %v10603 = vunpack.c.l.b16 %v10040
      %v10604 = vunpack.c.h.b16 %v10040
      %v10605 = vunpack.c.l.b16 %v10041
      %v10606 = vunpack.c.l.b16 %v10042
      %v10607 = vunpack.c.h.b16 %v10042
      %v10608 = vunpack.c.l.b16 %v10043
      %v10609 = vunpack.c.h.b16 %v10043
      %v10610 = vunpack.c.l.b16 %v10044
      %v10611 = vunpack.c.h.b16 %v10044
      %v10612 = vunpack.c.l.b16 %v10045
      %v10613 = vunpack.c.h.b16 %v10045
      %v10614 = vunpack.c.l.b16 %v10046
      %v10615 = vunpack.c.l.b16 %v10047
      %v10616 = vunpack.c.h.b16 %v10047
      %v10617 = vunpack.c.l.b16 %v10048
      %v10618 = vunpack.c.h.b16 %v10048
      %v10619 = vunpack.c.l.b16 %v10049
      %v10620 = vunpack.c.h.b16 %v10049
      %v10621 = vunpack.c.l.b16 %v10050
      %v10622 = vunpack.c.h.b16 %v10050
      %v10623 = vunpack.c.l.b16 %v10051
      %v10624 = vunpack.c.l.b16 %v10052
      %v10625 = vunpack.c.h.b16 %v10052
      %v10626 = vunpack.c.l.b16 %v10053
      %v10627 = vunpack.c.h.b16 %v10053
      %v10628 = vunpack.c.l.b16 %v10054
      %v10629 = vunpack.c.h.b16 %v10054
      %v10630 = vunpack.c.l.b16 %v10055
      %v10631 = vunpack.c.h.b16 %v10055
      %v10632 = vunpack.c.l.b16 %v10056
      %v10633 = vunpack.c.l.b16 %v10057
      %v10634 = vunpack.c.h.b16 %v10057
      %v10635 = vunpack.c.l.b16 %v10058
      %v10636 = vunpack.c.h.b16 %v10058
      %v10637 = vunpack.c.l.b16 %v10059
      %v10638 = vunpack.c.h.b16 %v10059
      %v10639 = vunpack.c.l.b16 %v10060
      %v10640 = vunpack.c.h.b16 %v10060
      %v10641 = vunpack.c.l.b16 %v10061
      %v10642 = vunpack.c.l.b16 %v10062
      %v10643 = vunpack.c.h.b16 %v10062
      %v10644 = vunpack.c.l.b16 %v10063
      %v10645 = vunpack.c.h.b16 %v10063
      %v10646 = vunpack.c.l.b16 %v10064
      %v10647 = vunpack.c.h.b16 %v10064
      %v10648 = vunpack.c.l.b16 %v10065
      %v10649 = vunpack.c.h.b16 %v10065
      %v10650 = vunpack.c.l.b16 %v10066
      %v10651 = vunpack.c.l.b16 %v10067
      %v10652 = vunpack.c.h.b16 %v10067
      %v10653 = vunpack.c.l.b16 %v10068
      %v10654 = vunpack.c.h.b16 %v10068
      %v10655 = vunpack.c.l.b16 %v10069
      %v10656 = vunpack.c.h.b16 %v10069
      %v10657 = vunpack.c.l.b16 %v10070
      %v10658 = vunpack.c.h.b16 %v10070
      %v10659 = vunpack.c.l.b16 %v10071
      %v10660 = vunpack.c.l.b16 %v10072
      %v10661 = vunpack.c.h.b16 %v10072
      %v10662 = vunpack.c.l.b16 %v10073
      %v10663 = vunpack.c.h.b16 %v10073
      %v10664 = vunpack.c.l.b16 %v10074
      %v10665 = vunpack.c.h.b16 %v10074
      %v10666 = vunpack.c.l.b16 %v10075
      %v10667 = vunpack.c.h.b16 %v10075
      %v10668 = vunpack.c.l.b16 %v10076
      %v10669 = vunpack.c.l.b16 %v10077
      %v10670 = vunpack.c.h.b16 %v10077
      %v10671 = vunpack.c.l.b16 %v10078
      %v10672 = vunpack.c.h.b16 %v10078
      %v10673 = vunpack.c.l.b16 %v10079
      %v10674 = vunpack.c.h.b16 %v10079
      %v10675 = vunpack.c.l.b16 %v10080
      %v10676 = vunpack.c.h.b16 %v10080
      %v10677 = vunpack.c.l.b16 %v10081
      %v10678 = vpack.c.b16 %v10399, %v10390
      %v10679 = vpack.c.b16 %v10400, %v10391
      %v10680 = vpack.c.b16 %v10401, %v10392
      %v10681 = vpack.c.b16 %v10402, %v10393
      %v10682 = vpack.c.b16 %v10403, %v10394
      %v10683 = vpack.c.b16 %v10404, %v10395
      %v10684 = vpack.c.b16 %v10405, %v10396
      %v10685 = vpack.c.b16 %v10406, %v10397
      %v10686 = vpack.c.b16 %v10407, %v10398
      %v10687 = vpack.c.b16 %v10417, %v10408
      %v10688 = vpack.c.b16 %v10418, %v10409
      %v10689 = vpack.c.b16 %v10419, %v10410
      %v10690 = vpack.c.b16 %v10420, %v10411
      %v10691 = vpack.c.b16 %v10421, %v10412
      %v10692 = vpack.c.b16 %v10422, %v10413
      %v10693 = vpack.c.b16 %v10423, %v10414
      %v10694 = vpack.c.b16 %v10424, %v10415
      %v10695 = vpack.c.b16 %v10425, %v10416
      %v10696 = vpack.c.b16 %v10435, %v10426
      %v10697 = vpack.c.b16 %v10436, %v10427
      %v10698 = vpack.c.b16 %v10437, %v10428
      %v10699 = vpack.c.b16 %v10438, %v10429
      %v10700 = vpack.c.b16 %v10439, %v10430
      %v10701 = vpack.c.b16 %v10440, %v10431
      %v10702 = vpack.c.b16 %v10441, %v10432
      %v10703 = vpack.c.b16 %v10442, %v10433
      %v10704 = vpack.c.b16 %v10443, %v10434
      %v10705 = vpack.c.b16 %v10453, %v10444
      %v10706 = vpack.c.b16 %v10454, %v10445
      %v10707 = vpack.c.b16 %v10455, %v10446
      %v10708 = vpack.c.b16 %v10456, %v10447
      %v10709 = vpack.c.b16 %v10457, %v10448
      %v10710 = vpack.c.b16 %v10458, %v10449
      %v10711 = vpack.c.b16 %v10459, %v10450
      %v10712 = vpack.c.b16 %v10460, %v10451
      %v10713 = vpack.c.b16 %v10461, %v10452
      %v10714 = vpack.c.b16 %v10471, %v10462
      %v10715 = vpack.c.b16 %v10472, %v10463
      %v10716 = vpack.c.b16 %v10473, %v10464
      %v10717 = vpack.c.b16 %v10474, %v10465
      %v10718 = vpack.c.b16 %v10475, %v10466
      %v10719 = vpack.c.b16 %v10476, %v10467
      %v10720 = vpack.c.b16 %v10477, %v10468
      %v10721 = vpack.c.b16 %v10478, %v10469
      %v10722 = vpack.c.b16 %v10479, %v10470
      %v10723 = vpack.c.b16 %v10489, %v10480
      %v10724 = vpack.c.b16 %v10490, %v10481
      %v10725 = vpack.c.b16 %v10491, %v10482
      %v10726 = vpack.c.b16 %v10492, %v10483
      %v10727 = vpack.c.b16 %v10493, %v10484
      %v10728 = vpack.c.b16 %v10494, %v10485
      %v10729 = vpack.c.b16 %v10495, %v10486
      %v10730 = vpack.c.b16 %v10496, %v10487
      %v10731 = vpack.c.b16 %v10497, %v10488
      %v10732 = vpack.c.b16 %v10507, %v10498
      %v10733 = vpack.c.b16 %v10508, %v10499
      %v10734 = vpack.c.b16 %v10509, %v10500
      %v10735 = vpack.c.b16 %v10510, %v10501
      %v10736 = vpack.c.b16 %v10511, %v10502
      %v10737 = vpack.c.b16 %v10512, %v10503
      %v10738 = vpack.c.b16 %v10513, %v10504
      %v10739 = vpack.c.b16 %v10514, %v10505
      %v10740 = vpack.c.b16 %v10515, %v10506
      %v10741 = vpack.c.b16 %v10525, %v10516
      %v10742 = vpack.c.b16 %v10526, %v10517
      %v10743 = vpack.c.b16 %v10527, %v10518
      %v10744 = vpack.c.b16 %v10528, %v10519
      %v10745 = vpack.c.b16 %v10529, %v10520
      %v10746 = vpack.c.b16 %v10530, %v10521
      %v10747 = vpack.c.b16 %v10531, %v10522
      %v10748 = vpack.c.b16 %v10532, %v10523
      %v10749 = vpack.c.b16 %v10533, %v10524
      %v10750 = vpack.c.b16 %v10543, %v10534
      %v10751 = vpack.c.b16 %v10544, %v10535
      %v10752 = vpack.c.b16 %v10545, %v10536
      %v10753 = vpack.c.b16 %v10546, %v10537
      %v10754 = vpack.c.b16 %v10547, %v10538
      %v10755 = vpack.c.b16 %v10548, %v10539
      %v10756 = vpack.c.b16 %v10549, %v10540
      %v10757 = vpack.c.b16 %v10550, %v10541
      %v10758 = vpack.c.b16 %v10551, %v10542
      %v10759 = vpack.c.b16 %v10561, %v10552
      %v10760 = vpack.c.b16 %v10562, %v10553
      %v10761 = vpack.c.b16 %v10563, %v10554
      %v10762 = vpack.c.b16 %v10564, %v10555
      %v10763 = vpack.c.b16 %v10565, %v10556
      %v10764 = vpack.c.b16 %v10566, %v10557
      %v10765 = vpack.c.b16 %v10567, %v10558
      %v10766 = vpack.c.b16 %v10568, %v10559
      %v10767 = vpack.c.b16 %v10569, %v10560
      %v10768 = vpack.c.b16 %v10579, %v10570
      %v10769 = vpack.c.b16 %v10580, %v10571
      %v10770 = vpack.c.b16 %v10581, %v10572
      %v10771 = vpack.c.b16 %v10582, %v10573
      %v10772 = vpack.c.b16 %v10583, %v10574
      %v10773 = vpack.c.b16 %v10584, %v10575
      %v10774 = vpack.c.b16 %v10585, %v10576
      %v10775 = vpack.c.b16 %v10586, %v10577
      %v10776 = vpack.c.b16 %v10587, %v10578
      %v10777 = vpack.c.b16 %v10597, %v10588
      %v10778 = vpack.c.b16 %v10598, %v10589
      %v10779 = vpack.c.b16 %v10599, %v10590
      %v10780 = vpack.c.b16 %v10600, %v10591
      %v10781 = vpack.c.b16 %v10601, %v10592
      %v10782 = vpack.c.b16 %v10602, %v10593
      %v10783 = vpack.c.b16 %v10603, %v10594
      %v10784 = vpack.c.b16 %v10604, %v10595
      %v10785 = vpack.c.b16 %v10605, %v10596
      %v10786 = vpack.c.b16 %v10615, %v10606
      %v10787 = vpack.c.b16 %v10616, %v10607
      %v10788 = vpack.c.b16 %v10617, %v10608
      %v10789 = vpack.c.b16 %v10618, %v10609
      %v10790 = vpack.c.b16 %v10619, %v10610
      %v10791 = vpack.c.b16 %v10620, %v10611
      %v10792 = vpack.c.b16 %v10621, %v10612
      %v10793 = vpack.c.b16 %v10622, %v10613
      %v10794 = vpack.c.b16 %v10623, %v10614
      %v10795 = vpack.c.b16 %v10633, %v10624
      %v10796 = vpack.c.b16 %v10634, %v10625
      %v10797 = vpack.c.b16 %v10635, %v10626
      %v10798 = vpack.c.b16 %v10636, %v10627
      %v10799 = vpack.c.b16 %v10637, %v10628
      %v10800 = vpack.c.b16 %v10638, %v10629
      %v10801 = vpack.c.b16 %v10639, %v10630
      %v10802 = vpack.c.b16 %v10640, %v10631
      %v10803 = vpack.c.b16 %v10641, %v10632
      %v10804 = vpack.c.b16 %v10651, %v10642
      %v10805 = vpack.c.b16 %v10652, %v10643
      %v10806 = vpack.c.b16 %v10653, %v10644
      %v10807 = vpack.c.b16 %v10654, %v10645
      %v10808 = vpack.c.b16 %v10655, %v10646
      %v10809 = vpack.c.b16 %v10656, %v10647
      %v10810 = vpack.c.b16 %v10657, %v10648
      %v10811 = vpack.c.b16 %v10658, %v10649
      %v10812 = vpack.c.b16 %v10659, %v10650
      %v10813 = vpack.c.b16 %v10669, %v10660
      %v10814 = vpack.c.b16 %v10670, %v10661
      %v10815 = vpack.c.b16 %v10671, %v10662
      %v10816 = vpack.c.b16 %v10672, %v10663
      %v10817 = vpack.c.b16 %v10673, %v10664
      %v10818 = vpack.c.b16 %v10674, %v10665
      %v10819 = vpack.c.b16 %v10675, %v10666
      %v10820 = vpack.c.b16 %v10676, %v10667
      %v10821 = vpack.c.b16 %v10677, %v10668
      %v11110 = vunpack.c.l.b16 %v10082
      %v11111 = vunpack.c.l.b16 %v10083
      %v11112 = vunpack.c.l.b16 %v10084
      %v11113 = vunpack.c.l.b16 %v10085
      %v11114 = vunpack.c.l.b16 %v10086
      %v11115 = vunpack.c.l.b16 %v10087
      %v11116 = vunpack.c.l.b16 %v10088
      %v11117 = vunpack.c.l.b16 %v10089
      %v11118 = vunpack.c.l.b16 %v10090
      %v11119 = vunpack.c.l.b16 %v10091
      %v11120 = vunpack.c.l.b16 %v10092
      %v11121 = vunpack.c.l.b16 %v10093
      %v11122 = vunpack.c.l.b16 %v10094
      %v11123 = vunpack.c.l.b16 %v10095
      %v11124 = vunpack.c.l.b16 %v10096
      %v11125 = vunpack.c.l.b16 %v10097
      %v11126 = vunpack.c.l.b16 %v10098
      %v11127 = vunpack.c.l.b16 %v10099
      %v11128 = vunpack.c.l.b16 %v10100
      %v11129 = vunpack.c.l.b16 %v10101
      %v11130 = vunpack.c.l.b16 %v10102
      %v11131 = vunpack.c.l.b16 %v10103
      %v11132 = vunpack.c.l.b16 %v10104
      %v11133 = vunpack.c.l.b16 %v10105
      %v11134 = vunpack.c.l.b16 %v10106
      %v11135 = vunpack.c.l.b16 %v10107
      %v11136 = vunpack.c.l.b16 %v10108
      %v11137 = vunpack.c.l.b16 %v10109
      %v11138 = vunpack.c.l.b16 %v10110
      %v11139 = vunpack.c.l.b16 %v10111
      %v11140 = vunpack.c.l.b16 %v10112
      %v11141 = vunpack.c.l.b16 %v10113
      %v11142 = vunpack.c.l.b16 %v10114
      %v11143 = vunpack.c.l.b16 %v10115
      %v11144 = vunpack.c.l.b16 %v10116
      %v11145 = vunpack.c.l.b16 %v10117
      %v11146 = vunpack.c.l.b16 %v10118
      %v11147 = vunpack.c.l.b16 %v10119
      %v11148 = vunpack.c.l.b16 %v10120
      %v11149 = vunpack.c.l.b16 %v10121
      %v11150 = vunpack.c.l.b16 %v10122
      %v11151 = vunpack.c.l.b16 %v10123
      %v11152 = vunpack.c.l.b16 %v10124
      %v11153 = vunpack.c.l.b16 %v10125
      %v11154 = vunpack.c.l.b16 %v10126
      %v11155 = vunpack.c.l.b16 %v10127
      %v11156 = vunpack.c.l.b16 %v10128
      %v11157 = vunpack.c.l.b16 %v10129
      %v11158 = vunpack.c.l.b16 %v10130
      %v11159 = vunpack.c.l.b16 %v10131
      %v11160 = vunpack.c.l.b16 %v10132
      %v11161 = vunpack.c.l.b16 %v10133
      %v11162 = vunpack.c.l.b16 %v10134
      %v11163 = vunpack.c.l.b16 %v10135
      %v11164 = vunpack.c.l.b16 %v10136
      %v11165 = vunpack.c.l.b16 %v10137
      %v11166 = vunpack.c.l.b16 %v10138
      %v11167 = vunpack.c.l.b16 %v10139
      %v11168 = vunpack.c.l.b16 %v10140
      %v11169 = vunpack.c.l.b16 %v10141
      %v11170 = vunpack.c.l.b16 %v10142
      %v11171 = vunpack.c.l.b16 %v10143
      %v11172 = vunpack.c.l.b16 %v10144
      %v11173 = vunpack.c.l.b16 %v10145
      %v11174 = vunpack.c.l.b16 %v10146
      %v11175 = vunpack.c.l.b16 %v10147
      %v11176 = vunpack.c.l.b16 %v10148
      %v11177 = vunpack.c.l.b16 %v10149
      %v11178 = vunpack.c.l.b16 %v10150
      %v11179 = vunpack.c.l.b16 %v10151
      %v11180 = vunpack.c.l.b16 %v10152
      %v11181 = vunpack.c.l.b16 %v10153
      %v11182 = vunpack.c.l.b16 %v10154
      %v11183 = vunpack.c.l.b16 %v10155
      %v11184 = vunpack.c.l.b16 %v10156
      %v11185 = vunpack.c.l.b16 %v10157
      %v11186 = vunpack.c.l.b16 %v10158
      %v11187 = vunpack.c.l.b16 %v10159
      %v11188 = vunpack.c.l.b16 %v10160
      %v11189 = vunpack.c.l.b16 %v10161
      %v11190 = vunpack.c.l.b16 %v10162
      %v11191 = vunpack.c.l.b16 %v10163
      %v11192 = vunpack.c.l.b16 %v10164
      %v11193 = vunpack.c.l.b16 %v10165
      %v11194 = vunpack.c.l.b16 %v10166
      %v11195 = vunpack.c.l.b16 %v10167
      %v11196 = vunpack.c.l.b16 %v10168
      %v11197 = vunpack.c.l.b16 %v10169
      %v11198 = vunpack.c.l.b16 %v10170
      %v11199 = vunpack.c.l.b16 %v10171
      %v11200 = vunpack.c.l.b16 %v10172
      %v11201 = vunpack.c.l.b16 %v10173
      %v11202 = vunpack.c.l.b16 %v10174
      %v11203 = vunpack.c.l.b16 %v10175
      %v11204 = vunpack.c.l.b16 %v10176
      %v11205 = vunpack.c.l.b16 %v10177
      %v11206 = vunpack.c.l.b16 %v10178
      %v11207 = vunpack.c.l.b16 %v10179
      %v11208 = vunpack.c.l.b16 %v10180
      %v11209 = vunpack.c.l.b16 %v10181
      %v11210 = vunpack.c.l.b16 %v10182
      %v11211 = vunpack.c.l.b16 %v10183
      %v11212 = vunpack.c.l.b16 %v10184
      %v11213 = vunpack.c.l.b16 %v10185
      %v11214 = vunpack.c.l.b16 %v10186
      %v11215 = vunpack.c.l.b16 %v10187
      %v11216 = vunpack.c.l.b16 %v10188
      %v11217 = vunpack.c.l.b16 %v10189
      %v11218 = vunpack.c.l.b16 %v10190
      %v11219 = vunpack.c.l.b16 %v10191
      %v11220 = vunpack.c.l.b16 %v10192
      %v11221 = vunpack.c.l.b16 %v10193
      %v11222 = vunpack.c.l.b16 %v10194
      %v11223 = vunpack.c.l.b16 %v10195
      %v11224 = vunpack.c.l.b16 %v10196
      %v11225 = vunpack.c.l.b16 %v10197
      %v11226 = vunpack.c.l.b16 %v10198
      %v11227 = vunpack.c.l.b16 %v10199
      %v11228 = vunpack.c.l.b16 %v10200
      %v11229 = vunpack.c.l.b16 %v10201
      %v11230 = vunpack.c.l.b16 %v10202
      %v11231 = vunpack.c.l.b16 %v10203
      %v11232 = vunpack.c.l.b16 %v10204
      %v11233 = vunpack.c.l.b16 %v10205
      %v11234 = vunpack.c.l.b16 %v10206
      %v11235 = vunpack.c.l.b16 %v10207
      %v11236 = vunpack.c.l.b16 %v10208
      %v11237 = vunpack.c.l.b16 %v10209
      %v11238 = vunpack.c.l.b16 %v10210
      %v11239 = vunpack.c.l.b16 %v10211
      %v11240 = vunpack.c.l.b16 %v10212
      %v11241 = vunpack.c.l.b16 %v10213
      %v11242 = vunpack.c.l.b16 %v10214
      %v11243 = vunpack.c.l.b16 %v10215
      %v11244 = vunpack.c.l.b16 %v10216
      %v11245 = vunpack.c.l.b16 %v10217
      %v11246 = vunpack.c.l.b16 %v10218
      %v11247 = vunpack.c.l.b16 %v10219
      %v11248 = vunpack.c.l.b16 %v10220
      %v11249 = vunpack.c.l.b16 %v10221
      %v11250 = vunpack.c.l.b16 %v10222
      %v11251 = vunpack.c.l.b16 %v10223
      %v11252 = vunpack.c.l.b16 %v10224
      %v11253 = vunpack.c.l.b16 %v10225
      %v11254 = vpack.c.b16 %v11111, %v11110
      %v11255 = vpack.c.b16 %v11113, %v11112
      %v11256 = vpack.c.b16 %v11115, %v11114
      %v11257 = vpack.c.b16 %v11117, %v11116
      %v11258 = vpack.c.b16 %v11119, %v11118
      %v11259 = vpack.c.b16 %v11121, %v11120
      %v11260 = vpack.c.b16 %v11123, %v11122
      %v11261 = vpack.c.b16 %v11125, %v11124
      %v11262 = vpack.c.b16 %v11127, %v11126
      %v11263 = vpack.c.b16 %v11129, %v11128
      %v11264 = vpack.c.b16 %v11131, %v11130
      %v11265 = vpack.c.b16 %v11133, %v11132
      %v11266 = vpack.c.b16 %v11135, %v11134
      %v11267 = vpack.c.b16 %v11137, %v11136
      %v11268 = vpack.c.b16 %v11139, %v11138
      %v11269 = vpack.c.b16 %v11141, %v11140
      %v11270 = vpack.c.b16 %v11143, %v11142
      %v11271 = vpack.c.b16 %v11145, %v11144
      %v11272 = vpack.c.b16 %v11147, %v11146
      %v11273 = vpack.c.b16 %v11149, %v11148
      %v11274 = vpack.c.b16 %v11151, %v11150
      %v11275 = vpack.c.b16 %v11153, %v11152
      %v11276 = vpack.c.b16 %v11155, %v11154
      %v11277 = vpack.c.b16 %v11157, %v11156
      %v11278 = vpack.c.b16 %v11159, %v11158
      %v11279 = vpack.c.b16 %v11161, %v11160
      %v11280 = vpack.c.b16 %v11163, %v11162
      %v11281 = vpack.c.b16 %v11165, %v11164
      %v11282 = vpack.c.b16 %v11167, %v11166
      %v11283 = vpack.c.b16 %v11169, %v11168
      %v11284 = vpack.c.b16 %v11171, %v11170
      %v11285 = vpack.c.b16 %v11173, %v11172
      %v11286 = vpack.c.b16 %v11175, %v11174
      %v11287 = vpack.c.b16 %v11177, %v11176
      %v11288 = vpack.c.b16 %v11179, %v11178
      %v11289 = vpack.c.b16 %v11181, %v11180
      %v11290 = vpack.c.b16 %v11183, %v11182
      %v11291 = vpack.c.b16 %v11185, %v11184
      %v11292 = vpack.c.b16 %v11187, %v11186
      %v11293 = vpack.c.b16 %v11189, %v11188
      %v11294 = vpack.c.b16 %v11191, %v11190
      %v11295 = vpack.c.b16 %v11193, %v11192
      %v11296 = vpack.c.b16 %v11195, %v11194
      %v11297 = vpack.c.b16 %v11197, %v11196
      %v11298 = vpack.c.b16 %v11199, %v11198
      %v11299 = vpack.c.b16 %v11201, %v11200
      %v11300 = vpack.c.b16 %v11203, %v11202
      %v11301 = vpack.c.b16 %v11205, %v11204
      %v11302 = vpack.c.b16 %v11207, %v11206
      %v11303 = vpack.c.b16 %v11209, %v11208
      %v11304 = vpack.c.b16 %v11211, %v11210
      %v11305 = vpack.c.b16 %v11213, %v11212
      %v11306 = vpack.c.b16 %v11215, %v11214
      %v11307 = vpack.c.b16 %v11217, %v11216
      %v11308 = vpack.c.b16 %v11219, %v11218
      %v11309 = vpack.c.b16 %v11221, %v11220
      %v11310 = vpack.c.b16 %v11223, %v11222
      %v11311 = vpack.c.b16 %v11225, %v11224
      %v11312 = vpack.c.b16 %v11227, %v11226
      %v11313 = vpack.c.b16 %v11229, %v11228
      %v11314 = vpack.c.b16 %v11231, %v11230
      %v11315 = vpack.c.b16 %v11233, %v11232
      %v11316 = vpack.c.b16 %v11235, %v11234
      %v11317 = vpack.c.b16 %v11237, %v11236
      %v11318 = vpack.c.b16 %v11239, %v11238
      %v11319 = vpack.c.b16 %v11241, %v11240
      %v11320 = vpack.c.b16 %v11243, %v11242
      %v11321 = vpack.c.b16 %v11245, %v11244
      %v11322 = vpack.c.b16 %v11247, %v11246
      %v11323 = vpack.c.b16 %v11249, %v11248
      %v11324 = vpack.c.b16 %v11251, %v11250
      %v11325 = vpack.c.b16 %v11253, %v11252
      %11398 = vmatpush.bf16.msra.mxu0 %v11261
      %11399 = vmatpush.bf16.msra.mxu0 %v11260
      %11400 = vmatpush.bf16.msra.mxu0 %v11259
      %11401 = vmatpush.bf16.msra.mxu0 %v11258
      %11402 = vmatpush.bf16.msra.mxu0 %v11257
      %11403 = vmatpush.bf16.msra.mxu0 %v11256
      %11404 = vmatpush.bf16.msra.mxu0 %v11255
      %11405 = vmatpush.bf16.msra.mxu0 %v11254
      %11406 = vmatmul.bf16.gmra.mxu0 %v10678
      %v11407 = vpop.f32.mrf.mxu0
      %v11408 = vadd.f32 %v10228, %v11407
      %v11409 = vpop.f32.mrf.mxu0
      %v11410 = vadd.f32 %v10228, %v11409
      %11411 = vmatmul.bf16.gmra.mxu0 %v10687
      %v11412 = vpop.f32.mrf.mxu0
      %v11413 = vadd.f32 %v10228, %v11412
      %v11414 = vpop.f32.mrf.mxu0
      %v11415 = vadd.f32 %v10228, %v11414
      %11416 = vmatmul.bf16.gmra.mxu0 %v10696
      %v11417 = vpop.f32.mrf.mxu0
      %v11418 = vadd.f32 %v10228, %v11417
      %v11419 = vpop.f32.mrf.mxu0
      %v11420 = vadd.f32 %v10228, %v11419
      %11421 = vmatmul.bf16.gmra.mxu0 %v10705
      %v11422 = vpop.f32.mrf.mxu0
      %v11423 = vadd.f32 %v10228, %v11422
      %v11424 = vpop.f32.mrf.mxu0
      %v11425 = vadd.f32 %v10228, %v11424
      %11426 = vmatmul.bf16.gmra.mxu0 %v10714
      %v11427 = vpop.f32.mrf.mxu0
      %v11428 = vadd.f32 %v10228, %v11427
      %v11429 = vpop.f32.mrf.mxu0
      %v11430 = vadd.f32 %v10228, %v11429
      %11431 = vmatmul.bf16.gmra.mxu0 %v10723
      %v11432 = vpop.f32.mrf.mxu0
      %v11433 = vadd.f32 %v10228, %v11432
      %v11434 = vpop.f32.mrf.mxu0
      %v11435 = vadd.f32 %v10228, %v11434
      %11436 = vmatmul.bf16.gmra.mxu0 %v10732
      %v11437 = vpop.f32.mrf.mxu0
      %v11438 = vadd.f32 %v10228, %v11437
      %v11439 = vpop.f32.mrf.mxu0
      %v11440 = vadd.f32 %v10228, %v11439
      %11441 = vmatmul.bf16.gmra.mxu0 %v10741
      %v11442 = vpop.f32.mrf.mxu0
      %v11443 = vadd.f32 %v10228, %v11442
      %v11444 = vpop.f32.mrf.mxu0
      %v11445 = vadd.f32 %v10228, %v11444
      %11446 = vmatmul.bf16.gmra.mxu0 %v10750
      %v11447 = vpop.f32.mrf.mxu0
      %v11448 = vadd.f32 %v10228, %v11447
      %v11449 = vpop.f32.mrf.mxu0
      %v11450 = vadd.f32 %v10228, %v11449
      %11451 = vmatmul.bf16.gmra.mxu0 %v10759
      %v11452 = vpop.f32.mrf.mxu0
      %v11453 = vadd.f32 %v10228, %v11452
      %v11454 = vpop.f32.mrf.mxu0
      %v11455 = vadd.f32 %v10228, %v11454
      %11456 = vmatmul.bf16.gmra.mxu0 %v10768
      %v11457 = vpop.f32.mrf.mxu0
      %v11458 = vadd.f32 %v10228, %v11457
      %v11459 = vpop.f32.mrf.mxu0
      %v11460 = vadd.f32 %v10228, %v11459
      %11461 = vmatmul.bf16.gmra.mxu0 %v10777
      %v11462 = vpop.f32.mrf.mxu0
      %v11463 = vadd.f32 %v10228, %v11462
      %v11464 = vpop.f32.mrf.mxu0
      %v11465 = vadd.f32 %v10228, %v11464
      %11466 = vmatmul.bf16.gmra.mxu0 %v10786
      %v11467 = vpop.f32.mrf.mxu0
      %v11468 = vadd.f32 %v10228, %v11467
      %v11469 = vpop.f32.mrf.mxu0
      %v11470 = vadd.f32 %v10228, %v11469
      %11471 = vmatmul.bf16.gmra.mxu0 %v10795
      %v11472 = vpop.f32.mrf.mxu0
      %v11473 = vadd.f32 %v10228, %v11472
      %v11474 = vpop.f32.mrf.mxu0
      %v11475 = vadd.f32 %v10228, %v11474
      %11476 = vmatmul.bf16.gmra.mxu0 %v10804
      %v11477 = vpop.f32.mrf.mxu0
      %v11478 = vadd.f32 %v10228, %v11477
      %v11479 = vpop.f32.mrf.mxu0
      %v11480 = vadd.f32 %v10228, %v11479
      %11481 = vmatmul.bf16.gmra.mxu0 %v10813
      %v11482 = vpop.f32.mrf.mxu0
      %v11483 = vadd.f32 %v10228, %v11482
      %v11484 = vpop.f32.mrf.mxu0
      %v11485 = vadd.f32 %v10228, %v11484
      %11486 = vdwg.mxu0
      %11487 = vmatpush.bf16.msra.mxu0 %v11269
      %11488 = vmatpush.bf16.msra.mxu0 %v11268
      %11489 = vmatpush.bf16.msra.mxu0 %v11267
      %11490 = vmatpush.bf16.msra.mxu0 %v11266
      %11491 = vmatpush.bf16.msra.mxu0 %v11265
      %11492 = vmatpush.bf16.msra.mxu0 %v11264
      %11493 = vmatpush.bf16.msra.mxu0 %v11263
      %11494 = vmatpush.bf16.msra.mxu0 %v11262
      %11495 = vmatmul.bf16.gmra.mxu0 %v10679
      %v11496 = vpop.f32.mrf.mxu0
      %v11497 = vadd.f32 %v11408, %v11496
      %v11498 = vpop.f32.mrf.mxu0
      %v11499 = vadd.f32 %v11410, %v11498
      %11500 = vmatmul.bf16.gmra.mxu0 %v10688
      %v11501 = vpop.f32.mrf.mxu0
      %v11502 = vadd.f32 %v11413, %v11501
      %v11503 = vpop.f32.mrf.mxu0
      %v11504 = vadd.f32 %v11415, %v11503
      %11505 = vmatmul.bf16.gmra.mxu0 %v10697
      %v11506 = vpop.f32.mrf.mxu0
      %v11507 = vadd.f32 %v11418, %v11506
      %v11508 = vpop.f32.mrf.mxu0
      %v11509 = vadd.f32 %v11420, %v11508
      %11510 = vmatmul.bf16.gmra.mxu0 %v10706
      %v11511 = vpop.f32.mrf.mxu0
      %v11512 = vadd.f32 %v11423, %v11511
      %v11513 = vpop.f32.mrf.mxu0
      %v11514 = vadd.f32 %v11425, %v11513
      %11515 = vmatmul.bf16.gmra.mxu0 %v10715
      %v11516 = vpop.f32.mrf.mxu0
      %v11517 = vadd.f32 %v11428, %v11516
      %v11518 = vpop.f32.mrf.mxu0
      %v11519 = vadd.f32 %v11430, %v11518
      %11520 = vmatmul.bf16.gmra.mxu0 %v10724
      %v11521 = vpop.f32.mrf.mxu0
      %v11522 = vadd.f32 %v11433, %v11521
      %v11523 = vpop.f32.mrf.mxu0
      %v11524 = vadd.f32 %v11435, %v11523
      %11525 = vmatmul.bf16.gmra.mxu0 %v10733
      %v11526 = vpop.f32.mrf.mxu0
      %v11527 = vadd.f32 %v11438, %v11526
      %v11528 = vpop.f32.mrf.mxu0
      %v11529 = vadd.f32 %v11440, %v11528
      %11530 = vmatmul.bf16.gmra.mxu0 %v10742
      %v11531 = vpop.f32.mrf.mxu0
      %v11532 = vadd.f32 %v11443, %v11531
      %v11533 = vpop.f32.mrf.mxu0
      %v11534 = vadd.f32 %v11445, %v11533
      %11535 = vmatmul.bf16.gmra.mxu0 %v10751
      %v11536 = vpop.f32.mrf.mxu0
      %v11537 = vadd.f32 %v11448, %v11536
      %v11538 = vpop.f32.mrf.mxu0
      %v11539 = vadd.f32 %v11450, %v11538
      %11540 = vmatmul.bf16.gmra.mxu0 %v10760
      %v11541 = vpop.f32.mrf.mxu0
      %v11542 = vadd.f32 %v11453, %v11541
      %v11543 = vpop.f32.mrf.mxu0
      %v11544 = vadd.f32 %v11455, %v11543
      %11545 = vmatmul.bf16.gmra.mxu0 %v10769
      %v11546 = vpop.f32.mrf.mxu0
      %v11547 = vadd.f32 %v11458, %v11546
      %v11548 = vpop.f32.mrf.mxu0
      %v11549 = vadd.f32 %v11460, %v11548
      %11550 = vmatmul.bf16.gmra.mxu0 %v10778
      %v11551 = vpop.f32.mrf.mxu0
      %v11552 = vadd.f32 %v11463, %v11551
      %v11553 = vpop.f32.mrf.mxu0
      %v11554 = vadd.f32 %v11465, %v11553
      %11555 = vmatmul.bf16.gmra.mxu0 %v10787
      %v11556 = vpop.f32.mrf.mxu0
      %v11557 = vadd.f32 %v11468, %v11556
      %v11558 = vpop.f32.mrf.mxu0
      %v11559 = vadd.f32 %v11470, %v11558
      %11560 = vmatmul.bf16.gmra.mxu0 %v10796
      %v11561 = vpop.f32.mrf.mxu0
      %v11562 = vadd.f32 %v11473, %v11561
      %v11563 = vpop.f32.mrf.mxu0
      %v11564 = vadd.f32 %v11475, %v11563
      %11565 = vmatmul.bf16.gmra.mxu0 %v10805
      %v11566 = vpop.f32.mrf.mxu0
      %v11567 = vadd.f32 %v11478, %v11566
      %v11568 = vpop.f32.mrf.mxu0
      %v11569 = vadd.f32 %v11480, %v11568
      %11570 = vmatmul.bf16.gmra.mxu0 %v10814
      %v11571 = vpop.f32.mrf.mxu0
      %v11572 = vadd.f32 %v11483, %v11571
      %v11573 = vpop.f32.mrf.mxu0
      %v11574 = vadd.f32 %v11485, %v11573
      %11575 = vdwg.mxu0
      %11576 = vmatpush.bf16.msra.mxu0 %v11277
      %11577 = vmatpush.bf16.msra.mxu0 %v11276
      %11578 = vmatpush.bf16.msra.mxu0 %v11275
      %11579 = vmatpush.bf16.msra.mxu0 %v11274
      %11580 = vmatpush.bf16.msra.mxu0 %v11273
      %11581 = vmatpush.bf16.msra.mxu0 %v11272
      %11582 = vmatpush.bf16.msra.mxu0 %v11271
      %11583 = vmatpush.bf16.msra.mxu0 %v11270
      %11584 = vmatmul.bf16.gmra.mxu0 %v10680
      %v11585 = vpop.f32.mrf.mxu0
      %v11586 = vadd.f32 %v11497, %v11585
      %v11587 = vpop.f32.mrf.mxu0
      %v11588 = vadd.f32 %v11499, %v11587
      %11589 = vmatmul.bf16.gmra.mxu0 %v10689
      %v11590 = vpop.f32.mrf.mxu0
      %v11591 = vadd.f32 %v11502, %v11590
      %v11592 = vpop.f32.mrf.mxu0
      %v11593 = vadd.f32 %v11504, %v11592
      %11594 = vmatmul.bf16.gmra.mxu0 %v10698
      %v11595 = vpop.f32.mrf.mxu0
      %v11596 = vadd.f32 %v11507, %v11595
      %v11597 = vpop.f32.mrf.mxu0
      %v11598 = vadd.f32 %v11509, %v11597
      %11599 = vmatmul.bf16.gmra.mxu0 %v10707
      %v11600 = vpop.f32.mrf.mxu0
      %v11601 = vadd.f32 %v11512, %v11600
      %v11602 = vpop.f32.mrf.mxu0
      %v11603 = vadd.f32 %v11514, %v11602
      %11604 = vmatmul.bf16.gmra.mxu0 %v10716
      %v11605 = vpop.f32.mrf.mxu0
      %v11606 = vadd.f32 %v11517, %v11605
      %v11607 = vpop.f32.mrf.mxu0
      %v11608 = vadd.f32 %v11519, %v11607
      %11609 = vmatmul.bf16.gmra.mxu0 %v10725
      %v11610 = vpop.f32.mrf.mxu0
      %v11611 = vadd.f32 %v11522, %v11610
      %v11612 = vpop.f32.mrf.mxu0
      %v11613 = vadd.f32 %v11524, %v11612
      %11614 = vmatmul.bf16.gmra.mxu0 %v10734
      %v11615 = vpop.f32.mrf.mxu0
      %v11616 = vadd.f32 %v11527, %v11615
      %v11617 = vpop.f32.mrf.mxu0
      %v11618 = vadd.f32 %v11529, %v11617
      %11619 = vmatmul.bf16.gmra.mxu0 %v10743
      %v11620 = vpop.f32.mrf.mxu0
      %v11621 = vadd.f32 %v11532, %v11620
      %v11622 = vpop.f32.mrf.mxu0
      %v11623 = vadd.f32 %v11534, %v11622
      %11624 = vmatmul.bf16.gmra.mxu0 %v10752
      %v11625 = vpop.f32.mrf.mxu0
      %v11626 = vadd.f32 %v11537, %v11625
      %v11627 = vpop.f32.mrf.mxu0
      %v11628 = vadd.f32 %v11539, %v11627
      %11629 = vmatmul.bf16.gmra.mxu0 %v10761
      %v11630 = vpop.f32.mrf.mxu0
      %v11631 = vadd.f32 %v11542, %v11630
      %v11632 = vpop.f32.mrf.mxu0
      %v11633 = vadd.f32 %v11544, %v11632
      %11634 = vmatmul.bf16.gmra.mxu0 %v10770
      %v11635 = vpop.f32.mrf.mxu0
      %v11636 = vadd.f32 %v11547, %v11635
      %v11637 = vpop.f32.mrf.mxu0
      %v11638 = vadd.f32 %v11549, %v11637
      %11639 = vmatmul.bf16.gmra.mxu0 %v10779
      %v11640 = vpop.f32.mrf.mxu0
      %v11641 = vadd.f32 %v11552, %v11640
      %v11642 = vpop.f32.mrf.mxu0
      %v11643 = vadd.f32 %v11554, %v11642
      %11644 = vmatmul.bf16.gmra.mxu0 %v10788
      %v11645 = vpop.f32.mrf.mxu0
      %v11646 = vadd.f32 %v11557, %v11645
      %v11647 = vpop.f32.mrf.mxu0
      %v11648 = vadd.f32 %v11559, %v11647
      %11649 = vmatmul.bf16.gmra.mxu0 %v10797
      %v11650 = vpop.f32.mrf.mxu0
      %v11651 = vadd.f32 %v11562, %v11650
      %v11652 = vpop.f32.mrf.mxu0
      %v11653 = vadd.f32 %v11564, %v11652
      %11654 = vmatmul.bf16.gmra.mxu0 %v10806
      %v11655 = vpop.f32.mrf.mxu0
      %v11656 = vadd.f32 %v11567, %v11655
      %v11657 = vpop.f32.mrf.mxu0
      %v11658 = vadd.f32 %v11569, %v11657
      %11659 = vmatmul.bf16.gmra.mxu0 %v10815
      %v11660 = vpop.f32.mrf.mxu0
      %v11661 = vadd.f32 %v11572, %v11660
      %v11662 = vpop.f32.mrf.mxu0
      %v11663 = vadd.f32 %v11574, %v11662
      %11664 = vdwg.mxu0
      %11665 = vmatpush.bf16.msra.mxu0 %v11285
      %11666 = vmatpush.bf16.msra.mxu0 %v11284
      %11667 = vmatpush.bf16.msra.mxu0 %v11283
      %11668 = vmatpush.bf16.msra.mxu0 %v11282
      %11669 = vmatpush.bf16.msra.mxu0 %v11281
      %11670 = vmatpush.bf16.msra.mxu0 %v11280
      %11671 = vmatpush.bf16.msra.mxu0 %v11279
      %11672 = vmatpush.bf16.msra.mxu0 %v11278
      %11673 = vmatmul.bf16.gmra.mxu0 %v10681
      %v11674 = vpop.f32.mrf.mxu0
      %v11675 = vadd.f32 %v11586, %v11674
      %v11676 = vpop.f32.mrf.mxu0
      %v11677 = vadd.f32 %v11588, %v11676
      %11678 = vmatmul.bf16.gmra.mxu0 %v10690
      %v11679 = vpop.f32.mrf.mxu0
      %v11680 = vadd.f32 %v11591, %v11679
      %v11681 = vpop.f32.mrf.mxu0
      %v11682 = vadd.f32 %v11593, %v11681
      %11683 = vmatmul.bf16.gmra.mxu0 %v10699
      %v11684 = vpop.f32.mrf.mxu0
      %v11685 = vadd.f32 %v11596, %v11684
      %v11686 = vpop.f32.mrf.mxu0
      %v11687 = vadd.f32 %v11598, %v11686
      %11688 = vmatmul.bf16.gmra.mxu0 %v10708
      %v11689 = vpop.f32.mrf.mxu0
      %v11690 = vadd.f32 %v11601, %v11689
      %v11691 = vpop.f32.mrf.mxu0
      %v11692 = vadd.f32 %v11603, %v11691
      %11693 = vmatmul.bf16.gmra.mxu0 %v10717
      %v11694 = vpop.f32.mrf.mxu0
      %v11695 = vadd.f32 %v11606, %v11694
      %v11696 = vpop.f32.mrf.mxu0
      %v11697 = vadd.f32 %v11608, %v11696
      %11698 = vmatmul.bf16.gmra.mxu0 %v10726
      %v11699 = vpop.f32.mrf.mxu0
      %v11700 = vadd.f32 %v11611, %v11699
      %v11701 = vpop.f32.mrf.mxu0
      %v11702 = vadd.f32 %v11613, %v11701
      %11703 = vmatmul.bf16.gmra.mxu0 %v10735
      %v11704 = vpop.f32.mrf.mxu0
      %v11705 = vadd.f32 %v11616, %v11704
      %v11706 = vpop.f32.mrf.mxu0
      %v11707 = vadd.f32 %v11618, %v11706
      %11708 = vmatmul.bf16.gmra.mxu0 %v10744
      %v11709 = vpop.f32.mrf.mxu0
      %v11710 = vadd.f32 %v11621, %v11709
      %v11711 = vpop.f32.mrf.mxu0
      %v11712 = vadd.f32 %v11623, %v11711
      %11713 = vmatmul.bf16.gmra.mxu0 %v10753
      %v11714 = vpop.f32.mrf.mxu0
      %v11715 = vadd.f32 %v11626, %v11714
      %v11716 = vpop.f32.mrf.mxu0
      %v11717 = vadd.f32 %v11628, %v11716
      %11718 = vmatmul.bf16.gmra.mxu0 %v10762
      %v11719 = vpop.f32.mrf.mxu0
      %v11720 = vadd.f32 %v11631, %v11719
      %v11721 = vpop.f32.mrf.mxu0
      %v11722 = vadd.f32 %v11633, %v11721
      %11723 = vmatmul.bf16.gmra.mxu0 %v10771
      %v11724 = vpop.f32.mrf.mxu0
      %v11725 = vadd.f32 %v11636, %v11724
      %v11726 = vpop.f32.mrf.mxu0
      %v11727 = vadd.f32 %v11638, %v11726
      %11728 = vmatmul.bf16.gmra.mxu0 %v10780
      %v11729 = vpop.f32.mrf.mxu0
      %v11730 = vadd.f32 %v11641, %v11729
      %v11731 = vpop.f32.mrf.mxu0
      %v11732 = vadd.f32 %v11643, %v11731
      %11733 = vmatmul.bf16.gmra.mxu0 %v10789
      %v11734 = vpop.f32.mrf.mxu0
      %v11735 = vadd.f32 %v11646, %v11734
      %v11736 = vpop.f32.mrf.mxu0
      %v11737 = vadd.f32 %v11648, %v11736
      %11738 = vmatmul.bf16.gmra.mxu0 %v10798
      %v11739 = vpop.f32.mrf.mxu0
      %v11740 = vadd.f32 %v11651, %v11739
      %v11741 = vpop.f32.mrf.mxu0
      %v11742 = vadd.f32 %v11653, %v11741
      %11743 = vmatmul.bf16.gmra.mxu0 %v10807
      %v11744 = vpop.f32.mrf.mxu0
      %v11745 = vadd.f32 %v11656, %v11744
      %v11746 = vpop.f32.mrf.mxu0
      %v11747 = vadd.f32 %v11658, %v11746
      %11748 = vmatmul.bf16.gmra.mxu0 %v10816
      %v11749 = vpop.f32.mrf.mxu0
      %v11750 = vadd.f32 %v11661, %v11749
      %v11751 = vpop.f32.mrf.mxu0
      %v11752 = vadd.f32 %v11663, %v11751
      %11753 = vdwg.mxu0
      %11754 = vmatpush.bf16.msra.mxu0 %v11293
      %11755 = vmatpush.bf16.msra.mxu0 %v11292
      %11756 = vmatpush.bf16.msra.mxu0 %v11291
      %11757 = vmatpush.bf16.msra.mxu0 %v11290
      %11758 = vmatpush.bf16.msra.mxu0 %v11289
      %11759 = vmatpush.bf16.msra.mxu0 %v11288
      %11760 = vmatpush.bf16.msra.mxu0 %v11287
      %11761 = vmatpush.bf16.msra.mxu0 %v11286
      %11762 = vmatmul.bf16.gmra.mxu0 %v10682
      %v11763 = vpop.f32.mrf.mxu0
      %v11764 = vadd.f32 %v11675, %v11763
      %v11765 = vpop.f32.mrf.mxu0
      %v11766 = vadd.f32 %v11677, %v11765
      %11767 = vmatmul.bf16.gmra.mxu0 %v10691
      %v11768 = vpop.f32.mrf.mxu0
      %v11769 = vadd.f32 %v11680, %v11768
      %v11770 = vpop.f32.mrf.mxu0
      %v11771 = vadd.f32 %v11682, %v11770
      %11772 = vmatmul.bf16.gmra.mxu0 %v10700
      %v11773 = vpop.f32.mrf.mxu0
      %v11774 = vadd.f32 %v11685, %v11773
      %v11775 = vpop.f32.mrf.mxu0
      %v11776 = vadd.f32 %v11687, %v11775
      %11777 = vmatmul.bf16.gmra.mxu0 %v10709
      %v11778 = vpop.f32.mrf.mxu0
      %v11779 = vadd.f32 %v11690, %v11778
      %v11780 = vpop.f32.mrf.mxu0
      %v11781 = vadd.f32 %v11692, %v11780
      %11782 = vmatmul.bf16.gmra.mxu0 %v10718
      %v11783 = vpop.f32.mrf.mxu0
      %v11784 = vadd.f32 %v11695, %v11783
      %v11785 = vpop.f32.mrf.mxu0
      %v11786 = vadd.f32 %v11697, %v11785
      %11787 = vmatmul.bf16.gmra.mxu0 %v10727
      %v11788 = vpop.f32.mrf.mxu0
      %v11789 = vadd.f32 %v11700, %v11788
      %v11790 = vpop.f32.mrf.mxu0
      %v11791 = vadd.f32 %v11702, %v11790
      %11792 = vmatmul.bf16.gmra.mxu0 %v10736
      %v11793 = vpop.f32.mrf.mxu0
      %v11794 = vadd.f32 %v11705, %v11793
      %v11795 = vpop.f32.mrf.mxu0
      %v11796 = vadd.f32 %v11707, %v11795
      %11797 = vmatmul.bf16.gmra.mxu0 %v10745
      %v11798 = vpop.f32.mrf.mxu0
      %v11799 = vadd.f32 %v11710, %v11798
      %v11800 = vpop.f32.mrf.mxu0
      %v11801 = vadd.f32 %v11712, %v11800
      %11802 = vmatmul.bf16.gmra.mxu0 %v10754
      %v11803 = vpop.f32.mrf.mxu0
      %v11804 = vadd.f32 %v11715, %v11803
      %v11805 = vpop.f32.mrf.mxu0
      %v11806 = vadd.f32 %v11717, %v11805
      %11807 = vmatmul.bf16.gmra.mxu0 %v10763
      %v11808 = vpop.f32.mrf.mxu0
      %v11809 = vadd.f32 %v11720, %v11808
      %v11810 = vpop.f32.mrf.mxu0
      %v11811 = vadd.f32 %v11722, %v11810
      %11812 = vmatmul.bf16.gmra.mxu0 %v10772
      %v11813 = vpop.f32.mrf.mxu0
      %v11814 = vadd.f32 %v11725, %v11813
      %v11815 = vpop.f32.mrf.mxu0
      %v11816 = vadd.f32 %v11727, %v11815
      %11817 = vmatmul.bf16.gmra.mxu0 %v10781
      %v11818 = vpop.f32.mrf.mxu0
      %v11819 = vadd.f32 %v11730, %v11818
      %v11820 = vpop.f32.mrf.mxu0
      %v11821 = vadd.f32 %v11732, %v11820
      %11822 = vmatmul.bf16.gmra.mxu0 %v10790
      %v11823 = vpop.f32.mrf.mxu0
      %v11824 = vadd.f32 %v11735, %v11823
      %v11825 = vpop.f32.mrf.mxu0
      %v11826 = vadd.f32 %v11737, %v11825
      %11827 = vmatmul.bf16.gmra.mxu0 %v10799
      %v11828 = vpop.f32.mrf.mxu0
      %v11829 = vadd.f32 %v11740, %v11828
      %v11830 = vpop.f32.mrf.mxu0
      %v11831 = vadd.f32 %v11742, %v11830
      %11832 = vmatmul.bf16.gmra.mxu0 %v10808
      %v11833 = vpop.f32.mrf.mxu0
      %v11834 = vadd.f32 %v11745, %v11833
      %v11835 = vpop.f32.mrf.mxu0
      %v11836 = vadd.f32 %v11747, %v11835
      %11837 = vmatmul.bf16.gmra.mxu0 %v10817
      %v11838 = vpop.f32.mrf.mxu0
      %v11839 = vadd.f32 %v11750, %v11838
      %v11840 = vpop.f32.mrf.mxu0
      %v11841 = vadd.f32 %v11752, %v11840
      %11842 = vdwg.mxu0
      %11843 = vmatpush.bf16.msra.mxu0 %v11301
      %11844 = vmatpush.bf16.msra.mxu0 %v11300
      %11845 = vmatpush.bf16.msra.mxu0 %v11299
      %11846 = vmatpush.bf16.msra.mxu0 %v11298
      %11847 = vmatpush.bf16.msra.mxu0 %v11297
      %11848 = vmatpush.bf16.msra.mxu0 %v11296
      %11849 = vmatpush.bf16.msra.mxu0 %v11295
      %11850 = vmatpush.bf16.msra.mxu0 %v11294
      %11851 = vmatmul.bf16.gmra.mxu0 %v10683
      %v11852 = vpop.f32.mrf.mxu0
      %v11853 = vadd.f32 %v11764, %v11852
      %v11854 = vpop.f32.mrf.mxu0
      %v11855 = vadd.f32 %v11766, %v11854
      %11856 = vmatmul.bf16.gmra.mxu0 %v10692
      %v11857 = vpop.f32.mrf.mxu0
      %v11858 = vadd.f32 %v11769, %v11857
      %v11859 = vpop.f32.mrf.mxu0
      %v11860 = vadd.f32 %v11771, %v11859
      %11861 = vmatmul.bf16.gmra.mxu0 %v10701
      %v11862 = vpop.f32.mrf.mxu0
      %v11863 = vadd.f32 %v11774, %v11862
      %v11864 = vpop.f32.mrf.mxu0
      %v11865 = vadd.f32 %v11776, %v11864
      %11866 = vmatmul.bf16.gmra.mxu0 %v10710
      %v11867 = vpop.f32.mrf.mxu0
      %v11868 = vadd.f32 %v11779, %v11867
      %v11869 = vpop.f32.mrf.mxu0
      %v11870 = vadd.f32 %v11781, %v11869
      %11871 = vmatmul.bf16.gmra.mxu0 %v10719
      %v11872 = vpop.f32.mrf.mxu0
      %v11873 = vadd.f32 %v11784, %v11872
      %v11874 = vpop.f32.mrf.mxu0
      %v11875 = vadd.f32 %v11786, %v11874
      %11876 = vmatmul.bf16.gmra.mxu0 %v10728
      %v11877 = vpop.f32.mrf.mxu0
      %v11878 = vadd.f32 %v11789, %v11877
      %v11879 = vpop.f32.mrf.mxu0
      %v11880 = vadd.f32 %v11791, %v11879
      %11881 = vmatmul.bf16.gmra.mxu0 %v10737
      %v11882 = vpop.f32.mrf.mxu0
      %v11883 = vadd.f32 %v11794, %v11882
      %v11884 = vpop.f32.mrf.mxu0
      %v11885 = vadd.f32 %v11796, %v11884
      %11886 = vmatmul.bf16.gmra.mxu0 %v10746
      %v11887 = vpop.f32.mrf.mxu0
      %v11888 = vadd.f32 %v11799, %v11887
      %v11889 = vpop.f32.mrf.mxu0
      %v11890 = vadd.f32 %v11801, %v11889
      %11891 = vmatmul.bf16.gmra.mxu0 %v10755
      %v11892 = vpop.f32.mrf.mxu0
      %v11893 = vadd.f32 %v11804, %v11892
      %v11894 = vpop.f32.mrf.mxu0
      %v11895 = vadd.f32 %v11806, %v11894
      %11896 = vmatmul.bf16.gmra.mxu0 %v10764
      %v11897 = vpop.f32.mrf.mxu0
      %v11898 = vadd.f32 %v11809, %v11897
      %v11899 = vpop.f32.mrf.mxu0
      %v11900 = vadd.f32 %v11811, %v11899
      %11901 = vmatmul.bf16.gmra.mxu0 %v10773
      %v11902 = vpop.f32.mrf.mxu0
      %v11903 = vadd.f32 %v11814, %v11902
      %v11904 = vpop.f32.mrf.mxu0
      %v11905 = vadd.f32 %v11816, %v11904
      %11906 = vmatmul.bf16.gmra.mxu0 %v10782
      %v11907 = vpop.f32.mrf.mxu0
      %v11908 = vadd.f32 %v11819, %v11907
      %v11909 = vpop.f32.mrf.mxu0
      %v11910 = vadd.f32 %v11821, %v11909
      %11911 = vmatmul.bf16.gmra.mxu0 %v10791
      %v11912 = vpop.f32.mrf.mxu0
      %v11913 = vadd.f32 %v11824, %v11912
      %v11914 = vpop.f32.mrf.mxu0
      %v11915 = vadd.f32 %v11826, %v11914
      %11916 = vmatmul.bf16.gmra.mxu0 %v10800
      %v11917 = vpop.f32.mrf.mxu0
      %v11918 = vadd.f32 %v11829, %v11917
      %v11919 = vpop.f32.mrf.mxu0
      %v11920 = vadd.f32 %v11831, %v11919
      %11921 = vmatmul.bf16.gmra.mxu0 %v10809
      %v11922 = vpop.f32.mrf.mxu0
      %v11923 = vadd.f32 %v11834, %v11922
      %v11924 = vpop.f32.mrf.mxu0
      %v11925 = vadd.f32 %v11836, %v11924
      %11926 = vmatmul.bf16.gmra.mxu0 %v10818
      %v11927 = vpop.f32.mrf.mxu0
      %v11928 = vadd.f32 %v11839, %v11927
      %v11929 = vpop.f32.mrf.mxu0
      %v11930 = vadd.f32 %v11841, %v11929
      %11931 = vdwg.mxu0
      %11932 = vmatpush.bf16.msra.mxu0 %v11309
      %11933 = vmatpush.bf16.msra.mxu0 %v11308
      %11934 = vmatpush.bf16.msra.mxu0 %v11307
      %11935 = vmatpush.bf16.msra.mxu0 %v11306
      %11936 = vmatpush.bf16.msra.mxu0 %v11305
      %11937 = vmatpush.bf16.msra.mxu0 %v11304
      %11938 = vmatpush.bf16.msra.mxu0 %v11303
      %11939 = vmatpush.bf16.msra.mxu0 %v11302
      %11940 = vmatmul.bf16.gmra.mxu0 %v10684
      %v11941 = vpop.f32.mrf.mxu0
      %v11942 = vadd.f32 %v11853, %v11941
      %v11943 = vpop.f32.mrf.mxu0
      %v11944 = vadd.f32 %v11855, %v11943
      %11945 = vmatmul.bf16.gmra.mxu0 %v10693
      %v11946 = vpop.f32.mrf.mxu0
      %v11947 = vadd.f32 %v11858, %v11946
      %v11948 = vpop.f32.mrf.mxu0
      %v11949 = vadd.f32 %v11860, %v11948
      %11950 = vmatmul.bf16.gmra.mxu0 %v10702
      %v11951 = vpop.f32.mrf.mxu0
      %v11952 = vadd.f32 %v11863, %v11951
      %v11953 = vpop.f32.mrf.mxu0
      %v11954 = vadd.f32 %v11865, %v11953
      %11955 = vmatmul.bf16.gmra.mxu0 %v10711
      %v11956 = vpop.f32.mrf.mxu0
      %v11957 = vadd.f32 %v11868, %v11956
      %v11958 = vpop.f32.mrf.mxu0
      %v11959 = vadd.f32 %v11870, %v11958
      %11960 = vmatmul.bf16.gmra.mxu0 %v10720
      %v11961 = vpop.f32.mrf.mxu0
      %v11962 = vadd.f32 %v11873, %v11961
      %v11963 = vpop.f32.mrf.mxu0
      %v11964 = vadd.f32 %v11875, %v11963
      %11965 = vmatmul.bf16.gmra.mxu0 %v10729
      %v11966 = vpop.f32.mrf.mxu0
      %v11967 = vadd.f32 %v11878, %v11966
      %v11968 = vpop.f32.mrf.mxu0
      %v11969 = vadd.f32 %v11880, %v11968
      %11970 = vmatmul.bf16.gmra.mxu0 %v10738
      %v11971 = vpop.f32.mrf.mxu0
      %v11972 = vadd.f32 %v11883, %v11971
      %v11973 = vpop.f32.mrf.mxu0
      %v11974 = vadd.f32 %v11885, %v11973
      %11975 = vmatmul.bf16.gmra.mxu0 %v10747
      %v11976 = vpop.f32.mrf.mxu0
      %v11977 = vadd.f32 %v11888, %v11976
      %v11978 = vpop.f32.mrf.mxu0
      %v11979 = vadd.f32 %v11890, %v11978
      %11980 = vmatmul.bf16.gmra.mxu0 %v10756
      %v11981 = vpop.f32.mrf.mxu0
      %v11982 = vadd.f32 %v11893, %v11981
      %v11983 = vpop.f32.mrf.mxu0
      %v11984 = vadd.f32 %v11895, %v11983
      %11985 = vmatmul.bf16.gmra.mxu0 %v10765
      %v11986 = vpop.f32.mrf.mxu0
      %v11987 = vadd.f32 %v11898, %v11986
      %v11988 = vpop.f32.mrf.mxu0
      %v11989 = vadd.f32 %v11900, %v11988
      %11990 = vmatmul.bf16.gmra.mxu0 %v10774
      %v11991 = vpop.f32.mrf.mxu0
      %v11992 = vadd.f32 %v11903, %v11991
      %v11993 = vpop.f32.mrf.mxu0
      %v11994 = vadd.f32 %v11905, %v11993
      %11995 = vmatmul.bf16.gmra.mxu0 %v10783
      %v11996 = vpop.f32.mrf.mxu0
      %v11997 = vadd.f32 %v11908, %v11996
      %v11998 = vpop.f32.mrf.mxu0
      %v11999 = vadd.f32 %v11910, %v11998
      %12000 = vmatmul.bf16.gmra.mxu0 %v10792
      %v12001 = vpop.f32.mrf.mxu0
      %v12002 = vadd.f32 %v11913, %v12001
      %v12003 = vpop.f32.mrf.mxu0
      %v12004 = vadd.f32 %v11915, %v12003
      %12005 = vmatmul.bf16.gmra.mxu0 %v10801
      %v12006 = vpop.f32.mrf.mxu0
      %v12007 = vadd.f32 %v11918, %v12006
      %v12008 = vpop.f32.mrf.mxu0
      %v12009 = vadd.f32 %v11920, %v12008
      %12010 = vmatmul.bf16.gmra.mxu0 %v10810
      %v12011 = vpop.f32.mrf.mxu0
      %v12012 = vadd.f32 %v11923, %v12011
      %v12013 = vpop.f32.mrf.mxu0
      %v12014 = vadd.f32 %v11925, %v12013
      %12015 = vmatmul.bf16.gmra.mxu0 %v10819
      %v12016 = vpop.f32.mrf.mxu0
      %v12017 = vadd.f32 %v11928, %v12016
      %v12018 = vpop.f32.mrf.mxu0
      %v12019 = vadd.f32 %v11930, %v12018
      %12020 = vdwg.mxu0
      %12021 = vmatpush.bf16.msra.mxu0 %v11317
      %12022 = vmatpush.bf16.msra.mxu0 %v11316
      %12023 = vmatpush.bf16.msra.mxu0 %v11315
      %12024 = vmatpush.bf16.msra.mxu0 %v11314
      %12025 = vmatpush.bf16.msra.mxu0 %v11313
      %12026 = vmatpush.bf16.msra.mxu0 %v11312
      %12027 = vmatpush.bf16.msra.mxu0 %v11311
      %12028 = vmatpush.bf16.msra.mxu0 %v11310
      %12029 = vmatmul.bf16.gmra.mxu0 %v10685
      %v12030 = vpop.f32.mrf.mxu0
      %v12031 = vadd.f32 %v11942, %v12030
      %v12032 = vpop.f32.mrf.mxu0
      %v12033 = vadd.f32 %v11944, %v12032
      %12034 = vmatmul.bf16.gmra.mxu0 %v10694
      %v12035 = vpop.f32.mrf.mxu0
      %v12036 = vadd.f32 %v11947, %v12035
      %v12037 = vpop.f32.mrf.mxu0
      %v12038 = vadd.f32 %v11949, %v12037
      %12039 = vmatmul.bf16.gmra.mxu0 %v10703
      %v12040 = vpop.f32.mrf.mxu0
      %v12041 = vadd.f32 %v11952, %v12040
      %v12042 = vpop.f32.mrf.mxu0
      %v12043 = vadd.f32 %v11954, %v12042
      %12044 = vmatmul.bf16.gmra.mxu0 %v10712
      %v12045 = vpop.f32.mrf.mxu0
      %v12046 = vadd.f32 %v11957, %v12045
      %v12047 = vpop.f32.mrf.mxu0
      %v12048 = vadd.f32 %v11959, %v12047
      %12049 = vmatmul.bf16.gmra.mxu0 %v10721
      %v12050 = vpop.f32.mrf.mxu0
      %v12051 = vadd.f32 %v11962, %v12050
      %v12052 = vpop.f32.mrf.mxu0
      %v12053 = vadd.f32 %v11964, %v12052
      %12054 = vmatmul.bf16.gmra.mxu0 %v10730
      %v12055 = vpop.f32.mrf.mxu0
      %v12056 = vadd.f32 %v11967, %v12055
      %v12057 = vpop.f32.mrf.mxu0
      %v12058 = vadd.f32 %v11969, %v12057
      %12059 = vmatmul.bf16.gmra.mxu0 %v10739
      %v12060 = vpop.f32.mrf.mxu0
      %v12061 = vadd.f32 %v11972, %v12060
      %v12062 = vpop.f32.mrf.mxu0
      %v12063 = vadd.f32 %v11974, %v12062
      %12064 = vmatmul.bf16.gmra.mxu0 %v10748
      %v12065 = vpop.f32.mrf.mxu0
      %v12066 = vadd.f32 %v11977, %v12065
      %v12067 = vpop.f32.mrf.mxu0
      %v12068 = vadd.f32 %v11979, %v12067
      %12069 = vmatmul.bf16.gmra.mxu0 %v10757
      %v12070 = vpop.f32.mrf.mxu0
      %v12071 = vadd.f32 %v11982, %v12070
      %v12072 = vpop.f32.mrf.mxu0
      %v12073 = vadd.f32 %v11984, %v12072
      %12074 = vmatmul.bf16.gmra.mxu0 %v10766
      %v12075 = vpop.f32.mrf.mxu0
      %v12076 = vadd.f32 %v11987, %v12075
      %v12077 = vpop.f32.mrf.mxu0
      %v12078 = vadd.f32 %v11989, %v12077
      %12079 = vmatmul.bf16.gmra.mxu0 %v10775
      %v12080 = vpop.f32.mrf.mxu0
      %v12081 = vadd.f32 %v11992, %v12080
      %v12082 = vpop.f32.mrf.mxu0
      %v12083 = vadd.f32 %v11994, %v12082
      %12084 = vmatmul.bf16.gmra.mxu0 %v10784
      %v12085 = vpop.f32.mrf.mxu0
      %v12086 = vadd.f32 %v11997, %v12085
      %v12087 = vpop.f32.mrf.mxu0
      %v12088 = vadd.f32 %v11999, %v12087
      %12089 = vmatmul.bf16.gmra.mxu0 %v10793
      %v12090 = vpop.f32.mrf.mxu0
      %v12091 = vadd.f32 %v12002, %v12090
      %v12092 = vpop.f32.mrf.mxu0
      %v12093 = vadd.f32 %v12004, %v12092
      %12094 = vmatmul.bf16.gmra.mxu0 %v10802
      %v12095 = vpop.f32.mrf.mxu0
      %v12096 = vadd.f32 %v12007, %v12095
      %v12097 = vpop.f32.mrf.mxu0
      %v12098 = vadd.f32 %v12009, %v12097
      %12099 = vmatmul.bf16.gmra.mxu0 %v10811
      %v12100 = vpop.f32.mrf.mxu0
      %v12101 = vadd.f32 %v12012, %v12100
      %v12102 = vpop.f32.mrf.mxu0
      %v12103 = vadd.f32 %v12014, %v12102
      %12104 = vmatmul.bf16.gmra.mxu0 %v10820
      %v12105 = vpop.f32.mrf.mxu0
      %v12106 = vadd.f32 %v12017, %v12105
      %v12107 = vpop.f32.mrf.mxu0
      %v12108 = vadd.f32 %v12019, %v12107
      %12109 = vdwg.mxu0
      %12110 = vmatpush.bf16.msra.mxu0 %v11325
      %12111 = vmatpush.bf16.msra.mxu0 %v11324
      %12112 = vmatpush.bf16.msra.mxu0 %v11323
      %12113 = vmatpush.bf16.msra.mxu0 %v11322
      %12114 = vmatpush.bf16.msra.mxu0 %v11321
      %12115 = vmatpush.bf16.msra.mxu0 %v11320
      %12116 = vmatpush.bf16.msra.mxu0 %v11319
      %12117 = vmatpush.bf16.msra.mxu0 %v11318
      %12118 = vmatmul.bf16.gmra.mxu0 %v10686
      %v12119 = vpop.f32.mrf.mxu0
      %v12120 = vadd.f32 %v12031, %v12119
      %v12121 = vpop.f32.mrf.mxu0
      %v12122 = vadd.f32 %v12033, %v12121
      %12123 = vmatmul.bf16.gmra.mxu0 %v10695
      %v12124 = vpop.f32.mrf.mxu0
      %v12125 = vadd.f32 %v12036, %v12124
      %v12126 = vpop.f32.mrf.mxu0
      %v12127 = vadd.f32 %v12038, %v12126
      %12128 = vmatmul.bf16.gmra.mxu0 %v10704
      %v12129 = vpop.f32.mrf.mxu0
      %v12130 = vadd.f32 %v12041, %v12129
      %v12131 = vpop.f32.mrf.mxu0
      %v12132 = vadd.f32 %v12043, %v12131
      %12133 = vmatmul.bf16.gmra.mxu0 %v10713
      %v12134 = vpop.f32.mrf.mxu0
      %v12135 = vadd.f32 %v12046, %v12134
      %v12136 = vpop.f32.mrf.mxu0
      %v12137 = vadd.f32 %v12048, %v12136
      %12138 = vmatmul.bf16.gmra.mxu0 %v10722
      %v12139 = vpop.f32.mrf.mxu0
      %v12140 = vadd.f32 %v12051, %v12139
      %v12141 = vpop.f32.mrf.mxu0
      %v12142 = vadd.f32 %v12053, %v12141
      %12143 = vmatmul.bf16.gmra.mxu0 %v10731
      %v12144 = vpop.f32.mrf.mxu0
      %v12145 = vadd.f32 %v12056, %v12144
      %v12146 = vpop.f32.mrf.mxu0
      %v12147 = vadd.f32 %v12058, %v12146
      %12148 = vmatmul.bf16.gmra.mxu0 %v10740
      %v12149 = vpop.f32.mrf.mxu0
      %v12150 = vadd.f32 %v12061, %v12149
      %v12151 = vpop.f32.mrf.mxu0
      %v12152 = vadd.f32 %v12063, %v12151
      %12153 = vmatmul.bf16.gmra.mxu0 %v10749
      %v12154 = vpop.f32.mrf.mxu0
      %v12155 = vadd.f32 %v12066, %v12154
      %v12156 = vpop.f32.mrf.mxu0
      %v12157 = vadd.f32 %v12068, %v12156
      %12158 = vmatmul.bf16.gmra.mxu0 %v10758
      %v12159 = vpop.f32.mrf.mxu0
      %v12160 = vadd.f32 %v12071, %v12159
      %v12161 = vpop.f32.mrf.mxu0
      %v12162 = vadd.f32 %v12073, %v12161
      %12163 = vmatmul.bf16.gmra.mxu0 %v10767
      %v12164 = vpop.f32.mrf.mxu0
      %v12165 = vadd.f32 %v12076, %v12164
      %v12166 = vpop.f32.mrf.mxu0
      %v12167 = vadd.f32 %v12078, %v12166
      %12168 = vmatmul.bf16.gmra.mxu0 %v10776
      %v12169 = vpop.f32.mrf.mxu0
      %v12170 = vadd.f32 %v12081, %v12169
      %v12171 = vpop.f32.mrf.mxu0
      %v12172 = vadd.f32 %v12083, %v12171
      %12173 = vmatmul.bf16.gmra.mxu0 %v10785
      %v12174 = vpop.f32.mrf.mxu0
      %v12175 = vadd.f32 %v12086, %v12174
      %v12176 = vpop.f32.mrf.mxu0
      %v12177 = vadd.f32 %v12088, %v12176
      %12178 = vmatmul.bf16.gmra.mxu0 %v10794
      %v12179 = vpop.f32.mrf.mxu0
      %v12180 = vadd.f32 %v12091, %v12179
      %v12181 = vpop.f32.mrf.mxu0
      %v12182 = vadd.f32 %v12093, %v12181
      %12183 = vmatmul.bf16.gmra.mxu0 %v10803
      %v12184 = vpop.f32.mrf.mxu0
      %v12185 = vadd.f32 %v12096, %v12184
      %v12186 = vpop.f32.mrf.mxu0
      %v12187 = vadd.f32 %v12098, %v12186
      %12188 = vmatmul.bf16.gmra.mxu0 %v10812
      %v12189 = vpop.f32.mrf.mxu0
      %v12190 = vadd.f32 %v12101, %v12189
      %v12191 = vpop.f32.mrf.mxu0
      %v12192 = vadd.f32 %v12103, %v12191
      %12193 = vmatmul.bf16.gmra.mxu0 %v10821
      %v12194 = vpop.f32.mrf.mxu0
      %v12195 = vadd.f32 %v12106, %v12194
      %v12196 = vpop.f32.mrf.mxu0
      %v12197 = vadd.f32 %v12108, %v12196
      %12198 = vdwg.mxu0
      %v12199 = vunpack.c.l.bf16 %v234
      %v12200 = vunpack.c.l.bf16 %v235
      %v12201 = vunpack.c.l.bf16 %v236
      %v12202 = vunpack.c.l.bf16 %v237
      %v12203 = vunpack.c.l.bf16 %v238
      %v12204 = vunpack.c.l.bf16 %v239
      %v12205 = vunpack.c.l.bf16 %v240
      %v12206 = vunpack.c.l.bf16 %v241
      %v12207 = vunpack.c.l.bf16 %v242
      %v12208 = vunpack.c.l.bf16 %v243
      %v12209 = vunpack.c.l.bf16 %v244
      %v12210 = vunpack.c.l.bf16 %v245
      %v12211 = vunpack.c.l.bf16 %v246
      %v12212 = vunpack.c.l.bf16 %v247
      %v12213 = vunpack.c.l.bf16 %v248
      %v12214 = vunpack.c.l.bf16 %v249
      %v12215 = vunpack.c.l.bf16 %v250
      %v12216 = vunpack.c.l.bf16 %v251
      %v12217 = vunpack.c.l.bf16 %v252
      %v12218 = vunpack.c.l.bf16 %v253
      %v12219 = vunpack.c.l.bf16 %v254
      %v12220 = vunpack.c.l.bf16 %v255
      %v12221 = vunpack.c.l.bf16 %v256
      %v12222 = vunpack.c.l.bf16 %v257
      %v12223 = vunpack.c.l.bf16 %v258
      %v12224 = vunpack.c.l.bf16 %v259
      %v12225 = vunpack.c.l.bf16 %v260
      %v12226 = vunpack.c.l.bf16 %v261
      %v12227 = vunpack.c.l.bf16 %v262
      %v12228 = vunpack.c.l.bf16 %v263
      %v12229 = vunpack.c.l.bf16 %v264
      %v12230 = vunpack.c.l.bf16 %v265
      %v12231 = vadd.f32 %v12120, %v12199
      %v12232 = vadd.f32 %v12122, %v12200
      %v12233 = vadd.f32 %v12125, %v12201
      %v12234 = vadd.f32 %v12127, %v12202
      %v12235 = vadd.f32 %v12130, %v12203
      %v12236 = vadd.f32 %v12132, %v12204
      %v12237 = vadd.f32 %v12135, %v12205
      %v12238 = vadd.f32 %v12137, %v12206
      %v12239 = vadd.f32 %v12140, %v12207
      %v12240 = vadd.f32 %v12142, %v12208
      %v12241 = vadd.f32 %v12145, %v12209
      %v12242 = vadd.f32 %v12147, %v12210
      %v12243 = vadd.f32 %v12150, %v12211
      %v12244 = vadd.f32 %v12152, %v12212
      %v12245 = vadd.f32 %v12155, %v12213
      %v12246 = vadd.f32 %v12157, %v12214
      %v12247 = vadd.f32 %v12160, %v12215
      %v12248 = vadd.f32 %v12162, %v12216
      %v12249 = vadd.f32 %v12165, %v12217
      %v12250 = vadd.f32 %v12167, %v12218
      %v12251 = vadd.f32 %v12170, %v12219
      %v12252 = vadd.f32 %v12172, %v12220
      %v12253 = vadd.f32 %v12175, %v12221
      %v12254 = vadd.f32 %v12177, %v12222
      %v12255 = vadd.f32 %v12180, %v12223
      %v12256 = vadd.f32 %v12182, %v12224
      %v12257 = vadd.f32 %v12185, %v12225
      %v12258 = vadd.f32 %v12187, %v12226
      %v12259 = vadd.f32 %v12190, %v12227
      %v12260 = vadd.f32 %v12192, %v12228
      %v12261 = vadd.f32 %v12195, %v12229
      %v12262 = vadd.f32 %v12197, %v12230
      %v12263 = vmax.f32 %v12231, 0.0
      %v12264 = vmax.f32 %v12232, 0.0
      %v12265 = vmax.f32 %v12233, 0.0
      %v12266 = vmax.f32 %v12234, 0.0
      %v12267 = vmax.f32 %v12235, 0.0
      %v12268 = vmax.f32 %v12236, 0.0
      %v12269 = vmax.f32 %v12237, 0.0
      %v12270 = vmax.f32 %v12238, 0.0
      %v12271 = vmax.f32 %v12239, 0.0
      %v12272 = vmax.f32 %v12240, 0.0
      %v12273 = vmax.f32 %v12241, 0.0
      %v12274 = vmax.f32 %v12242, 0.0
      %v12275 = vmax.f32 %v12243, 0.0
      %v12276 = vmax.f32 %v12244, 0.0
      %v12277 = vmax.f32 %v12245, 0.0
      %v12278 = vmax.f32 %v12246, 0.0
      %v12279 = vmax.f32 %v12247, 0.0
      %v12280 = vmax.f32 %v12248, 0.0
      %v12281 = vmax.f32 %v12249, 0.0
      %v12282 = vmax.f32 %v12250, 0.0
      %v12283 = vmax.f32 %v12251, 0.0
      %v12284 = vmax.f32 %v12252, 0.0
      %v12285 = vmax.f32 %v12253, 0.0
      %v12286 = vmax.f32 %v12254, 0.0
      %v12287 = vmax.f32 %v12255, 0.0
      %v12288 = vmax.f32 %v12256, 0.0
      %v12289 = vmax.f32 %v12257, 0.0
      %v12290 = vmax.f32 %v12258, 0.0
      %v12291 = vmax.f32 %v12259, 0.0
      %v12292 = vmax.f32 %v12260, 0.0
      %v12293 = vmax.f32 %v12261, 0.0
      %v12294 = vmax.f32 %v12262, 0.0
      %v12295 = vpack.c.bf16 %v12263, %v12263
      %v12296 = vpack.c.bf16 %v12264, %v12264
      %v12297 = vpack.c.bf16 %v12265, %v12265
      %v12298 = vpack.c.bf16 %v12266, %v12266
      %v12299 = vpack.c.bf16 %v12267, %v12267
      %v12300 = vpack.c.bf16 %v12268, %v12268
      %v12301 = vpack.c.bf16 %v12269, %v12269
      %v12302 = vpack.c.bf16 %v12270, %v12270
      %v12303 = vpack.c.bf16 %v12271, %v12271
      %v12304 = vpack.c.bf16 %v12272, %v12272
      %v12305 = vpack.c.bf16 %v12273, %v12273
      %v12306 = vpack.c.bf16 %v12274, %v12274
      %v12307 = vpack.c.bf16 %v12275, %v12275
      %v12308 = vpack.c.bf16 %v12276, %v12276
      %v12309 = vpack.c.bf16 %v12277, %v12277
      %v12310 = vpack.c.bf16 %v12278, %v12278
      %v12311 = vpack.c.bf16 %v12279, %v12279
      %v12312 = vpack.c.bf16 %v12280, %v12280
      %v12313 = vpack.c.bf16 %v12281, %v12281
      %v12314 = vpack.c.bf16 %v12282, %v12282
      %v12315 = vpack.c.bf16 %v12283, %v12283
      %v12316 = vpack.c.bf16 %v12284, %v12284
      %v12317 = vpack.c.bf16 %v12285, %v12285
      %v12318 = vpack.c.bf16 %v12286, %v12286
      %v12319 = vpack.c.bf16 %v12287, %v12287
      %v12320 = vpack.c.bf16 %v12288, %v12288
      %v12321 = vpack.c.bf16 %v12289, %v12289
      %v12322 = vpack.c.bf16 %v12290, %v12290
      %v12323 = vpack.c.bf16 %v12291, %v12291
      %v12324 = vpack.c.bf16 %v12292, %v12292
      %v12325 = vpack.c.bf16 %v12293, %v12293
      %v12326 = vpack.c.bf16 %v12294, %v12294
      %12327 = vst [vmem:[%s231] sm:$0xf] %v12295
      %12328 = vst [vmem:[%s231 + $0x4] sm:$0xf] %v12296
      %12329 = vst [vmem:[%s231 + $0x8] sm:$0xf] %v12297
      %12330 = vst [vmem:[%s231 + $0xc] sm:$0xf] %v12298
      %12331 = vst [vmem:[%s231 + $0x10] sm:$0xf] %v12299
      %12332 = vst [vmem:[%s231 + $0x14] sm:$0xf] %v12300
      %12333 = vst [vmem:[%s231 + $0x18] sm:$0xf] %v12301
      %12334 = vst [vmem:[%s231 + $0x1c] sm:$0xf] %v12302
      %12335 = vst [vmem:[%s231 + $0x20] sm:$0xf] %v12303
      %12336 = vst [vmem:[%s231 + $0x24] sm:$0xf] %v12304
      %12337 = vst [vmem:[%s231 + $0x28] sm:$0xf] %v12305
      %12338 = vst [vmem:[%s231 + $0x2c] sm:$0xf] %v12306
      %12339 = vst [vmem:[%s231 + $0x30] sm:$0xf] %v12307
      %12340 = vst [vmem:[%s231 + $0x34] sm:$0xf] %v12308
      %12341 = vst [vmem:[%s231 + $0x38] sm:$0xf] %v12309
      %12342 = vst [vmem:[%s231 + $0x3c] sm:$0xf] %v12310
      %12343 = vst [vmem:[%s231 + $0x40] sm:$0xf] %v12311
      %12344 = vst [vmem:[%s231 + $0x44] sm:$0xf] %v12312
      %12345 = vst [vmem:[%s231 + $0x48] sm:$0xf] %v12313
      %12346 = vst [vmem:[%s231 + $0x4c] sm:$0xf] %v12314
      %12347 = vst [vmem:[%s231 + $0x50] sm:$0xf] %v12315
      %12348 = vst [vmem:[%s231 + $0x54] sm:$0xf] %v12316
      %12349 = vst [vmem:[%s231 + $0x58] sm:$0xf] %v12317
      %12350 = vst [vmem:[%s231 + $0x5c] sm:$0xf] %v12318
      %12351 = vst [vmem:[%s231 + $0x60] sm:$0xf] %v12319
      %12352 = vst [vmem:[%s231 + $0x64] sm:$0xf] %v12320
      %12353 = vst [vmem:[%s231 + $0x68] sm:$0xf] %v12321
      %12354 = vst [vmem:[%s231 + $0x6c] sm:$0xf] %v12322
      %12355 = vst [vmem:[%s231 + $0x70] sm:$0xf] %v12323
      %12356 = vst [vmem:[%s231 + $0x74] sm:$0xf] %v12324
      %12357 = vst [vmem:[%s231 + $0x78] sm:$0xf] %v12325
      %12358 = vst [vmem:[%s231 + $0x7c] sm:$0xf] %v12326
      %s12359 = smul.u32 4, %s16
      %p12360 = scmp.lt.s32.totalorder %s12359, 15
      %s12361 = scalar_select %p12360, %s12359, 15
      %s12362 = smul.addr %s12361, 8
      %s12363 = smul.addr %s12362, 4
      %s12364 = scalar_lea.vmem %s5, %s12363
      // Predicated region
      $region41: #{residual_block_nchw.1} parent=39 // pred_check
        %p12365 = pneg %p144
      $region42: #{residual_block_nchw.1} parent=39 // pred_check_branch
        %12367 = sbr.rel (%p12365) target = $region44
      $region43: #{residual_block_nchw.1} parent=39 // pred_region
        %s12368 = smul.u32 4, %s16
      $region44: #{residual_block_nchw.1} parent=39 // pred_fallthru
        _
    $region40: #{residual_block_nchw.1} parent=5 // pred_fallthru
      _
    %p12369 = scmp.le.s32.totalorder 2, %s11
    // Predicated region
    $region45: #{residual_block_nchw.1} parent=5 // pred_check
      %p12370 = pneg %p12369
    $region46: #{residual_block_nchw.1} parent=5 // pred_check_branch
      %12372 = sbr.rel (%p12370) target = $region48
    $region47: #{residual_block_nchw.1} parent=5 // pred_region
      %s12373 = ssub.s32 %s11, 2
      // Predicated region
      $region49: #{residual_block_nchw.1} parent=47 // pred_check
        %p12374 = pneg %p150
      $region50: #{residual_block_nchw.1} parent=47 // pred_check_branch
        %12376 = sbr.rel (%p12374) target = $region52
      $region51: #{residual_block_nchw.1} parent=47 // pred_region
        %s12377 = smul.u32 4, %s17
        %p12378 = scmp.lt.s32.totalorder %s12377, 15
        %s12379 = scalar_select %p12378, %s12377, 15
        %s12380 = smul.addr %s12379, 8
        %s12381 = smul.addr %s12380, 4
        %s12382 = scalar_lea.vmem %s5, %s12381
      $region52: #{residual_block_nchw.1} parent=47 // pred_fallthru
        _
    $region48: #{residual_block_nchw.1} parent=5 // pred_fallthru
      _
  $region6: #{residual_block_nchw.1} parent=0 // loop_footer
    %s15 = sadd.s32 1, %s11
  $region7: #{residual_block_nchw.1} parent=0 // loop_footer_branch
    %10 = sbr.rel target = $region3
  $region8: #{residual_block_nchw.1} parent=0 // loop_exit
    _

</llo_original>
